<compile_context>
chip_gen: v7x
topology: tpu7x:2x2x1
jax: 0.10.0
libtpu: 0.0.40
codegen_flags: <defaults>
</compile_context>

<pallas_src>
import functools

import jax
import jax.numpy as jnp
from jax.experimental import pallas as pl
from jax.experimental.pallas import tpu as pltpu


def _zpad_geometry(H, W):
    """Geometry of the flattened, row-padded activation buffer.

    Rows [0, img0)          : zeros (>= W+1 halo rows above the image)
    Rows [img0, img0+H*W)   : image, flattened (H*W, C)
    Rows [img0+H*W, P)      : zeros (>= W+1 halo rows below the image)
    img0 is rounded to a multiple of 16 so the big bf16 image writes are
    sublane-pack aligned.
    """
    HW = H * W
    img0 = ((W + 1 + 15) // 16) * 16
    P = ((img0 + HW + W + 1 + 15) // 16) * 16
    return HW, img0, P


def _residual_ca_kernel(x_ref, w1_ref, b1_ref, w2_ref, b2_ref,
                        wd1_ref, bd1_ref, wd2_ref, bd2_ref,
                        o_ref, zpad_ref, *, H, W, C):
    """One batch element per grid step, activations flattened to (H*W, C).

    x_ref   : (1, H*W, C)  f32   input (NHWC flattened over H,W)
    w1/w2   : (9, C, C)    bf16  conv weights, tap-major (dy, dx)
    b1/b2   : (1, C)       f32
    wd1     : (C, C//r) f32,  bd1: (1, C//r) f32   CA squeeze
    wd2     : (C//r, C) f32,  bd2: (1, C) f32      CA excite
    o_ref   : (1, H*W, C)  f32
    zpad_ref: VMEM (P, C)  bf16  flattened, row-padded conv input (reused by both convs)
    """
    HW, IMG0, P = _zpad_geometry(H, W)

    # ---- zero only the halo regions; the image rows are fully overwritten below.
    #      Done every step so the kernel is megacore-safe. ----
    zpad_ref[0:IMG0, :] = jnp.zeros((IMG0, C), jnp.bfloat16)
    zpad_ref[IMG0 + HW:P, :] = jnp.zeros((P - IMG0 - HW, C), jnp.bfloat16)

    # Border-column masks for the dx = -1 / +1 taps.  Computed once per step and
    # reused by both convs (hoisted so the broadcast isn't re-emitted per tap).
    w_idx = jax.lax.broadcasted_iota(jnp.int32, (HW, C), 0) % W
    not_left = w_idx != 0              # rows that may use a dx = -1 neighbor
    not_right = w_idx != (W - 1)       # rows that may use a dx = +1 neighbor

    def conv3x3(w_ref, b_ref):
        # 9 shifted-slice bf16 matmuls accumulated in f32.  Slice start
        # IMG0 + (dy-1)*W + (dx-1) realizes the spatial shift on the flattened,
        # row-padded buffer; wrap-around at the left/right image border is zeroed
        # with the precomputed column masks (top/bottom fall into halo zeros).
        acc = None
        for dy in range(3):
            for dx in range(3):
                t = dy * 3 + dx
                start = IMG0 + (dy - 1) * W + (dx - 1)
                tap = zpad_ref[start:start + HW, :]          # (HW, C) bf16
                if dx == 0:
                    tap = jnp.where(not_left, tap, 0)
                elif dx == 2:
                    tap = jnp.where(not_right, tap, 0)
                part = jnp.dot(tap, w_ref[t],
                               preferred_element_type=jnp.float32)
                acc = part if acc is None else acc + part
        return acc + b_ref[0]                                 # (HW, C) f32

    x = x_ref[0]                                              # (HW, C) f32

    # ---- conv1 (3x3, pad=1); cast-once bf16 input, ReLU+cast fused into write-back ----
    zpad_ref[IMG0:IMG0 + HW, :] = x.astype(jnp.bfloat16)
    out1 = conv3x3(w1_ref, b1_ref)
    zpad_ref[IMG0:IMG0 + HW, :] = jnp.maximum(out1, 0.0).astype(jnp.bfloat16)

    # ---- conv2 (3x3, pad=1) ----
    out2 = conv3x3(w2_ref, b2_ref)                            # (HW, C) f32

    # ---- channel attention: GAP -> 1x1 -> ReLU -> 1x1 -> sigmoid ----
    y = jnp.mean(out2, axis=0, keepdims=True)                 # (1, C)
    y = jnp.maximum(
        jnp.dot(y, wd1_ref[...], preferred_element_type=jnp.float32) + bd1_ref[0],
        0.0)                                                  # (1, C//r)
    y = jax.nn.sigmoid(
        jnp.dot(y, wd2_ref[...], preferred_element_type=jnp.float32) + bd2_ref[0])
    # (1, C) per-channel gate

    # ---- residual add (f32 identity, f32 gated branch) ----
    o_ref[0] = x + out2 * y


def residual_block_noBN_CA_nhwc(x_nhwc, params):
    """NHWC-native forward (no layout transposes, no host-side padding).

    x_nhwc: (B, H, W, C) float32.  Returns (B, H, W, C) float32.
    """
    w1, b1, w2, b2, wd1, bd1, wd2, bd2 = params
    B, H, W, C = x_nhwc.shape
    Cr = wd1.shape[1]
    HW, _, P = _zpad_geometry(H, W)

    # Conv weights tap-major: (3,3,Cin,Cout) -> (9, Cin, Cout), bf16 for the MXU.
    w1f = w1.reshape(9, C, C).astype(jnp.bfloat16)
    w2f = w2.reshape(9, C, C).astype(jnp.bfloat16)

    # Free row-major reshape: activations flow as (B, H*W, C).
    x_flat = x_nhwc.astype(jnp.float32).reshape(B, HW, C)

    kern = functools.partial(_residual_ca_kernel, H=H, W=W, C=C)

    flops = B * (4 * 9 * HW * C * C + 4 * C * Cr)
    bytes_accessed = (2 * B * HW * C * 4            # activations in + out
                      + 2 * 9 * C * C * 2           # bf16 conv weights
                      + (2 * C + 2 * Cr + 2 * C * Cr) * 4)
    cost = pl.CostEstimate(flops=flops, transcendentals=B * C,
                           bytes_accessed=bytes_accessed)

    # Real per-step footprint: double-buffered f32 in/out blocks + bf16 zpad +
    # bf16 conv weights + f32 temporaries (out1/out2/accs/masks) + headroom.
    vmem_need = (4 * HW * C * 4                      # in + out blocks, double buffered
                 + P * C * 2                         # zpad (bf16)
                 + 2 * (2 * 9 * C * C * 2)           # conv weights (bf16)
                 + 8 * HW * C * 4)                   # f32 temporaries + headroom
    vmem_limit = int(min(max(vmem_need, 32 * 1024 * 1024), 96 * 1024 * 1024))

    out = pl.pallas_call(
        kern,
        out_shape=jax.ShapeDtypeStruct((B, HW, C), jnp.float32),
        grid_spec=pltpu.PrefetchScalarGridSpec(
            num_scalar_prefetch=0,
            grid=(B,),
            in_specs=[
                pl.BlockSpec((1, HW, C), lambda b: (b, 0, 0)),   # x (flattened NHWC)
                pl.BlockSpec((9, C, C), lambda b: (0, 0, 0)),    # conv1 W (bf16)
                pl.BlockSpec((1, C), lambda b: (0, 0)),          # conv1 b
                pl.BlockSpec((9, C, C), lambda b: (0, 0, 0)),    # conv2 W (bf16)
                pl.BlockSpec((1, C), lambda b: (0, 0)),          # conv2 b
                pl.BlockSpec((C, Cr), lambda b: (0, 0)),         # CA squeeze W
                pl.BlockSpec((1, Cr), lambda b: (0, 0)),         # CA squeeze b
                pl.BlockSpec((Cr, C), lambda b: (0, 0)),         # CA excite W
                pl.BlockSpec((1, C), lambda b: (0, 0)),          # CA excite b
            ],
            out_specs=pl.BlockSpec((1, HW, C), lambda b: (b, 0, 0)),
            scratch_shapes=[
                pltpu.VMEM((P, C), jnp.bfloat16),    # flattened, row-padded conv input
            ],
        ),
        compiler_params=pltpu.CompilerParams(
            dimension_semantics=("parallel",),
            vmem_limit_bytes=vmem_limit),
        cost_estimate=cost,
    )(x_flat, w1f, b1, w2f, b2, wd1, bd1, wd2, bd2)
    return out.reshape(B, H, W, C)


def residual_block_noBN_CA_nchw(x_nchw, params):
    """Thin NCHW compatibility shim matching the PyTorch module interface.
    In a real model, keep activations NHWC across stacked blocks instead."""
    x_nhwc = jnp.transpose(x_nchw, (0, 2, 3, 1))
    out = residual_block_noBN_CA_nhwc(x_nhwc, params)
    return jnp.transpose(out, (0, 3, 1, 2))


def _reference_nhwc(x, params):
    """Pure-JAX (f32) reference for correctness checking, NHWC."""
    w1, b1, w2, b2, wd1, bd1, wd2, bd2 = params

    def conv3x3(z, w_hwio, b):
        y = jax.lax.conv_general_dilated(
            z, w_hwio, window_strides=(1, 1), padding="SAME",
            dimension_numbers=("NHWC", "HWIO", "NHWC"))
        return y + b.reshape(1, 1, 1, -1)

    out = jax.nn.relu(conv3x3(x, w1, b1))
    out = conv3x3(out, w2, b2)
    y = jnp.mean(out, axis=(1, 2))                 # (B, C) global avg pool
    y = jax.nn.relu(y @ wd1 + bd1)
    y = jax.nn.sigmoid(y @ wd2 + bd2)
    return x + out * y[:, None, None, :]


def _make_params(key, nf=64, reduction=16):
    """Deterministic synthetic init mirroring the module's shapes
    (kaiming fan_in * 0.1 for convs, tiny biases)."""
    cr = nf // reduction
    ks = jax.random.split(key, 8)
    std_conv = (2.0 / (nf * 9)) ** 0.5 * 0.1       # kaiming fan_in, scale=0.1
    std_du1 = (2.0 / nf) ** 0.5                    # 1x1 conv, fan_in = nf
    std_du2 = (2.0 / cr) ** 0.5
    w1 = jax.random.normal(ks[0], (3, 3, nf, nf), jnp.float32) * std_conv
    b1 = jax.random.normal(ks[1], (1, nf), jnp.float32) * 0.01 + 1e-4
    w2 = jax.random.normal(ks[2], (3, 3, nf, nf), jnp.float32) * std_conv
    b2 = jax.random.normal(ks[3], (1, nf), jnp.float32) * 0.01 + 1e-4
    wd1 = jax.random.normal(ks[4], (nf, cr), jnp.float32) * std_du1
    bd1 = jax.random.normal(ks[5], (1, cr), jnp.float32) * 0.01
    wd2 = jax.random.normal(ks[6], (cr, nf), jnp.float32) * std_du2
    bd2 = jax.random.normal(ks[7], (1, nf), jnp.float32) * 0.01
    return (w1, b1, w2, b2, wd1, bd1, wd2, bd2)


if __name__ == "__main__":
    B, NF, H, W = 2, 64, 16, 16                    # nf=64 so nf//16 = 4
    key = jax.random.PRNGKey(0)
    kx, kp = jax.random.split(key)
    x_nhwc = jax.random.normal(kx, (B, H, W, NF), jnp.float32)   # NHWC, end-to-end
    params = _make_params(kp, nf=NF, reduction=16)

    out = residual_block_noBN_CA_nhwc(x_nhwc, params)
    out = jax.block_until_ready(out)

    ref = _reference_nhwc(x_nhwc, params)
    assert out.shape == ref.shape == (B, H, W, NF)
    # bf16 MXU operands (f32 accumulation, per-tap) -> slightly looser tolerance than f32.
    assert jnp.allclose(out, ref, atol=5e-3, rtol=5e-3), (
        float(jnp.max(jnp.abs(out - ref))))

    # NCHW compatibility path (matches the PyTorch module's layout).
    x_nchw = jnp.transpose(x_nhwc, (0, 3, 1, 2))
    out_nchw = jax.block_until_ready(residual_block_noBN_CA_nchw(x_nchw, params))
    assert jnp.allclose(out_nchw, jnp.transpose(ref, (0, 3, 1, 2)),
                        atol=5e-3, rtol=5e-3)

    print("KERNEL_OK")
</pallas_src>

<mosaic_0001>
module attributes {stable_mosaic.version = 11 : i64} {
  func.func @_residual_ca_kernel(%arg0: i32, %arg1: memref<1x256x64xf32, #tpu.memory_space<vmem>>, %arg2: memref<9x64x64xbf16, #tpu.memory_space<vmem>>, %arg3: memref<1x64xf32, #tpu.memory_space<vmem>>, %arg4: memref<9x64x64xbf16, #tpu.memory_space<vmem>>, %arg5: memref<1x64xf32, #tpu.memory_space<vmem>>, %arg6: memref<64x4xf32, #tpu.memory_space<vmem>>, %arg7: memref<1x4xf32, #tpu.memory_space<vmem>>, %arg8: memref<4x64xf32, #tpu.memory_space<vmem>>, %arg9: memref<1x64xf32, #tpu.memory_space<vmem>>, %arg10: memref<1x256x64xf32, #tpu.memory_space<vmem>>, %arg11: memref<320x64xbf16, #tpu.memory_space<vmem>>) attributes {dimension_semantics = [#tpu.dimension_semantics<parallel>], iteration_bounds = array<i64: 2>, scalar_prefetch = 0 : i64, scratch_operands = 1 : i64, tpu.core_type = #tpu.core_type<tc>, window_params = [{transform_indices = @transform_0, window_bounds = array<i64: 1, 256, 64>}, {pipeline_mode = #tpu.pipeline_mode<synchronous>, transform_indices = @transform_1, window_bounds = array<i64: 9, 64, 64>}, {pipeline_mode = #tpu.pipeline_mode<synchronous>, transform_indices = @transform_2, window_bounds = array<i64: 1, 64>}, {pipeline_mode = #tpu.pipeline_mode<synchronous>, transform_indices = @transform_3, window_bounds = array<i64: 9, 64, 64>}, {pipeline_mode = #tpu.pipeline_mode<synchronous>, transform_indices = @transform_4, window_bounds = array<i64: 1, 64>}, {pipeline_mode = #tpu.pipeline_mode<synchronous>, transform_indices = @transform_5, window_bounds = array<i64: 64, 4>}, {pipeline_mode = #tpu.pipeline_mode<synchronous>, transform_indices = @transform_6, window_bounds = array<i64: 1, 4>}, {pipeline_mode = #tpu.pipeline_mode<synchronous>, transform_indices = @transform_7, window_bounds = array<i64: 4, 64>}, {pipeline_mode = #tpu.pipeline_mode<synchronous>, transform_indices = @transform_8, window_bounds = array<i64: 1, 64>}, {transform_indices = @transform_9, window_bounds = array<i64: 1, 256, 64>}]} {
    %cst = arith.constant 0.000000e+00 : bf16
    %0 = vector.broadcast %cst : bf16 to vector<32x64xbf16>
    %c0 = arith.constant 0 : index
    %c0_0 = arith.constant 0 : index
    %1 = vector.load %arg11[%c0, %c0_0] : memref<320x64xbf16, #tpu.memory_space<vmem>>, vector<32x64xbf16>
    tpu.vector_store %arg11[%c0, %c0_0], %0 {strides = array<i32>} : memref<320x64xbf16, #tpu.memory_space<vmem>>, vector<32x64xbf16>,
    %cst_1 = arith.constant 0.000000e+00 : bf16
    %2 = vector.broadcast %cst_1 : bf16 to vector<32x64xbf16>
    %c288 = arith.constant 288 : index
    %c0_2 = arith.constant 0 : index
    %3 = vector.load %arg11[%c288, %c0_2] : memref<320x64xbf16, #tpu.memory_space<vmem>>, vector<32x64xbf16>
    tpu.vector_store %arg11[%c288, %c0_2], %2 {strides = array<i32>} : memref<320x64xbf16, #tpu.memory_space<vmem>>, vector<32x64xbf16>,
    %4 = tpu.iota {dimensions = array<i32: 0>} : vector<256x64xi32>
    %c16_i32 = arith.constant 16 : i32
    %c0_i32 = arith.constant 0 : i32
    %5 = arith.cmpi eq, %c16_i32, %c0_i32 : i32
    %c1_i32 = arith.constant 1 : i32
    %6 = arith.select %5, %c1_i32, %c16_i32 : i32
    %7 = vector.broadcast %6 : i32 to vector<256x64xi32>
    %8 = arith.remsi %4, %7 : vector<256x64xi32>
    %c0_i32_3 = arith.constant 0 : i32
    %9 = vector.broadcast %c0_i32_3 : i32 to vector<256x64xi32>
    %10 = arith.cmpi ne, %8, %9 : vector<256x64xi32>
    %c0_i32_4 = arith.constant 0 : i32
    %11 = vector.broadcast %c0_i32_4 : i32 to vector<256x64xi32>
    %12 = arith.cmpi slt, %8, %11 : vector<256x64xi32>
    %c0_i32_5 = arith.constant 0 : i32
    %13 = arith.cmpi slt, %6, %c0_i32_5 : i32
    %14 = vector.broadcast %13 : i1 to vector<256x64xi1>
    %15 = vector.broadcast %14 : vector<256x64xi1> to vector<256x64xi1>
    %16 = arith.xori %12, %15 : vector<256x64xi1>
    %17 = arith.andi %16, %10 : vector<256x64xi1>
    %18 = vector.broadcast %6 : i32 to vector<256x64xi32>
    %19 = arith.addi %8, %18 : vector<256x64xi32>
    %20 = arith.select %17, %19, %8 : vector<256x64xi1>, vector<256x64xi32>
    %c0_i32_6 = arith.constant 0 : i32
    %21 = vector.broadcast %c0_i32_6 : i32 to vector<256x64xi32>
    %22 = arith.cmpi ne, %20, %21 : vector<256x64xi32>
    %c15_i32 = arith.constant 15 : i32
    %23 = vector.broadcast %c15_i32 : i32 to vector<256x64xi32>
    %24 = arith.cmpi ne, %20, %23 : vector<256x64xi32>
    %c0_7 = arith.constant 0 : index
    %c0_8 = arith.constant 0 : index
    %c0_9 = arith.constant 0 : index
    %25 = vector.load %arg1[%c0_7, %c0_8, %c0_9] : memref<1x256x64xf32, #tpu.memory_space<vmem>>, vector<1x256x64xf32>
    %26 = vector.shape_cast %25 : vector<1x256x64xf32> to vector<256x64xf32>
    %27 = arith.truncf %26 : vector<256x64xf32> to vector<256x64xbf16>
    %c32 = arith.constant 32 : index
    %c0_10 = arith.constant 0 : index
    %28 = vector.load %arg11[%c32, %c0_10] : memref<320x64xbf16, #tpu.memory_space<vmem>>, vector<256x64xbf16>
    tpu.vector_store %arg11[%c32, %c0_10], %27 {strides = array<i32>} : memref<320x64xbf16, #tpu.memory_space<vmem>>, vector<256x64xbf16>,
    %c15 = arith.constant 15 : index
    %c0_11 = arith.constant 0 : index
    %29 = vector.load %arg11[%c15, %c0_11] : memref<320x64xbf16, #tpu.memory_space<vmem>>, vector<256x64xbf16>
    %c0_i32_12 = arith.constant 0 : i32
    %30 = arith.sitofp %c0_i32_12 : i32 to bf16
    %31 = vector.broadcast %30 : bf16 to vector<256x64xbf16>
    %32 = arith.select %22, %29, %31 : vector<256x64xi1>, vector<256x64xbf16>
    %c0_13 = arith.constant 0 : index
    %c0_14 = arith.constant 0 : index
    %c0_15 = arith.constant 0 : index
    %33 = vector.load %arg2[%c0_13, %c0_14, %c0_15] : memref<9x64x64xbf16, #tpu.memory_space<vmem>>, vector<1x64x64xbf16>
    %34 = vector.shape_cast %33 : vector<1x64x64xbf16> to vector<64x64xbf16>
    %cst_16 = arith.constant dense<0.000000e+00> : vector<256x64xf32>
    %35 = tpu.matmul %32, %34, %cst_16 {dimension_numbers = #tpu.dot_dimension_numbers<[1], [0], [0], [1], [0, 0, 1, 1], [], []>} : vector<256x64xbf16>, vector<64x64xbf16>, vector<256x64xf32> -> vector<256x64xf32>
    %c16 = arith.constant 16 : index
    %c0_17 = arith.constant 0 : index
    %36 = vector.load %arg11[%c16, %c0_17] : memref<320x64xbf16, #tpu.memory_space<vmem>>, vector<256x64xbf16>
    %c1 = arith.constant 1 : index
    %c0_18 = arith.constant 0 : index
    %c0_19 = arith.constant 0 : index
    %37 = vector.load %arg2[%c1, %c0_18, %c0_19] : memref<9x64x64xbf16, #tpu.memory_space<vmem>>, vector<1x64x64xbf16>
    %38 = vector.shape_cast %37 : vector<1x64x64xbf16> to vector<64x64xbf16>
    %cst_20 = arith.constant dense<0.000000e+00> : vector<256x64xf32>
    %39 = tpu.matmul %36, %38, %cst_20 {dimension_numbers = #tpu.dot_dimension_numbers<[1], [0], [0], [1], [0, 0, 1, 1], [], []>} : vector<256x64xbf16>, vector<64x64xbf16>, vector<256x64xf32> -> vector<256x64xf32>
    %40 = arith.addf %35, %39 : vector<256x64xf32>
    %c17 = arith.constant 17 : index
    %c0_21 = arith.constant 0 : index
    %41 = vector.load %arg11[%c17, %c0_21] : memref<320x64xbf16, #tpu.memory_space<vmem>>, vector<256x64xbf16>
    %c0_i32_22 = arith.constant 0 : i32
    %42 = arith.sitofp %c0_i32_22 : i32 to bf16
    %43 = vector.broadcast %42 : bf16 to vector<256x64xbf16>
    %44 = arith.select %24, %41, %43 : vector<256x64xi1>, vector<256x64xbf16>
    %c2 = arith.constant 2 : index
    %c0_23 = arith.constant 0 : index
    %c0_24 = arith.constant 0 : index
    %45 = vector.load %arg2[%c2, %c0_23, %c0_24] : memref<9x64x64xbf16, #tpu.memory_space<vmem>>, vector<1x64x64xbf16>
    %46 = vector.shape_cast %45 : vector<1x64x64xbf16> to vector<64x64xbf16>
    %cst_25 = arith.constant dense<0.000000e+00> : vector<256x64xf32>
    %47 = tpu.matmul %44, %46, %cst_25 {dimension_numbers = #tpu.dot_dimension_numbers<[1], [0], [0], [1], [0, 0, 1, 1], [], []>} : vector<256x64xbf16>, vector<64x64xbf16>, vector<256x64xf32> -> vector<256x64xf32>
    %48 = arith.addf %40, %47 : vector<256x64xf32>
    %c31 = arith.constant 31 : index
    %c0_26 = arith.constant 0 : index
    %49 = vector.load %arg11[%c31, %c0_26] : memref<320x64xbf16, #tpu.memory_space<vmem>>, vector<256x64xbf16>
    %c0_i32_27 = arith.constant 0 : i32
    %50 = arith.sitofp %c0_i32_27 : i32 to bf16
    %51 = vector.broadcast %50 : bf16 to vector<256x64xbf16>
    %52 = arith.select %22, %49, %51 : vector<256x64xi1>, vector<256x64xbf16>
    %c3 = arith.constant 3 : index
    %c0_28 = arith.constant 0 : index
    %c0_29 = arith.constant 0 : index
    %53 = vector.load %arg2[%c3, %c0_28, %c0_29] : memref<9x64x64xbf16, #tpu.memory_space<vmem>>, vector<1x64x64xbf16>
    %54 = vector.shape_cast %53 : vector<1x64x64xbf16> to vector<64x64xbf16>
    %cst_30 = arith.constant dense<0.000000e+00> : vector<256x64xf32>
    %55 = tpu.matmul %52, %54, %cst_30 {dimension_numbers = #tpu.dot_dimension_numbers<[1], [0], [0], [1], [0, 0, 1, 1], [], []>} : vector<256x64xbf16>, vector<64x64xbf16>, vector<256x64xf32> -> vector<256x64xf32>
    %56 = arith.addf %48, %55 : vector<256x64xf32>
    %c32_31 = arith.constant 32 : index
    %c0_32 = arith.constant 0 : index
    %57 = vector.load %arg11[%c32_31, %c0_32] : memref<320x64xbf16, #tpu.memory_space<vmem>>, vector<256x64xbf16>
    %c4 = arith.constant 4 : index
    %c0_33 = arith.constant 0 : index
    %c0_34 = arith.constant 0 : index
    %58 = vector.load %arg2[%c4, %c0_33, %c0_34] : memref<9x64x64xbf16, #tpu.memory_space<vmem>>, vector<1x64x64xbf16>
    %59 = vector.shape_cast %58 : vector<1x64x64xbf16> to vector<64x64xbf16>
    %cst_35 = arith.constant dense<0.000000e+00> : vector<256x64xf32>
    %60 = tpu.matmul %57, %59, %cst_35 {dimension_numbers = #tpu.dot_dimension_numbers<[1], [0], [0], [1], [0, 0, 1, 1], [], []>} : vector<256x64xbf16>, vector<64x64xbf16>, vector<256x64xf32> -> vector<256x64xf32>
    %61 = arith.addf %56, %60 : vector<256x64xf32>
    %c33 = arith.constant 33 : index
    %c0_36 = arith.constant 0 : index
    %62 = vector.load %arg11[%c33, %c0_36] : memref<320x64xbf16, #tpu.memory_space<vmem>>, vector<256x64xbf16>
    %c0_i32_37 = arith.constant 0 : i32
    %63 = arith.sitofp %c0_i32_37 : i32 to bf16
    %64 = vector.broadcast %63 : bf16 to vector<256x64xbf16>
    %65 = arith.select %24, %62, %64 : vector<256x64xi1>, vector<256x64xbf16>
    %c5 = arith.constant 5 : index
    %c0_38 = arith.constant 0 : index
    %c0_39 = arith.constant 0 : index
    %66 = vector.load %arg2[%c5, %c0_38, %c0_39] : memref<9x64x64xbf16, #tpu.memory_space<vmem>>, vector<1x64x64xbf16>
    %67 = vector.shape_cast %66 : vector<1x64x64xbf16> to vector<64x64xbf16>
    %cst_40 = arith.constant dense<0.000000e+00> : vector<256x64xf32>
    %68 = tpu.matmul %65, %67, %cst_40 {dimension_numbers = #tpu.dot_dimension_numbers<[1], [0], [0], [1], [0, 0, 1, 1], [], []>} : vector<256x64xbf16>, vector<64x64xbf16>, vector<256x64xf32> -> vector<256x64xf32>
    %69 = arith.addf %61, %68 : vector<256x64xf32>
    %c47 = arith.constant 47 : index
    %c0_41 = arith.constant 0 : index
    %70 = vector.load %arg11[%c47, %c0_41] : memref<320x64xbf16, #tpu.memory_space<vmem>>, vector<256x64xbf16>
    %c0_i32_42 = arith.constant 0 : i32
    %71 = arith.sitofp %c0_i32_42 : i32 to bf16
    %72 = vector.broadcast %71 : bf16 to vector<256x64xbf16>
    %73 = arith.select %22, %70, %72 : vector<256x64xi1>, vector<256x64xbf16>
    %c6 = arith.constant 6 : index
    %c0_43 = arith.constant 0 : index
    %c0_44 = arith.constant 0 : index
    %74 = vector.load %arg2[%c6, %c0_43, %c0_44] : memref<9x64x64xbf16, #tpu.memory_space<vmem>>, vector<1x64x64xbf16>
    %75 = vector.shape_cast %74 : vector<1x64x64xbf16> to vector<64x64xbf16>
    %cst_45 = arith.constant dense<0.000000e+00> : vector<256x64xf32>
    %76 = tpu.matmul %73, %75, %cst_45 {dimension_numbers = #tpu.dot_dimension_numbers<[1], [0], [0], [1], [0, 0, 1, 1], [], []>} : vector<256x64xbf16>, vector<64x64xbf16>, vector<256x64xf32> -> vector<256x64xf32>
    %77 = arith.addf %69, %76 : vector<256x64xf32>
    %c48 = arith.constant 48 : index
    %c0_46 = arith.constant 0 : index
    %78 = vector.load %arg11[%c48, %c0_46] : memref<320x64xbf16, #tpu.memory_space<vmem>>, vector<256x64xbf16>
    %c7 = arith.constant 7 : index
    %c0_47 = arith.constant 0 : index
    %c0_48 = arith.constant 0 : index
    %79 = vector.load %arg2[%c7, %c0_47, %c0_48] : memref<9x64x64xbf16, #tpu.memory_space<vmem>>, vector<1x64x64xbf16>
    %80 = vector.shape_cast %79 : vector<1x64x64xbf16> to vector<64x64xbf16>
    %cst_49 = arith.constant dense<0.000000e+00> : vector<256x64xf32>
    %81 = tpu.matmul %78, %80, %cst_49 {dimension_numbers = #tpu.dot_dimension_numbers<[1], [0], [0], [1], [0, 0, 1, 1], [], []>} : vector<256x64xbf16>, vector<64x64xbf16>, vector<256x64xf32> -> vector<256x64xf32>
    %82 = arith.addf %77, %81 : vector<256x64xf32>
    %c49 = arith.constant 49 : index
    %c0_50 = arith.constant 0 : index
    %83 = vector.load %arg11[%c49, %c0_50] : memref<320x64xbf16, #tpu.memory_space<vmem>>, vector<256x64xbf16>
    %c0_i32_51 = arith.constant 0 : i32
    %84 = arith.sitofp %c0_i32_51 : i32 to bf16
    %85 = vector.broadcast %84 : bf16 to vector<256x64xbf16>
    %86 = arith.select %24, %83, %85 : vector<256x64xi1>, vector<256x64xbf16>
    %c8 = arith.constant 8 : index
    %c0_52 = arith.constant 0 : index
    %c0_53 = arith.constant 0 : index
    %87 = vector.load %arg2[%c8, %c0_52, %c0_53] : memref<9x64x64xbf16, #tpu.memory_space<vmem>>, vector<1x64x64xbf16>
    %88 = vector.shape_cast %87 : vector<1x64x64xbf16> to vector<64x64xbf16>
    %cst_54 = arith.constant dense<0.000000e+00> : vector<256x64xf32>
    %89 = tpu.matmul %86, %88, %cst_54 {dimension_numbers = #tpu.dot_dimension_numbers<[1], [0], [0], [1], [0, 0, 1, 1], [], []>} : vector<256x64xbf16>, vector<64x64xbf16>, vector<256x64xf32> -> vector<256x64xf32>
    %90 = arith.addf %82, %89 : vector<256x64xf32>
    %c0_55 = arith.constant 0 : index
    %c0_56 = arith.constant 0 : index
    %91 = vector.load %arg3[%c0_55, %c0_56] : memref<1x64xf32, #tpu.memory_space<vmem>>, vector<1x64xf32>
    %92 = vector.shape_cast %91 : vector<1x64xf32> to vector<64xf32>
    %93 = vector.shape_cast %92 : vector<64xf32> to vector<1x64xf32>
    %94 = vector.broadcast %93 : vector<1x64xf32> to vector<256x64xf32>
    %95 = arith.addf %90, %94 : vector<256x64xf32>
    %cst_57 = arith.constant 0.000000e+00 : f32
    %96 = vector.broadcast %cst_57 : f32 to vector<256x64xf32>
    %97 = arith.maximumf %95, %96 : vector<256x64xf32>
    %98 = arith.truncf %97 : vector<256x64xf32> to vector<256x64xbf16>
    %c32_58 = arith.constant 32 : index
    %c0_59 = arith.constant 0 : index
    %99 = vector.load %arg11[%c32_58, %c0_59] : memref<320x64xbf16, #tpu.memory_space<vmem>>, vector<256x64xbf16>
    tpu.vector_store %arg11[%c32_58, %c0_59], %98 {strides = array<i32>} : memref<320x64xbf16, #tpu.memory_space<vmem>>, vector<256x64xbf16>,
    %c15_60 = arith.constant 15 : index
    %c0_61 = arith.constant 0 : index
    %100 = vector.load %arg11[%c15_60, %c0_61] : memref<320x64xbf16, #tpu.memory_space<vmem>>, vector<256x64xbf16>
    %c0_i32_62 = arith.constant 0 : i32
    %101 = arith.sitofp %c0_i32_62 : i32 to bf16
    %102 = vector.broadcast %101 : bf16 to vector<256x64xbf16>
    %103 = arith.select %22, %100, %102 : vector<256x64xi1>, vector<256x64xbf16>
    %c0_63 = arith.constant 0 : index
    %c0_64 = arith.constant 0 : index
    %c0_65 = arith.constant 0 : index
    %104 = vector.load %arg4[%c0_63, %c0_64, %c0_65] : memref<9x64x64xbf16, #tpu.memory_space<vmem>>, vector<1x64x64xbf16>
    %105 = vector.shape_cast %104 : vector<1x64x64xbf16> to vector<64x64xbf16>
    %cst_66 = arith.constant dense<0.000000e+00> : vector<256x64xf32>
    %106 = tpu.matmul %103, %105, %cst_66 {dimension_numbers = #tpu.dot_dimension_numbers<[1], [0], [0], [1], [0, 0, 1, 1], [], []>} : vector<256x64xbf16>, vector<64x64xbf16>, vector<256x64xf32> -> vector<256x64xf32>
    %c16_67 = arith.constant 16 : index
    %c0_68 = arith.constant 0 : index
    %107 = vector.load %arg11[%c16_67, %c0_68] : memref<320x64xbf16, #tpu.memory_space<vmem>>, vector<256x64xbf16>
    %c1_69 = arith.constant 1 : index
    %c0_70 = arith.constant 0 : index
    %c0_71 = arith.constant 0 : index
    %108 = vector.load %arg4[%c1_69, %c0_70, %c0_71] : memref<9x64x64xbf16, #tpu.memory_space<vmem>>, vector<1x64x64xbf16>
    %109 = vector.shape_cast %108 : vector<1x64x64xbf16> to vector<64x64xbf16>
    %cst_72 = arith.constant dense<0.000000e+00> : vector<256x64xf32>
    %110 = tpu.matmul %107, %109, %cst_72 {dimension_numbers = #tpu.dot_dimension_numbers<[1], [0], [0], [1], [0, 0, 1, 1], [], []>} : vector<256x64xbf16>, vector<64x64xbf16>, vector<256x64xf32> -> vector<256x64xf32>
    %111 = arith.addf %106, %110 : vector<256x64xf32>
    %c17_73 = arith.constant 17 : index
    %c0_74 = arith.constant 0 : index
    %112 = vector.load %arg11[%c17_73, %c0_74] : memref<320x64xbf16, #tpu.memory_space<vmem>>, vector<256x64xbf16>
    %c0_i32_75 = arith.constant 0 : i32
    %113 = arith.sitofp %c0_i32_75 : i32 to bf16
    %114 = vector.broadcast %113 : bf16 to vector<256x64xbf16>
    %115 = arith.select %24, %112, %114 : vector<256x64xi1>, vector<256x64xbf16>
    %c2_76 = arith.constant 2 : index
    %c0_77 = arith.constant 0 : index
    %c0_78 = arith.constant 0 : index
    %116 = vector.load %arg4[%c2_76, %c0_77, %c0_78] : memref<9x64x64xbf16, #tpu.memory_space<vmem>>, vector<1x64x64xbf16>
    %117 = vector.shape_cast %116 : vector<1x64x64xbf16> to vector<64x64xbf16>
    %cst_79 = arith.constant dense<0.000000e+00> : vector<256x64xf32>
    %118 = tpu.matmul %115, %117, %cst_79 {dimension_numbers = #tpu.dot_dimension_numbers<[1], [0], [0], [1], [0, 0, 1, 1], [], []>} : vector<256x64xbf16>, vector<64x64xbf16>, vector<256x64xf32> -> vector<256x64xf32>
    %119 = arith.addf %111, %118 : vector<256x64xf32>
    %c31_80 = arith.constant 31 : index
    %c0_81 = arith.constant 0 : index
    %120 = vector.load %arg11[%c31_80, %c0_81] : memref<320x64xbf16, #tpu.memory_space<vmem>>, vector<256x64xbf16>
    %c0_i32_82 = arith.constant 0 : i32
    %121 = arith.sitofp %c0_i32_82 : i32 to bf16
    %122 = vector.broadcast %121 : bf16 to vector<256x64xbf16>
    %123 = arith.select %22, %120, %122 : vector<256x64xi1>, vector<256x64xbf16>
    %c3_83 = arith.constant 3 : index
    %c0_84 = arith.constant 0 : index
    %c0_85 = arith.constant 0 : index
    %124 = vector.load %arg4[%c3_83, %c0_84, %c0_85] : memref<9x64x64xbf16, #tpu.memory_space<vmem>>, vector<1x64x64xbf16>
    %125 = vector.shape_cast %124 : vector<1x64x64xbf16> to vector<64x64xbf16>
    %cst_86 = arith.constant dense<0.000000e+00> : vector<256x64xf32>
    %126 = tpu.matmul %123, %125, %cst_86 {dimension_numbers = #tpu.dot_dimension_numbers<[1], [0], [0], [1], [0, 0, 1, 1], [], []>} : vector<256x64xbf16>, vector<64x64xbf16>, vector<256x64xf32> -> vector<256x64xf32>
    %127 = arith.addf %119, %126 : vector<256x64xf32>
    %c32_87 = arith.constant 32 : index
    %c0_88 = arith.constant 0 : index
    %128 = vector.load %arg11[%c32_87, %c0_88] : memref<320x64xbf16, #tpu.memory_space<vmem>>, vector<256x64xbf16>
    %c4_89 = arith.constant 4 : index
    %c0_90 = arith.constant 0 : index
    %c0_91 = arith.constant 0 : index
    %129 = vector.load %arg4[%c4_89, %c0_90, %c0_91] : memref<9x64x64xbf16, #tpu.memory_space<vmem>>, vector<1x64x64xbf16>
    %130 = vector.shape_cast %129 : vector<1x64x64xbf16> to vector<64x64xbf16>
    %cst_92 = arith.constant dense<0.000000e+00> : vector<256x64xf32>
    %131 = tpu.matmul %128, %130, %cst_92 {dimension_numbers = #tpu.dot_dimension_numbers<[1], [0], [0], [1], [0, 0, 1, 1], [], []>} : vector<256x64xbf16>, vector<64x64xbf16>, vector<256x64xf32> -> vector<256x64xf32>
    %132 = arith.addf %127, %131 : vector<256x64xf32>
    %c33_93 = arith.constant 33 : index
    %c0_94 = arith.constant 0 : index
    %133 = vector.load %arg11[%c33_93, %c0_94] : memref<320x64xbf16, #tpu.memory_space<vmem>>, vector<256x64xbf16>
    %c0_i32_95 = arith.constant 0 : i32
    %134 = arith.sitofp %c0_i32_95 : i32 to bf16
    %135 = vector.broadcast %134 : bf16 to vector<256x64xbf16>
    %136 = arith.select %24, %133, %135 : vector<256x64xi1>, vector<256x64xbf16>
    %c5_96 = arith.constant 5 : index
    %c0_97 = arith.constant 0 : index
    %c0_98 = arith.constant 0 : index
    %137 = vector.load %arg4[%c5_96, %c0_97, %c0_98] : memref<9x64x64xbf16, #tpu.memory_space<vmem>>, vector<1x64x64xbf16>
    %138 = vector.shape_cast %137 : vector<1x64x64xbf16> to vector<64x64xbf16>
    %cst_99 = arith.constant dense<0.000000e+00> : vector<256x64xf32>
    %139 = tpu.matmul %136, %138, %cst_99 {dimension_numbers = #tpu.dot_dimension_numbers<[1], [0], [0], [1], [0, 0, 1, 1], [], []>} : vector<256x64xbf16>, vector<64x64xbf16>, vector<256x64xf32> -> vector<256x64xf32>
    %140 = arith.addf %132, %139 : vector<256x64xf32>
    %c47_100 = arith.constant 47 : index
    %c0_101 = arith.constant 0 : index
    %141 = vector.load %arg11[%c47_100, %c0_101] : memref<320x64xbf16, #tpu.memory_space<vmem>>, vector<256x64xbf16>
    %c0_i32_102 = arith.constant 0 : i32
    %142 = arith.sitofp %c0_i32_102 : i32 to bf16
    %143 = vector.broadcast %142 : bf16 to vector<256x64xbf16>
    %144 = arith.select %22, %141, %143 : vector<256x64xi1>, vector<256x64xbf16>
    %c6_103 = arith.constant 6 : index
    %c0_104 = arith.constant 0 : index
    %c0_105 = arith.constant 0 : index
    %145 = vector.load %arg4[%c6_103, %c0_104, %c0_105] : memref<9x64x64xbf16, #tpu.memory_space<vmem>>, vector<1x64x64xbf16>
    %146 = vector.shape_cast %145 : vector<1x64x64xbf16> to vector<64x64xbf16>
    %cst_106 = arith.constant dense<0.000000e+00> : vector<256x64xf32>
    %147 = tpu.matmul %144, %146, %cst_106 {dimension_numbers = #tpu.dot_dimension_numbers<[1], [0], [0], [1], [0, 0, 1, 1], [], []>} : vector<256x64xbf16>, vector<64x64xbf16>, vector<256x64xf32> -> vector<256x64xf32>
    %148 = arith.addf %140, %147 : vector<256x64xf32>
    %c48_107 = arith.constant 48 : index
    %c0_108 = arith.constant 0 : index
    %149 = vector.load %arg11[%c48_107, %c0_108] : memref<320x64xbf16, #tpu.memory_space<vmem>>, vector<256x64xbf16>
    %c7_109 = arith.constant 7 : index
    %c0_110 = arith.constant 0 : index
    %c0_111 = arith.constant 0 : index
    %150 = vector.load %arg4[%c7_109, %c0_110, %c0_111] : memref<9x64x64xbf16, #tpu.memory_space<vmem>>, vector<1x64x64xbf16>
    %151 = vector.shape_cast %150 : vector<1x64x64xbf16> to vector<64x64xbf16>
    %cst_112 = arith.constant dense<0.000000e+00> : vector<256x64xf32>
    %152 = tpu.matmul %149, %151, %cst_112 {dimension_numbers = #tpu.dot_dimension_numbers<[1], [0], [0], [1], [0, 0, 1, 1], [], []>} : vector<256x64xbf16>, vector<64x64xbf16>, vector<256x64xf32> -> vector<256x64xf32>
    %153 = arith.addf %148, %152 : vector<256x64xf32>
    %c49_113 = arith.constant 49 : index
    %c0_114 = arith.constant 0 : index
    %154 = vector.load %arg11[%c49_113, %c0_114] : memref<320x64xbf16, #tpu.memory_space<vmem>>, vector<256x64xbf16>
    %c0_i32_115 = arith.constant 0 : i32
    %155 = arith.sitofp %c0_i32_115 : i32 to bf16
    %156 = vector.broadcast %155 : bf16 to vector<256x64xbf16>
    %157 = arith.select %24, %154, %156 : vector<256x64xi1>, vector<256x64xbf16>
    %c8_116 = arith.constant 8 : index
    %c0_117 = arith.constant 0 : index
    %c0_118 = arith.constant 0 : index
    %158 = vector.load %arg4[%c8_116, %c0_117, %c0_118] : memref<9x64x64xbf16, #tpu.memory_space<vmem>>, vector<1x64x64xbf16>
    %159 = vector.shape_cast %158 : vector<1x64x64xbf16> to vector<64x64xbf16>
    %cst_119 = arith.constant dense<0.000000e+00> : vector<256x64xf32>
    %160 = tpu.matmul %157, %159, %cst_119 {dimension_numbers = #tpu.dot_dimension_numbers<[1], [0], [0], [1], [0, 0, 1, 1], [], []>} : vector<256x64xbf16>, vector<64x64xbf16>, vector<256x64xf32> -> vector<256x64xf32>
    %161 = arith.addf %153, %160 : vector<256x64xf32>
    %c0_120 = arith.constant 0 : index
    %c0_121 = arith.constant 0 : index
    %162 = vector.load %arg5[%c0_120, %c0_121] : memref<1x64xf32, #tpu.memory_space<vmem>>, vector<1x64xf32>
    %163 = vector.shape_cast %162 : vector<1x64xf32> to vector<64xf32>
    %164 = vector.shape_cast %163 : vector<64xf32> to vector<1x64xf32>
    %165 = vector.broadcast %164 : vector<1x64xf32> to vector<256x64xf32>
    %166 = arith.addf %161, %165 : vector<256x64xf32>
    %cst_122 = arith.constant dense<0.000000e+00> : vector<64xf32>
    %167 = vector.multi_reduction <add>, %166, %cst_122 [0] : vector<256x64xf32> to vector<64xf32>
    %168 = vector.shape_cast %167 : vector<64xf32> to vector<1x64xf32>
    %cst_123 = arith.constant 2.560000e+02 : f32
    %169 = vector.broadcast %cst_123 : f32 to vector<1x64xf32>
    %170 = arith.divf %168, %169 : vector<1x64xf32>
    %c0_124 = arith.constant 0 : index
    %c0_125 = arith.constant 0 : index
    %171 = vector.load %arg6[%c0_124, %c0_125] : memref<64x4xf32, #tpu.memory_space<vmem>>, vector<64x4xf32>
    %cst_126 = arith.constant dense<0.000000e+00> : vector<1x4xf32>
    %172 = tpu.matmul %170, %171, %cst_126 {dimension_numbers = #tpu.dot_dimension_numbers<[1], [0], [0], [1], [0, 0, 1, 1], [], []>} : vector<1x64xf32>, vector<64x4xf32>, vector<1x4xf32> -> vector<1x4xf32>
    %c0_127 = arith.constant 0 : index
    %c0_128 = arith.constant 0 : index
    %173 = vector.load %arg7[%c0_127, %c0_128] : memref<1x4xf32, #tpu.memory_space<vmem>>, vector<1x4xf32>
    %174 = vector.shape_cast %173 : vector<1x4xf32> to vector<4xf32>
    %175 = vector.shape_cast %174 : vector<4xf32> to vector<1x4xf32>
    %176 = arith.addf %172, %175 : vector<1x4xf32>
    %cst_129 = arith.constant 0.000000e+00 : f32
    %177 = vector.broadcast %cst_129 : f32 to vector<1x4xf32>
    %178 = arith.maximumf %176, %177 : vector<1x4xf32>
    %c0_130 = arith.constant 0 : index
    %c0_131 = arith.constant 0 : index
    %179 = vector.load %arg8[%c0_130, %c0_131] : memref<4x64xf32, #tpu.memory_space<vmem>>, vector<4x64xf32>
    %cst_132 = arith.constant dense<0.000000e+00> : vector<1x64xf32>
    %180 = tpu.matmul %178, %179, %cst_132 {dimension_numbers = #tpu.dot_dimension_numbers<[1], [0], [0], [1], [0, 0, 1, 1], [], []>} : vector<1x4xf32>, vector<4x64xf32>, vector<1x64xf32> -> vector<1x64xf32>
    %c0_133 = arith.constant 0 : index
    %c0_134 = arith.constant 0 : index
    %181 = vector.load %arg9[%c0_133, %c0_134] : memref<1x64xf32, #tpu.memory_space<vmem>>, vector<1x64xf32>
    %182 = vector.shape_cast %181 : vector<1x64xf32> to vector<64xf32>
    %183 = vector.shape_cast %182 : vector<64xf32> to vector<1x64xf32>
    %184 = arith.addf %180, %183 : vector<1x64xf32>
    %185 = arith.negf %184 : vector<1x64xf32>
    %186 = math.exp %185 : vector<1x64xf32>
    %cst_135 = arith.constant 1.000000e+00 : f32
    %187 = vector.broadcast %cst_135 : f32 to vector<1x64xf32>
    %188 = arith.addf %187, %186 : vector<1x64xf32>
    %189 = arith.divf %187, %188 : vector<1x64xf32>
    %190 = vector.broadcast %189 : vector<1x64xf32> to vector<256x64xf32>
    %191 = arith.mulf %166, %190 : vector<256x64xf32>
    %192 = arith.addf %26, %191 : vector<256x64xf32>
    %c0_136 = arith.constant 0 : index
    %c0_137 = arith.constant 0 : index
    %c0_138 = arith.constant 0 : index
    %193 = vector.load %arg10[%c0_136, %c0_137, %c0_138] : memref<1x256x64xf32, #tpu.memory_space<vmem>>, vector<1x256x64xf32>
    %194 = vector.shape_cast %193 : vector<1x256x64xf32> to vector<256x64xf32>
    %195 = vector.shape_cast %192 : vector<256x64xf32> to vector<1x256x64xf32>
    tpu.vector_store %arg10[%c0_136, %c0_137, %c0_138], %195 {strides = array<i32>} : memref<1x256x64xf32, #tpu.memory_space<vmem>>, vector<1x256x64xf32>,
    return
  }
  func.func @transform_0(%arg0: i32) -> (i32, i32, i32) {
    %c0_i32 = arith.constant 0 : i32
    %c0_i32_0 = arith.constant 0 : i32
    %c0_i32_1 = arith.constant 0 : i32
    return %arg0, %c0_i32, %c0_i32_0 : i32, i32, i32
  }
  func.func @transform_1(%arg0: i32) -> (i32, i32, i32) {
    %c0_i32 = arith.constant 0 : i32
    %c0_i32_0 = arith.constant 0 : i32
    %c0_i32_1 = arith.constant 0 : i32
    %c0_i32_2 = arith.constant 0 : i32
    return %c0_i32, %c0_i32_0, %c0_i32_1 : i32, i32, i32
  }
  func.func @transform_2(%arg0: i32) -> (i32, i32) {
    %c0_i32 = arith.constant 0 : i32
    %c0_i32_0 = arith.constant 0 : i32
    %c0_i32_1 = arith.constant 0 : i32
    return %c0_i32, %c0_i32_0 : i32, i32
  }
  func.func @transform_3(%arg0: i32) -> (i32, i32, i32) {
    %c0_i32 = arith.constant 0 : i32
    %c0_i32_0 = arith.constant 0 : i32
    %c0_i32_1 = arith.constant 0 : i32
    %c0_i32_2 = arith.constant 0 : i32
    return %c0_i32, %c0_i32_0, %c0_i32_1 : i32, i32, i32
  }
  func.func @transform_4(%arg0: i32) -> (i32, i32) {
    %c0_i32 = arith.constant 0 : i32
    %c0_i32_0 = arith.constant 0 : i32
    %c0_i32_1 = arith.constant 0 : i32
    return %c0_i32, %c0_i32_0 : i32, i32
  }
  func.func @transform_5(%arg0: i32) -> (i32, i32) {
    %c0_i32 = arith.constant 0 : i32
    %c0_i32_0 = arith.constant 0 : i32
    %c0_i32_1 = arith.constant 0 : i32
    return %c0_i32, %c0_i32_0 : i32, i32
  }
  func.func @transform_6(%arg0: i32) -> (i32, i32) {
    %c0_i32 = arith.constant 0 : i32
    %c0_i32_0 = arith.constant 0 : i32
    %c0_i32_1 = arith.constant 0 : i32
    return %c0_i32, %c0_i32_0 : i32, i32
  }
  func.func @transform_7(%arg0: i32) -> (i32, i32) {
    %c0_i32 = arith.constant 0 : i32
    %c0_i32_0 = arith.constant 0 : i32
    %c0_i32_1 = arith.constant 0 : i32
    return %c0_i32, %c0_i32_0 : i32, i32
  }
  func.func @transform_8(%arg0: i32) -> (i32, i32) {
    %c0_i32 = arith.constant 0 : i32
    %c0_i32_0 = arith.constant 0 : i32
    %c0_i32_1 = arith.constant 0 : i32
    return %c0_i32, %c0_i32_0 : i32, i32
  }
  func.func @transform_9(%arg0: i32) -> (i32, i32, i32) {
    %c0_i32 = arith.constant 0 : i32
    %c0_i32_0 = arith.constant 0 : i32
    %c0_i32_1 = arith.constant 0 : i32
    return %arg0, %c0_i32, %c0_i32_0 : i32, i32, i32
  }
}

</mosaic_0001>

<llo_original>
// kernel: tpu_custom_call.1
$region0: #{tpu_custom_call.1}
  #allocation0 [shape = 'u32[]', space=smem, size = 0x4, offset = 0x4, fixed_abs, tag = 'smem constant byte address 0x4 - core index']
  #allocation1 [shape = 'u32[144,128]{1,0:T(1,128)}', space=vmem, size = 0x12000, scoped, tag = 'internal scratch']
  #allocation2 [shape = 'bf16[320,64]{1,0:T(16,128)(2,1)}', space=vmem, size = 0x14000, scoped, tag = 'scratch operand']
  %s0 = inlined_call_operand.vmem [shape: f32[2,256,64], index: 0, kind: input, shape index: {}]
  %s1 = inlined_call_operand.vmem [shape: bf16[9,64,64], index: 1, kind: input, shape index: {}]
  %s2 = inlined_call_operand.vmem [shape: f32[1,64], index: 2, kind: input, shape index: {}]
  %s3 = inlined_call_operand.vmem [shape: bf16[9,64,64], index: 3, kind: input, shape index: {}]
  %s4 = inlined_call_operand.vmem [shape: f32[1,64], index: 4, kind: input, shape index: {}]
  %s5 = inlined_call_operand.vmem [shape: f32[64,4], index: 5, kind: input, shape index: {}]
  %s6 = inlined_call_operand.vmem [shape: f32[1,4], index: 6, kind: input, shape index: {}]
  %s7 = inlined_call_operand.vmem [shape: f32[4,64], index: 7, kind: input, shape index: {}]
  %s8 = inlined_call_operand.vmem [shape: f32[1,64], index: 8, kind: input, shape index: {}]
  %s9 = inlined_call_operand.vmem [shape: f32[2,256,64], index: 9, kind: output, shape index: {}]
  %s10 = sld [smem:[#allocation0]]
  $region69: #{tpu_custom_call.1} parent=0
    _
  %s12 = ssub.s32 1, %s10
  %s13 = scalar_select 0, %s12, %s10
  loop: start=0, step=1, limit=4
  $region2: #{tpu_custom_call.1} parent=0 // loop_pre_header
    _
  $region3: #{tpu_custom_call.1} parent=0 // loop_header
    %s15 = sphi 0, %s19
    %p16 = scmp.ge.s32.totalorder %s15, 4
    %s25 = sphi 0, %s27
    %s28 = sphi 0, %s25
    %s29 = sphi 0, %s28
    %s45 = sphi 0, %s29
    %s49 = sphi 0, %s49
    %s51 = sphi 0, %s49
    %s52 = sphi 0, %s51
    %s66 = sphi 0, %s52
    %s70 = sphi 0, %s70
    %s72 = sphi 0, %s70
    %s73 = sphi 0, %s72
    %s87 = sphi 0, %s73
    %s91 = sphi 0, %s91
    %s93 = sphi 0, %s91
    %s94 = sphi 0, %s93
    %s108 = sphi 0, %s94
    %s112 = sphi 0, %s112
    %s114 = sphi 0, %s112
    %s115 = sphi 0, %s114
    %s129 = sphi 0, %s115
    %s133 = sphi 0, %s133
    %s135 = sphi 0, %s133
    %s136 = sphi 0, %s135
    %s150 = sphi 0, %s136
    %s154 = sphi 0, %s154
    %s156 = sphi 0, %s154
    %s157 = sphi 0, %s156
    %s171 = sphi 0, %s157
    %s175 = sphi 0, %s175
    %s177 = sphi 0, %s175
    %s178 = sphi 0, %s177
    %s192 = sphi 0, %s178
    %s196 = sphi 0, %s196
    %s198 = sphi 0, %s196
    %s199 = sphi 0, %s198
    %s213 = sphi 0, %s199
    %s219 = sphi 0, %s221
    %s222 = sphi 0, %s219
    %s223 = sphi 0, %s222
    %s239 = sphi 0, %s223
  $region4: #{tpu_custom_call.1} parent=0 // loop_header_branch
    %18 = sbr.rel (%p16) target = $region8
  $region5: #{tpu_custom_call.1} parent=0 // loop_body
    %s20 = ssub.s32 %s15, 1
    %s21 = ssub.s32 %s15, 2
    %s22 = sadd.s32 %s15, 1
    %s23 = ssub.s32 %s15, %s22
    %p24 = scmp.eq.s32.totalorder %s23, 0
    %s26 = sadd.s32 %s25, 1
    %s27 = scalar_select %p24, %s25, %s26
    %p30 = pneg %p24
    %p31 = scmp.eq.s32.totalorder %s15, 1
    %p32 = por %p30, %p31
    %p33 = scmp.ne.s32.totalorder %s25, %s28
    %p34 = scmp.eq.s32.totalorder %s15, 0
    %p35 = por %p33, %p34
    %p36 = scmp.ne.s32.totalorder %s25, %s28
    %p37 = scmp.eq.s32.totalorder %s20, 1
    %p38 = por %p36, %p37
    %p39 = scmp.ne.s32.totalorder %s28, %s29
    %p40 = scmp.eq.s32.totalorder %s20, 0
    %p41 = por %p39, %p40
    %p42 = scmp.ne.s32.totalorder %s28, %s29
    %p43 = scmp.eq.s32.totalorder %s21, 1
    %p44 = por %p42, %p43
    %p46 = scmp.ne.s32.totalorder %s29, %s45
    %p47 = scmp.eq.s32.totalorder %s21, 0
    %p48 = por %p46, %p47
    %s50 = sadd.s32 %s49, 1
    %p53 = scmp.eq.s32.totalorder %s15, 1
    %p54 = scmp.ne.s32.totalorder %s49, %s51
    %p55 = scmp.eq.s32.totalorder %s15, 0
    %p56 = por %p54, %p55
    %p57 = scmp.ne.s32.totalorder %s49, %s51
    %p58 = scmp.eq.s32.totalorder %s20, 1
    %p59 = por %p57, %p58
    %p60 = scmp.ne.s32.totalorder %s51, %s52
    %p61 = scmp.eq.s32.totalorder %s20, 0
    %p62 = por %p60, %p61
    %p63 = scmp.ne.s32.totalorder %s51, %s52
    %p64 = scmp.eq.s32.totalorder %s21, 1
    %p65 = por %p63, %p64
    %p67 = scmp.ne.s32.totalorder %s52, %s66
    %p68 = scmp.eq.s32.totalorder %s21, 0
    %p69 = por %p67, %p68
    %s71 = sadd.s32 %s70, 1
    %p74 = scmp.eq.s32.totalorder %s15, 1
    %p75 = scmp.ne.s32.totalorder %s70, %s72
    %p76 = scmp.eq.s32.totalorder %s15, 0
    %p77 = por %p75, %p76
    %p78 = scmp.ne.s32.totalorder %s70, %s72
    %p79 = scmp.eq.s32.totalorder %s20, 1
    %p80 = por %p78, %p79
    %p81 = scmp.ne.s32.totalorder %s72, %s73
    %p82 = scmp.eq.s32.totalorder %s20, 0
    %p83 = por %p81, %p82
    %p84 = scmp.ne.s32.totalorder %s72, %s73
    %p85 = scmp.eq.s32.totalorder %s21, 1
    %p86 = por %p84, %p85
    %p88 = scmp.ne.s32.totalorder %s73, %s87
    %p89 = scmp.eq.s32.totalorder %s21, 0
    %p90 = por %p88, %p89
    %s92 = sadd.s32 %s91, 1
    %p95 = scmp.eq.s32.totalorder %s15, 1
    %p96 = scmp.ne.s32.totalorder %s91, %s93
    %p97 = scmp.eq.s32.totalorder %s15, 0
    %p98 = por %p96, %p97
    %p99 = scmp.ne.s32.totalorder %s91, %s93
    %p100 = scmp.eq.s32.totalorder %s20, 1
    %p101 = por %p99, %p100
    %p102 = scmp.ne.s32.totalorder %s93, %s94
    %p103 = scmp.eq.s32.totalorder %s20, 0
    %p104 = por %p102, %p103
    %p105 = scmp.ne.s32.totalorder %s93, %s94
    %p106 = scmp.eq.s32.totalorder %s21, 1
    %p107 = por %p105, %p106
    %p109 = scmp.ne.s32.totalorder %s94, %s108
    %p110 = scmp.eq.s32.totalorder %s21, 0
    %p111 = por %p109, %p110
    %s113 = sadd.s32 %s112, 1
    %p116 = scmp.eq.s32.totalorder %s15, 1
    %p117 = scmp.ne.s32.totalorder %s112, %s114
    %p118 = scmp.eq.s32.totalorder %s15, 0
    %p119 = por %p117, %p118
    %p120 = scmp.ne.s32.totalorder %s112, %s114
    %p121 = scmp.eq.s32.totalorder %s20, 1
    %p122 = por %p120, %p121
    %p123 = scmp.ne.s32.totalorder %s114, %s115
    %p124 = scmp.eq.s32.totalorder %s20, 0
    %p125 = por %p123, %p124
    %p126 = scmp.ne.s32.totalorder %s114, %s115
    %p127 = scmp.eq.s32.totalorder %s21, 1
    %p128 = por %p126, %p127
    %p130 = scmp.ne.s32.totalorder %s115, %s129
    %p131 = scmp.eq.s32.totalorder %s21, 0
    %p132 = por %p130, %p131
    %s134 = sadd.s32 %s133, 1
    %p137 = scmp.eq.s32.totalorder %s15, 1
    %p138 = scmp.ne.s32.totalorder %s133, %s135
    %p139 = scmp.eq.s32.totalorder %s15, 0
    %p140 = por %p138, %p139
    %p141 = scmp.ne.s32.totalorder %s133, %s135
    %p142 = scmp.eq.s32.totalorder %s20, 1
    %p143 = por %p141, %p142
    %p144 = scmp.ne.s32.totalorder %s135, %s136
    %p145 = scmp.eq.s32.totalorder %s20, 0
    %p146 = por %p144, %p145
    %p147 = scmp.ne.s32.totalorder %s135, %s136
    %p148 = scmp.eq.s32.totalorder %s21, 1
    %p149 = por %p147, %p148
    %p151 = scmp.ne.s32.totalorder %s136, %s150
    %p152 = scmp.eq.s32.totalorder %s21, 0
    %p153 = por %p151, %p152
    %s155 = sadd.s32 %s154, 1
    %p158 = scmp.eq.s32.totalorder %s15, 1
    %p159 = scmp.ne.s32.totalorder %s154, %s156
    %p160 = scmp.eq.s32.totalorder %s15, 0
    %p161 = por %p159, %p160
    %p162 = scmp.ne.s32.totalorder %s154, %s156
    %p163 = scmp.eq.s32.totalorder %s20, 1
    %p164 = por %p162, %p163
    %p165 = scmp.ne.s32.totalorder %s156, %s157
    %p166 = scmp.eq.s32.totalorder %s20, 0
    %p167 = por %p165, %p166
    %p168 = scmp.ne.s32.totalorder %s156, %s157
    %p169 = scmp.eq.s32.totalorder %s21, 1
    %p170 = por %p168, %p169
    %p172 = scmp.ne.s32.totalorder %s157, %s171
    %p173 = scmp.eq.s32.totalorder %s21, 0
    %p174 = por %p172, %p173
    %s176 = sadd.s32 %s175, 1
    %p179 = scmp.eq.s32.totalorder %s15, 1
    %p180 = scmp.ne.s32.totalorder %s175, %s177
    %p181 = scmp.eq.s32.totalorder %s15, 0
    %p182 = por %p180, %p181
    %p183 = scmp.ne.s32.totalorder %s175, %s177
    %p184 = scmp.eq.s32.totalorder %s20, 1
    %p185 = por %p183, %p184
    %p186 = scmp.ne.s32.totalorder %s177, %s178
    %p187 = scmp.eq.s32.totalorder %s20, 0
    %p188 = por %p186, %p187
    %p189 = scmp.ne.s32.totalorder %s177, %s178
    %p190 = scmp.eq.s32.totalorder %s21, 1
    %p191 = por %p189, %p190
    %p193 = scmp.ne.s32.totalorder %s178, %s192
    %p194 = scmp.eq.s32.totalorder %s21, 0
    %p195 = por %p193, %p194
    %s197 = sadd.s32 %s196, 1
    %p200 = scmp.eq.s32.totalorder %s15, 1
    %p201 = scmp.ne.s32.totalorder %s196, %s198
    %p202 = scmp.eq.s32.totalorder %s15, 0
    %p203 = por %p201, %p202
    %p204 = scmp.ne.s32.totalorder %s196, %s198
    %p205 = scmp.eq.s32.totalorder %s20, 1
    %p206 = por %p204, %p205
    %p207 = scmp.ne.s32.totalorder %s198, %s199
    %p208 = scmp.eq.s32.totalorder %s20, 0
    %p209 = por %p207, %p208
    %p210 = scmp.ne.s32.totalorder %s198, %s199
    %p211 = scmp.eq.s32.totalorder %s21, 1
    %p212 = por %p210, %p211
    %p214 = scmp.ne.s32.totalorder %s199, %s213
    %p215 = scmp.eq.s32.totalorder %s21, 0
    %p216 = por %p214, %p215
    %s217 = ssub.s32 %s15, %s22
    %p218 = scmp.eq.s32.totalorder %s217, 0
    %s220 = sadd.s32 %s219, 1
    %s221 = scalar_select %p218, %s219, %s220
    %p224 = pneg %p218
    %p225 = scmp.eq.s32.totalorder %s15, 1
    %p226 = por %p224, %p225
    %p227 = scmp.ne.s32.totalorder %s219, %s222
    %p228 = scmp.eq.s32.totalorder %s15, 0
    %p229 = por %p227, %p228
    %p230 = scmp.ne.s32.totalorder %s219, %s222
    %p231 = scmp.eq.s32.totalorder %s20, 1
    %p232 = por %p230, %p231
    %p233 = scmp.ne.s32.totalorder %s222, %s223
    %p234 = scmp.eq.s32.totalorder %s20, 0
    %p235 = por %p233, %p234
    %p236 = scmp.ne.s32.totalorder %s222, %s223
    %p237 = scmp.eq.s32.totalorder %s21, 1
    %p238 = por %p236, %p237
    %p240 = scmp.ne.s32.totalorder %s223, %s239
    %p241 = scmp.eq.s32.totalorder %s21, 0
    %p242 = por %p240, %p241
    %p243 = scmp.le.s32.totalorder 1, %s15
    %p244 = scmp.lt.s32.totalorder %s15, 3
    %p245 = pnand %p243, %p244
    %p246 = pneg %p245
    // Predicated region
    $region9: #{tpu_custom_call.1} parent=5 // pred_check
      _
    $region10: #{tpu_custom_call.1} parent=5 // pred_check_branch
      %248 = sbr.rel (%p245) target = $region12
    $region11: #{tpu_custom_call.1} parent=5 // pred_region
      %s249 = ssub.s32 %s15, 1
      // Predicated region
      $region13: #{tpu_custom_call.1} parent=11 // pred_check
        %p250 = pneg %p62
      $region14: #{tpu_custom_call.1} parent=11 // pred_check_branch
        %252 = sbr.rel (%p250) target = $region16
      $region15: #{tpu_custom_call.1} parent=11 // pred_region
        _
      $region16: #{tpu_custom_call.1} parent=11 // pred_fallthru
        _
      // Predicated region
      $region17: #{tpu_custom_call.1} parent=11 // pred_check
        %p253 = pneg %p83
      $region18: #{tpu_custom_call.1} parent=11 // pred_check_branch
        %255 = sbr.rel (%p253) target = $region20
      $region19: #{tpu_custom_call.1} parent=11 // pred_region
        _
      $region20: #{tpu_custom_call.1} parent=11 // pred_fallthru
        _
      // Predicated region
      $region21: #{tpu_custom_call.1} parent=11 // pred_check
        %p256 = pneg %p104
      $region22: #{tpu_custom_call.1} parent=11 // pred_check_branch
        %258 = sbr.rel (%p256) target = $region24
      $region23: #{tpu_custom_call.1} parent=11 // pred_region
        _
      $region24: #{tpu_custom_call.1} parent=11 // pred_fallthru
        _
      // Predicated region
      $region25: #{tpu_custom_call.1} parent=11 // pred_check
        %p259 = pneg %p125
      $region26: #{tpu_custom_call.1} parent=11 // pred_check_branch
        %261 = sbr.rel (%p259) target = $region28
      $region27: #{tpu_custom_call.1} parent=11 // pred_region
        _
      $region28: #{tpu_custom_call.1} parent=11 // pred_fallthru
        _
      // Predicated region
      $region29: #{tpu_custom_call.1} parent=11 // pred_check
        %p262 = pneg %p146
      $region30: #{tpu_custom_call.1} parent=11 // pred_check_branch
        %264 = sbr.rel (%p262) target = $region32
      $region31: #{tpu_custom_call.1} parent=11 // pred_region
        _
      $region32: #{tpu_custom_call.1} parent=11 // pred_fallthru
        _
      // Predicated region
      $region33: #{tpu_custom_call.1} parent=11 // pred_check
        %p265 = pneg %p167
      $region34: #{tpu_custom_call.1} parent=11 // pred_check_branch
        %267 = sbr.rel (%p265) target = $region36
      $region35: #{tpu_custom_call.1} parent=11 // pred_region
        _
      $region36: #{tpu_custom_call.1} parent=11 // pred_fallthru
        _
      // Predicated region
      $region37: #{tpu_custom_call.1} parent=11 // pred_check
        %p268 = pneg %p188
      $region38: #{tpu_custom_call.1} parent=11 // pred_check_branch
        %270 = sbr.rel (%p268) target = $region40
      $region39: #{tpu_custom_call.1} parent=11 // pred_region
        _
      $region40: #{tpu_custom_call.1} parent=11 // pred_fallthru
        _
      // Predicated region
      $region41: #{tpu_custom_call.1} parent=11 // pred_check
        %p271 = pneg %p209
      $region42: #{tpu_custom_call.1} parent=11 // pred_check_branch
        %273 = sbr.rel (%p271) target = $region44
      $region43: #{tpu_custom_call.1} parent=11 // pred_region
        _
      $region44: #{tpu_custom_call.1} parent=11 // pred_fallthru
        _
    $region12: #{tpu_custom_call.1} parent=5 // pred_fallthru
      _
    %p274 = scmp.lt.s32.totalorder %s15, 2
    // Predicated region
    $region45: #{tpu_custom_call.1} parent=5 // pred_check
      %p275 = pneg %p274
    $region46: #{tpu_custom_call.1} parent=5 // pred_check_branch
      %277 = sbr.rel (%p275) target = $region48
    $region47: #{tpu_custom_call.1} parent=5 // pred_region
      // Predicated region
      $region49: #{tpu_custom_call.1} parent=47 // pred_check
        %p278 = pneg %p35
      $region50: #{tpu_custom_call.1} parent=47 // pred_check_branch
        %280 = sbr.rel (%p278) target = $region52
      $region51: #{tpu_custom_call.1} parent=47 // pred_region
        %p281 = scmp.lt.s32.totalorder %s15, 1
        %s282 = scalar_select %p281, %s15, 1
        %s283 = smul.addr %s282, 32
        %s284 = smul.addr %s283, 8
        %s285 = scalar_lea.vmem %s0, %s284
      $region52: #{tpu_custom_call.1} parent=47 // pred_fallthru
        _
    $region48: #{tpu_custom_call.1} parent=5 // pred_fallthru
      _
    %p286 = scmp.le.s32.totalorder 1, %s15
    %p287 = scmp.lt.s32.totalorder %s15, 3
    %p288 = pnand %p286, %p287
    %p289 = pneg %p288
    // Predicated region
    $region53: #{tpu_custom_call.1} parent=5 // pred_check
      _
    $region54: #{tpu_custom_call.1} parent=5 // pred_check_branch
      %291 = sbr.rel (%p288) target = $region56
    $region55: #{tpu_custom_call.1} parent=5 // pred_region
      %s292 = ssub.s32 %s15, 1
      %p293 = scmp.lt.s32.totalorder %s20, 1
      %s294 = scalar_select %p293, %s20, 1
      %s295 = smul.addr %s294, 32
      %s296 = smul.addr %s295, 8
      %s297 = scalar_lea.vmem %s0, %s296
      %p298 = pneg %p41
      %p299 = pneg %p38
      %p300 = pneg %p62
      %p301 = pneg %p59
      %p302 = pneg %p83
      %p303 = pneg %p80
      %p304 = pneg %p104
      %p305 = pneg %p101
      %p306 = pneg %p125
      %p307 = pneg %p122
      %p308 = pneg %p146
      %p309 = pneg %p143
      %p310 = pneg %p167
      %p311 = pneg %p164
      %p312 = pneg %p188
      %p313 = pneg %p185
      %p314 = pneg %p209
      %p315 = pneg %p206
      %p316 = pneg %p235
      %p317 = pneg %p232
      %p318 = scmp.lt.s32.totalorder %s20, 1
      %s319 = scalar_select %p318, %s20, 1
      %s320 = smul.addr %s319, 32
      %s321 = smul.addr %s320, 8
      %s322 = scalar_lea.vmem %s9, %s321
      %p323 = scmp.lt.s32.totalorder %s20, 1
      %s324 = scalar_select %p323, %s20, 1
      %s325 = smul.addr %s324, 32
      %s326 = smul.addr %s325, 8
      %s327 = scalar_lea.vmem %s0, %s326
      %p328 = scmp.lt.s32.totalorder %s20, 1
      %s329 = scalar_select %p328, %s20, 1
      %s330 = smul.addr %s329, 32
      %s331 = smul.addr %s330, 8
      %s332 = scalar_lea.vmem %s9, %s331
      %vm336 = vcmask 523264
      %337 = vst.msk [vmem:[#allocation2] sm:$0xff] %vm336, 0
      %338 = vst.msk [vmem:[#allocation2 + $0x8] sm:$0xff] %vm336, 0
      %339 = vst.msk [vmem:[#allocation2 + $0x90] sm:$0xff] %vm336, 0
      %340 = vst.msk [vmem:[#allocation2 + $0x98] sm:$0xff] %vm336, 0
      %v341 = vlaneseq
      %v342 = vshrl.u32 %v341, 7
      %v343 = vadd.s32 %v342, 8
      %v344 = vadd.s32 %v342, 16
      %v345 = vadd.s32 %v342, 24
      %v346 = vadd.s32 %v342, 32
      %v347 = vadd.s32 %v342, 40
      %v348 = vadd.s32 %v342, 48
      %v349 = vadd.s32 %v342, 56
      %v350 = vadd.s32 %v342, 64
      %v351 = vadd.s32 %v342, 72
      %v352 = vadd.s32 %v342, 80
      %v353 = vadd.s32 %v342, 88
      %v354 = vadd.s32 %v342, 96
      %v355 = vadd.s32 %v342, 104
      %v356 = vadd.s32 %v342, 112
      %v357 = vadd.s32 %v342, 120
      %v358 = vadd.s32 %v342, 128
      %v359 = vadd.s32 %v342, 136
      %v360 = vadd.s32 %v342, 144
      %v361 = vadd.s32 %v342, 152
      %v362 = vadd.s32 %v342, 160
      %v363 = vadd.s32 %v342, 168
      %v364 = vadd.s32 %v342, 176
      %v365 = vadd.s32 %v342, 184
      %v366 = vadd.s32 %v342, 192
      %v367 = vadd.s32 %v342, 200
      %v368 = vadd.s32 %v342, 208
      %v369 = vadd.s32 %v342, 216
      %v370 = vadd.s32 %v342, 224
      %v371 = vadd.s32 %v342, 232
      %v372 = vadd.s32 %v342, 240
      %v373 = vadd.s32 %v342, 248
      %vm374 = vcmp.lt.s32.totalorder %v342, 0
      %v375 = vsub.s32 0, %v342
      %v376 = vsel %vm374, %v375, %v342
      %v377 = vshrl.u32 %v376, 4
      %v378 = vand.u32 %v376, 15
      %v379 = vsub.s32 0, %v378
      %v380 = vsel %vm374, %v379, %v378
      %vm381 = vcmp.lt.s32.totalorder %v343, 0
      %v382 = vsub.s32 0, %v343
      %v383 = vsel %vm381, %v382, %v343
      %v384 = vshrl.u32 %v383, 4
      %v385 = vand.u32 %v383, 15
      %v386 = vsub.s32 0, %v385
      %v387 = vsel %vm381, %v386, %v385
      %vm388 = vcmp.lt.s32.totalorder %v344, 0
      %v389 = vsub.s32 0, %v344
      %v390 = vsel %vm388, %v389, %v344
      %v391 = vshrl.u32 %v390, 4
      %v392 = vand.u32 %v390, 15
      %v393 = vsub.s32 0, %v392
      %v394 = vsel %vm388, %v393, %v392
      %vm395 = vcmp.lt.s32.totalorder %v345, 0
      %v396 = vsub.s32 0, %v345
      %v397 = vsel %vm395, %v396, %v345
      %v398 = vshrl.u32 %v397, 4
      %v399 = vand.u32 %v397, 15
      %v400 = vsub.s32 0, %v399
      %v401 = vsel %vm395, %v400, %v399
      %vm402 = vcmp.lt.s32.totalorder %v346, 0
      %v403 = vsub.s32 0, %v346
      %v404 = vsel %vm402, %v403, %v346
      %v405 = vshrl.u32 %v404, 4
      %v406 = vand.u32 %v404, 15
      %v407 = vsub.s32 0, %v406
      %v408 = vsel %vm402, %v407, %v406
      %vm409 = vcmp.lt.s32.totalorder %v347, 0
      %v410 = vsub.s32 0, %v347
      %v411 = vsel %vm409, %v410, %v347
      %v412 = vshrl.u32 %v411, 4
      %v413 = vand.u32 %v411, 15
      %v414 = vsub.s32 0, %v413
      %v415 = vsel %vm409, %v414, %v413
      %vm416 = vcmp.lt.s32.totalorder %v348, 0
      %v417 = vsub.s32 0, %v348
      %v418 = vsel %vm416, %v417, %v348
      %v419 = vshrl.u32 %v418, 4
      %v420 = vand.u32 %v418, 15
      %v421 = vsub.s32 0, %v420
      %v422 = vsel %vm416, %v421, %v420
      %vm423 = vcmp.lt.s32.totalorder %v349, 0
      %v424 = vsub.s32 0, %v349
      %v425 = vsel %vm423, %v424, %v349
      %v426 = vshrl.u32 %v425, 4
      %v427 = vand.u32 %v425, 15
      %v428 = vsub.s32 0, %v427
      %v429 = vsel %vm423, %v428, %v427
      %vm430 = vcmp.lt.s32.totalorder %v350, 0
      %v431 = vsub.s32 0, %v350
      %v432 = vsel %vm430, %v431, %v350
      %v433 = vshrl.u32 %v432, 4
      %v434 = vand.u32 %v432, 15
      %v435 = vsub.s32 0, %v434
      %v436 = vsel %vm430, %v435, %v434
      %vm437 = vcmp.lt.s32.totalorder %v351, 0
      %v438 = vsub.s32 0, %v351
      %v439 = vsel %vm437, %v438, %v351
      %v440 = vshrl.u32 %v439, 4
      %v441 = vand.u32 %v439, 15
      %v442 = vsub.s32 0, %v441
      %v443 = vsel %vm437, %v442, %v441
      %vm444 = vcmp.lt.s32.totalorder %v352, 0
      %v445 = vsub.s32 0, %v352
      %v446 = vsel %vm444, %v445, %v352
      %v447 = vshrl.u32 %v446, 4
      %v448 = vand.u32 %v446, 15
      %v449 = vsub.s32 0, %v448
      %v450 = vsel %vm444, %v449, %v448
      %vm451 = vcmp.lt.s32.totalorder %v353, 0
      %v452 = vsub.s32 0, %v353
      %v453 = vsel %vm451, %v452, %v353
      %v454 = vshrl.u32 %v453, 4
      %v455 = vand.u32 %v453, 15
      %v456 = vsub.s32 0, %v455
      %v457 = vsel %vm451, %v456, %v455
      %vm458 = vcmp.lt.s32.totalorder %v354, 0
      %v459 = vsub.s32 0, %v354
      %v460 = vsel %vm458, %v459, %v354
      %v461 = vshrl.u32 %v460, 4
      %v462 = vand.u32 %v460, 15
      %v463 = vsub.s32 0, %v462
      %v464 = vsel %vm458, %v463, %v462
      %vm465 = vcmp.lt.s32.totalorder %v355, 0
      %v466 = vsub.s32 0, %v355
      %v467 = vsel %vm465, %v466, %v355
      %v468 = vshrl.u32 %v467, 4
      %v469 = vand.u32 %v467, 15
      %v470 = vsub.s32 0, %v469
      %v471 = vsel %vm465, %v470, %v469
      %vm472 = vcmp.lt.s32.totalorder %v356, 0
      %v473 = vsub.s32 0, %v356
      %v474 = vsel %vm472, %v473, %v356
      %v475 = vshrl.u32 %v474, 4
      %v476 = vand.u32 %v474, 15
      %v477 = vsub.s32 0, %v476
      %v478 = vsel %vm472, %v477, %v476
      %vm479 = vcmp.lt.s32.totalorder %v357, 0
      %v480 = vsub.s32 0, %v357
      %v481 = vsel %vm479, %v480, %v357
      %v482 = vshrl.u32 %v481, 4
      %v483 = vand.u32 %v481, 15
      %v484 = vsub.s32 0, %v483
      %v485 = vsel %vm479, %v484, %v483
      %vm486 = vcmp.lt.s32.totalorder %v358, 0
      %v487 = vsub.s32 0, %v358
      %v488 = vsel %vm486, %v487, %v358
      %v489 = vshrl.u32 %v488, 4
      %v490 = vand.u32 %v488, 15
      %v491 = vsub.s32 0, %v490
      %v492 = vsel %vm486, %v491, %v490
      %vm493 = vcmp.lt.s32.totalorder %v359, 0
      %v494 = vsub.s32 0, %v359
      %v495 = vsel %vm493, %v494, %v359
      %v496 = vshrl.u32 %v495, 4
      %v497 = vand.u32 %v495, 15
      %v498 = vsub.s32 0, %v497
      %v499 = vsel %vm493, %v498, %v497
      %vm500 = vcmp.lt.s32.totalorder %v360, 0
      %v501 = vsub.s32 0, %v360
      %v502 = vsel %vm500, %v501, %v360
      %v503 = vshrl.u32 %v502, 4
      %v504 = vand.u32 %v502, 15
      %v505 = vsub.s32 0, %v504
      %v506 = vsel %vm500, %v505, %v504
      %vm507 = vcmp.lt.s32.totalorder %v361, 0
      %v508 = vsub.s32 0, %v361
      %v509 = vsel %vm507, %v508, %v361
      %v510 = vshrl.u32 %v509, 4
      %v511 = vand.u32 %v509, 15
      %v512 = vsub.s32 0, %v511
      %v513 = vsel %vm507, %v512, %v511
      %vm514 = vcmp.lt.s32.totalorder %v362, 0
      %v515 = vsub.s32 0, %v362
      %v516 = vsel %vm514, %v515, %v362
      %v517 = vshrl.u32 %v516, 4
      %v518 = vand.u32 %v516, 15
      %v519 = vsub.s32 0, %v518
      %v520 = vsel %vm514, %v519, %v518
      %vm521 = vcmp.lt.s32.totalorder %v363, 0
      %v522 = vsub.s32 0, %v363
      %v523 = vsel %vm521, %v522, %v363
      %v524 = vshrl.u32 %v523, 4
      %v525 = vand.u32 %v523, 15
      %v526 = vsub.s32 0, %v525
      %v527 = vsel %vm521, %v526, %v525
      %vm528 = vcmp.lt.s32.totalorder %v364, 0
      %v529 = vsub.s32 0, %v364
      %v530 = vsel %vm528, %v529, %v364
      %v531 = vshrl.u32 %v530, 4
      %v532 = vand.u32 %v530, 15
      %v533 = vsub.s32 0, %v532
      %v534 = vsel %vm528, %v533, %v532
      %vm535 = vcmp.lt.s32.totalorder %v365, 0
      %v536 = vsub.s32 0, %v365
      %v537 = vsel %vm535, %v536, %v365
      %v538 = vshrl.u32 %v537, 4
      %v539 = vand.u32 %v537, 15
      %v540 = vsub.s32 0, %v539
      %v541 = vsel %vm535, %v540, %v539
      %vm542 = vcmp.lt.s32.totalorder %v366, 0
      %v543 = vsub.s32 0, %v366
      %v544 = vsel %vm542, %v543, %v366
      %v545 = vshrl.u32 %v544, 4
      %v546 = vand.u32 %v544, 15
      %v547 = vsub.s32 0, %v546
      %v548 = vsel %vm542, %v547, %v546
      %vm549 = vcmp.lt.s32.totalorder %v367, 0
      %v550 = vsub.s32 0, %v367
      %v551 = vsel %vm549, %v550, %v367
      %v552 = vshrl.u32 %v551, 4
      %v553 = vand.u32 %v551, 15
      %v554 = vsub.s32 0, %v553
      %v555 = vsel %vm549, %v554, %v553
      %vm556 = vcmp.lt.s32.totalorder %v368, 0
      %v557 = vsub.s32 0, %v368
      %v558 = vsel %vm556, %v557, %v368
      %v559 = vshrl.u32 %v558, 4
      %v560 = vand.u32 %v558, 15
      %v561 = vsub.s32 0, %v560
      %v562 = vsel %vm556, %v561, %v560
      %vm563 = vcmp.lt.s32.totalorder %v369, 0
      %v564 = vsub.s32 0, %v369
      %v565 = vsel %vm563, %v564, %v369
      %v566 = vshrl.u32 %v565, 4
      %v567 = vand.u32 %v565, 15
      %v568 = vsub.s32 0, %v567
      %v569 = vsel %vm563, %v568, %v567
      %vm570 = vcmp.lt.s32.totalorder %v370, 0
      %v571 = vsub.s32 0, %v370
      %v572 = vsel %vm570, %v571, %v370
      %v573 = vshrl.u32 %v572, 4
      %v574 = vand.u32 %v572, 15
      %v575 = vsub.s32 0, %v574
      %v576 = vsel %vm570, %v575, %v574
      %vm577 = vcmp.lt.s32.totalorder %v371, 0
      %v578 = vsub.s32 0, %v371
      %v579 = vsel %vm577, %v578, %v371
      %v580 = vshrl.u32 %v579, 4
      %v581 = vand.u32 %v579, 15
      %v582 = vsub.s32 0, %v581
      %v583 = vsel %vm577, %v582, %v581
      %vm584 = vcmp.lt.s32.totalorder %v372, 0
      %v585 = vsub.s32 0, %v372
      %v586 = vsel %vm584, %v585, %v372
      %v587 = vshrl.u32 %v586, 4
      %v588 = vand.u32 %v586, 15
      %v589 = vsub.s32 0, %v588
      %v590 = vsel %vm584, %v589, %v588
      %vm591 = vcmp.lt.s32.totalorder %v373, 0
      %v592 = vsub.s32 0, %v373
      %v593 = vsel %vm591, %v592, %v373
      %v594 = vshrl.u32 %v593, 4
      %v595 = vand.u32 %v593, 15
      %v596 = vsub.s32 0, %v595
      %v597 = vsel %vm591, %v596, %v595
      %vm598 = vcmp.ne.s32.totalorder %v380, 0
      %vm599 = vcmp.ne.s32.totalorder %v387, 0
      %vm600 = vcmp.ne.s32.totalorder %v394, 0
      %vm601 = vcmp.ne.s32.totalorder %v401, 0
      %vm602 = vcmp.ne.s32.totalorder %v408, 0
      %vm603 = vcmp.ne.s32.totalorder %v415, 0
      %vm604 = vcmp.ne.s32.totalorder %v422, 0
      %vm605 = vcmp.ne.s32.totalorder %v429, 0
      %vm606 = vcmp.ne.s32.totalorder %v436, 0
      %vm607 = vcmp.ne.s32.totalorder %v443, 0
      %vm608 = vcmp.ne.s32.totalorder %v450, 0
      %vm609 = vcmp.ne.s32.totalorder %v457, 0
      %vm610 = vcmp.ne.s32.totalorder %v464, 0
      %vm611 = vcmp.ne.s32.totalorder %v471, 0
      %vm612 = vcmp.ne.s32.totalorder %v478, 0
      %vm613 = vcmp.ne.s32.totalorder %v485, 0
      %vm614 = vcmp.ne.s32.totalorder %v492, 0
      %vm615 = vcmp.ne.s32.totalorder %v499, 0
      %vm616 = vcmp.ne.s32.totalorder %v506, 0
      %vm617 = vcmp.ne.s32.totalorder %v513, 0
      %vm618 = vcmp.ne.s32.totalorder %v520, 0
      %vm619 = vcmp.ne.s32.totalorder %v527, 0
      %vm620 = vcmp.ne.s32.totalorder %v534, 0
      %vm621 = vcmp.ne.s32.totalorder %v541, 0
      %vm622 = vcmp.ne.s32.totalorder %v548, 0
      %vm623 = vcmp.ne.s32.totalorder %v555, 0
      %vm624 = vcmp.ne.s32.totalorder %v562, 0
      %vm625 = vcmp.ne.s32.totalorder %v569, 0
      %vm626 = vcmp.ne.s32.totalorder %v576, 0
      %vm627 = vcmp.ne.s32.totalorder %v583, 0
      %vm628 = vcmp.ne.s32.totalorder %v590, 0
      %vm629 = vcmp.ne.s32.totalorder %v597, 0
      %vm630 = vcmp.lt.s32.totalorder %v380, 0
      %vm631 = vcmp.lt.s32.totalorder %v387, 0
      %vm632 = vcmp.lt.s32.totalorder %v394, 0
      %vm633 = vcmp.lt.s32.totalorder %v401, 0
      %vm634 = vcmp.lt.s32.totalorder %v408, 0
      %vm635 = vcmp.lt.s32.totalorder %v415, 0
      %vm636 = vcmp.lt.s32.totalorder %v422, 0
      %vm637 = vcmp.lt.s32.totalorder %v429, 0
      %vm638 = vcmp.lt.s32.totalorder %v436, 0
      %vm639 = vcmp.lt.s32.totalorder %v443, 0
      %vm640 = vcmp.lt.s32.totalorder %v450, 0
      %vm641 = vcmp.lt.s32.totalorder %v457, 0
      %vm642 = vcmp.lt.s32.totalorder %v464, 0
      %vm643 = vcmp.lt.s32.totalorder %v471, 0
      %vm644 = vcmp.lt.s32.totalorder %v478, 0
      %vm645 = vcmp.lt.s32.totalorder %v485, 0
      %vm646 = vcmp.lt.s32.totalorder %v492, 0
      %vm647 = vcmp.lt.s32.totalorder %v499, 0
      %vm648 = vcmp.lt.s32.totalorder %v506, 0
      %vm649 = vcmp.lt.s32.totalorder %v513, 0
      %vm650 = vcmp.lt.s32.totalorder %v520, 0
      %vm651 = vcmp.lt.s32.totalorder %v527, 0
      %vm652 = vcmp.lt.s32.totalorder %v534, 0
      %vm653 = vcmp.lt.s32.totalorder %v541, 0
      %vm654 = vcmp.lt.s32.totalorder %v548, 0
      %vm655 = vcmp.lt.s32.totalorder %v555, 0
      %vm656 = vcmp.lt.s32.totalorder %v562, 0
      %vm657 = vcmp.lt.s32.totalorder %v569, 0
      %vm658 = vcmp.lt.s32.totalorder %v576, 0
      %vm659 = vcmp.lt.s32.totalorder %v583, 0
      %vm660 = vcmp.lt.s32.totalorder %v590, 0
      %vm661 = vcmp.lt.s32.totalorder %v597, 0
      %vm662 = vmand %vm630, %vm598
      %vm663 = vmand %vm631, %vm599
      %vm664 = vmand %vm632, %vm600
      %vm665 = vmand %vm633, %vm601
      %vm666 = vmand %vm634, %vm602
      %vm667 = vmand %vm635, %vm603
      %vm668 = vmand %vm636, %vm604
      %vm669 = vmand %vm637, %vm605
      %vm670 = vmand %vm638, %vm606
      %vm671 = vmand %vm639, %vm607
      %vm672 = vmand %vm640, %vm608
      %vm673 = vmand %vm641, %vm609
      %vm674 = vmand %vm642, %vm610
      %vm675 = vmand %vm643, %vm611
      %vm676 = vmand %vm644, %vm612
      %vm677 = vmand %vm645, %vm613
      %vm678 = vmand %vm646, %vm614
      %vm679 = vmand %vm647, %vm615
      %vm680 = vmand %vm648, %vm616
      %vm681 = vmand %vm649, %vm617
      %vm682 = vmand %vm650, %vm618
      %vm683 = vmand %vm651, %vm619
      %vm684 = vmand %vm652, %vm620
      %vm685 = vmand %vm653, %vm621
      %vm686 = vmand %vm654, %vm622
      %vm687 = vmand %vm655, %vm623
      %vm688 = vmand %vm656, %vm624
      %vm689 = vmand %vm657, %vm625
      %vm690 = vmand %vm658, %vm626
      %vm691 = vmand %vm659, %vm627
      %vm692 = vmand %vm660, %vm628
      %vm693 = vmand %vm661, %vm629
      %v694 = vadd.s32 %v380, 16
      %v695 = vadd.s32 %v387, 16
      %v696 = vadd.s32 %v394, 16
      %v697 = vadd.s32 %v401, 16
      %v698 = vadd.s32 %v408, 16
      %v699 = vadd.s32 %v415, 16
      %v700 = vadd.s32 %v422, 16
      %v701 = vadd.s32 %v429, 16
      %v702 = vadd.s32 %v436, 16
      %v703 = vadd.s32 %v443, 16
      %v704 = vadd.s32 %v450, 16
      %v705 = vadd.s32 %v457, 16
      %v706 = vadd.s32 %v464, 16
      %v707 = vadd.s32 %v471, 16
      %v708 = vadd.s32 %v478, 16
      %v709 = vadd.s32 %v485, 16
      %v710 = vadd.s32 %v492, 16
      %v711 = vadd.s32 %v499, 16
      %v712 = vadd.s32 %v506, 16
      %v713 = vadd.s32 %v513, 16
      %v714 = vadd.s32 %v520, 16
      %v715 = vadd.s32 %v527, 16
      %v716 = vadd.s32 %v534, 16
      %v717 = vadd.s32 %v541, 16
      %v718 = vadd.s32 %v548, 16
      %v719 = vadd.s32 %v555, 16
      %v720 = vadd.s32 %v562, 16
      %v721 = vadd.s32 %v569, 16
      %v722 = vadd.s32 %v576, 16
      %v723 = vadd.s32 %v583, 16
      %v724 = vadd.s32 %v590, 16
      %v725 = vadd.s32 %v597, 16
      %v726 = vsel %vm662, %v694, %v380
      %v727 = vsel %vm663, %v695, %v387
      %v728 = vsel %vm664, %v696, %v394
      %v729 = vsel %vm665, %v697, %v401
      %v730 = vsel %vm666, %v698, %v408
      %v731 = vsel %vm667, %v699, %v415
      %v732 = vsel %vm668, %v700, %v422
      %v733 = vsel %vm669, %v701, %v429
      %v734 = vsel %vm670, %v702, %v436
      %v735 = vsel %vm671, %v703, %v443
      %v736 = vsel %vm672, %v704, %v450
      %v737 = vsel %vm673, %v705, %v457
      %v738 = vsel %vm674, %v706, %v464
      %v739 = vsel %vm675, %v707, %v471
      %v740 = vsel %vm676, %v708, %v478
      %v741 = vsel %vm677, %v709, %v485
      %v742 = vsel %vm678, %v710, %v492
      %v743 = vsel %vm679, %v711, %v499
      %v744 = vsel %vm680, %v712, %v506
      %v745 = vsel %vm681, %v713, %v513
      %v746 = vsel %vm682, %v714, %v520
      %v747 = vsel %vm683, %v715, %v527
      %v748 = vsel %vm684, %v716, %v534
      %v749 = vsel %vm685, %v717, %v541
      %v750 = vsel %vm686, %v718, %v548
      %v751 = vsel %vm687, %v719, %v555
      %v752 = vsel %vm688, %v720, %v562
      %v753 = vsel %vm689, %v721, %v569
      %v754 = vsel %vm690, %v722, %v576
      %v755 = vsel %vm691, %v723, %v583
      %v756 = vsel %vm692, %v724, %v590
      %v757 = vsel %vm693, %v725, %v597
      %vm758 = vcmp.ne.s32.totalorder %v726, 0
      %vm759 = vcmp.ne.s32.totalorder %v727, 0
      %vm760 = vcmp.ne.s32.totalorder %v728, 0
      %vm761 = vcmp.ne.s32.totalorder %v729, 0
      %vm762 = vcmp.ne.s32.totalorder %v730, 0
      %vm763 = vcmp.ne.s32.totalorder %v731, 0
      %vm764 = vcmp.ne.s32.totalorder %v732, 0
      %vm765 = vcmp.ne.s32.totalorder %v733, 0
      %vm766 = vcmp.ne.s32.totalorder %v734, 0
      %vm767 = vcmp.ne.s32.totalorder %v735, 0
      %vm768 = vcmp.ne.s32.totalorder %v736, 0
      %vm769 = vcmp.ne.s32.totalorder %v737, 0
      %vm770 = vcmp.ne.s32.totalorder %v738, 0
      %vm771 = vcmp.ne.s32.totalorder %v739, 0
      %vm772 = vcmp.ne.s32.totalorder %v740, 0
      %vm773 = vcmp.ne.s32.totalorder %v741, 0
      %vm774 = vcmp.ne.s32.totalorder %v742, 0
      %vm775 = vcmp.ne.s32.totalorder %v743, 0
      %vm776 = vcmp.ne.s32.totalorder %v744, 0
      %vm777 = vcmp.ne.s32.totalorder %v745, 0
      %vm778 = vcmp.ne.s32.totalorder %v746, 0
      %vm779 = vcmp.ne.s32.totalorder %v747, 0
      %vm780 = vcmp.ne.s32.totalorder %v748, 0
      %vm781 = vcmp.ne.s32.totalorder %v749, 0
      %vm782 = vcmp.ne.s32.totalorder %v750, 0
      %vm783 = vcmp.ne.s32.totalorder %v751, 0
      %vm784 = vcmp.ne.s32.totalorder %v752, 0
      %vm785 = vcmp.ne.s32.totalorder %v753, 0
      %vm786 = vcmp.ne.s32.totalorder %v754, 0
      %vm787 = vcmp.ne.s32.totalorder %v755, 0
      %vm788 = vcmp.ne.s32.totalorder %v756, 0
      %vm789 = vcmp.ne.s32.totalorder %v757, 0
      %vm790 = vcmp.ne.s32.totalorder %v726, 15
      %vm791 = vcmp.ne.s32.totalorder %v727, 15
      %vm792 = vcmp.ne.s32.totalorder %v728, 15
      %vm793 = vcmp.ne.s32.totalorder %v729, 15
      %vm794 = vcmp.ne.s32.totalorder %v730, 15
      %vm795 = vcmp.ne.s32.totalorder %v731, 15
      %vm796 = vcmp.ne.s32.totalorder %v732, 15
      %vm797 = vcmp.ne.s32.totalorder %v733, 15
      %vm798 = vcmp.ne.s32.totalorder %v734, 15
      %vm799 = vcmp.ne.s32.totalorder %v735, 15
      %vm800 = vcmp.ne.s32.totalorder %v736, 15
      %vm801 = vcmp.ne.s32.totalorder %v737, 15
      %vm802 = vcmp.ne.s32.totalorder %v738, 15
      %vm803 = vcmp.ne.s32.totalorder %v739, 15
      %vm804 = vcmp.ne.s32.totalorder %v740, 15
      %vm805 = vcmp.ne.s32.totalorder %v741, 15
      %vm806 = vcmp.ne.s32.totalorder %v742, 15
      %vm807 = vcmp.ne.s32.totalorder %v743, 15
      %vm808 = vcmp.ne.s32.totalorder %v744, 15
      %vm809 = vcmp.ne.s32.totalorder %v745, 15
      %vm810 = vcmp.ne.s32.totalorder %v746, 15
      %vm811 = vcmp.ne.s32.totalorder %v747, 15
      %vm812 = vcmp.ne.s32.totalorder %v748, 15
      %vm813 = vcmp.ne.s32.totalorder %v749, 15
      %vm814 = vcmp.ne.s32.totalorder %v750, 15
      %vm815 = vcmp.ne.s32.totalorder %v751, 15
      %vm816 = vcmp.ne.s32.totalorder %v752, 15
      %vm817 = vcmp.ne.s32.totalorder %v753, 15
      %vm818 = vcmp.ne.s32.totalorder %v754, 15
      %vm819 = vcmp.ne.s32.totalorder %v755, 15
      %vm820 = vcmp.ne.s32.totalorder %v756, 15
      %vm821 = vcmp.ne.s32.totalorder %v757, 15
      %v822 = vld [vmem:[%s327] sm:$0xff]
      %v823 = vld [vmem:[%s327 + $0x8] sm:$0xff]
      %v824 = vld [vmem:[%s327 + $0x10] sm:$0xff]
      %v825 = vld [vmem:[%s327 + $0x18] sm:$0xff]
      %v826 = vld [vmem:[%s327 + $0x20] sm:$0xff]
      %v827 = vld [vmem:[%s327 + $0x28] sm:$0xff]
      %v828 = vld [vmem:[%s327 + $0x30] sm:$0xff]
      %v829 = vld [vmem:[%s327 + $0x38] sm:$0xff]
      %v830 = vld [vmem:[%s327 + $0x40] sm:$0xff]
      %v831 = vld [vmem:[%s327 + $0x48] sm:$0xff]
      %v832 = vld [vmem:[%s327 + $0x50] sm:$0xff]
      %v833 = vld [vmem:[%s327 + $0x58] sm:$0xff]
      %v834 = vld [vmem:[%s327 + $0x60] sm:$0xff]
      %v835 = vld [vmem:[%s327 + $0x68] sm:$0xff]
      %v836 = vld [vmem:[%s327 + $0x70] sm:$0xff]
      %v837 = vld [vmem:[%s327 + $0x78] sm:$0xff]
      %v838 = vld [vmem:[%s327 + $0x80] sm:$0xff]
      %v839 = vld [vmem:[%s327 + $0x88] sm:$0xff]
      %v840 = vld [vmem:[%s327 + $0x90] sm:$0xff]
      %v841 = vld [vmem:[%s327 + $0x98] sm:$0xff]
      %v842 = vld [vmem:[%s327 + $0xa0] sm:$0xff]
      %v843 = vld [vmem:[%s327 + $0xa8] sm:$0xff]
      %v844 = vld [vmem:[%s327 + $0xb0] sm:$0xff]
      %v845 = vld [vmem:[%s327 + $0xb8] sm:$0xff]
      %v846 = vld [vmem:[%s327 + $0xc0] sm:$0xff]
      %v847 = vld [vmem:[%s327 + $0xc8] sm:$0xff]
      %v848 = vld [vmem:[%s327 + $0xd0] sm:$0xff]
      %v849 = vld [vmem:[%s327 + $0xd8] sm:$0xff]
      %v850 = vld [vmem:[%s327 + $0xe0] sm:$0xff]
      %v851 = vld [vmem:[%s327 + $0xe8] sm:$0xff]
      %v852 = vld [vmem:[%s327 + $0xf0] sm:$0xff]
      %v853 = vld [vmem:[%s327 + $0xf8] sm:$0xff]
      %v854 = vpack.c.bf16 %v823, %v822
      %v855 = vpack.c.bf16 %v825, %v824
      %v856 = vpack.c.bf16 %v827, %v826
      %v857 = vpack.c.bf16 %v829, %v828
      %v858 = vpack.c.bf16 %v831, %v830
      %v859 = vpack.c.bf16 %v833, %v832
      %v860 = vpack.c.bf16 %v835, %v834
      %v861 = vpack.c.bf16 %v837, %v836
      %v862 = vpack.c.bf16 %v839, %v838
      %v863 = vpack.c.bf16 %v841, %v840
      %v864 = vpack.c.bf16 %v843, %v842
      %v865 = vpack.c.bf16 %v845, %v844
      %v866 = vpack.c.bf16 %v847, %v846
      %v867 = vpack.c.bf16 %v849, %v848
      %v868 = vpack.c.bf16 %v851, %v850
      %v869 = vpack.c.bf16 %v853, %v852
      %870 = vst.msk [vmem:[#allocation2 + $0x10] sm:$0xff] %vm336, %v854
      %871 = vst.msk [vmem:[#allocation2 + $0x18] sm:$0xff] %vm336, %v855
      %872 = vst.msk [vmem:[#allocation2 + $0x20] sm:$0xff] %vm336, %v856
      %873 = vst.msk [vmem:[#allocation2 + $0x28] sm:$0xff] %vm336, %v857
      %874 = vst.msk [vmem:[#allocation2 + $0x30] sm:$0xff] %vm336, %v858
      %875 = vst.msk [vmem:[#allocation2 + $0x38] sm:$0xff] %vm336, %v859
      %876 = vst.msk [vmem:[#allocation2 + $0x40] sm:$0xff] %vm336, %v860
      %877 = vst.msk [vmem:[#allocation2 + $0x48] sm:$0xff] %vm336, %v861
      %878 = vst.msk [vmem:[#allocation2 + $0x50] sm:$0xff] %vm336, %v862
      %879 = vst.msk [vmem:[#allocation2 + $0x58] sm:$0xff] %vm336, %v863
      %880 = vst.msk [vmem:[#allocation2 + $0x60] sm:$0xff] %vm336, %v864
      %881 = vst.msk [vmem:[#allocation2 + $0x68] sm:$0xff] %vm336, %v865
      %882 = vst.msk [vmem:[#allocation2 + $0x70] sm:$0xff] %vm336, %v866
      %883 = vst.msk [vmem:[#allocation2 + $0x78] sm:$0xff] %vm336, %v867
      %884 = vst.msk [vmem:[#allocation2 + $0x80] sm:$0xff] %vm336, %v868
      %885 = vst.msk [vmem:[#allocation2 + $0x88] sm:$0xff] %vm336, %v869
      %v886 = vld [vmem:[#allocation2] sm:$0x80]
      %v887 = vld [vmem:[#allocation2 + $0x8] sm:$0xff]
      %v888 = vld [vmem:[#allocation2 + $0x10] sm:$0xff]
      %v889 = vld [vmem:[#allocation2 + $0x18] sm:$0xff]
      %v890 = vld [vmem:[#allocation2 + $0x20] sm:$0xff]
      %v891 = vld [vmem:[#allocation2 + $0x28] sm:$0xff]
      %v892 = vld [vmem:[#allocation2 + $0x30] sm:$0xff]
      %v893 = vld [vmem:[#allocation2 + $0x38] sm:$0xff]
      %v894 = vld [vmem:[#allocation2 + $0x40] sm:$0xff]
      %v895 = vld [vmem:[#allocation2 + $0x48] sm:$0xff]
      %v896 = vld [vmem:[#allocation2 + $0x50] sm:$0xff]
      %v897 = vld [vmem:[#allocation2 + $0x58] sm:$0xff]
      %v898 = vld [vmem:[#allocation2 + $0x60] sm:$0xff]
      %v899 = vld [vmem:[#allocation2 + $0x68] sm:$0xff]
      %v900 = vld [vmem:[#allocation2 + $0x70] sm:$0xff]
      %v901 = vld [vmem:[#allocation2 + $0x78] sm:$0xff]
      %v902 = vld [vmem:[#allocation2 + $0x80] sm:$0xff]
      %vm903 = vmpackc.low %vm758, %vm758
      %vm904 = vmpackc.low %vm759, %vm759
      %vm905 = vmpackc.low %vm760, %vm760
      %vm906 = vmpackc.low %vm761, %vm761
      %vm907 = vmpackc.low %vm762, %vm762
      %vm908 = vmpackc.low %vm763, %vm763
      %vm909 = vmpackc.low %vm764, %vm764
      %vm910 = vmpackc.low %vm765, %vm765
      %vm911 = vmpackc.low %vm766, %vm766
      %vm912 = vmpackc.low %vm767, %vm767
      %vm913 = vmpackc.low %vm768, %vm768
      %vm914 = vmpackc.low %vm769, %vm769
      %vm915 = vmpackc.low %vm770, %vm770
      %vm916 = vmpackc.low %vm771, %vm771
      %vm917 = vmpackc.low %vm772, %vm772
      %vm918 = vmpackc.low %vm773, %vm773
      %vm919 = vmpackc.low %vm774, %vm774
      %vm920 = vmpackc.low %vm775, %vm775
      %vm921 = vmpackc.low %vm776, %vm776
      %vm922 = vmpackc.low %vm777, %vm777
      %vm923 = vmpackc.low %vm778, %vm778
      %vm924 = vmpackc.low %vm779, %vm779
      %vm925 = vmpackc.low %vm780, %vm780
      %vm926 = vmpackc.low %vm781, %vm781
      %vm927 = vmpackc.low %vm782, %vm782
      %vm928 = vmpackc.low %vm783, %vm783
      %vm929 = vmpackc.low %vm784, %vm784
      %vm930 = vmpackc.low %vm785, %vm785
      %vm931 = vmpackc.low %vm786, %vm786
      %vm932 = vmpackc.low %vm787, %vm787
      %vm933 = vmpackc.low %vm788, %vm788
      %vm934 = vmpackc.low %vm789, %vm789
      %v935 = vsel %vm903, 65537, 0
      %v936 = vsel %vm904, 65537, 0
      %v937 = vsel %vm905, 65537, 0
      %v938 = vsel %vm906, 65537, 0
      %v939 = vsel %vm907, 65537, 0
      %v940 = vsel %vm908, 65537, 0
      %v941 = vsel %vm909, 65537, 0
      %v942 = vsel %vm910, 65537, 0
      %v943 = vsel %vm911, 65537, 0
      %v944 = vsel %vm912, 65537, 0
      %v945 = vsel %vm913, 65537, 0
      %v946 = vsel %vm914, 65537, 0
      %v947 = vsel %vm915, 65537, 0
      %v948 = vsel %vm916, 65537, 0
      %v949 = vsel %vm917, 65537, 0
      %v950 = vsel %vm918, 65537, 0
      %v951 = vsel %vm919, 65537, 0
      %v952 = vsel %vm920, 65537, 0
      %v953 = vsel %vm921, 65537, 0
      %v954 = vsel %vm922, 65537, 0
      %v955 = vsel %vm923, 65537, 0
      %v956 = vsel %vm924, 65537, 0
      %v957 = vsel %vm925, 65537, 0
      %v958 = vsel %vm926, 65537, 0
      %v959 = vsel %vm927, 65537, 0
      %v960 = vsel %vm928, 65537, 0
      %v961 = vsel %vm929, 65537, 0
      %v962 = vsel %vm930, 65537, 0
      %v963 = vsel %vm931, 65537, 0
      %v964 = vsel %vm932, 65537, 0
      %v965 = vsel %vm933, 65537, 0
      %v966 = vsel %vm934, 65537, 0
      %v967 = vunpack.c.l.b16 %v935
      %v968 = vunpack.c.l.b16 %v936
      %v969 = vunpack.c.l.b16 %v937
      %v970 = vunpack.c.l.b16 %v938
      %v971 = vunpack.c.l.b16 %v939
      %v972 = vunpack.c.l.b16 %v940
      %v973 = vunpack.c.l.b16 %v941
      %v974 = vunpack.c.l.b16 %v942
      %v975 = vunpack.c.l.b16 %v943
      %v976 = vunpack.c.l.b16 %v944
      %v977 = vunpack.c.l.b16 %v945
      %v978 = vunpack.c.l.b16 %v946
      %v979 = vunpack.c.l.b16 %v947
      %v980 = vunpack.c.l.b16 %v948
      %v981 = vunpack.c.l.b16 %v949
      %v982 = vunpack.c.l.b16 %v950
      %v983 = vunpack.c.l.b16 %v951
      %v984 = vunpack.c.l.b16 %v952
      %v985 = vunpack.c.l.b16 %v953
      %v986 = vunpack.c.l.b16 %v954
      %v987 = vunpack.c.l.b16 %v955
      %v988 = vunpack.c.l.b16 %v956
      %v989 = vunpack.c.l.b16 %v957
      %v990 = vunpack.c.l.b16 %v958
      %v991 = vunpack.c.l.b16 %v959
      %v992 = vunpack.c.l.b16 %v960
      %v993 = vunpack.c.l.b16 %v961
      %v994 = vunpack.c.l.b16 %v962
      %v995 = vunpack.c.l.b16 %v963
      %v996 = vunpack.c.l.b16 %v964
      %v997 = vunpack.c.l.b16 %v965
      %v998 = vunpack.c.l.b16 %v966
      %v999 = vpack.c.b16 %v968, %v967
      %v1000 = vpack.c.b16 %v970, %v969
      %v1001 = vpack.c.b16 %v972, %v971
      %v1002 = vpack.c.b16 %v974, %v973
      %v1003 = vpack.c.b16 %v976, %v975
      %v1004 = vpack.c.b16 %v978, %v977
      %v1005 = vpack.c.b16 %v980, %v979
      %v1006 = vpack.c.b16 %v982, %v981
      %v1007 = vpack.c.b16 %v984, %v983
      %v1008 = vpack.c.b16 %v986, %v985
      %v1009 = vpack.c.b16 %v988, %v987
      %v1010 = vpack.c.b16 %v990, %v989
      %v1011 = vpack.c.b16 %v992, %v991
      %v1012 = vpack.c.b16 %v994, %v993
      %v1013 = vpack.c.b16 %v996, %v995
      %v1014 = vpack.c.b16 %v998, %v997
      %vm1015 = vsmask.f32 7424
      %v1017 = vshll.u32 %v999, 16
      %v1019 = vrot.slane %v1017, 1
      %v1020 = vshrl.u32 %v999, 16
      %v1022 = vor.u32 %v1020, %v1019
      %v1024 = vshll.u32 %v1000, 16
      %v1026 = vrot.slane %v1024, 1
      %v1027 = vsel %vm1015, %v1022, %v1026
      %v1028 = vshrl.u32 %v1000, 16
      %v1030 = vor.u32 %v1028, %v1026
      %v1032 = vshll.u32 %v1001, 16
      %v1034 = vrot.slane %v1032, 1
      %v1035 = vsel %vm1015, %v1030, %v1034
      %v1036 = vshrl.u32 %v1001, 16
      %v1038 = vor.u32 %v1036, %v1034
      %v1040 = vshll.u32 %v1002, 16
      %v1042 = vrot.slane %v1040, 1
      %v1043 = vsel %vm1015, %v1038, %v1042
      %v1044 = vshrl.u32 %v1002, 16
      %v1046 = vor.u32 %v1044, %v1042
      %v1048 = vshll.u32 %v1003, 16
      %v1050 = vrot.slane %v1048, 1
      %v1051 = vsel %vm1015, %v1046, %v1050
      %v1052 = vshrl.u32 %v1003, 16
      %v1054 = vor.u32 %v1052, %v1050
      %v1056 = vshll.u32 %v1004, 16
      %v1058 = vrot.slane %v1056, 1
      %v1059 = vsel %vm1015, %v1054, %v1058
      %v1060 = vshrl.u32 %v1004, 16
      %v1062 = vor.u32 %v1060, %v1058
      %v1064 = vshll.u32 %v1005, 16
      %v1066 = vrot.slane %v1064, 1
      %v1067 = vsel %vm1015, %v1062, %v1066
      %v1068 = vshrl.u32 %v1005, 16
      %v1070 = vor.u32 %v1068, %v1066
      %v1072 = vshll.u32 %v1006, 16
      %v1074 = vrot.slane %v1072, 1
      %v1075 = vsel %vm1015, %v1070, %v1074
      %v1076 = vshrl.u32 %v1006, 16
      %v1078 = vor.u32 %v1076, %v1074
      %v1080 = vshll.u32 %v1007, 16
      %v1082 = vrot.slane %v1080, 1
      %v1083 = vsel %vm1015, %v1078, %v1082
      %v1084 = vshrl.u32 %v1007, 16
      %v1086 = vor.u32 %v1084, %v1082
      %v1088 = vshll.u32 %v1008, 16
      %v1090 = vrot.slane %v1088, 1
      %v1091 = vsel %vm1015, %v1086, %v1090
      %v1092 = vshrl.u32 %v1008, 16
      %v1094 = vor.u32 %v1092, %v1090
      %v1096 = vshll.u32 %v1009, 16
      %v1098 = vrot.slane %v1096, 1
      %v1099 = vsel %vm1015, %v1094, %v1098
      %v1100 = vshrl.u32 %v1009, 16
      %v1102 = vor.u32 %v1100, %v1098
      %v1104 = vshll.u32 %v1010, 16
      %v1106 = vrot.slane %v1104, 1
      %v1107 = vsel %vm1015, %v1102, %v1106
      %v1108 = vshrl.u32 %v1010, 16
      %v1110 = vor.u32 %v1108, %v1106
      %v1112 = vshll.u32 %v1011, 16
      %v1114 = vrot.slane %v1112, 1
      %v1115 = vsel %vm1015, %v1110, %v1114
      %v1116 = vshrl.u32 %v1011, 16
      %v1118 = vor.u32 %v1116, %v1114
      %v1120 = vshll.u32 %v1012, 16
      %v1122 = vrot.slane %v1120, 1
      %v1123 = vsel %vm1015, %v1118, %v1122
      %v1124 = vshrl.u32 %v1012, 16
      %v1126 = vor.u32 %v1124, %v1122
      %v1128 = vshll.u32 %v1013, 16
      %v1130 = vrot.slane %v1128, 1
      %v1131 = vsel %vm1015, %v1126, %v1130
      %v1132 = vshrl.u32 %v1013, 16
      %v1134 = vor.u32 %v1132, %v1130
      %v1136 = vshll.u32 %v1014, 16
      %v1138 = vrot.slane %v1136, 1
      %v1139 = vsel %vm1015, %v1134, %v1138
      %v1140 = vshrl.u32 %v1014, 16
      %v1142 = vor.u32 %v1140, %v1138
      %vm1143 = vcmp.ne.s16.totalorder %v1019, 0
      %vm1144 = vcmp.ne.s16.totalorder %v1027, 0
      %vm1145 = vcmp.ne.s16.totalorder %v1035, 0
      %vm1146 = vcmp.ne.s16.totalorder %v1043, 0
      %vm1147 = vcmp.ne.s16.totalorder %v1051, 0
      %vm1148 = vcmp.ne.s16.totalorder %v1059, 0
      %vm1149 = vcmp.ne.s16.totalorder %v1067, 0
      %vm1150 = vcmp.ne.s16.totalorder %v1075, 0
      %vm1151 = vcmp.ne.s16.totalorder %v1083, 0
      %vm1152 = vcmp.ne.s16.totalorder %v1091, 0
      %vm1153 = vcmp.ne.s16.totalorder %v1099, 0
      %vm1154 = vcmp.ne.s16.totalorder %v1107, 0
      %vm1155 = vcmp.ne.s16.totalorder %v1115, 0
      %vm1156 = vcmp.ne.s16.totalorder %v1123, 0
      %vm1157 = vcmp.ne.s16.totalorder %v1131, 0
      %vm1158 = vcmp.ne.s16.totalorder %v1139, 0
      %vm1159 = vcmp.ne.s16.totalorder %v1142, 0
      %v1160 = vsel %vm1143, %v886, 0
      %v1161 = vsel %vm1144, %v887, 0
      %v1162 = vsel %vm1145, %v888, 0
      %v1163 = vsel %vm1146, %v889, 0
      %v1164 = vsel %vm1147, %v890, 0
      %v1165 = vsel %vm1148, %v891, 0
      %v1166 = vsel %vm1149, %v892, 0
      %v1167 = vsel %vm1150, %v893, 0
      %v1168 = vsel %vm1151, %v894, 0
      %v1169 = vsel %vm1152, %v895, 0
      %v1170 = vsel %vm1153, %v896, 0
      %v1171 = vsel %vm1154, %v897, 0
      %v1172 = vsel %vm1155, %v898, 0
      %v1173 = vsel %vm1156, %v899, 0
      %v1174 = vsel %vm1157, %v900, 0
      %v1175 = vsel %vm1158, %v901, 0
      %v1176 = vsel %vm1159, %v902, 0
      %v1177 = vld [vmem:[%s1] sm:$0xf]
      %v1178 = vld [vmem:[%s1 + $0x4] sm:$0xf]
      %v1179 = vld [vmem:[%s1 + $0x8] sm:$0xf]
      %v1180 = vld [vmem:[%s1 + $0xc] sm:$0xf]
      %v1181 = vld [vmem:[%s1 + $0x10] sm:$0xf]
      %v1182 = vld [vmem:[%s1 + $0x14] sm:$0xf]
      %v1183 = vld [vmem:[%s1 + $0x18] sm:$0xf]
      %v1184 = vld [vmem:[%s1 + $0x1c] sm:$0xf]
      %s1185 = scalar_lea.vmem %s1, 32
      %v1186 = vld [vmem:[%s1185] sm:$0xf]
      %v1187 = vld [vmem:[%s1185 + $0x4] sm:$0xf]
      %v1188 = vld [vmem:[%s1185 + $0x8] sm:$0xf]
      %v1189 = vld [vmem:[%s1185 + $0xc] sm:$0xf]
      %v1190 = vld [vmem:[%s1185 + $0x10] sm:$0xf]
      %v1191 = vld [vmem:[%s1185 + $0x14] sm:$0xf]
      %v1192 = vld [vmem:[%s1185 + $0x18] sm:$0xf]
      %v1193 = vld [vmem:[%s1185 + $0x1c] sm:$0xf]
      %v1202 = vunpack.c.l.b16 %v1186
      %v1203 = vunpack.c.l.b16 %v1187
      %v1204 = vunpack.c.l.b16 %v1188
      %v1205 = vunpack.c.l.b16 %v1189
      %v1206 = vunpack.c.l.b16 %v1190
      %v1207 = vunpack.c.l.b16 %v1191
      %v1208 = vunpack.c.l.b16 %v1192
      %v1209 = vunpack.c.l.b16 %v1193
      %v1210 = vpack.c.b16 %v1203, %v1202
      %v1211 = vpack.c.b16 %v1205, %v1204
      %v1212 = vpack.c.b16 %v1207, %v1206
      %v1213 = vpack.c.b16 %v1209, %v1208
      %v1219 = vsel %vm336, %v887, 0
      %v1222 = vsel %vm336, %v888, 0
      %v1225 = vsel %vm336, %v889, 0
      %v1228 = vsel %vm336, %v890, 0
      %v1231 = vsel %vm336, %v891, 0
      %v1234 = vsel %vm336, %v892, 0
      %v1237 = vsel %vm336, %v893, 0
      %v1240 = vsel %vm336, %v894, 0
      %v1243 = vsel %vm336, %v895, 0
      %v1246 = vsel %vm336, %v896, 0
      %v1249 = vsel %vm336, %v897, 0
      %v1252 = vsel %vm336, %v898, 0
      %v1255 = vsel %vm336, %v899, 0
      %v1258 = vsel %vm336, %v900, 0
      %v1261 = vsel %vm336, %v901, 0
      %v1264 = vsel %vm336, %v902, 0
      %1266 = vmatprep.subr.bf16.mxu0 0
      %1267 = vmatpush1.bf16.msra.mxu0 %v1210
      %1268 = vmatprep.subr.bf16.mxu0 0
      %1269 = vmatpush1.bf16.msra.mxu0 %v1211
      %1270 = vmatprep.subr.bf16.mxu0 0
      %1271 = vmatpush1.bf16.msra.mxu0 %v1212
      %1272 = vmatprep.subr.bf16.mxu0 0
      %1273 = vmatpush1.bf16.msra.mxu0 %v1213
      %1274 = vmatprep.subr.bf16.mxu0 0
      %1275 = vmatpush1.bf16.msra.mxu0 0
      %1276 = vmatprep.subr.bf16.mxu0 0
      %1277 = vmatpush1.bf16.msra.mxu0 0
      %1278 = vmatprep.subr.bf16.mxu0 0
      %1279 = vmatpush1.bf16.msra.mxu0 0
      %1280 = vmatprep.subr.bf16.mxu0 0
      %1281 = vmatpush1.bf16.msra.mxu0 0
      %1282 = vmatprep.subr.bf16.mxu0 0
      %1283 = vmatpush1.bf16.msra.mxu0 0
      %1284 = vmatprep.subr.bf16.mxu0 0
      %1285 = vmatpush1.bf16.msra.mxu0 0
      %1286 = vmatprep.subr.bf16.mxu0 0
      %1287 = vmatpush1.bf16.msra.mxu0 0
      %1288 = vmatprep.subr.bf16.mxu0 0
      %1289 = vmatpush1.bf16.msra.mxu0 0
      %1290 = vmatprep.subr.bf16.mxu0 0
      %1291 = vmatpush1.bf16.msra.mxu0 0
      %1292 = vmatprep.subr.bf16.mxu0 0
      %1293 = vmatpush1.bf16.msra.mxu0 0
      %1294 = vmatprep.subr.bf16.mxu0 0
      %1295 = vmatpush1.bf16.msra.mxu0 0
      %1296 = vmatprep.subr.bf16.mxu0 0
      %1297 = vmatpush1.bf16.msra.mxu0 0
      %1298 = vmatprep.mubr.bf16.mxu0 0
      %1299 = vmatmul.mubr.bf16.gmra.mrb[0].mxu0 %v1219
      %v1300 = vpop.f32.mrb[0].mxu0
      %v1301 = vadd.f32 0.0, %v1300
      %v1302 = vpop.f32.mrb[0].mxu0
      %v1303 = vpop.f32.mrb[0].mxu0
      %v1304 = vadd.f32 0.0, %v1303
      %v1305 = vpop.f32.mrb[0].mxu0
      %1306 = vmatprep.mubr.bf16.mxu0 0
      %1307 = vmatmul.mubr.bf16.gmra.mrb[0].mxu0 %v1222
      %v1308 = vpop.f32.mrb[0].mxu0
      %v1309 = vadd.f32 0.0, %v1308
      %v1310 = vpop.f32.mrb[0].mxu0
      %v1311 = vpop.f32.mrb[0].mxu0
      %v1312 = vadd.f32 0.0, %v1311
      %v1313 = vpop.f32.mrb[0].mxu0
      %1314 = vmatprep.mubr.bf16.mxu0 0
      %1315 = vmatmul.mubr.bf16.gmra.mrb[0].mxu0 %v1225
      %v1316 = vpop.f32.mrb[0].mxu0
      %v1317 = vadd.f32 0.0, %v1316
      %v1318 = vpop.f32.mrb[0].mxu0
      %v1319 = vpop.f32.mrb[0].mxu0
      %v1320 = vadd.f32 0.0, %v1319
      %v1321 = vpop.f32.mrb[0].mxu0
      %1322 = vmatprep.mubr.bf16.mxu0 0
      %1323 = vmatmul.mubr.bf16.gmra.mrb[0].mxu0 %v1228
      %v1324 = vpop.f32.mrb[0].mxu0
      %v1325 = vadd.f32 0.0, %v1324
      %v1326 = vpop.f32.mrb[0].mxu0
      %v1327 = vpop.f32.mrb[0].mxu0
      %v1328 = vadd.f32 0.0, %v1327
      %v1329 = vpop.f32.mrb[0].mxu0
      %1330 = vmatprep.mubr.bf16.mxu0 0
      %1331 = vmatmul.mubr.bf16.gmra.mrb[0].mxu0 %v1231
      %v1332 = vpop.f32.mrb[0].mxu0
      %v1333 = vadd.f32 0.0, %v1332
      %v1334 = vpop.f32.mrb[0].mxu0
      %v1335 = vpop.f32.mrb[0].mxu0
      %v1336 = vadd.f32 0.0, %v1335
      %v1337 = vpop.f32.mrb[0].mxu0
      %1338 = vmatprep.mubr.bf16.mxu0 0
      %1339 = vmatmul.mubr.bf16.gmra.mrb[0].mxu0 %v1234
      %v1340 = vpop.f32.mrb[0].mxu0
      %v1341 = vadd.f32 0.0, %v1340
      %v1342 = vpop.f32.mrb[0].mxu0
      %v1343 = vpop.f32.mrb[0].mxu0
      %v1344 = vadd.f32 0.0, %v1343
      %v1345 = vpop.f32.mrb[0].mxu0
      %1346 = vmatprep.mubr.bf16.mxu0 0
      %1347 = vmatmul.mubr.bf16.gmra.mrb[0].mxu0 %v1237
      %v1348 = vpop.f32.mrb[0].mxu0
      %v1349 = vadd.f32 0.0, %v1348
      %v1350 = vpop.f32.mrb[0].mxu0
      %v1351 = vpop.f32.mrb[0].mxu0
      %v1352 = vadd.f32 0.0, %v1351
      %v1353 = vpop.f32.mrb[0].mxu0
      %1354 = vmatprep.mubr.bf16.mxu0 0
      %1355 = vmatmul.mubr.bf16.gmra.mrb[0].mxu0 %v1240
      %v1356 = vpop.f32.mrb[0].mxu0
      %v1357 = vadd.f32 0.0, %v1356
      %v1358 = vpop.f32.mrb[0].mxu0
      %v1359 = vpop.f32.mrb[0].mxu0
      %v1360 = vadd.f32 0.0, %v1359
      %v1361 = vpop.f32.mrb[0].mxu0
      %1362 = vmatprep.mubr.bf16.mxu0 0
      %1363 = vmatmul.mubr.bf16.gmra.mrb[0].mxu0 %v1243
      %v1364 = vpop.f32.mrb[0].mxu0
      %v1365 = vadd.f32 0.0, %v1364
      %v1366 = vpop.f32.mrb[0].mxu0
      %v1367 = vpop.f32.mrb[0].mxu0
      %v1368 = vadd.f32 0.0, %v1367
      %v1369 = vpop.f32.mrb[0].mxu0
      %1370 = vmatprep.mubr.bf16.mxu0 0
      %1371 = vmatmul.mubr.bf16.gmra.mrb[0].mxu0 %v1246
      %v1372 = vpop.f32.mrb[0].mxu0
      %v1373 = vadd.f32 0.0, %v1372
      %v1374 = vpop.f32.mrb[0].mxu0
      %v1375 = vpop.f32.mrb[0].mxu0
      %v1376 = vadd.f32 0.0, %v1375
      %v1377 = vpop.f32.mrb[0].mxu0
      %1378 = vmatprep.mubr.bf16.mxu0 0
      %1379 = vmatmul.mubr.bf16.gmra.mrb[0].mxu0 %v1249
      %v1380 = vpop.f32.mrb[0].mxu0
      %v1381 = vadd.f32 0.0, %v1380
      %v1382 = vpop.f32.mrb[0].mxu0
      %v1383 = vpop.f32.mrb[0].mxu0
      %v1384 = vadd.f32 0.0, %v1383
      %v1385 = vpop.f32.mrb[0].mxu0
      %1386 = vmatprep.mubr.bf16.mxu0 0
      %1387 = vmatmul.mubr.bf16.gmra.mrb[0].mxu0 %v1252
      %v1388 = vpop.f32.mrb[0].mxu0
      %v1389 = vadd.f32 0.0, %v1388
      %v1390 = vpop.f32.mrb[0].mxu0
      %v1391 = vpop.f32.mrb[0].mxu0
      %v1392 = vadd.f32 0.0, %v1391
      %v1393 = vpop.f32.mrb[0].mxu0
      %1394 = vmatprep.mubr.bf16.mxu0 0
      %1395 = vmatmul.mubr.bf16.gmra.mrb[0].mxu0 %v1255
      %v1396 = vpop.f32.mrb[0].mxu0
      %v1397 = vadd.f32 0.0, %v1396
      %v1398 = vpop.f32.mrb[0].mxu0
      %v1399 = vpop.f32.mrb[0].mxu0
      %v1400 = vadd.f32 0.0, %v1399
      %v1401 = vpop.f32.mrb[0].mxu0
      %1402 = vmatprep.mubr.bf16.mxu0 0
      %1403 = vmatmul.mubr.bf16.gmra.mrb[0].mxu0 %v1258
      %v1404 = vpop.f32.mrb[0].mxu0
      %v1405 = vadd.f32 0.0, %v1404
      %v1406 = vpop.f32.mrb[0].mxu0
      %v1407 = vpop.f32.mrb[0].mxu0
      %v1408 = vadd.f32 0.0, %v1407
      %v1409 = vpop.f32.mrb[0].mxu0
      %1410 = vmatprep.mubr.bf16.mxu0 0
      %1411 = vmatmul.mubr.bf16.gmra.mrb[0].mxu0 %v1261
      %v1412 = vpop.f32.mrb[0].mxu0
      %v1413 = vadd.f32 0.0, %v1412
      %v1414 = vpop.f32.mrb[0].mxu0
      %v1415 = vpop.f32.mrb[0].mxu0
      %v1416 = vadd.f32 0.0, %v1415
      %v1417 = vpop.f32.mrb[0].mxu0
      %1418 = vmatprep.mubr.bf16.mxu0 0
      %1419 = vmatmul.mubr.bf16.gmra.mrb[0].mxu0 %v1264
      %v1420 = vpop.f32.mrb[0].mxu0
      %v1421 = vadd.f32 0.0, %v1420
      %v1422 = vpop.f32.mrb[0].mxu0
      %v1423 = vpop.f32.mrb[0].mxu0
      %v1424 = vadd.f32 0.0, %v1423
      %v1425 = vpop.f32.mrb[0].mxu0
      %1426 = vdwg.mxu0
      %vm1427 = vsmask.f32 256
      %v1429 = vshrl.u32 %v1160, 16
      %v1431 = vrot.slane %v1429, 7
      %v1433 = vshrl.u32 %v1161, 16
      %v1435 = vrot.slane %v1433, 7
      %v1436 = vshll.u32 %v1161, 16
      %v1438 = vor.u32 %v1435, %v1436
      %v1439 = vsel %vm1427, %v1431, %v1438
      %v1441 = vshrl.u32 %v1162, 16
      %v1443 = vrot.slane %v1441, 7
      %v1444 = vshll.u32 %v1162, 16
      %v1446 = vor.u32 %v1443, %v1444
      %v1447 = vsel %vm1427, %v1435, %v1446
      %v1449 = vshrl.u32 %v1163, 16
      %v1451 = vrot.slane %v1449, 7
      %v1452 = vshll.u32 %v1163, 16
      %v1454 = vor.u32 %v1451, %v1452
      %v1455 = vsel %vm1427, %v1443, %v1454
      %v1457 = vshrl.u32 %v1164, 16
      %v1459 = vrot.slane %v1457, 7
      %v1460 = vshll.u32 %v1164, 16
      %v1462 = vor.u32 %v1459, %v1460
      %v1463 = vsel %vm1427, %v1451, %v1462
      %v1465 = vshrl.u32 %v1165, 16
      %v1467 = vrot.slane %v1465, 7
      %v1468 = vshll.u32 %v1165, 16
      %v1470 = vor.u32 %v1467, %v1468
      %v1471 = vsel %vm1427, %v1459, %v1470
      %v1473 = vshrl.u32 %v1166, 16
      %v1475 = vrot.slane %v1473, 7
      %v1476 = vshll.u32 %v1166, 16
      %v1478 = vor.u32 %v1475, %v1476
      %v1479 = vsel %vm1427, %v1467, %v1478
      %v1481 = vshrl.u32 %v1167, 16
      %v1483 = vrot.slane %v1481, 7
      %v1484 = vshll.u32 %v1167, 16
      %v1486 = vor.u32 %v1483, %v1484
      %v1487 = vsel %vm1427, %v1475, %v1486
      %v1489 = vshrl.u32 %v1168, 16
      %v1491 = vrot.slane %v1489, 7
      %v1492 = vshll.u32 %v1168, 16
      %v1494 = vor.u32 %v1491, %v1492
      %v1495 = vsel %vm1427, %v1483, %v1494
      %v1497 = vshrl.u32 %v1169, 16
      %v1499 = vrot.slane %v1497, 7
      %v1500 = vshll.u32 %v1169, 16
      %v1502 = vor.u32 %v1499, %v1500
      %v1503 = vsel %vm1427, %v1491, %v1502
      %v1505 = vshrl.u32 %v1170, 16
      %v1507 = vrot.slane %v1505, 7
      %v1508 = vshll.u32 %v1170, 16
      %v1510 = vor.u32 %v1507, %v1508
      %v1511 = vsel %vm1427, %v1499, %v1510
      %v1513 = vshrl.u32 %v1171, 16
      %v1515 = vrot.slane %v1513, 7
      %v1516 = vshll.u32 %v1171, 16
      %v1518 = vor.u32 %v1515, %v1516
      %v1519 = vsel %vm1427, %v1507, %v1518
      %v1521 = vshrl.u32 %v1172, 16
      %v1523 = vrot.slane %v1521, 7
      %v1524 = vshll.u32 %v1172, 16
      %v1526 = vor.u32 %v1523, %v1524
      %v1527 = vsel %vm1427, %v1515, %v1526
      %v1529 = vshrl.u32 %v1173, 16
      %v1531 = vrot.slane %v1529, 7
      %v1532 = vshll.u32 %v1173, 16
      %v1534 = vor.u32 %v1531, %v1532
      %v1535 = vsel %vm1427, %v1523, %v1534
      %v1537 = vshrl.u32 %v1174, 16
      %v1539 = vrot.slane %v1537, 7
      %v1540 = vshll.u32 %v1174, 16
      %v1542 = vor.u32 %v1539, %v1540
      %v1543 = vsel %vm1427, %v1531, %v1542
      %v1545 = vshrl.u32 %v1175, 16
      %v1547 = vrot.slane %v1545, 7
      %v1548 = vshll.u32 %v1175, 16
      %v1550 = vor.u32 %v1547, %v1548
      %v1551 = vsel %vm1427, %v1539, %v1550
      %v1553 = vshrl.u32 %v1176, 16
      %v1555 = vrot.slane %v1553, 7
      %v1556 = vshll.u32 %v1176, 16
      %v1558 = vor.u32 %v1555, %v1556
      %v1559 = vsel %vm1427, %v1547, %v1558
      %v1568 = vunpack.c.l.b16 %v1177
      %v1569 = vunpack.c.l.b16 %v1178
      %v1570 = vunpack.c.l.b16 %v1179
      %v1571 = vunpack.c.l.b16 %v1180
      %v1572 = vunpack.c.l.b16 %v1181
      %v1573 = vunpack.c.l.b16 %v1182
      %v1574 = vunpack.c.l.b16 %v1183
      %v1575 = vunpack.c.l.b16 %v1184
      %v1576 = vpack.c.b16 %v1569, %v1568
      %v1577 = vpack.c.b16 %v1571, %v1570
      %v1578 = vpack.c.b16 %v1573, %v1572
      %v1579 = vpack.c.b16 %v1575, %v1574
      %v1585 = vsel %vm336, %v1439, 0
      %v1588 = vsel %vm336, %v1447, 0
      %v1591 = vsel %vm336, %v1455, 0
      %v1594 = vsel %vm336, %v1463, 0
      %v1597 = vsel %vm336, %v1471, 0
      %v1600 = vsel %vm336, %v1479, 0
      %v1603 = vsel %vm336, %v1487, 0
      %v1606 = vsel %vm336, %v1495, 0
      %v1609 = vsel %vm336, %v1503, 0
      %v1612 = vsel %vm336, %v1511, 0
      %v1615 = vsel %vm336, %v1519, 0
      %v1618 = vsel %vm336, %v1527, 0
      %v1621 = vsel %vm336, %v1535, 0
      %v1624 = vsel %vm336, %v1543, 0
      %v1627 = vsel %vm336, %v1551, 0
      %v1630 = vsel %vm336, %v1559, 0
      %1632 = vmatprep.subr.bf16.mxu0 0
      %1633 = vmatpush1.bf16.msra.mxu0 %v1576
      %1634 = vmatprep.subr.bf16.mxu0 0
      %1635 = vmatpush1.bf16.msra.mxu0 %v1577
      %1636 = vmatprep.subr.bf16.mxu0 0
      %1637 = vmatpush1.bf16.msra.mxu0 %v1578
      %1638 = vmatprep.subr.bf16.mxu0 0
      %1639 = vmatpush1.bf16.msra.mxu0 %v1579
      %1640 = vmatprep.subr.bf16.mxu0 0
      %1641 = vmatpush1.bf16.msra.mxu0 0
      %1642 = vmatprep.subr.bf16.mxu0 0
      %1643 = vmatpush1.bf16.msra.mxu0 0
      %1644 = vmatprep.subr.bf16.mxu0 0
      %1645 = vmatpush1.bf16.msra.mxu0 0
      %1646 = vmatprep.subr.bf16.mxu0 0
      %1647 = vmatpush1.bf16.msra.mxu0 0
      %1648 = vmatprep.subr.bf16.mxu0 0
      %1649 = vmatpush1.bf16.msra.mxu0 0
      %1650 = vmatprep.subr.bf16.mxu0 0
      %1651 = vmatpush1.bf16.msra.mxu0 0
      %1652 = vmatprep.subr.bf16.mxu0 0
      %1653 = vmatpush1.bf16.msra.mxu0 0
      %1654 = vmatprep.subr.bf16.mxu0 0
      %1655 = vmatpush1.bf16.msra.mxu0 0
      %1656 = vmatprep.subr.bf16.mxu0 0
      %1657 = vmatpush1.bf16.msra.mxu0 0
      %1658 = vmatprep.subr.bf16.mxu0 0
      %1659 = vmatpush1.bf16.msra.mxu0 0
      %1660 = vmatprep.subr.bf16.mxu0 0
      %1661 = vmatpush1.bf16.msra.mxu0 0
      %1662 = vmatprep.subr.bf16.mxu0 0
      %1663 = vmatpush1.bf16.msra.mxu0 0
      %1664 = vmatprep.mubr.bf16.mxu0 0
      %1665 = vmatmul.mubr.bf16.gmra.mrb[0].mxu0 %v1585
      %v1666 = vpop.f32.mrb[0].mxu0
      %v1667 = vadd.f32 %v1301, %v1666
      %v1668 = vpop.f32.mrb[0].mxu0
      %v1669 = vpop.f32.mrb[0].mxu0
      %v1670 = vadd.f32 %v1304, %v1669
      %v1671 = vpop.f32.mrb[0].mxu0
      %1672 = vmatprep.mubr.bf16.mxu0 0
      %1673 = vmatmul.mubr.bf16.gmra.mrb[0].mxu0 %v1588
      %v1674 = vpop.f32.mrb[0].mxu0
      %v1675 = vadd.f32 %v1309, %v1674
      %v1676 = vpop.f32.mrb[0].mxu0
      %v1677 = vpop.f32.mrb[0].mxu0
      %v1678 = vadd.f32 %v1312, %v1677
      %v1679 = vpop.f32.mrb[0].mxu0
      %1680 = vmatprep.mubr.bf16.mxu0 0
      %1681 = vmatmul.mubr.bf16.gmra.mrb[0].mxu0 %v1591
      %v1682 = vpop.f32.mrb[0].mxu0
      %v1683 = vadd.f32 %v1317, %v1682
      %v1684 = vpop.f32.mrb[0].mxu0
      %v1685 = vpop.f32.mrb[0].mxu0
      %v1686 = vadd.f32 %v1320, %v1685
      %v1687 = vpop.f32.mrb[0].mxu0
      %1688 = vmatprep.mubr.bf16.mxu0 0
      %1689 = vmatmul.mubr.bf16.gmra.mrb[0].mxu0 %v1594
      %v1690 = vpop.f32.mrb[0].mxu0
      %v1691 = vadd.f32 %v1325, %v1690
      %v1692 = vpop.f32.mrb[0].mxu0
      %v1693 = vpop.f32.mrb[0].mxu0
      %v1694 = vadd.f32 %v1328, %v1693
      %v1695 = vpop.f32.mrb[0].mxu0
      %1696 = vmatprep.mubr.bf16.mxu0 0
      %1697 = vmatmul.mubr.bf16.gmra.mrb[0].mxu0 %v1597
      %v1698 = vpop.f32.mrb[0].mxu0
      %v1699 = vadd.f32 %v1333, %v1698
      %v1700 = vpop.f32.mrb[0].mxu0
      %v1701 = vpop.f32.mrb[0].mxu0
      %v1702 = vadd.f32 %v1336, %v1701
      %v1703 = vpop.f32.mrb[0].mxu0
      %1704 = vmatprep.mubr.bf16.mxu0 0
      %1705 = vmatmul.mubr.bf16.gmra.mrb[0].mxu0 %v1600
      %v1706 = vpop.f32.mrb[0].mxu0
      %v1707 = vadd.f32 %v1341, %v1706
      %v1708 = vpop.f32.mrb[0].mxu0
      %v1709 = vpop.f32.mrb[0].mxu0
      %v1710 = vadd.f32 %v1344, %v1709
      %v1711 = vpop.f32.mrb[0].mxu0
      %1712 = vmatprep.mubr.bf16.mxu0 0
      %1713 = vmatmul.mubr.bf16.gmra.mrb[0].mxu0 %v1603
      %v1714 = vpop.f32.mrb[0].mxu0
      %v1715 = vadd.f32 %v1349, %v1714
      %v1716 = vpop.f32.mrb[0].mxu0
      %v1717 = vpop.f32.mrb[0].mxu0
      %v1718 = vadd.f32 %v1352, %v1717
      %v1719 = vpop.f32.mrb[0].mxu0
      %1720 = vmatprep.mubr.bf16.mxu0 0
      %1721 = vmatmul.mubr.bf16.gmra.mrb[0].mxu0 %v1606
      %v1722 = vpop.f32.mrb[0].mxu0
      %v1723 = vadd.f32 %v1357, %v1722
      %v1724 = vpop.f32.mrb[0].mxu0
      %v1725 = vpop.f32.mrb[0].mxu0
      %v1726 = vadd.f32 %v1360, %v1725
      %v1727 = vpop.f32.mrb[0].mxu0
      %1728 = vmatprep.mubr.bf16.mxu0 0
      %1729 = vmatmul.mubr.bf16.gmra.mrb[0].mxu0 %v1609
      %v1730 = vpop.f32.mrb[0].mxu0
      %v1731 = vadd.f32 %v1365, %v1730
      %v1732 = vpop.f32.mrb[0].mxu0
      %v1733 = vpop.f32.mrb[0].mxu0
      %v1734 = vadd.f32 %v1368, %v1733
      %v1735 = vpop.f32.mrb[0].mxu0
      %1736 = vmatprep.mubr.bf16.mxu0 0
      %1737 = vmatmul.mubr.bf16.gmra.mrb[0].mxu0 %v1612
      %v1738 = vpop.f32.mrb[0].mxu0
      %v1739 = vadd.f32 %v1373, %v1738
      %v1740 = vpop.f32.mrb[0].mxu0
      %v1741 = vpop.f32.mrb[0].mxu0
      %v1742 = vadd.f32 %v1376, %v1741
      %v1743 = vpop.f32.mrb[0].mxu0
      %1744 = vmatprep.mubr.bf16.mxu0 0
      %1745 = vmatmul.mubr.bf16.gmra.mrb[0].mxu0 %v1615
      %v1746 = vpop.f32.mrb[0].mxu0
      %v1747 = vadd.f32 %v1381, %v1746
      %v1748 = vpop.f32.mrb[0].mxu0
      %v1749 = vpop.f32.mrb[0].mxu0
      %v1750 = vadd.f32 %v1384, %v1749
      %v1751 = vpop.f32.mrb[0].mxu0
      %1752 = vmatprep.mubr.bf16.mxu0 0
      %1753 = vmatmul.mubr.bf16.gmra.mrb[0].mxu0 %v1618
      %v1754 = vpop.f32.mrb[0].mxu0
      %v1755 = vadd.f32 %v1389, %v1754
      %v1756 = vpop.f32.mrb[0].mxu0
      %v1757 = vpop.f32.mrb[0].mxu0
      %v1758 = vadd.f32 %v1392, %v1757
      %v1759 = vpop.f32.mrb[0].mxu0
      %1760 = vmatprep.mubr.bf16.mxu0 0
      %1761 = vmatmul.mubr.bf16.gmra.mrb[0].mxu0 %v1621
      %v1762 = vpop.f32.mrb[0].mxu0
      %v1763 = vadd.f32 %v1397, %v1762
      %v1764 = vpop.f32.mrb[0].mxu0
      %v1765 = vpop.f32.mrb[0].mxu0
      %v1766 = vadd.f32 %v1400, %v1765
      %v1767 = vpop.f32.mrb[0].mxu0
      %1768 = vmatprep.mubr.bf16.mxu0 0
      %1769 = vmatmul.mubr.bf16.gmra.mrb[0].mxu0 %v1624
      %v1770 = vpop.f32.mrb[0].mxu0
      %v1771 = vadd.f32 %v1405, %v1770
      %v1772 = vpop.f32.mrb[0].mxu0
      %v1773 = vpop.f32.mrb[0].mxu0
      %v1774 = vadd.f32 %v1408, %v1773
      %v1775 = vpop.f32.mrb[0].mxu0
      %1776 = vmatprep.mubr.bf16.mxu0 0
      %1777 = vmatmul.mubr.bf16.gmra.mrb[0].mxu0 %v1627
      %v1778 = vpop.f32.mrb[0].mxu0
      %v1779 = vadd.f32 %v1413, %v1778
      %v1780 = vpop.f32.mrb[0].mxu0
      %v1781 = vpop.f32.mrb[0].mxu0
      %v1782 = vadd.f32 %v1416, %v1781
      %v1783 = vpop.f32.mrb[0].mxu0
      %1784 = vmatprep.mubr.bf16.mxu0 0
      %1785 = vmatmul.mubr.bf16.gmra.mrb[0].mxu0 %v1630
      %v1786 = vpop.f32.mrb[0].mxu0
      %v1787 = vadd.f32 %v1421, %v1786
      %v1788 = vpop.f32.mrb[0].mxu0
      %v1789 = vpop.f32.mrb[0].mxu0
      %v1790 = vadd.f32 %v1424, %v1789
      %v1791 = vpop.f32.mrb[0].mxu0
      %1792 = vdwg.mxu0
      %v1793 = vld [vmem:[#allocation2 + $0x8] sm:$0xff]
      %v1794 = vld [vmem:[#allocation2 + $0x10] sm:$0xff]
      %v1795 = vld [vmem:[#allocation2 + $0x18] sm:$0xff]
      %v1796 = vld [vmem:[#allocation2 + $0x20] sm:$0xff]
      %v1797 = vld [vmem:[#allocation2 + $0x28] sm:$0xff]
      %v1798 = vld [vmem:[#allocation2 + $0x30] sm:$0xff]
      %v1799 = vld [vmem:[#allocation2 + $0x38] sm:$0xff]
      %v1800 = vld [vmem:[#allocation2 + $0x40] sm:$0xff]
      %v1801 = vld [vmem:[#allocation2 + $0x48] sm:$0xff]
      %v1802 = vld [vmem:[#allocation2 + $0x50] sm:$0xff]
      %v1803 = vld [vmem:[#allocation2 + $0x58] sm:$0xff]
      %v1804 = vld [vmem:[#allocation2 + $0x60] sm:$0xff]
      %v1805 = vld [vmem:[#allocation2 + $0x68] sm:$0xff]
      %v1806 = vld [vmem:[#allocation2 + $0x70] sm:$0xff]
      %v1807 = vld [vmem:[#allocation2 + $0x78] sm:$0xff]
      %v1808 = vld [vmem:[#allocation2 + $0x80] sm:$0xff]
      %v1809 = vld [vmem:[#allocation2 + $0x88] sm:$0x1]
      %vm1810 = vmpackc.low %vm790, %vm790
      %vm1811 = vmpackc.low %vm791, %vm791
      %vm1812 = vmpackc.low %vm792, %vm792
      %vm1813 = vmpackc.low %vm793, %vm793
      %vm1814 = vmpackc.low %vm794, %vm794
      %vm1815 = vmpackc.low %vm795, %vm795
      %vm1816 = vmpackc.low %vm796, %vm796
      %vm1817 = vmpackc.low %vm797, %vm797
      %vm1818 = vmpackc.low %vm798, %vm798
      %vm1819 = vmpackc.low %vm799, %vm799
      %vm1820 = vmpackc.low %vm800, %vm800
      %vm1821 = vmpackc.low %vm801, %vm801
      %vm1822 = vmpackc.low %vm802, %vm802
      %vm1823 = vmpackc.low %vm803, %vm803
      %vm1824 = vmpackc.low %vm804, %vm804
      %vm1825 = vmpackc.low %vm805, %vm805
      %vm1826 = vmpackc.low %vm806, %vm806
      %vm1827 = vmpackc.low %vm807, %vm807
      %vm1828 = vmpackc.low %vm808, %vm808
      %vm1829 = vmpackc.low %vm809, %vm809
      %vm1830 = vmpackc.low %vm810, %vm810
      %vm1831 = vmpackc.low %vm811, %vm811
      %vm1832 = vmpackc.low %vm812, %vm812
      %vm1833 = vmpackc.low %vm813, %vm813
      %vm1834 = vmpackc.low %vm814, %vm814
      %vm1835 = vmpackc.low %vm815, %vm815
      %vm1836 = vmpackc.low %vm816, %vm816
      %vm1837 = vmpackc.low %vm817, %vm817
      %vm1838 = vmpackc.low %vm818, %vm818
      %vm1839 = vmpackc.low %vm819, %vm819
      %vm1840 = vmpackc.low %vm820, %vm820
      %vm1841 = vmpackc.low %vm821, %vm821
      %v1842 = vsel %vm1810, 65537, 0
      %v1843 = vsel %vm1811, 65537, 0
      %v1844 = vsel %vm1812, 65537, 0
      %v1845 = vsel %vm1813, 65537, 0
      %v1846 = vsel %vm1814, 65537, 0
      %v1847 = vsel %vm1815, 65537, 0
      %v1848 = vsel %vm1816, 65537, 0
      %v1849 = vsel %vm1817, 65537, 0
      %v1850 = vsel %vm1818, 65537, 0
      %v1851 = vsel %vm1819, 65537, 0
      %v1852 = vsel %vm1820, 65537, 0
      %v1853 = vsel %vm1821, 65537, 0
      %v1854 = vsel %vm1822, 65537, 0
      %v1855 = vsel %vm1823, 65537, 0
      %v1856 = vsel %vm1824, 65537, 0
      %v1857 = vsel %vm1825, 65537, 0
      %v1858 = vsel %vm1826, 65537, 0
      %v1859 = vsel %vm1827, 65537, 0
      %v1860 = vsel %vm1828, 65537, 0
      %v1861 = vsel %vm1829, 65537, 0
      %v1862 = vsel %vm1830, 65537, 0
      %v1863 = vsel %vm1831, 65537, 0
      %v1864 = vsel %vm1832, 65537, 0
      %v1865 = vsel %vm1833, 65537, 0
      %v1866 = vsel %vm1834, 65537, 0
      %v1867 = vsel %vm1835, 65537, 0
      %v1868 = vsel %vm1836, 65537, 0
      %v1869 = vsel %vm1837, 65537, 0
      %v1870 = vsel %vm1838, 65537, 0
      %v1871 = vsel %vm1839, 65537, 0
      %v1872 = vsel %vm1840, 65537, 0
      %v1873 = vsel %vm1841, 65537, 0
      %v1874 = vunpack.c.l.b16 %v1842
      %v1875 = vunpack.c.l.b16 %v1843
      %v1876 = vunpack.c.l.b16 %v1844
      %v1877 = vunpack.c.l.b16 %v1845
      %v1878 = vunpack.c.l.b16 %v1846
      %v1879 = vunpack.c.l.b16 %v1847
      %v1880 = vunpack.c.l.b16 %v1848
      %v1881 = vunpack.c.l.b16 %v1849
      %v1882 = vunpack.c.l.b16 %v1850
      %v1883 = vunpack.c.l.b16 %v1851
      %v1884 = vunpack.c.l.b16 %v1852
      %v1885 = vunpack.c.l.b16 %v1853
      %v1886 = vunpack.c.l.b16 %v1854
      %v1887 = vunpack.c.l.b16 %v1855
      %v1888 = vunpack.c.l.b16 %v1856
      %v1889 = vunpack.c.l.b16 %v1857
      %v1890 = vunpack.c.l.b16 %v1858
      %v1891 = vunpack.c.l.b16 %v1859
      %v1892 = vunpack.c.l.b16 %v1860
      %v1893 = vunpack.c.l.b16 %v1861
      %v1894 = vunpack.c.l.b16 %v1862
      %v1895 = vunpack.c.l.b16 %v1863
      %v1896 = vunpack.c.l.b16 %v1864
      %v1897 = vunpack.c.l.b16 %v1865
      %v1898 = vunpack.c.l.b16 %v1866
      %v1899 = vunpack.c.l.b16 %v1867
      %v1900 = vunpack.c.l.b16 %v1868
      %v1901 = vunpack.c.l.b16 %v1869
      %v1902 = vunpack.c.l.b16 %v1870
      %v1903 = vunpack.c.l.b16 %v1871
      %v1904 = vunpack.c.l.b16 %v1872
      %v1905 = vunpack.c.l.b16 %v1873
      %v1906 = vpack.c.b16 %v1875, %v1874
      %v1907 = vpack.c.b16 %v1877, %v1876
      %v1908 = vpack.c.b16 %v1879, %v1878
      %v1909 = vpack.c.b16 %v1881, %v1880
      %v1910 = vpack.c.b16 %v1883, %v1882
      %v1911 = vpack.c.b16 %v1885, %v1884
      %v1912 = vpack.c.b16 %v1887, %v1886
      %v1913 = vpack.c.b16 %v1889, %v1888
      %v1914 = vpack.c.b16 %v1891, %v1890
      %v1915 = vpack.c.b16 %v1893, %v1892
      %v1916 = vpack.c.b16 %v1895, %v1894
      %v1917 = vpack.c.b16 %v1897, %v1896
      %v1918 = vpack.c.b16 %v1899, %v1898
      %v1919 = vpack.c.b16 %v1901, %v1900
      %v1920 = vpack.c.b16 %v1903, %v1902
      %v1921 = vpack.c.b16 %v1905, %v1904
      %v1923 = vshrl.u32 %v1906, 16
      %v1925 = vrot.slane %v1923, 7
      %v1926 = vshll.u32 %v1906, 16
      %v1928 = vor.u32 %v1925, %v1926
      %v1930 = vshrl.u32 %v1907, 16
      %v1932 = vrot.slane %v1930, 7
      %v1933 = vshll.u32 %v1907, 16
      %v1935 = vor.u32 %v1932, %v1933
      %v1936 = vsel %vm1427, %v1925, %v1935
      %v1938 = vshrl.u32 %v1908, 16
      %v1940 = vrot.slane %v1938, 7
      %v1941 = vshll.u32 %v1908, 16
      %v1943 = vor.u32 %v1940, %v1941
      %v1944 = vsel %vm1427, %v1932, %v1943
      %v1946 = vshrl.u32 %v1909, 16
      %v1948 = vrot.slane %v1946, 7
      %v1949 = vshll.u32 %v1909, 16
      %v1951 = vor.u32 %v1948, %v1949
      %v1952 = vsel %vm1427, %v1940, %v1951
      %v1954 = vshrl.u32 %v1910, 16
      %v1956 = vrot.slane %v1954, 7
      %v1957 = vshll.u32 %v1910, 16
      %v1959 = vor.u32 %v1956, %v1957
      %v1960 = vsel %vm1427, %v1948, %v1959
      %v1962 = vshrl.u32 %v1911, 16
      %v1964 = vrot.slane %v1962, 7
      %v1965 = vshll.u32 %v1911, 16
      %v1967 = vor.u32 %v1964, %v1965
      %v1968 = vsel %vm1427, %v1956, %v1967
      %v1970 = vshrl.u32 %v1912, 16
      %v1972 = vrot.slane %v1970, 7
      %v1973 = vshll.u32 %v1912, 16
      %v1975 = vor.u32 %v1972, %v1973
      %v1976 = vsel %vm1427, %v1964, %v1975
      %v1978 = vshrl.u32 %v1913, 16
      %v1980 = vrot.slane %v1978, 7
      %v1981 = vshll.u32 %v1913, 16
      %v1983 = vor.u32 %v1980, %v1981
      %v1984 = vsel %vm1427, %v1972, %v1983
      %v1986 = vshrl.u32 %v1914, 16
      %v1988 = vrot.slane %v1986, 7
      %v1989 = vshll.u32 %v1914, 16
      %v1991 = vor.u32 %v1988, %v1989
      %v1992 = vsel %vm1427, %v1980, %v1991
      %v1994 = vshrl.u32 %v1915, 16
      %v1996 = vrot.slane %v1994, 7
      %v1997 = vshll.u32 %v1915, 16
      %v1999 = vor.u32 %v1996, %v1997
      %v2000 = vsel %vm1427, %v1988, %v1999
      %v2002 = vshrl.u32 %v1916, 16
      %v2004 = vrot.slane %v2002, 7
      %v2005 = vshll.u32 %v1916, 16
      %v2007 = vor.u32 %v2004, %v2005
      %v2008 = vsel %vm1427, %v1996, %v2007
      %v2010 = vshrl.u32 %v1917, 16
      %v2012 = vrot.slane %v2010, 7
      %v2013 = vshll.u32 %v1917, 16
      %v2015 = vor.u32 %v2012, %v2013
      %v2016 = vsel %vm1427, %v2004, %v2015
      %v2018 = vshrl.u32 %v1918, 16
      %v2020 = vrot.slane %v2018, 7
      %v2021 = vshll.u32 %v1918, 16
      %v2023 = vor.u32 %v2020, %v2021
      %v2024 = vsel %vm1427, %v2012, %v2023
      %v2026 = vshrl.u32 %v1919, 16
      %v2028 = vrot.slane %v2026, 7
      %v2029 = vshll.u32 %v1919, 16
      %v2031 = vor.u32 %v2028, %v2029
      %v2032 = vsel %vm1427, %v2020, %v2031
      %v2034 = vshrl.u32 %v1920, 16
      %v2036 = vrot.slane %v2034, 7
      %v2037 = vshll.u32 %v1920, 16
      %v2039 = vor.u32 %v2036, %v2037
      %v2040 = vsel %vm1427, %v2028, %v2039
      %v2042 = vshrl.u32 %v1921, 16
      %v2044 = vrot.slane %v2042, 7
      %v2045 = vshll.u32 %v1921, 16
      %v2047 = vor.u32 %v2044, %v2045
      %v2048 = vsel %vm1427, %v2036, %v2047
      %vm2049 = vcmp.ne.s16.totalorder %v1928, 0
      %vm2050 = vcmp.ne.s16.totalorder %v1936, 0
      %vm2051 = vcmp.ne.s16.totalorder %v1944, 0
      %vm2052 = vcmp.ne.s16.totalorder %v1952, 0
      %vm2053 = vcmp.ne.s16.totalorder %v1960, 0
      %vm2054 = vcmp.ne.s16.totalorder %v1968, 0
      %vm2055 = vcmp.ne.s16.totalorder %v1976, 0
      %vm2056 = vcmp.ne.s16.totalorder %v1984, 0
      %vm2057 = vcmp.ne.s16.totalorder %v1992, 0
      %vm2058 = vcmp.ne.s16.totalorder %v2000, 0
      %vm2059 = vcmp.ne.s16.totalorder %v2008, 0
      %vm2060 = vcmp.ne.s16.totalorder %v2016, 0
      %vm2061 = vcmp.ne.s16.totalorder %v2024, 0
      %vm2062 = vcmp.ne.s16.totalorder %v2032, 0
      %vm2063 = vcmp.ne.s16.totalorder %v2040, 0
      %vm2064 = vcmp.ne.s16.totalorder %v2048, 0
      %vm2065 = vcmp.ne.s16.totalorder %v2044, 0
      %v2066 = vsel %vm2049, %v1793, 0
      %v2067 = vsel %vm2050, %v1794, 0
      %v2068 = vsel %vm2051, %v1795, 0
      %v2069 = vsel %vm2052, %v1796, 0
      %v2070 = vsel %vm2053, %v1797, 0
      %v2071 = vsel %vm2054, %v1798, 0
      %v2072 = vsel %vm2055, %v1799, 0
      %v2073 = vsel %vm2056, %v1800, 0
      %v2074 = vsel %vm2057, %v1801, 0
      %v2075 = vsel %vm2058, %v1802, 0
      %v2076 = vsel %vm2059, %v1803, 0
      %v2077 = vsel %vm2060, %v1804, 0
      %v2078 = vsel %vm2061, %v1805, 0
      %v2079 = vsel %vm2062, %v1806, 0
      %v2080 = vsel %vm2063, %v1807, 0
      %v2081 = vsel %vm2064, %v1808, 0
      %v2082 = vsel %vm2065, %v1809, 0
      %s2083 = scalar_lea.vmem %s1, 64
      %v2084 = vld [vmem:[%s2083] sm:$0xf]
      %v2085 = vld [vmem:[%s2083 + $0x4] sm:$0xf]
      %v2086 = vld [vmem:[%s2083 + $0x8] sm:$0xf]
      %v2087 = vld [vmem:[%s2083 + $0xc] sm:$0xf]
      %v2088 = vld [vmem:[%s2083 + $0x10] sm:$0xf]
      %v2089 = vld [vmem:[%s2083 + $0x14] sm:$0xf]
      %v2090 = vld [vmem:[%s2083 + $0x18] sm:$0xf]
      %v2091 = vld [vmem:[%s2083 + $0x1c] sm:$0xf]
      %v2093 = vshrl.u32 %v2066, 16
      %v2095 = vshll.u32 %v2066, 16
      %v2097 = vrot.slane %v2095, 1
      %v2098 = vor.u32 %v2093, %v2097
      %v2100 = vshll.u32 %v2067, 16
      %v2102 = vrot.slane %v2100, 1
      %v2103 = vsel %vm1015, %v2098, %v2102
      %v2104 = vshrl.u32 %v2067, 16
      %v2106 = vor.u32 %v2104, %v2102
      %v2108 = vshll.u32 %v2068, 16
      %v2110 = vrot.slane %v2108, 1
      %v2111 = vsel %vm1015, %v2106, %v2110
      %v2112 = vshrl.u32 %v2068, 16
      %v2114 = vor.u32 %v2112, %v2110
      %v2116 = vshll.u32 %v2069, 16
      %v2118 = vrot.slane %v2116, 1
      %v2119 = vsel %vm1015, %v2114, %v2118
      %v2120 = vshrl.u32 %v2069, 16
      %v2122 = vor.u32 %v2120, %v2118
      %v2124 = vshll.u32 %v2070, 16
      %v2126 = vrot.slane %v2124, 1
      %v2127 = vsel %vm1015, %v2122, %v2126
      %v2128 = vshrl.u32 %v2070, 16
      %v2130 = vor.u32 %v2128, %v2126
      %v2132 = vshll.u32 %v2071, 16
      %v2134 = vrot.slane %v2132, 1
      %v2135 = vsel %vm1015, %v2130, %v2134
      %v2136 = vshrl.u32 %v2071, 16
      %v2138 = vor.u32 %v2136, %v2134
      %v2140 = vshll.u32 %v2072, 16
      %v2142 = vrot.slane %v2140, 1
      %v2143 = vsel %vm1015, %v2138, %v2142
      %v2144 = vshrl.u32 %v2072, 16
      %v2146 = vor.u32 %v2144, %v2142
      %v2148 = vshll.u32 %v2073, 16
      %v2150 = vrot.slane %v2148, 1
      %v2151 = vsel %vm1015, %v2146, %v2150
      %v2152 = vshrl.u32 %v2073, 16
      %v2154 = vor.u32 %v2152, %v2150
      %v2156 = vshll.u32 %v2074, 16
      %v2158 = vrot.slane %v2156, 1
      %v2159 = vsel %vm1015, %v2154, %v2158
      %v2160 = vshrl.u32 %v2074, 16
      %v2162 = vor.u32 %v2160, %v2158
      %v2164 = vshll.u32 %v2075, 16
      %v2166 = vrot.slane %v2164, 1
      %v2167 = vsel %vm1015, %v2162, %v2166
      %v2168 = vshrl.u32 %v2075, 16
      %v2170 = vor.u32 %v2168, %v2166
      %v2172 = vshll.u32 %v2076, 16
      %v2174 = vrot.slane %v2172, 1
      %v2175 = vsel %vm1015, %v2170, %v2174
      %v2176 = vshrl.u32 %v2076, 16
      %v2178 = vor.u32 %v2176, %v2174
      %v2180 = vshll.u32 %v2077, 16
      %v2182 = vrot.slane %v2180, 1
      %v2183 = vsel %vm1015, %v2178, %v2182
      %v2184 = vshrl.u32 %v2077, 16
      %v2186 = vor.u32 %v2184, %v2182
      %v2188 = vshll.u32 %v2078, 16
      %v2190 = vrot.slane %v2188, 1
      %v2191 = vsel %vm1015, %v2186, %v2190
      %v2192 = vshrl.u32 %v2078, 16
      %v2194 = vor.u32 %v2192, %v2190
      %v2196 = vshll.u32 %v2079, 16
      %v2198 = vrot.slane %v2196, 1
      %v2199 = vsel %vm1015, %v2194, %v2198
      %v2200 = vshrl.u32 %v2079, 16
      %v2202 = vor.u32 %v2200, %v2198
      %v2204 = vshll.u32 %v2080, 16
      %v2206 = vrot.slane %v2204, 1
      %v2207 = vsel %vm1015, %v2202, %v2206
      %v2208 = vshrl.u32 %v2080, 16
      %v2210 = vor.u32 %v2208, %v2206
      %v2212 = vshll.u32 %v2081, 16
      %v2214 = vrot.slane %v2212, 1
      %v2215 = vsel %vm1015, %v2210, %v2214
      %v2216 = vshrl.u32 %v2081, 16
      %v2218 = vor.u32 %v2216, %v2214
      %v2220 = vshll.u32 %v2082, 16
      %v2222 = vrot.slane %v2220, 1
      %v2223 = vsel %vm1015, %v2218, %v2222
      %v2232 = vunpack.c.l.b16 %v2084
      %v2233 = vunpack.c.l.b16 %v2085
      %v2234 = vunpack.c.l.b16 %v2086
      %v2235 = vunpack.c.l.b16 %v2087
      %v2236 = vunpack.c.l.b16 %v2088
      %v2237 = vunpack.c.l.b16 %v2089
      %v2238 = vunpack.c.l.b16 %v2090
      %v2239 = vunpack.c.l.b16 %v2091
      %v2240 = vpack.c.b16 %v2233, %v2232
      %v2241 = vpack.c.b16 %v2235, %v2234
      %v2242 = vpack.c.b16 %v2237, %v2236
      %v2243 = vpack.c.b16 %v2239, %v2238
      %v2249 = vsel %vm336, %v2103, 0
      %v2252 = vsel %vm336, %v2111, 0
      %v2255 = vsel %vm336, %v2119, 0
      %v2258 = vsel %vm336, %v2127, 0
      %v2261 = vsel %vm336, %v2135, 0
      %v2264 = vsel %vm336, %v2143, 0
      %v2267 = vsel %vm336, %v2151, 0
      %v2270 = vsel %vm336, %v2159, 0
      %v2273 = vsel %vm336, %v2167, 0
      %v2276 = vsel %vm336, %v2175, 0
      %v2279 = vsel %vm336, %v2183, 0
      %v2282 = vsel %vm336, %v2191, 0
      %v2285 = vsel %vm336, %v2199, 0
      %v2288 = vsel %vm336, %v2207, 0
      %v2291 = vsel %vm336, %v2215, 0
      %v2294 = vsel %vm336, %v2223, 0
      %2296 = vmatprep.subr.bf16.mxu0 0
      %2297 = vmatpush1.bf16.msra.mxu0 %v2240
      %2298 = vmatprep.subr.bf16.mxu0 0
      %2299 = vmatpush1.bf16.msra.mxu0 %v2241
      %2300 = vmatprep.subr.bf16.mxu0 0
      %2301 = vmatpush1.bf16.msra.mxu0 %v2242
      %2302 = vmatprep.subr.bf16.mxu0 0
      %2303 = vmatpush1.bf16.msra.mxu0 %v2243
      %2304 = vmatprep.subr.bf16.mxu0 0
      %2305 = vmatpush1.bf16.msra.mxu0 0
      %2306 = vmatprep.subr.bf16.mxu0 0
      %2307 = vmatpush1.bf16.msra.mxu0 0
      %2308 = vmatprep.subr.bf16.mxu0 0
      %2309 = vmatpush1.bf16.msra.mxu0 0
      %2310 = vmatprep.subr.bf16.mxu0 0
      %2311 = vmatpush1.bf16.msra.mxu0 0
      %2312 = vmatprep.subr.bf16.mxu0 0
      %2313 = vmatpush1.bf16.msra.mxu0 0
      %2314 = vmatprep.subr.bf16.mxu0 0
      %2315 = vmatpush1.bf16.msra.mxu0 0
      %2316 = vmatprep.subr.bf16.mxu0 0
      %2317 = vmatpush1.bf16.msra.mxu0 0
      %2318 = vmatprep.subr.bf16.mxu0 0
      %2319 = vmatpush1.bf16.msra.mxu0 0
      %2320 = vmatprep.subr.bf16.mxu0 0
      %2321 = vmatpush1.bf16.msra.mxu0 0
      %2322 = vmatprep.subr.bf16.mxu0 0
      %2323 = vmatpush1.bf16.msra.mxu0 0
      %2324 = vmatprep.subr.bf16.mxu0 0
      %2325 = vmatpush1.bf16.msra.mxu0 0
      %2326 = vmatprep.subr.bf16.mxu0 0
      %2327 = vmatpush1.bf16.msra.mxu0 0
      %2328 = vmatprep.mubr.bf16.mxu0 0
      %2329 = vmatmul.mubr.bf16.gmra.mrb[0].mxu0 %v2249
      %v2330 = vpop.f32.mrb[0].mxu0
      %v2331 = vadd.f32 0.0, %v2330
      %v2332 = vpop.f32.mrb[0].mxu0
      %v2333 = vpop.f32.mrb[0].mxu0
      %v2334 = vadd.f32 0.0, %v2333
      %v2335 = vpop.f32.mrb[0].mxu0
      %2336 = vmatprep.mubr.bf16.mxu0 0
      %2337 = vmatmul.mubr.bf16.gmra.mrb[0].mxu0 %v2252
      %v2338 = vpop.f32.mrb[0].mxu0
      %v2339 = vadd.f32 0.0, %v2338
      %v2340 = vpop.f32.mrb[0].mxu0
      %v2341 = vpop.f32.mrb[0].mxu0
      %v2342 = vadd.f32 0.0, %v2341
      %v2343 = vpop.f32.mrb[0].mxu0
      %2344 = vmatprep.mubr.bf16.mxu0 0
      %2345 = vmatmul.mubr.bf16.gmra.mrb[0].mxu0 %v2255
      %v2346 = vpop.f32.mrb[0].mxu0
      %v2347 = vadd.f32 0.0, %v2346
      %v2348 = vpop.f32.mrb[0].mxu0
      %v2349 = vpop.f32.mrb[0].mxu0
      %v2350 = vadd.f32 0.0, %v2349
      %v2351 = vpop.f32.mrb[0].mxu0
      %2352 = vmatprep.mubr.bf16.mxu0 0
      %2353 = vmatmul.mubr.bf16.gmra.mrb[0].mxu0 %v2258
      %v2354 = vpop.f32.mrb[0].mxu0
      %v2355 = vadd.f32 0.0, %v2354
      %v2356 = vpop.f32.mrb[0].mxu0
      %v2357 = vpop.f32.mrb[0].mxu0
      %v2358 = vadd.f32 0.0, %v2357
      %v2359 = vpop.f32.mrb[0].mxu0
      %2360 = vmatprep.mubr.bf16.mxu0 0
      %2361 = vmatmul.mubr.bf16.gmra.mrb[0].mxu0 %v2261
      %v2362 = vpop.f32.mrb[0].mxu0
      %v2363 = vadd.f32 0.0, %v2362
      %v2364 = vpop.f32.mrb[0].mxu0
      %v2365 = vpop.f32.mrb[0].mxu0
      %v2366 = vadd.f32 0.0, %v2365
      %v2367 = vpop.f32.mrb[0].mxu0
      %2368 = vmatprep.mubr.bf16.mxu0 0
      %2369 = vmatmul.mubr.bf16.gmra.mrb[0].mxu0 %v2264
      %v2370 = vpop.f32.mrb[0].mxu0
      %v2371 = vadd.f32 0.0, %v2370
      %v2372 = vpop.f32.mrb[0].mxu0
      %v2373 = vpop.f32.mrb[0].mxu0
      %v2374 = vadd.f32 0.0, %v2373
      %v2375 = vpop.f32.mrb[0].mxu0
      %2376 = vmatprep.mubr.bf16.mxu0 0
      %2377 = vmatmul.mubr.bf16.gmra.mrb[0].mxu0 %v2267
      %v2378 = vpop.f32.mrb[0].mxu0
      %v2379 = vadd.f32 0.0, %v2378
      %v2380 = vpop.f32.mrb[0].mxu0
      %v2381 = vpop.f32.mrb[0].mxu0
      %v2382 = vadd.f32 0.0, %v2381
      %v2383 = vpop.f32.mrb[0].mxu0
      %2384 = vmatprep.mubr.bf16.mxu0 0
      %2385 = vmatmul.mubr.bf16.gmra.mrb[0].mxu0 %v2270
      %v2386 = vpop.f32.mrb[0].mxu0
      %v2387 = vadd.f32 0.0, %v2386
      %v2388 = vpop.f32.mrb[0].mxu0
      %v2389 = vpop.f32.mrb[0].mxu0
      %v2390 = vadd.f32 0.0, %v2389
      %v2391 = vpop.f32.mrb[0].mxu0
      %2392 = vmatprep.mubr.bf16.mxu0 0
      %2393 = vmatmul.mubr.bf16.gmra.mrb[0].mxu0 %v2273
      %v2394 = vpop.f32.mrb[0].mxu0
      %v2395 = vadd.f32 0.0, %v2394
      %v2396 = vpop.f32.mrb[0].mxu0
      %v2397 = vpop.f32.mrb[0].mxu0
      %v2398 = vadd.f32 0.0, %v2397
      %v2399 = vpop.f32.mrb[0].mxu0
      %2400 = vmatprep.mubr.bf16.mxu0 0
      %2401 = vmatmul.mubr.bf16.gmra.mrb[0].mxu0 %v2276
      %v2402 = vpop.f32.mrb[0].mxu0
      %v2403 = vadd.f32 0.0, %v2402
      %v2404 = vpop.f32.mrb[0].mxu0
      %v2405 = vpop.f32.mrb[0].mxu0
      %v2406 = vadd.f32 0.0, %v2405
      %v2407 = vpop.f32.mrb[0].mxu0
      %2408 = vmatprep.mubr.bf16.mxu0 0
      %2409 = vmatmul.mubr.bf16.gmra.mrb[0].mxu0 %v2279
      %v2410 = vpop.f32.mrb[0].mxu0
      %v2411 = vadd.f32 0.0, %v2410
      %v2412 = vpop.f32.mrb[0].mxu0
      %v2413 = vpop.f32.mrb[0].mxu0
      %v2414 = vadd.f32 0.0, %v2413
      %v2415 = vpop.f32.mrb[0].mxu0
      %2416 = vmatprep.mubr.bf16.mxu0 0
      %2417 = vmatmul.mubr.bf16.gmra.mrb[0].mxu0 %v2282
      %v2418 = vpop.f32.mrb[0].mxu0
      %v2419 = vadd.f32 0.0, %v2418
      %v2420 = vpop.f32.mrb[0].mxu0
      %v2421 = vpop.f32.mrb[0].mxu0
      %v2422 = vadd.f32 0.0, %v2421
      %v2423 = vpop.f32.mrb[0].mxu0
      %2424 = vmatprep.mubr.bf16.mxu0 0
      %2425 = vmatmul.mubr.bf16.gmra.mrb[0].mxu0 %v2285
      %v2426 = vpop.f32.mrb[0].mxu0
      %v2427 = vadd.f32 0.0, %v2426
      %v2428 = vpop.f32.mrb[0].mxu0
      %v2429 = vpop.f32.mrb[0].mxu0
      %v2430 = vadd.f32 0.0, %v2429
      %v2431 = vpop.f32.mrb[0].mxu0
      %2432 = vmatprep.mubr.bf16.mxu0 0
      %2433 = vmatmul.mubr.bf16.gmra.mrb[0].mxu0 %v2288
      %v2434 = vpop.f32.mrb[0].mxu0
      %v2435 = vadd.f32 0.0, %v2434
      %v2436 = vpop.f32.mrb[0].mxu0
      %v2437 = vpop.f32.mrb[0].mxu0
      %v2438 = vadd.f32 0.0, %v2437
      %v2439 = vpop.f32.mrb[0].mxu0
      %2440 = vmatprep.mubr.bf16.mxu0 0
      %2441 = vmatmul.mubr.bf16.gmra.mrb[0].mxu0 %v2291
      %v2442 = vpop.f32.mrb[0].mxu0
      %v2443 = vadd.f32 0.0, %v2442
      %v2444 = vpop.f32.mrb[0].mxu0
      %v2445 = vpop.f32.mrb[0].mxu0
      %v2446 = vadd.f32 0.0, %v2445
      %v2447 = vpop.f32.mrb[0].mxu0
      %2448 = vmatprep.mubr.bf16.mxu0 0
      %2449 = vmatmul.mubr.bf16.gmra.mrb[0].mxu0 %v2294
      %v2450 = vpop.f32.mrb[0].mxu0
      %v2451 = vadd.f32 0.0, %v2450
      %v2452 = vpop.f32.mrb[0].mxu0
      %v2453 = vpop.f32.mrb[0].mxu0
      %v2454 = vadd.f32 0.0, %v2453
      %v2455 = vpop.f32.mrb[0].mxu0
      %2456 = vdwg.mxu0
      %v2457 = vadd.f32 %v1667, %v2331
      %v2458 = vadd.f32 %v1670, %v2334
      %v2459 = vadd.f32 %v1675, %v2339
      %v2460 = vadd.f32 %v1678, %v2342
      %v2461 = vadd.f32 %v1683, %v2347
      %v2462 = vadd.f32 %v1686, %v2350
      %v2463 = vadd.f32 %v1691, %v2355
      %v2464 = vadd.f32 %v1694, %v2358
      %v2465 = vadd.f32 %v1699, %v2363
      %v2466 = vadd.f32 %v1702, %v2366
      %v2467 = vadd.f32 %v1707, %v2371
      %v2468 = vadd.f32 %v1710, %v2374
      %v2469 = vadd.f32 %v1715, %v2379
      %v2470 = vadd.f32 %v1718, %v2382
      %v2471 = vadd.f32 %v1723, %v2387
      %v2472 = vadd.f32 %v1726, %v2390
      %v2473 = vadd.f32 %v1731, %v2395
      %v2474 = vadd.f32 %v1734, %v2398
      %v2475 = vadd.f32 %v1739, %v2403
      %v2476 = vadd.f32 %v1742, %v2406
      %v2477 = vadd.f32 %v1747, %v2411
      %v2478 = vadd.f32 %v1750, %v2414
      %v2479 = vadd.f32 %v1755, %v2419
      %v2480 = vadd.f32 %v1758, %v2422
      %v2481 = vadd.f32 %v1763, %v2427
      %v2482 = vadd.f32 %v1766, %v2430
      %v2483 = vadd.f32 %v1771, %v2435
      %v2484 = vadd.f32 %v1774, %v2438
      %v2485 = vadd.f32 %v1779, %v2443
      %v2486 = vadd.f32 %v1782, %v2446
      %v2487 = vadd.f32 %v1787, %v2451
      %v2488 = vadd.f32 %v1790, %v2454
      %v2489 = vld [vmem:[#allocation2 + $0x8] sm:$0x80]
      %v2490 = vld [vmem:[#allocation2 + $0x88] sm:$0xff]
      %v2491 = vsel %vm1143, %v2489, 0
      %v2492 = vsel %vm1144, %v1794, 0
      %v2493 = vsel %vm1145, %v1795, 0
      %v2494 = vsel %vm1146, %v1796, 0
      %v2495 = vsel %vm1147, %v1797, 0
      %v2496 = vsel %vm1148, %v1798, 0
      %v2497 = vsel %vm1149, %v1799, 0
      %v2498 = vsel %vm1150, %v1800, 0
      %v2499 = vsel %vm1151, %v1801, 0
      %v2500 = vsel %vm1152, %v1802, 0
      %v2501 = vsel %vm1153, %v1803, 0
      %v2502 = vsel %vm1154, %v1804, 0
      %v2503 = vsel %vm1155, %v1805, 0
      %v2504 = vsel %vm1156, %v1806, 0
      %v2505 = vsel %vm1157, %v1807, 0
      %v2506 = vsel %vm1158, %v1808, 0
      %v2507 = vsel %vm1159, %v2490, 0
      %s2508 = scalar_lea.vmem %s1, 96
      %v2509 = vld [vmem:[%s2508] sm:$0xf]
      %v2510 = vld [vmem:[%s2508 + $0x4] sm:$0xf]
      %v2511 = vld [vmem:[%s2508 + $0x8] sm:$0xf]
      %v2512 = vld [vmem:[%s2508 + $0xc] sm:$0xf]
      %v2513 = vld [vmem:[%s2508 + $0x10] sm:$0xf]
      %v2514 = vld [vmem:[%s2508 + $0x14] sm:$0xf]
      %v2515 = vld [vmem:[%s2508 + $0x18] sm:$0xf]
      %v2516 = vld [vmem:[%s2508 + $0x1c] sm:$0xf]
      %v2518 = vshrl.u32 %v2491, 16
      %v2520 = vrot.slane %v2518, 7
      %v2522 = vshrl.u32 %v2492, 16
      %v2524 = vrot.slane %v2522, 7
      %v2525 = vshll.u32 %v2492, 16
      %v2527 = vor.u32 %v2524, %v2525
      %v2528 = vsel %vm1427, %v2520, %v2527
      %v2530 = vshrl.u32 %v2493, 16
      %v2532 = vrot.slane %v2530, 7
      %v2533 = vshll.u32 %v2493, 16
      %v2535 = vor.u32 %v2532, %v2533
      %v2536 = vsel %vm1427, %v2524, %v2535
      %v2538 = vshrl.u32 %v2494, 16
      %v2540 = vrot.slane %v2538, 7
      %v2541 = vshll.u32 %v2494, 16
      %v2543 = vor.u32 %v2540, %v2541
      %v2544 = vsel %vm1427, %v2532, %v2543
      %v2546 = vshrl.u32 %v2495, 16
      %v2548 = vrot.slane %v2546, 7
      %v2549 = vshll.u32 %v2495, 16
      %v2551 = vor.u32 %v2548, %v2549
      %v2552 = vsel %vm1427, %v2540, %v2551
      %v2554 = vshrl.u32 %v2496, 16
      %v2556 = vrot.slane %v2554, 7
      %v2557 = vshll.u32 %v2496, 16
      %v2559 = vor.u32 %v2556, %v2557
      %v2560 = vsel %vm1427, %v2548, %v2559
      %v2562 = vshrl.u32 %v2497, 16
      %v2564 = vrot.slane %v2562, 7
      %v2565 = vshll.u32 %v2497, 16
      %v2567 = vor.u32 %v2564, %v2565
      %v2568 = vsel %vm1427, %v2556, %v2567
      %v2570 = vshrl.u32 %v2498, 16
      %v2572 = vrot.slane %v2570, 7
      %v2573 = vshll.u32 %v2498, 16
      %v2575 = vor.u32 %v2572, %v2573
      %v2576 = vsel %vm1427, %v2564, %v2575
      %v2578 = vshrl.u32 %v2499, 16
      %v2580 = vrot.slane %v2578, 7
      %v2581 = vshll.u32 %v2499, 16
      %v2583 = vor.u32 %v2580, %v2581
      %v2584 = vsel %vm1427, %v2572, %v2583
      %v2586 = vshrl.u32 %v2500, 16
      %v2588 = vrot.slane %v2586, 7
      %v2589 = vshll.u32 %v2500, 16
      %v2591 = vor.u32 %v2588, %v2589
      %v2592 = vsel %vm1427, %v2580, %v2591
      %v2594 = vshrl.u32 %v2501, 16
      %v2596 = vrot.slane %v2594, 7
      %v2597 = vshll.u32 %v2501, 16
      %v2599 = vor.u32 %v2596, %v2597
      %v2600 = vsel %vm1427, %v2588, %v2599
      %v2602 = vshrl.u32 %v2502, 16
      %v2604 = vrot.slane %v2602, 7
      %v2605 = vshll.u32 %v2502, 16
      %v2607 = vor.u32 %v2604, %v2605
      %v2608 = vsel %vm1427, %v2596, %v2607
      %v2610 = vshrl.u32 %v2503, 16
      %v2612 = vrot.slane %v2610, 7
      %v2613 = vshll.u32 %v2503, 16
      %v2615 = vor.u32 %v2612, %v2613
      %v2616 = vsel %vm1427, %v2604, %v2615
      %v2618 = vshrl.u32 %v2504, 16
      %v2620 = vrot.slane %v2618, 7
      %v2621 = vshll.u32 %v2504, 16
      %v2623 = vor.u32 %v2620, %v2621
      %v2624 = vsel %vm1427, %v2612, %v2623
      %v2626 = vshrl.u32 %v2505, 16
      %v2628 = vrot.slane %v2626, 7
      %v2629 = vshll.u32 %v2505, 16
      %v2631 = vor.u32 %v2628, %v2629
      %v2632 = vsel %vm1427, %v2620, %v2631
      %v2634 = vshrl.u32 %v2506, 16
      %v2636 = vrot.slane %v2634, 7
      %v2637 = vshll.u32 %v2506, 16
      %v2639 = vor.u32 %v2636, %v2637
      %v2640 = vsel %vm1427, %v2628, %v2639
      %v2642 = vshrl.u32 %v2507, 16
      %v2644 = vrot.slane %v2642, 7
      %v2645 = vshll.u32 %v2507, 16
      %v2647 = vor.u32 %v2644, %v2645
      %v2648 = vsel %vm1427, %v2636, %v2647
      %v2657 = vunpack.c.l.b16 %v2509
      %v2658 = vunpack.c.l.b16 %v2510
      %v2659 = vunpack.c.l.b16 %v2511
      %v2660 = vunpack.c.l.b16 %v2512
      %v2661 = vunpack.c.l.b16 %v2513
      %v2662 = vunpack.c.l.b16 %v2514
      %v2663 = vunpack.c.l.b16 %v2515
      %v2664 = vunpack.c.l.b16 %v2516
      %v2665 = vpack.c.b16 %v2658, %v2657
      %v2666 = vpack.c.b16 %v2660, %v2659
      %v2667 = vpack.c.b16 %v2662, %v2661
      %v2668 = vpack.c.b16 %v2664, %v2663
      %v2674 = vsel %vm336, %v2528, 0
      %v2677 = vsel %vm336, %v2536, 0
      %v2680 = vsel %vm336, %v2544, 0
      %v2683 = vsel %vm336, %v2552, 0
      %v2686 = vsel %vm336, %v2560, 0
      %v2689 = vsel %vm336, %v2568, 0
      %v2692 = vsel %vm336, %v2576, 0
      %v2695 = vsel %vm336, %v2584, 0
      %v2698 = vsel %vm336, %v2592, 0
      %v2701 = vsel %vm336, %v2600, 0
      %v2704 = vsel %vm336, %v2608, 0
      %v2707 = vsel %vm336, %v2616, 0
      %v2710 = vsel %vm336, %v2624, 0
      %v2713 = vsel %vm336, %v2632, 0
      %v2716 = vsel %vm336, %v2640, 0
      %v2719 = vsel %vm336, %v2648, 0
      %2721 = vmatprep.subr.bf16.mxu0 0
      %2722 = vmatpush1.bf16.msra.mxu0 %v2665
      %2723 = vmatprep.subr.bf16.mxu0 0
      %2724 = vmatpush1.bf16.msra.mxu0 %v2666
      %2725 = vmatprep.subr.bf16.mxu0 0
      %2726 = vmatpush1.bf16.msra.mxu0 %v2667
      %2727 = vmatprep.subr.bf16.mxu0 0
      %2728 = vmatpush1.bf16.msra.mxu0 %v2668
      %2729 = vmatprep.subr.bf16.mxu0 0
      %2730 = vmatpush1.bf16.msra.mxu0 0
      %2731 = vmatprep.subr.bf16.mxu0 0
      %2732 = vmatpush1.bf16.msra.mxu0 0
      %2733 = vmatprep.subr.bf16.mxu0 0
      %2734 = vmatpush1.bf16.msra.mxu0 0
      %2735 = vmatprep.subr.bf16.mxu0 0
      %2736 = vmatpush1.bf16.msra.mxu0 0
      %2737 = vmatprep.subr.bf16.mxu0 0
      %2738 = vmatpush1.bf16.msra.mxu0 0
      %2739 = vmatprep.subr.bf16.mxu0 0
      %2740 = vmatpush1.bf16.msra.mxu0 0
      %2741 = vmatprep.subr.bf16.mxu0 0
      %2742 = vmatpush1.bf16.msra.mxu0 0
      %2743 = vmatprep.subr.bf16.mxu0 0
      %2744 = vmatpush1.bf16.msra.mxu0 0
      %2745 = vmatprep.subr.bf16.mxu0 0
      %2746 = vmatpush1.bf16.msra.mxu0 0
      %2747 = vmatprep.subr.bf16.mxu0 0
      %2748 = vmatpush1.bf16.msra.mxu0 0
      %2749 = vmatprep.subr.bf16.mxu0 0
      %2750 = vmatpush1.bf16.msra.mxu0 0
      %2751 = vmatprep.subr.bf16.mxu0 0
      %2752 = vmatpush1.bf16.msra.mxu0 0
      %2753 = vmatprep.mubr.bf16.mxu0 0
      %2754 = vmatmul.mubr.bf16.gmra.mrb[0].mxu0 %v2674
      %v2755 = vpop.f32.mrb[0].mxu0
      %v2756 = vadd.f32 0.0, %v2755
      %v2757 = vpop.f32.mrb[0].mxu0
      %v2758 = vpop.f32.mrb[0].mxu0
      %v2759 = vadd.f32 0.0, %v2758
      %v2760 = vpop.f32.mrb[0].mxu0
      %2761 = vmatprep.mubr.bf16.mxu0 0
      %2762 = vmatmul.mubr.bf16.gmra.mrb[0].mxu0 %v2677
      %v2763 = vpop.f32.mrb[0].mxu0
      %v2764 = vadd.f32 0.0, %v2763
      %v2765 = vpop.f32.mrb[0].mxu0
      %v2766 = vpop.f32.mrb[0].mxu0
      %v2767 = vadd.f32 0.0, %v2766
      %v2768 = vpop.f32.mrb[0].mxu0
      %2769 = vmatprep.mubr.bf16.mxu0 0
      %2770 = vmatmul.mubr.bf16.gmra.mrb[0].mxu0 %v2680
      %v2771 = vpop.f32.mrb[0].mxu0
      %v2772 = vadd.f32 0.0, %v2771
      %v2773 = vpop.f32.mrb[0].mxu0
      %v2774 = vpop.f32.mrb[0].mxu0
      %v2775 = vadd.f32 0.0, %v2774
      %v2776 = vpop.f32.mrb[0].mxu0
      %2777 = vmatprep.mubr.bf16.mxu0 0
      %2778 = vmatmul.mubr.bf16.gmra.mrb[0].mxu0 %v2683
      %v2779 = vpop.f32.mrb[0].mxu0
      %v2780 = vadd.f32 0.0, %v2779
      %v2781 = vpop.f32.mrb[0].mxu0
      %v2782 = vpop.f32.mrb[0].mxu0
      %v2783 = vadd.f32 0.0, %v2782
      %v2784 = vpop.f32.mrb[0].mxu0
      %2785 = vmatprep.mubr.bf16.mxu0 0
      %2786 = vmatmul.mubr.bf16.gmra.mrb[0].mxu0 %v2686
      %v2787 = vpop.f32.mrb[0].mxu0
      %v2788 = vadd.f32 0.0, %v2787
      %v2789 = vpop.f32.mrb[0].mxu0
      %v2790 = vpop.f32.mrb[0].mxu0
      %v2791 = vadd.f32 0.0, %v2790
      %v2792 = vpop.f32.mrb[0].mxu0
      %2793 = vmatprep.mubr.bf16.mxu0 0
      %2794 = vmatmul.mubr.bf16.gmra.mrb[0].mxu0 %v2689
      %v2795 = vpop.f32.mrb[0].mxu0
      %v2796 = vadd.f32 0.0, %v2795
      %v2797 = vpop.f32.mrb[0].mxu0
      %v2798 = vpop.f32.mrb[0].mxu0
      %v2799 = vadd.f32 0.0, %v2798
      %v2800 = vpop.f32.mrb[0].mxu0
      %2801 = vmatprep.mubr.bf16.mxu0 0
      %2802 = vmatmul.mubr.bf16.gmra.mrb[0].mxu0 %v2692
      %v2803 = vpop.f32.mrb[0].mxu0
      %v2804 = vadd.f32 0.0, %v2803
      %v2805 = vpop.f32.mrb[0].mxu0
      %v2806 = vpop.f32.mrb[0].mxu0
      %v2807 = vadd.f32 0.0, %v2806
      %v2808 = vpop.f32.mrb[0].mxu0
      %2809 = vmatprep.mubr.bf16.mxu0 0
      %2810 = vmatmul.mubr.bf16.gmra.mrb[0].mxu0 %v2695
      %v2811 = vpop.f32.mrb[0].mxu0
      %v2812 = vadd.f32 0.0, %v2811
      %v2813 = vpop.f32.mrb[0].mxu0
      %v2814 = vpop.f32.mrb[0].mxu0
      %v2815 = vadd.f32 0.0, %v2814
      %v2816 = vpop.f32.mrb[0].mxu0
      %2817 = vmatprep.mubr.bf16.mxu0 0
      %2818 = vmatmul.mubr.bf16.gmra.mrb[0].mxu0 %v2698
      %v2819 = vpop.f32.mrb[0].mxu0
      %v2820 = vadd.f32 0.0, %v2819
      %v2821 = vpop.f32.mrb[0].mxu0
      %v2822 = vpop.f32.mrb[0].mxu0
      %v2823 = vadd.f32 0.0, %v2822
      %v2824 = vpop.f32.mrb[0].mxu0
      %2825 = vmatprep.mubr.bf16.mxu0 0
      %2826 = vmatmul.mubr.bf16.gmra.mrb[0].mxu0 %v2701
      %v2827 = vpop.f32.mrb[0].mxu0
      %v2828 = vadd.f32 0.0, %v2827
      %v2829 = vpop.f32.mrb[0].mxu0
      %v2830 = vpop.f32.mrb[0].mxu0
      %v2831 = vadd.f32 0.0, %v2830
      %v2832 = vpop.f32.mrb[0].mxu0
      %2833 = vmatprep.mubr.bf16.mxu0 0
      %2834 = vmatmul.mubr.bf16.gmra.mrb[0].mxu0 %v2704
      %v2835 = vpop.f32.mrb[0].mxu0
      %v2836 = vadd.f32 0.0, %v2835
      %v2837 = vpop.f32.mrb[0].mxu0
      %v2838 = vpop.f32.mrb[0].mxu0
      %v2839 = vadd.f32 0.0, %v2838
      %v2840 = vpop.f32.mrb[0].mxu0
      %2841 = vmatprep.mubr.bf16.mxu0 0
      %2842 = vmatmul.mubr.bf16.gmra.mrb[0].mxu0 %v2707
      %v2843 = vpop.f32.mrb[0].mxu0
      %v2844 = vadd.f32 0.0, %v2843
      %v2845 = vpop.f32.mrb[0].mxu0
      %v2846 = vpop.f32.mrb[0].mxu0
      %v2847 = vadd.f32 0.0, %v2846
      %v2848 = vpop.f32.mrb[0].mxu0
      %2849 = vmatprep.mubr.bf16.mxu0 0
      %2850 = vmatmul.mubr.bf16.gmra.mrb[0].mxu0 %v2710
      %v2851 = vpop.f32.mrb[0].mxu0
      %v2852 = vadd.f32 0.0, %v2851
      %v2853 = vpop.f32.mrb[0].mxu0
      %v2854 = vpop.f32.mrb[0].mxu0
      %v2855 = vadd.f32 0.0, %v2854
      %v2856 = vpop.f32.mrb[0].mxu0
      %2857 = vmatprep.mubr.bf16.mxu0 0
      %2858 = vmatmul.mubr.bf16.gmra.mrb[0].mxu0 %v2713
      %v2859 = vpop.f32.mrb[0].mxu0
      %v2860 = vadd.f32 0.0, %v2859
      %v2861 = vpop.f32.mrb[0].mxu0
      %v2862 = vpop.f32.mrb[0].mxu0
      %v2863 = vadd.f32 0.0, %v2862
      %v2864 = vpop.f32.mrb[0].mxu0
      %2865 = vmatprep.mubr.bf16.mxu0 0
      %2866 = vmatmul.mubr.bf16.gmra.mrb[0].mxu0 %v2716
      %v2867 = vpop.f32.mrb[0].mxu0
      %v2868 = vadd.f32 0.0, %v2867
      %v2869 = vpop.f32.mrb[0].mxu0
      %v2870 = vpop.f32.mrb[0].mxu0
      %v2871 = vadd.f32 0.0, %v2870
      %v2872 = vpop.f32.mrb[0].mxu0
      %2873 = vmatprep.mubr.bf16.mxu0 0
      %2874 = vmatmul.mubr.bf16.gmra.mrb[0].mxu0 %v2719
      %v2875 = vpop.f32.mrb[0].mxu0
      %v2876 = vadd.f32 0.0, %v2875
      %v2877 = vpop.f32.mrb[0].mxu0
      %v2878 = vpop.f32.mrb[0].mxu0
      %v2879 = vadd.f32 0.0, %v2878
      %v2880 = vpop.f32.mrb[0].mxu0
      %2881 = vdwg.mxu0
      %v2882 = vadd.f32 %v2457, %v2756
      %v2883 = vadd.f32 %v2458, %v2759
      %v2884 = vadd.f32 %v2459, %v2764
      %v2885 = vadd.f32 %v2460, %v2767
      %v2886 = vadd.f32 %v2461, %v2772
      %v2887 = vadd.f32 %v2462, %v2775
      %v2888 = vadd.f32 %v2463, %v2780
      %v2889 = vadd.f32 %v2464, %v2783
      %v2890 = vadd.f32 %v2465, %v2788
      %v2891 = vadd.f32 %v2466, %v2791
      %v2892 = vadd.f32 %v2467, %v2796
      %v2893 = vadd.f32 %v2468, %v2799
      %v2894 = vadd.f32 %v2469, %v2804
      %v2895 = vadd.f32 %v2470, %v2807
      %v2896 = vadd.f32 %v2471, %v2812
      %v2897 = vadd.f32 %v2472, %v2815
      %v2898 = vadd.f32 %v2473, %v2820
      %v2899 = vadd.f32 %v2474, %v2823
      %v2900 = vadd.f32 %v2475, %v2828
      %v2901 = vadd.f32 %v2476, %v2831
      %v2902 = vadd.f32 %v2477, %v2836
      %v2903 = vadd.f32 %v2478, %v2839
      %v2904 = vadd.f32 %v2479, %v2844
      %v2905 = vadd.f32 %v2480, %v2847
      %v2906 = vadd.f32 %v2481, %v2852
      %v2907 = vadd.f32 %v2482, %v2855
      %v2908 = vadd.f32 %v2483, %v2860
      %v2909 = vadd.f32 %v2484, %v2863
      %v2910 = vadd.f32 %v2485, %v2868
      %v2911 = vadd.f32 %v2486, %v2871
      %v2912 = vadd.f32 %v2487, %v2876
      %v2913 = vadd.f32 %v2488, %v2879
      %s2914 = scalar_lea.vmem %s1, 128
      %v2915 = vld [vmem:[%s2914] sm:$0xf]
      %v2916 = vld [vmem:[%s2914 + $0x4] sm:$0xf]
      %v2917 = vld [vmem:[%s2914 + $0x8] sm:$0xf]
      %v2918 = vld [vmem:[%s2914 + $0xc] sm:$0xf]
      %v2919 = vld [vmem:[%s2914 + $0x10] sm:$0xf]
      %v2920 = vld [vmem:[%s2914 + $0x14] sm:$0xf]
      %v2921 = vld [vmem:[%s2914 + $0x18] sm:$0xf]
      %v2922 = vld [vmem:[%s2914 + $0x1c] sm:$0xf]
      %v2931 = vunpack.c.l.b16 %v2915
      %v2932 = vunpack.c.l.b16 %v2916
      %v2933 = vunpack.c.l.b16 %v2917
      %v2934 = vunpack.c.l.b16 %v2918
      %v2935 = vunpack.c.l.b16 %v2919
      %v2936 = vunpack.c.l.b16 %v2920
      %v2937 = vunpack.c.l.b16 %v2921
      %v2938 = vunpack.c.l.b16 %v2922
      %v2939 = vpack.c.b16 %v2932, %v2931
      %v2940 = vpack.c.b16 %v2934, %v2933
      %v2941 = vpack.c.b16 %v2936, %v2935
      %v2942 = vpack.c.b16 %v2938, %v2937
      %v2948 = vsel %vm336, %v1794, 0
      %v2951 = vsel %vm336, %v1795, 0
      %v2954 = vsel %vm336, %v1796, 0
      %v2957 = vsel %vm336, %v1797, 0
      %v2960 = vsel %vm336, %v1798, 0
      %v2963 = vsel %vm336, %v1799, 0
      %v2966 = vsel %vm336, %v1800, 0
      %v2969 = vsel %vm336, %v1801, 0
      %v2972 = vsel %vm336, %v1802, 0
      %v2975 = vsel %vm336, %v1803, 0
      %v2978 = vsel %vm336, %v1804, 0
      %v2981 = vsel %vm336, %v1805, 0
      %v2984 = vsel %vm336, %v1806, 0
      %v2987 = vsel %vm336, %v1807, 0
      %v2990 = vsel %vm336, %v1808, 0
      %v2993 = vsel %vm336, %v2490, 0
      %2995 = vmatprep.subr.bf16.mxu0 0
      %2996 = vmatpush1.bf16.msra.mxu0 %v2939
      %2997 = vmatprep.subr.bf16.mxu0 0
      %2998 = vmatpush1.bf16.msra.mxu0 %v2940
      %2999 = vmatprep.subr.bf16.mxu0 0
      %3000 = vmatpush1.bf16.msra.mxu0 %v2941
      %3001 = vmatprep.subr.bf16.mxu0 0
      %3002 = vmatpush1.bf16.msra.mxu0 %v2942
      %3003 = vmatprep.subr.bf16.mxu0 0
      %3004 = vmatpush1.bf16.msra.mxu0 0
      %3005 = vmatprep.subr.bf16.mxu0 0
      %3006 = vmatpush1.bf16.msra.mxu0 0
      %3007 = vmatprep.subr.bf16.mxu0 0
      %3008 = vmatpush1.bf16.msra.mxu0 0
      %3009 = vmatprep.subr.bf16.mxu0 0
      %3010 = vmatpush1.bf16.msra.mxu0 0
      %3011 = vmatprep.subr.bf16.mxu0 0
      %3012 = vmatpush1.bf16.msra.mxu0 0
      %3013 = vmatprep.subr.bf16.mxu0 0
      %3014 = vmatpush1.bf16.msra.mxu0 0
      %3015 = vmatprep.subr.bf16.mxu0 0
      %3016 = vmatpush1.bf16.msra.mxu0 0
      %3017 = vmatprep.subr.bf16.mxu0 0
      %3018 = vmatpush1.bf16.msra.mxu0 0
      %3019 = vmatprep.subr.bf16.mxu0 0
      %3020 = vmatpush1.bf16.msra.mxu0 0
      %3021 = vmatprep.subr.bf16.mxu0 0
      %3022 = vmatpush1.bf16.msra.mxu0 0
      %3023 = vmatprep.subr.bf16.mxu0 0
      %3024 = vmatpush1.bf16.msra.mxu0 0
      %3025 = vmatprep.subr.bf16.mxu0 0
      %3026 = vmatpush1.bf16.msra.mxu0 0
      %3027 = vmatprep.mubr.bf16.mxu0 0
      %3028 = vmatmul.mubr.bf16.gmra.mrb[0].mxu0 %v2948
      %v3029 = vpop.f32.mrb[0].mxu0
      %v3030 = vadd.f32 0.0, %v3029
      %v3031 = vpop.f32.mrb[0].mxu0
      %v3032 = vpop.f32.mrb[0].mxu0
      %v3033 = vadd.f32 0.0, %v3032
      %v3034 = vpop.f32.mrb[0].mxu0
      %3035 = vmatprep.mubr.bf16.mxu0 0
      %3036 = vmatmul.mubr.bf16.gmra.mrb[0].mxu0 %v2951
      %v3037 = vpop.f32.mrb[0].mxu0
      %v3038 = vadd.f32 0.0, %v3037
      %v3039 = vpop.f32.mrb[0].mxu0
      %v3040 = vpop.f32.mrb[0].mxu0
      %v3041 = vadd.f32 0.0, %v3040
      %v3042 = vpop.f32.mrb[0].mxu0
      %3043 = vmatprep.mubr.bf16.mxu0 0
      %3044 = vmatmul.mubr.bf16.gmra.mrb[0].mxu0 %v2954
      %v3045 = vpop.f32.mrb[0].mxu0
      %v3046 = vadd.f32 0.0, %v3045
      %v3047 = vpop.f32.mrb[0].mxu0
      %v3048 = vpop.f32.mrb[0].mxu0
      %v3049 = vadd.f32 0.0, %v3048
      %v3050 = vpop.f32.mrb[0].mxu0
      %3051 = vmatprep.mubr.bf16.mxu0 0
      %3052 = vmatmul.mubr.bf16.gmra.mrb[0].mxu0 %v2957
      %v3053 = vpop.f32.mrb[0].mxu0
      %v3054 = vadd.f32 0.0, %v3053
      %v3055 = vpop.f32.mrb[0].mxu0
      %v3056 = vpop.f32.mrb[0].mxu0
      %v3057 = vadd.f32 0.0, %v3056
      %v3058 = vpop.f32.mrb[0].mxu0
      %3059 = vmatprep.mubr.bf16.mxu0 0
      %3060 = vmatmul.mubr.bf16.gmra.mrb[0].mxu0 %v2960
      %v3061 = vpop.f32.mrb[0].mxu0
      %v3062 = vadd.f32 0.0, %v3061
      %v3063 = vpop.f32.mrb[0].mxu0
      %v3064 = vpop.f32.mrb[0].mxu0
      %v3065 = vadd.f32 0.0, %v3064
      %v3066 = vpop.f32.mrb[0].mxu0
      %3067 = vmatprep.mubr.bf16.mxu0 0
      %3068 = vmatmul.mubr.bf16.gmra.mrb[0].mxu0 %v2963
      %v3069 = vpop.f32.mrb[0].mxu0
      %v3070 = vadd.f32 0.0, %v3069
      %v3071 = vpop.f32.mrb[0].mxu0
      %v3072 = vpop.f32.mrb[0].mxu0
      %v3073 = vadd.f32 0.0, %v3072
      %v3074 = vpop.f32.mrb[0].mxu0
      %3075 = vmatprep.mubr.bf16.mxu0 0
      %3076 = vmatmul.mubr.bf16.gmra.mrb[0].mxu0 %v2966
      %v3077 = vpop.f32.mrb[0].mxu0
      %v3078 = vadd.f32 0.0, %v3077
      %v3079 = vpop.f32.mrb[0].mxu0
      %v3080 = vpop.f32.mrb[0].mxu0
      %v3081 = vadd.f32 0.0, %v3080
      %v3082 = vpop.f32.mrb[0].mxu0
      %3083 = vmatprep.mubr.bf16.mxu0 0
      %3084 = vmatmul.mubr.bf16.gmra.mrb[0].mxu0 %v2969
      %v3085 = vpop.f32.mrb[0].mxu0
      %v3086 = vadd.f32 0.0, %v3085
      %v3087 = vpop.f32.mrb[0].mxu0
      %v3088 = vpop.f32.mrb[0].mxu0
      %v3089 = vadd.f32 0.0, %v3088
      %v3090 = vpop.f32.mrb[0].mxu0
      %3091 = vmatprep.mubr.bf16.mxu0 0
      %3092 = vmatmul.mubr.bf16.gmra.mrb[0].mxu0 %v2972
      %v3093 = vpop.f32.mrb[0].mxu0
      %v3094 = vadd.f32 0.0, %v3093
      %v3095 = vpop.f32.mrb[0].mxu0
      %v3096 = vpop.f32.mrb[0].mxu0
      %v3097 = vadd.f32 0.0, %v3096
      %v3098 = vpop.f32.mrb[0].mxu0
      %3099 = vmatprep.mubr.bf16.mxu0 0
      %3100 = vmatmul.mubr.bf16.gmra.mrb[0].mxu0 %v2975
      %v3101 = vpop.f32.mrb[0].mxu0
      %v3102 = vadd.f32 0.0, %v3101
      %v3103 = vpop.f32.mrb[0].mxu0
      %v3104 = vpop.f32.mrb[0].mxu0
      %v3105 = vadd.f32 0.0, %v3104
      %v3106 = vpop.f32.mrb[0].mxu0
      %3107 = vmatprep.mubr.bf16.mxu0 0
      %3108 = vmatmul.mubr.bf16.gmra.mrb[0].mxu0 %v2978
      %v3109 = vpop.f32.mrb[0].mxu0
      %v3110 = vadd.f32 0.0, %v3109
      %v3111 = vpop.f32.mrb[0].mxu0
      %v3112 = vpop.f32.mrb[0].mxu0
      %v3113 = vadd.f32 0.0, %v3112
      %v3114 = vpop.f32.mrb[0].mxu0
      %3115 = vmatprep.mubr.bf16.mxu0 0
      %3116 = vmatmul.mubr.bf16.gmra.mrb[0].mxu0 %v2981
      %v3117 = vpop.f32.mrb[0].mxu0
      %v3118 = vadd.f32 0.0, %v3117
      %v3119 = vpop.f32.mrb[0].mxu0
      %v3120 = vpop.f32.mrb[0].mxu0
      %v3121 = vadd.f32 0.0, %v3120
      %v3122 = vpop.f32.mrb[0].mxu0
      %3123 = vmatprep.mubr.bf16.mxu0 0
      %3124 = vmatmul.mubr.bf16.gmra.mrb[0].mxu0 %v2984
      %v3125 = vpop.f32.mrb[0].mxu0
      %v3126 = vadd.f32 0.0, %v3125
      %v3127 = vpop.f32.mrb[0].mxu0
      %v3128 = vpop.f32.mrb[0].mxu0
      %v3129 = vadd.f32 0.0, %v3128
      %v3130 = vpop.f32.mrb[0].mxu0
      %3131 = vmatprep.mubr.bf16.mxu0 0
      %3132 = vmatmul.mubr.bf16.gmra.mrb[0].mxu0 %v2987
      %v3133 = vpop.f32.mrb[0].mxu0
      %v3134 = vadd.f32 0.0, %v3133
      %v3135 = vpop.f32.mrb[0].mxu0
      %v3136 = vpop.f32.mrb[0].mxu0
      %v3137 = vadd.f32 0.0, %v3136
      %v3138 = vpop.f32.mrb[0].mxu0
      %3139 = vmatprep.mubr.bf16.mxu0 0
      %3140 = vmatmul.mubr.bf16.gmra.mrb[0].mxu0 %v2990
      %v3141 = vpop.f32.mrb[0].mxu0
      %v3142 = vadd.f32 0.0, %v3141
      %v3143 = vpop.f32.mrb[0].mxu0
      %v3144 = vpop.f32.mrb[0].mxu0
      %v3145 = vadd.f32 0.0, %v3144
      %v3146 = vpop.f32.mrb[0].mxu0
      %3147 = vmatprep.mubr.bf16.mxu0 0
      %3148 = vmatmul.mubr.bf16.gmra.mrb[0].mxu0 %v2993
      %v3149 = vpop.f32.mrb[0].mxu0
      %v3150 = vadd.f32 0.0, %v3149
      %v3151 = vpop.f32.mrb[0].mxu0
      %v3152 = vpop.f32.mrb[0].mxu0
      %v3153 = vadd.f32 0.0, %v3152
      %v3154 = vpop.f32.mrb[0].mxu0
      %3155 = vdwg.mxu0
      %v3156 = vadd.f32 %v2882, %v3030
      %v3157 = vadd.f32 %v2883, %v3033
      %v3158 = vadd.f32 %v2884, %v3038
      %v3159 = vadd.f32 %v2885, %v3041
      %v3160 = vadd.f32 %v2886, %v3046
      %v3161 = vadd.f32 %v2887, %v3049
      %v3162 = vadd.f32 %v2888, %v3054
      %v3163 = vadd.f32 %v2889, %v3057
      %v3164 = vadd.f32 %v2890, %v3062
      %v3165 = vadd.f32 %v2891, %v3065
      %v3166 = vadd.f32 %v2892, %v3070
      %v3167 = vadd.f32 %v2893, %v3073
      %v3168 = vadd.f32 %v2894, %v3078
      %v3169 = vadd.f32 %v2895, %v3081
      %v3170 = vadd.f32 %v2896, %v3086
      %v3171 = vadd.f32 %v2897, %v3089
      %v3172 = vadd.f32 %v2898, %v3094
      %v3173 = vadd.f32 %v2899, %v3097
      %v3174 = vadd.f32 %v2900, %v3102
      %v3175 = vadd.f32 %v2901, %v3105
      %v3176 = vadd.f32 %v2902, %v3110
      %v3177 = vadd.f32 %v2903, %v3113
      %v3178 = vadd.f32 %v2904, %v3118
      %v3179 = vadd.f32 %v2905, %v3121
      %v3180 = vadd.f32 %v2906, %v3126
      %v3181 = vadd.f32 %v2907, %v3129
      %v3182 = vadd.f32 %v2908, %v3134
      %v3183 = vadd.f32 %v2909, %v3137
      %v3184 = vadd.f32 %v2910, %v3142
      %v3185 = vadd.f32 %v2911, %v3145
      %v3186 = vadd.f32 %v2912, %v3150
      %v3187 = vadd.f32 %v2913, %v3153
      %v3188 = vld [vmem:[#allocation2 + $0x10] sm:$0xff]
      %v3189 = vld [vmem:[#allocation2 + $0x18] sm:$0xff]
      %v3190 = vld [vmem:[#allocation2 + $0x20] sm:$0xff]
      %v3191 = vld [vmem:[#allocation2 + $0x28] sm:$0xff]
      %v3192 = vld [vmem:[#allocation2 + $0x30] sm:$0xff]
      %v3193 = vld [vmem:[#allocation2 + $0x38] sm:$0xff]
      %v3194 = vld [vmem:[#allocation2 + $0x40] sm:$0xff]
      %v3195 = vld [vmem:[#allocation2 + $0x48] sm:$0xff]
      %v3196 = vld [vmem:[#allocation2 + $0x50] sm:$0xff]
      %v3197 = vld [vmem:[#allocation2 + $0x58] sm:$0xff]
      %v3198 = vld [vmem:[#allocation2 + $0x60] sm:$0xff]
      %v3199 = vld [vmem:[#allocation2 + $0x68] sm:$0xff]
      %v3200 = vld [vmem:[#allocation2 + $0x70] sm:$0xff]
      %v3201 = vld [vmem:[#allocation2 + $0x78] sm:$0xff]
      %v3202 = vld [vmem:[#allocation2 + $0x80] sm:$0xff]
      %v3203 = vld [vmem:[#allocation2 + $0x88] sm:$0xff]
      %v3204 = vld [vmem:[#allocation2 + $0x90] sm:$0x1]
      %v3205 = vsel %vm2049, %v3188, 0
      %v3206 = vsel %vm2050, %v3189, 0
      %v3207 = vsel %vm2051, %v3190, 0
      %v3208 = vsel %vm2052, %v3191, 0
      %v3209 = vsel %vm2053, %v3192, 0
      %v3210 = vsel %vm2054, %v3193, 0
      %v3211 = vsel %vm2055, %v3194, 0
      %v3212 = vsel %vm2056, %v3195, 0
      %v3213 = vsel %vm2057, %v3196, 0
      %v3214 = vsel %vm2058, %v3197, 0
      %v3215 = vsel %vm2059, %v3198, 0
      %v3216 = vsel %vm2060, %v3199, 0
      %v3217 = vsel %vm2061, %v3200, 0
      %v3218 = vsel %vm2062, %v3201, 0
      %v3219 = vsel %vm2063, %v3202, 0
      %v3220 = vsel %vm2064, %v3203, 0
      %v3221 = vsel %vm2065, %v3204, 0
      %s3222 = scalar_lea.vmem %s1, 160
      %v3223 = vld [vmem:[%s3222] sm:$0xf]
      %v3224 = vld [vmem:[%s3222 + $0x4] sm:$0xf]
      %v3225 = vld [vmem:[%s3222 + $0x8] sm:$0xf]
      %v3226 = vld [vmem:[%s3222 + $0xc] sm:$0xf]
      %v3227 = vld [vmem:[%s3222 + $0x10] sm:$0xf]
      %v3228 = vld [vmem:[%s3222 + $0x14] sm:$0xf]
      %v3229 = vld [vmem:[%s3222 + $0x18] sm:$0xf]
      %v3230 = vld [vmem:[%s3222 + $0x1c] sm:$0xf]
      %v3232 = vshrl.u32 %v3205, 16
      %v3234 = vshll.u32 %v3205, 16
      %v3236 = vrot.slane %v3234, 1
      %v3237 = vor.u32 %v3232, %v3236
      %v3239 = vshll.u32 %v3206, 16
      %v3241 = vrot.slane %v3239, 1
      %v3242 = vsel %vm1015, %v3237, %v3241
      %v3243 = vshrl.u32 %v3206, 16
      %v3245 = vor.u32 %v3243, %v3241
      %v3247 = vshll.u32 %v3207, 16
      %v3249 = vrot.slane %v3247, 1
      %v3250 = vsel %vm1015, %v3245, %v3249
      %v3251 = vshrl.u32 %v3207, 16
      %v3253 = vor.u32 %v3251, %v3249
      %v3255 = vshll.u32 %v3208, 16
      %v3257 = vrot.slane %v3255, 1
      %v3258 = vsel %vm1015, %v3253, %v3257
      %v3259 = vshrl.u32 %v3208, 16
      %v3261 = vor.u32 %v3259, %v3257
      %v3263 = vshll.u32 %v3209, 16
      %v3265 = vrot.slane %v3263, 1
      %v3266 = vsel %vm1015, %v3261, %v3265
      %v3267 = vshrl.u32 %v3209, 16
      %v3269 = vor.u32 %v3267, %v3265
      %v3271 = vshll.u32 %v3210, 16
      %v3273 = vrot.slane %v3271, 1
      %v3274 = vsel %vm1015, %v3269, %v3273
      %v3275 = vshrl.u32 %v3210, 16
      %v3277 = vor.u32 %v3275, %v3273
      %v3279 = vshll.u32 %v3211, 16
      %v3281 = vrot.slane %v3279, 1
      %v3282 = vsel %vm1015, %v3277, %v3281
      %v3283 = vshrl.u32 %v3211, 16
      %v3285 = vor.u32 %v3283, %v3281
      %v3287 = vshll.u32 %v3212, 16
      %v3289 = vrot.slane %v3287, 1
      %v3290 = vsel %vm1015, %v3285, %v3289
      %v3291 = vshrl.u32 %v3212, 16
      %v3293 = vor.u32 %v3291, %v3289
      %v3295 = vshll.u32 %v3213, 16
      %v3297 = vrot.slane %v3295, 1
      %v3298 = vsel %vm1015, %v3293, %v3297
      %v3299 = vshrl.u32 %v3213, 16
      %v3301 = vor.u32 %v3299, %v3297
      %v3303 = vshll.u32 %v3214, 16
      %v3305 = vrot.slane %v3303, 1
      %v3306 = vsel %vm1015, %v3301, %v3305
      %v3307 = vshrl.u32 %v3214, 16
      %v3309 = vor.u32 %v3307, %v3305
      %v3311 = vshll.u32 %v3215, 16
      %v3313 = vrot.slane %v3311, 1
      %v3314 = vsel %vm1015, %v3309, %v3313
      %v3315 = vshrl.u32 %v3215, 16
      %v3317 = vor.u32 %v3315, %v3313
      %v3319 = vshll.u32 %v3216, 16
      %v3321 = vrot.slane %v3319, 1
      %v3322 = vsel %vm1015, %v3317, %v3321
      %v3323 = vshrl.u32 %v3216, 16
      %v3325 = vor.u32 %v3323, %v3321
      %v3327 = vshll.u32 %v3217, 16
      %v3329 = vrot.slane %v3327, 1
      %v3330 = vsel %vm1015, %v3325, %v3329
      %v3331 = vshrl.u32 %v3217, 16
      %v3333 = vor.u32 %v3331, %v3329
      %v3335 = vshll.u32 %v3218, 16
      %v3337 = vrot.slane %v3335, 1
      %v3338 = vsel %vm1015, %v3333, %v3337
      %v3339 = vshrl.u32 %v3218, 16
      %v3341 = vor.u32 %v3339, %v3337
      %v3343 = vshll.u32 %v3219, 16
      %v3345 = vrot.slane %v3343, 1
      %v3346 = vsel %vm1015, %v3341, %v3345
      %v3347 = vshrl.u32 %v3219, 16
      %v3349 = vor.u32 %v3347, %v3345
      %v3351 = vshll.u32 %v3220, 16
      %v3353 = vrot.slane %v3351, 1
      %v3354 = vsel %vm1015, %v3349, %v3353
      %v3355 = vshrl.u32 %v3220, 16
      %v3357 = vor.u32 %v3355, %v3353
      %v3359 = vshll.u32 %v3221, 16
      %v3361 = vrot.slane %v3359, 1
      %v3362 = vsel %vm1015, %v3357, %v3361
      %v3371 = vunpack.c.l.b16 %v3223
      %v3372 = vunpack.c.l.b16 %v3224
      %v3373 = vunpack.c.l.b16 %v3225
      %v3374 = vunpack.c.l.b16 %v3226
      %v3375 = vunpack.c.l.b16 %v3227
      %v3376 = vunpack.c.l.b16 %v3228
      %v3377 = vunpack.c.l.b16 %v3229
      %v3378 = vunpack.c.l.b16 %v3230
      %v3379 = vpack.c.b16 %v3372, %v3371
      %v3380 = vpack.c.b16 %v3374, %v3373
      %v3381 = vpack.c.b16 %v3376, %v3375
      %v3382 = vpack.c.b16 %v3378, %v3377
      %v3388 = vsel %vm336, %v3242, 0
      %v3391 = vsel %vm336, %v3250, 0
      %v3394 = vsel %vm336, %v3258, 0
      %v3397 = vsel %vm336, %v3266, 0
      %v3400 = vsel %vm336, %v3274, 0
      %v3403 = vsel %vm336, %v3282, 0
      %v3406 = vsel %vm336, %v3290, 0
      %v3409 = vsel %vm336, %v3298, 0
      %v3412 = vsel %vm336, %v3306, 0
      %v3415 = vsel %vm336, %v3314, 0
      %v3418 = vsel %vm336, %v3322, 0
      %v3421 = vsel %vm336, %v3330, 0
      %v3424 = vsel %vm336, %v3338, 0
      %v3427 = vsel %vm336, %v3346, 0
      %v3430 = vsel %vm336, %v3354, 0
      %v3433 = vsel %vm336, %v3362, 0
      %3435 = vmatprep.subr.bf16.mxu0 0
      %3436 = vmatpush1.bf16.msra.mxu0 %v3379
      %3437 = vmatprep.subr.bf16.mxu0 0
      %3438 = vmatpush1.bf16.msra.mxu0 %v3380
      %3439 = vmatprep.subr.bf16.mxu0 0
      %3440 = vmatpush1.bf16.msra.mxu0 %v3381
      %3441 = vmatprep.subr.bf16.mxu0 0
      %3442 = vmatpush1.bf16.msra.mxu0 %v3382
      %3443 = vmatprep.subr.bf16.mxu0 0
      %3444 = vmatpush1.bf16.msra.mxu0 0
      %3445 = vmatprep.subr.bf16.mxu0 0
      %3446 = vmatpush1.bf16.msra.mxu0 0
      %3447 = vmatprep.subr.bf16.mxu0 0
      %3448 = vmatpush1.bf16.msra.mxu0 0
      %3449 = vmatprep.subr.bf16.mxu0 0
      %3450 = vmatpush1.bf16.msra.mxu0 0
      %3451 = vmatprep.subr.bf16.mxu0 0
      %3452 = vmatpush1.bf16.msra.mxu0 0
      %3453 = vmatprep.subr.bf16.mxu0 0
      %3454 = vmatpush1.bf16.msra.mxu0 0
      %3455 = vmatprep.subr.bf16.mxu0 0
      %3456 = vmatpush1.bf16.msra.mxu0 0
      %3457 = vmatprep.subr.bf16.mxu0 0
      %3458 = vmatpush1.bf16.msra.mxu0 0
      %3459 = vmatprep.subr.bf16.mxu0 0
      %3460 = vmatpush1.bf16.msra.mxu0 0
      %3461 = vmatprep.subr.bf16.mxu0 0
      %3462 = vmatpush1.bf16.msra.mxu0 0
      %3463 = vmatprep.subr.bf16.mxu0 0
      %3464 = vmatpush1.bf16.msra.mxu0 0
      %3465 = vmatprep.subr.bf16.mxu0 0
      %3466 = vmatpush1.bf16.msra.mxu0 0
      %3467 = vmatprep.mubr.bf16.mxu0 0
      %3468 = vmatmul.mubr.bf16.gmra.mrb[0].mxu0 %v3388
      %v3469 = vpop.f32.mrb[0].mxu0
      %v3470 = vadd.f32 0.0, %v3469
      %v3471 = vpop.f32.mrb[0].mxu0
      %v3472 = vpop.f32.mrb[0].mxu0
      %v3473 = vadd.f32 0.0, %v3472
      %v3474 = vpop.f32.mrb[0].mxu0
      %3475 = vmatprep.mubr.bf16.mxu0 0
      %3476 = vmatmul.mubr.bf16.gmra.mrb[0].mxu0 %v3391
      %v3477 = vpop.f32.mrb[0].mxu0
      %v3478 = vadd.f32 0.0, %v3477
      %v3479 = vpop.f32.mrb[0].mxu0
      %v3480 = vpop.f32.mrb[0].mxu0
      %v3481 = vadd.f32 0.0, %v3480
      %v3482 = vpop.f32.mrb[0].mxu0
      %3483 = vmatprep.mubr.bf16.mxu0 0
      %3484 = vmatmul.mubr.bf16.gmra.mrb[0].mxu0 %v3394
      %v3485 = vpop.f32.mrb[0].mxu0
      %v3486 = vadd.f32 0.0, %v3485
      %v3487 = vpop.f32.mrb[0].mxu0
      %v3488 = vpop.f32.mrb[0].mxu0
      %v3489 = vadd.f32 0.0, %v3488
      %v3490 = vpop.f32.mrb[0].mxu0
      %3491 = vmatprep.mubr.bf16.mxu0 0
      %3492 = vmatmul.mubr.bf16.gmra.mrb[0].mxu0 %v3397
      %v3493 = vpop.f32.mrb[0].mxu0
      %v3494 = vadd.f32 0.0, %v3493
      %v3495 = vpop.f32.mrb[0].mxu0
      %v3496 = vpop.f32.mrb[0].mxu0
      %v3497 = vadd.f32 0.0, %v3496
      %v3498 = vpop.f32.mrb[0].mxu0
      %3499 = vmatprep.mubr.bf16.mxu0 0
      %3500 = vmatmul.mubr.bf16.gmra.mrb[0].mxu0 %v3400
      %v3501 = vpop.f32.mrb[0].mxu0
      %v3502 = vadd.f32 0.0, %v3501
      %v3503 = vpop.f32.mrb[0].mxu0
      %v3504 = vpop.f32.mrb[0].mxu0
      %v3505 = vadd.f32 0.0, %v3504
      %v3506 = vpop.f32.mrb[0].mxu0
      %3507 = vmatprep.mubr.bf16.mxu0 0
      %3508 = vmatmul.mubr.bf16.gmra.mrb[0].mxu0 %v3403
      %v3509 = vpop.f32.mrb[0].mxu0
      %v3510 = vadd.f32 0.0, %v3509
      %v3511 = vpop.f32.mrb[0].mxu0
      %v3512 = vpop.f32.mrb[0].mxu0
      %v3513 = vadd.f32 0.0, %v3512
      %v3514 = vpop.f32.mrb[0].mxu0
      %3515 = vmatprep.mubr.bf16.mxu0 0
      %3516 = vmatmul.mubr.bf16.gmra.mrb[0].mxu0 %v3406
      %v3517 = vpop.f32.mrb[0].mxu0
      %v3518 = vadd.f32 0.0, %v3517
      %v3519 = vpop.f32.mrb[0].mxu0
      %v3520 = vpop.f32.mrb[0].mxu0
      %v3521 = vadd.f32 0.0, %v3520
      %v3522 = vpop.f32.mrb[0].mxu0
      %3523 = vmatprep.mubr.bf16.mxu0 0
      %3524 = vmatmul.mubr.bf16.gmra.mrb[0].mxu0 %v3409
      %v3525 = vpop.f32.mrb[0].mxu0
      %v3526 = vadd.f32 0.0, %v3525
      %v3527 = vpop.f32.mrb[0].mxu0
      %v3528 = vpop.f32.mrb[0].mxu0
      %v3529 = vadd.f32 0.0, %v3528
      %v3530 = vpop.f32.mrb[0].mxu0
      %3531 = vmatprep.mubr.bf16.mxu0 0
      %3532 = vmatmul.mubr.bf16.gmra.mrb[0].mxu0 %v3412
      %v3533 = vpop.f32.mrb[0].mxu0
      %v3534 = vadd.f32 0.0, %v3533
      %v3535 = vpop.f32.mrb[0].mxu0
      %v3536 = vpop.f32.mrb[0].mxu0
      %v3537 = vadd.f32 0.0, %v3536
      %v3538 = vpop.f32.mrb[0].mxu0
      %3539 = vmatprep.mubr.bf16.mxu0 0
      %3540 = vmatmul.mubr.bf16.gmra.mrb[0].mxu0 %v3415
      %v3541 = vpop.f32.mrb[0].mxu0
      %v3542 = vadd.f32 0.0, %v3541
      %v3543 = vpop.f32.mrb[0].mxu0
      %v3544 = vpop.f32.mrb[0].mxu0
      %v3545 = vadd.f32 0.0, %v3544
      %v3546 = vpop.f32.mrb[0].mxu0
      %3547 = vmatprep.mubr.bf16.mxu0 0
      %3548 = vmatmul.mubr.bf16.gmra.mrb[0].mxu0 %v3418
      %v3549 = vpop.f32.mrb[0].mxu0
      %v3550 = vadd.f32 0.0, %v3549
      %v3551 = vpop.f32.mrb[0].mxu0
      %v3552 = vpop.f32.mrb[0].mxu0
      %v3553 = vadd.f32 0.0, %v3552
      %v3554 = vpop.f32.mrb[0].mxu0
      %3555 = vmatprep.mubr.bf16.mxu0 0
      %3556 = vmatmul.mubr.bf16.gmra.mrb[0].mxu0 %v3421
      %v3557 = vpop.f32.mrb[0].mxu0
      %v3558 = vadd.f32 0.0, %v3557
      %v3559 = vpop.f32.mrb[0].mxu0
      %v3560 = vpop.f32.mrb[0].mxu0
      %v3561 = vadd.f32 0.0, %v3560
      %v3562 = vpop.f32.mrb[0].mxu0
      %3563 = vmatprep.mubr.bf16.mxu0 0
      %3564 = vmatmul.mubr.bf16.gmra.mrb[0].mxu0 %v3424
      %v3565 = vpop.f32.mrb[0].mxu0
      %v3566 = vadd.f32 0.0, %v3565
      %v3567 = vpop.f32.mrb[0].mxu0
      %v3568 = vpop.f32.mrb[0].mxu0
      %v3569 = vadd.f32 0.0, %v3568
      %v3570 = vpop.f32.mrb[0].mxu0
      %3571 = vmatprep.mubr.bf16.mxu0 0
      %3572 = vmatmul.mubr.bf16.gmra.mrb[0].mxu0 %v3427
      %v3573 = vpop.f32.mrb[0].mxu0
      %v3574 = vadd.f32 0.0, %v3573
      %v3575 = vpop.f32.mrb[0].mxu0
      %v3576 = vpop.f32.mrb[0].mxu0
      %v3577 = vadd.f32 0.0, %v3576
      %v3578 = vpop.f32.mrb[0].mxu0
      %3579 = vmatprep.mubr.bf16.mxu0 0
      %3580 = vmatmul.mubr.bf16.gmra.mrb[0].mxu0 %v3430
      %v3581 = vpop.f32.mrb[0].mxu0
      %v3582 = vadd.f32 0.0, %v3581
      %v3583 = vpop.f32.mrb[0].mxu0
      %v3584 = vpop.f32.mrb[0].mxu0
      %v3585 = vadd.f32 0.0, %v3584
      %v3586 = vpop.f32.mrb[0].mxu0
      %3587 = vmatprep.mubr.bf16.mxu0 0
      %3588 = vmatmul.mubr.bf16.gmra.mrb[0].mxu0 %v3433
      %v3589 = vpop.f32.mrb[0].mxu0
      %v3590 = vadd.f32 0.0, %v3589
      %v3591 = vpop.f32.mrb[0].mxu0
      %v3592 = vpop.f32.mrb[0].mxu0
      %v3593 = vadd.f32 0.0, %v3592
      %v3594 = vpop.f32.mrb[0].mxu0
      %3595 = vdwg.mxu0
      %v3596 = vadd.f32 %v3156, %v3470
      %v3597 = vadd.f32 %v3157, %v3473
      %v3598 = vadd.f32 %v3158, %v3478
      %v3599 = vadd.f32 %v3159, %v3481
      %v3600 = vadd.f32 %v3160, %v3486
      %v3601 = vadd.f32 %v3161, %v3489
      %v3602 = vadd.f32 %v3162, %v3494
      %v3603 = vadd.f32 %v3163, %v3497
      %v3604 = vadd.f32 %v3164, %v3502
      %v3605 = vadd.f32 %v3165, %v3505
      %v3606 = vadd.f32 %v3166, %v3510
      %v3607 = vadd.f32 %v3167, %v3513
      %v3608 = vadd.f32 %v3168, %v3518
      %v3609 = vadd.f32 %v3169, %v3521
      %v3610 = vadd.f32 %v3170, %v3526
      %v3611 = vadd.f32 %v3171, %v3529
      %v3612 = vadd.f32 %v3172, %v3534
      %v3613 = vadd.f32 %v3173, %v3537
      %v3614 = vadd.f32 %v3174, %v3542
      %v3615 = vadd.f32 %v3175, %v3545
      %v3616 = vadd.f32 %v3176, %v3550
      %v3617 = vadd.f32 %v3177, %v3553
      %v3618 = vadd.f32 %v3178, %v3558
      %v3619 = vadd.f32 %v3179, %v3561
      %v3620 = vadd.f32 %v3180, %v3566
      %v3621 = vadd.f32 %v3181, %v3569
      %v3622 = vadd.f32 %v3182, %v3574
      %v3623 = vadd.f32 %v3183, %v3577
      %v3624 = vadd.f32 %v3184, %v3582
      %v3625 = vadd.f32 %v3185, %v3585
      %v3626 = vadd.f32 %v3186, %v3590
      %v3627 = vadd.f32 %v3187, %v3593
      %v3628 = vld [vmem:[#allocation2 + $0x10] sm:$0x80]
      %v3629 = vld [vmem:[#allocation2 + $0x90] sm:$0xff]
      %v3630 = vsel %vm1143, %v3628, 0
      %v3631 = vsel %vm1144, %v3189, 0
      %v3632 = vsel %vm1145, %v3190, 0
      %v3633 = vsel %vm1146, %v3191, 0
      %v3634 = vsel %vm1147, %v3192, 0
      %v3635 = vsel %vm1148, %v3193, 0
      %v3636 = vsel %vm1149, %v3194, 0
      %v3637 = vsel %vm1150, %v3195, 0
      %v3638 = vsel %vm1151, %v3196, 0
      %v3639 = vsel %vm1152, %v3197, 0
      %v3640 = vsel %vm1153, %v3198, 0
      %v3641 = vsel %vm1154, %v3199, 0
      %v3642 = vsel %vm1155, %v3200, 0
      %v3643 = vsel %vm1156, %v3201, 0
      %v3644 = vsel %vm1157, %v3202, 0
      %v3645 = vsel %vm1158, %v3203, 0
      %v3646 = vsel %vm1159, %v3629, 0
      %s3647 = scalar_lea.vmem %s1, 192
      %v3648 = vld [vmem:[%s3647] sm:$0xf]
      %v3649 = vld [vmem:[%s3647 + $0x4] sm:$0xf]
      %v3650 = vld [vmem:[%s3647 + $0x8] sm:$0xf]
      %v3651 = vld [vmem:[%s3647 + $0xc] sm:$0xf]
      %v3652 = vld [vmem:[%s3647 + $0x10] sm:$0xf]
      %v3653 = vld [vmem:[%s3647 + $0x14] sm:$0xf]
      %v3654 = vld [vmem:[%s3647 + $0x18] sm:$0xf]
      %v3655 = vld [vmem:[%s3647 + $0x1c] sm:$0xf]
      %v3657 = vshrl.u32 %v3630, 16
      %v3659 = vrot.slane %v3657, 7
      %v3661 = vshrl.u32 %v3631, 16
      %v3663 = vrot.slane %v3661, 7
      %v3664 = vshll.u32 %v3631, 16
      %v3666 = vor.u32 %v3663, %v3664
      %v3667 = vsel %vm1427, %v3659, %v3666
      %v3669 = vshrl.u32 %v3632, 16
      %v3671 = vrot.slane %v3669, 7
      %v3672 = vshll.u32 %v3632, 16
      %v3674 = vor.u32 %v3671, %v3672
      %v3675 = vsel %vm1427, %v3663, %v3674
      %v3677 = vshrl.u32 %v3633, 16
      %v3679 = vrot.slane %v3677, 7
      %v3680 = vshll.u32 %v3633, 16
      %v3682 = vor.u32 %v3679, %v3680
      %v3683 = vsel %vm1427, %v3671, %v3682
      %v3685 = vshrl.u32 %v3634, 16
      %v3687 = vrot.slane %v3685, 7
      %v3688 = vshll.u32 %v3634, 16
      %v3690 = vor.u32 %v3687, %v3688
      %v3691 = vsel %vm1427, %v3679, %v3690
      %v3693 = vshrl.u32 %v3635, 16
      %v3695 = vrot.slane %v3693, 7
      %v3696 = vshll.u32 %v3635, 16
      %v3698 = vor.u32 %v3695, %v3696
      %v3699 = vsel %vm1427, %v3687, %v3698
      %v3701 = vshrl.u32 %v3636, 16
      %v3703 = vrot.slane %v3701, 7
      %v3704 = vshll.u32 %v3636, 16
      %v3706 = vor.u32 %v3703, %v3704
      %v3707 = vsel %vm1427, %v3695, %v3706
      %v3709 = vshrl.u32 %v3637, 16
      %v3711 = vrot.slane %v3709, 7
      %v3712 = vshll.u32 %v3637, 16
      %v3714 = vor.u32 %v3711, %v3712
      %v3715 = vsel %vm1427, %v3703, %v3714
      %v3717 = vshrl.u32 %v3638, 16
      %v3719 = vrot.slane %v3717, 7
      %v3720 = vshll.u32 %v3638, 16
      %v3722 = vor.u32 %v3719, %v3720
      %v3723 = vsel %vm1427, %v3711, %v3722
      %v3725 = vshrl.u32 %v3639, 16
      %v3727 = vrot.slane %v3725, 7
      %v3728 = vshll.u32 %v3639, 16
      %v3730 = vor.u32 %v3727, %v3728
      %v3731 = vsel %vm1427, %v3719, %v3730
      %v3733 = vshrl.u32 %v3640, 16
      %v3735 = vrot.slane %v3733, 7
      %v3736 = vshll.u32 %v3640, 16
      %v3738 = vor.u32 %v3735, %v3736
      %v3739 = vsel %vm1427, %v3727, %v3738
      %v3741 = vshrl.u32 %v3641, 16
      %v3743 = vrot.slane %v3741, 7
      %v3744 = vshll.u32 %v3641, 16
      %v3746 = vor.u32 %v3743, %v3744
      %v3747 = vsel %vm1427, %v3735, %v3746
      %v3749 = vshrl.u32 %v3642, 16
      %v3751 = vrot.slane %v3749, 7
      %v3752 = vshll.u32 %v3642, 16
      %v3754 = vor.u32 %v3751, %v3752
      %v3755 = vsel %vm1427, %v3743, %v3754
      %v3757 = vshrl.u32 %v3643, 16
      %v3759 = vrot.slane %v3757, 7
      %v3760 = vshll.u32 %v3643, 16
      %v3762 = vor.u32 %v3759, %v3760
      %v3763 = vsel %vm1427, %v3751, %v3762
      %v3765 = vshrl.u32 %v3644, 16
      %v3767 = vrot.slane %v3765, 7
      %v3768 = vshll.u32 %v3644, 16
      %v3770 = vor.u32 %v3767, %v3768
      %v3771 = vsel %vm1427, %v3759, %v3770
      %v3773 = vshrl.u32 %v3645, 16
      %v3775 = vrot.slane %v3773, 7
      %v3776 = vshll.u32 %v3645, 16
      %v3778 = vor.u32 %v3775, %v3776
      %v3779 = vsel %vm1427, %v3767, %v3778
      %v3781 = vshrl.u32 %v3646, 16
      %v3783 = vrot.slane %v3781, 7
      %v3784 = vshll.u32 %v3646, 16
      %v3786 = vor.u32 %v3783, %v3784
      %v3787 = vsel %vm1427, %v3775, %v3786
      %v3796 = vunpack.c.l.b16 %v3648
      %v3797 = vunpack.c.l.b16 %v3649
      %v3798 = vunpack.c.l.b16 %v3650
      %v3799 = vunpack.c.l.b16 %v3651
      %v3800 = vunpack.c.l.b16 %v3652
      %v3801 = vunpack.c.l.b16 %v3653
      %v3802 = vunpack.c.l.b16 %v3654
      %v3803 = vunpack.c.l.b16 %v3655
      %v3804 = vpack.c.b16 %v3797, %v3796
      %v3805 = vpack.c.b16 %v3799, %v3798
      %v3806 = vpack.c.b16 %v3801, %v3800
      %v3807 = vpack.c.b16 %v3803, %v3802
      %v3813 = vsel %vm336, %v3667, 0
      %v3816 = vsel %vm336, %v3675, 0
      %v3819 = vsel %vm336, %v3683, 0
      %v3822 = vsel %vm336, %v3691, 0
      %v3825 = vsel %vm336, %v3699, 0
      %v3828 = vsel %vm336, %v3707, 0
      %v3831 = vsel %vm336, %v3715, 0
      %v3834 = vsel %vm336, %v3723, 0
      %v3837 = vsel %vm336, %v3731, 0
      %v3840 = vsel %vm336, %v3739, 0
      %v3843 = vsel %vm336, %v3747, 0
      %v3846 = vsel %vm336, %v3755, 0
      %v3849 = vsel %vm336, %v3763, 0
      %v3852 = vsel %vm336, %v3771, 0
      %v3855 = vsel %vm336, %v3779, 0
      %v3858 = vsel %vm336, %v3787, 0
      %3860 = vmatprep.subr.bf16.mxu0 0
      %3861 = vmatpush1.bf16.msra.mxu0 %v3804
      %3862 = vmatprep.subr.bf16.mxu0 0
      %3863 = vmatpush1.bf16.msra.mxu0 %v3805
      %3864 = vmatprep.subr.bf16.mxu0 0
      %3865 = vmatpush1.bf16.msra.mxu0 %v3806
      %3866 = vmatprep.subr.bf16.mxu0 0
      %3867 = vmatpush1.bf16.msra.mxu0 %v3807
      %3868 = vmatprep.subr.bf16.mxu0 0
      %3869 = vmatpush1.bf16.msra.mxu0 0
      %3870 = vmatprep.subr.bf16.mxu0 0
      %3871 = vmatpush1.bf16.msra.mxu0 0
      %3872 = vmatprep.subr.bf16.mxu0 0
      %3873 = vmatpush1.bf16.msra.mxu0 0
      %3874 = vmatprep.subr.bf16.mxu0 0
      %3875 = vmatpush1.bf16.msra.mxu0 0
      %3876 = vmatprep.subr.bf16.mxu0 0
      %3877 = vmatpush1.bf16.msra.mxu0 0
      %3878 = vmatprep.subr.bf16.mxu0 0
      %3879 = vmatpush1.bf16.msra.mxu0 0
      %3880 = vmatprep.subr.bf16.mxu0 0
      %3881 = vmatpush1.bf16.msra.mxu0 0
      %3882 = vmatprep.subr.bf16.mxu0 0
      %3883 = vmatpush1.bf16.msra.mxu0 0
      %3884 = vmatprep.subr.bf16.mxu0 0
      %3885 = vmatpush1.bf16.msra.mxu0 0
      %3886 = vmatprep.subr.bf16.mxu0 0
      %3887 = vmatpush1.bf16.msra.mxu0 0
      %3888 = vmatprep.subr.bf16.mxu0 0
      %3889 = vmatpush1.bf16.msra.mxu0 0
      %3890 = vmatprep.subr.bf16.mxu0 0
      %3891 = vmatpush1.bf16.msra.mxu0 0
      %3892 = vmatprep.mubr.bf16.mxu0 0
      %3893 = vmatmul.mubr.bf16.gmra.mrb[0].mxu0 %v3813
      %v3894 = vpop.f32.mrb[0].mxu0
      %v3895 = vadd.f32 0.0, %v3894
      %v3896 = vpop.f32.mrb[0].mxu0
      %v3897 = vpop.f32.mrb[0].mxu0
      %v3898 = vadd.f32 0.0, %v3897
      %v3899 = vpop.f32.mrb[0].mxu0
      %3900 = vmatprep.mubr.bf16.mxu0 0
      %3901 = vmatmul.mubr.bf16.gmra.mrb[0].mxu0 %v3816
      %v3902 = vpop.f32.mrb[0].mxu0
      %v3903 = vadd.f32 0.0, %v3902
      %v3904 = vpop.f32.mrb[0].mxu0
      %v3905 = vpop.f32.mrb[0].mxu0
      %v3906 = vadd.f32 0.0, %v3905
      %v3907 = vpop.f32.mrb[0].mxu0
      %3908 = vmatprep.mubr.bf16.mxu0 0
      %3909 = vmatmul.mubr.bf16.gmra.mrb[0].mxu0 %v3819
      %v3910 = vpop.f32.mrb[0].mxu0
      %v3911 = vadd.f32 0.0, %v3910
      %v3912 = vpop.f32.mrb[0].mxu0
      %v3913 = vpop.f32.mrb[0].mxu0
      %v3914 = vadd.f32 0.0, %v3913
      %v3915 = vpop.f32.mrb[0].mxu0
      %3916 = vmatprep.mubr.bf16.mxu0 0
      %3917 = vmatmul.mubr.bf16.gmra.mrb[0].mxu0 %v3822
      %v3918 = vpop.f32.mrb[0].mxu0
      %v3919 = vadd.f32 0.0, %v3918
      %v3920 = vpop.f32.mrb[0].mxu0
      %v3921 = vpop.f32.mrb[0].mxu0
      %v3922 = vadd.f32 0.0, %v3921
      %v3923 = vpop.f32.mrb[0].mxu0
      %3924 = vmatprep.mubr.bf16.mxu0 0
      %3925 = vmatmul.mubr.bf16.gmra.mrb[0].mxu0 %v3825
      %v3926 = vpop.f32.mrb[0].mxu0
      %v3927 = vadd.f32 0.0, %v3926
      %v3928 = vpop.f32.mrb[0].mxu0
      %v3929 = vpop.f32.mrb[0].mxu0
      %v3930 = vadd.f32 0.0, %v3929
      %v3931 = vpop.f32.mrb[0].mxu0
      %3932 = vmatprep.mubr.bf16.mxu0 0
      %3933 = vmatmul.mubr.bf16.gmra.mrb[0].mxu0 %v3828
      %v3934 = vpop.f32.mrb[0].mxu0
      %v3935 = vadd.f32 0.0, %v3934
      %v3936 = vpop.f32.mrb[0].mxu0
      %v3937 = vpop.f32.mrb[0].mxu0
      %v3938 = vadd.f32 0.0, %v3937
      %v3939 = vpop.f32.mrb[0].mxu0
      %3940 = vmatprep.mubr.bf16.mxu0 0
      %3941 = vmatmul.mubr.bf16.gmra.mrb[0].mxu0 %v3831
      %v3942 = vpop.f32.mrb[0].mxu0
      %v3943 = vadd.f32 0.0, %v3942
      %v3944 = vpop.f32.mrb[0].mxu0
      %v3945 = vpop.f32.mrb[0].mxu0
      %v3946 = vadd.f32 0.0, %v3945
      %v3947 = vpop.f32.mrb[0].mxu0
      %3948 = vmatprep.mubr.bf16.mxu0 0
      %3949 = vmatmul.mubr.bf16.gmra.mrb[0].mxu0 %v3834
      %v3950 = vpop.f32.mrb[0].mxu0
      %v3951 = vadd.f32 0.0, %v3950
      %v3952 = vpop.f32.mrb[0].mxu0
      %v3953 = vpop.f32.mrb[0].mxu0
      %v3954 = vadd.f32 0.0, %v3953
      %v3955 = vpop.f32.mrb[0].mxu0
      %3956 = vmatprep.mubr.bf16.mxu0 0
      %3957 = vmatmul.mubr.bf16.gmra.mrb[0].mxu0 %v3837
      %v3958 = vpop.f32.mrb[0].mxu0
      %v3959 = vadd.f32 0.0, %v3958
      %v3960 = vpop.f32.mrb[0].mxu0
      %v3961 = vpop.f32.mrb[0].mxu0
      %v3962 = vadd.f32 0.0, %v3961
      %v3963 = vpop.f32.mrb[0].mxu0
      %3964 = vmatprep.mubr.bf16.mxu0 0
      %3965 = vmatmul.mubr.bf16.gmra.mrb[0].mxu0 %v3840
      %v3966 = vpop.f32.mrb[0].mxu0
      %v3967 = vadd.f32 0.0, %v3966
      %v3968 = vpop.f32.mrb[0].mxu0
      %v3969 = vpop.f32.mrb[0].mxu0
      %v3970 = vadd.f32 0.0, %v3969
      %v3971 = vpop.f32.mrb[0].mxu0
      %3972 = vmatprep.mubr.bf16.mxu0 0
      %3973 = vmatmul.mubr.bf16.gmra.mrb[0].mxu0 %v3843
      %v3974 = vpop.f32.mrb[0].mxu0
      %v3975 = vadd.f32 0.0, %v3974
      %v3976 = vpop.f32.mrb[0].mxu0
      %v3977 = vpop.f32.mrb[0].mxu0
      %v3978 = vadd.f32 0.0, %v3977
      %v3979 = vpop.f32.mrb[0].mxu0
      %3980 = vmatprep.mubr.bf16.mxu0 0
      %3981 = vmatmul.mubr.bf16.gmra.mrb[0].mxu0 %v3846
      %v3982 = vpop.f32.mrb[0].mxu0
      %v3983 = vadd.f32 0.0, %v3982
      %v3984 = vpop.f32.mrb[0].mxu0
      %v3985 = vpop.f32.mrb[0].mxu0
      %v3986 = vadd.f32 0.0, %v3985
      %v3987 = vpop.f32.mrb[0].mxu0
      %3988 = vmatprep.mubr.bf16.mxu0 0
      %3989 = vmatmul.mubr.bf16.gmra.mrb[0].mxu0 %v3849
      %v3990 = vpop.f32.mrb[0].mxu0
      %v3991 = vadd.f32 0.0, %v3990
      %v3992 = vpop.f32.mrb[0].mxu0
      %v3993 = vpop.f32.mrb[0].mxu0
      %v3994 = vadd.f32 0.0, %v3993
      %v3995 = vpop.f32.mrb[0].mxu0
      %3996 = vmatprep.mubr.bf16.mxu0 0
      %3997 = vmatmul.mubr.bf16.gmra.mrb[0].mxu0 %v3852
      %v3998 = vpop.f32.mrb[0].mxu0
      %v3999 = vadd.f32 0.0, %v3998
      %v4000 = vpop.f32.mrb[0].mxu0
      %v4001 = vpop.f32.mrb[0].mxu0
      %v4002 = vadd.f32 0.0, %v4001
      %v4003 = vpop.f32.mrb[0].mxu0
      %4004 = vmatprep.mubr.bf16.mxu0 0
      %4005 = vmatmul.mubr.bf16.gmra.mrb[0].mxu0 %v3855
      %v4006 = vpop.f32.mrb[0].mxu0
      %v4007 = vadd.f32 0.0, %v4006
      %v4008 = vpop.f32.mrb[0].mxu0
      %v4009 = vpop.f32.mrb[0].mxu0
      %v4010 = vadd.f32 0.0, %v4009
      %v4011 = vpop.f32.mrb[0].mxu0
      %4012 = vmatprep.mubr.bf16.mxu0 0
      %4013 = vmatmul.mubr.bf16.gmra.mrb[0].mxu0 %v3858
      %v4014 = vpop.f32.mrb[0].mxu0
      %v4015 = vadd.f32 0.0, %v4014
      %v4016 = vpop.f32.mrb[0].mxu0
      %v4017 = vpop.f32.mrb[0].mxu0
      %v4018 = vadd.f32 0.0, %v4017
      %v4019 = vpop.f32.mrb[0].mxu0
      %4020 = vdwg.mxu0
      %v4021 = vadd.f32 %v3596, %v3895
      %v4022 = vadd.f32 %v3597, %v3898
      %v4023 = vadd.f32 %v3598, %v3903
      %v4024 = vadd.f32 %v3599, %v3906
      %v4025 = vadd.f32 %v3600, %v3911
      %v4026 = vadd.f32 %v3601, %v3914
      %v4027 = vadd.f32 %v3602, %v3919
      %v4028 = vadd.f32 %v3603, %v3922
      %v4029 = vadd.f32 %v3604, %v3927
      %v4030 = vadd.f32 %v3605, %v3930
      %v4031 = vadd.f32 %v3606, %v3935
      %v4032 = vadd.f32 %v3607, %v3938
      %v4033 = vadd.f32 %v3608, %v3943
      %v4034 = vadd.f32 %v3609, %v3946
      %v4035 = vadd.f32 %v3610, %v3951
      %v4036 = vadd.f32 %v3611, %v3954
      %v4037 = vadd.f32 %v3612, %v3959
      %v4038 = vadd.f32 %v3613, %v3962
      %v4039 = vadd.f32 %v3614, %v3967
      %v4040 = vadd.f32 %v3615, %v3970
      %v4041 = vadd.f32 %v3616, %v3975
      %v4042 = vadd.f32 %v3617, %v3978
      %v4043 = vadd.f32 %v3618, %v3983
      %v4044 = vadd.f32 %v3619, %v3986
      %v4045 = vadd.f32 %v3620, %v3991
      %v4046 = vadd.f32 %v3621, %v3994
      %v4047 = vadd.f32 %v3622, %v3999
      %v4048 = vadd.f32 %v3623, %v4002
      %v4049 = vadd.f32 %v3624, %v4007
      %v4050 = vadd.f32 %v3625, %v4010
      %v4051 = vadd.f32 %v3626, %v4015
      %v4052 = vadd.f32 %v3627, %v4018
      %s4053 = scalar_lea.vmem %s1, 224
      %v4054 = vld [vmem:[%s4053] sm:$0xf]
      %v4055 = vld [vmem:[%s4053 + $0x4] sm:$0xf]
      %v4056 = vld [vmem:[%s4053 + $0x8] sm:$0xf]
      %v4057 = vld [vmem:[%s4053 + $0xc] sm:$0xf]
      %v4058 = vld [vmem:[%s4053 + $0x10] sm:$0xf]
      %v4059 = vld [vmem:[%s4053 + $0x14] sm:$0xf]
      %v4060 = vld [vmem:[%s4053 + $0x18] sm:$0xf]
      %v4061 = vld [vmem:[%s4053 + $0x1c] sm:$0xf]
      %v4070 = vunpack.c.l.b16 %v4054
      %v4071 = vunpack.c.l.b16 %v4055
      %v4072 = vunpack.c.l.b16 %v4056
      %v4073 = vunpack.c.l.b16 %v4057
      %v4074 = vunpack.c.l.b16 %v4058
      %v4075 = vunpack.c.l.b16 %v4059
      %v4076 = vunpack.c.l.b16 %v4060
      %v4077 = vunpack.c.l.b16 %v4061
      %v4078 = vpack.c.b16 %v4071, %v4070
      %v4079 = vpack.c.b16 %v4073, %v4072
      %v4080 = vpack.c.b16 %v4075, %v4074
      %v4081 = vpack.c.b16 %v4077, %v4076
      %v4087 = vsel %vm336, %v3189, 0
      %v4090 = vsel %vm336, %v3190, 0
      %v4093 = vsel %vm336, %v3191, 0
      %v4096 = vsel %vm336, %v3192, 0
      %v4099 = vsel %vm336, %v3193, 0
      %v4102 = vsel %vm336, %v3194, 0
      %v4105 = vsel %vm336, %v3195, 0
      %v4108 = vsel %vm336, %v3196, 0
      %v4111 = vsel %vm336, %v3197, 0
      %v4114 = vsel %vm336, %v3198, 0
      %v4117 = vsel %vm336, %v3199, 0
      %v4120 = vsel %vm336, %v3200, 0
      %v4123 = vsel %vm336, %v3201, 0
      %v4126 = vsel %vm336, %v3202, 0
      %v4129 = vsel %vm336, %v3203, 0
      %v4132 = vsel %vm336, %v3629, 0
      %4134 = vmatprep.subr.bf16.mxu0 0
      %4135 = vmatpush1.bf16.msra.mxu0 %v4078
      %4136 = vmatprep.subr.bf16.mxu0 0
      %4137 = vmatpush1.bf16.msra.mxu0 %v4079
      %4138 = vmatprep.subr.bf16.mxu0 0
      %4139 = vmatpush1.bf16.msra.mxu0 %v4080
      %4140 = vmatprep.subr.bf16.mxu0 0
      %4141 = vmatpush1.bf16.msra.mxu0 %v4081
      %4142 = vmatprep.subr.bf16.mxu0 0
      %4143 = vmatpush1.bf16.msra.mxu0 0
      %4144 = vmatprep.subr.bf16.mxu0 0
      %4145 = vmatpush1.bf16.msra.mxu0 0
      %4146 = vmatprep.subr.bf16.mxu0 0
      %4147 = vmatpush1.bf16.msra.mxu0 0
      %4148 = vmatprep.subr.bf16.mxu0 0
      %4149 = vmatpush1.bf16.msra.mxu0 0
      %4150 = vmatprep.subr.bf16.mxu0 0
      %4151 = vmatpush1.bf16.msra.mxu0 0
      %4152 = vmatprep.subr.bf16.mxu0 0
      %4153 = vmatpush1.bf16.msra.mxu0 0
      %4154 = vmatprep.subr.bf16.mxu0 0
      %4155 = vmatpush1.bf16.msra.mxu0 0
      %4156 = vmatprep.subr.bf16.mxu0 0
      %4157 = vmatpush1.bf16.msra.mxu0 0
      %4158 = vmatprep.subr.bf16.mxu0 0
      %4159 = vmatpush1.bf16.msra.mxu0 0
      %4160 = vmatprep.subr.bf16.mxu0 0
      %4161 = vmatpush1.bf16.msra.mxu0 0
      %4162 = vmatprep.subr.bf16.mxu0 0
      %4163 = vmatpush1.bf16.msra.mxu0 0
      %4164 = vmatprep.subr.bf16.mxu0 0
      %4165 = vmatpush1.bf16.msra.mxu0 0
      %4166 = vmatprep.mubr.bf16.mxu0 0
      %4167 = vmatmul.mubr.bf16.gmra.mrb[0].mxu0 %v4087
      %v4168 = vpop.f32.mrb[0].mxu0
      %v4169 = vadd.f32 0.0, %v4168
      %v4170 = vpop.f32.mrb[0].mxu0
      %v4171 = vpop.f32.mrb[0].mxu0
      %v4172 = vadd.f32 0.0, %v4171
      %v4173 = vpop.f32.mrb[0].mxu0
      %4174 = vmatprep.mubr.bf16.mxu0 0
      %4175 = vmatmul.mubr.bf16.gmra.mrb[0].mxu0 %v4090
      %v4176 = vpop.f32.mrb[0].mxu0
      %v4177 = vadd.f32 0.0, %v4176
      %v4178 = vpop.f32.mrb[0].mxu0
      %v4179 = vpop.f32.mrb[0].mxu0
      %v4180 = vadd.f32 0.0, %v4179
      %v4181 = vpop.f32.mrb[0].mxu0
      %4182 = vmatprep.mubr.bf16.mxu0 0
      %4183 = vmatmul.mubr.bf16.gmra.mrb[0].mxu0 %v4093
      %v4184 = vpop.f32.mrb[0].mxu0
      %v4185 = vadd.f32 0.0, %v4184
      %v4186 = vpop.f32.mrb[0].mxu0
      %v4187 = vpop.f32.mrb[0].mxu0
      %v4188 = vadd.f32 0.0, %v4187
      %v4189 = vpop.f32.mrb[0].mxu0
      %4190 = vmatprep.mubr.bf16.mxu0 0
      %4191 = vmatmul.mubr.bf16.gmra.mrb[0].mxu0 %v4096
      %v4192 = vpop.f32.mrb[0].mxu0
      %v4193 = vadd.f32 0.0, %v4192
      %v4194 = vpop.f32.mrb[0].mxu0
      %v4195 = vpop.f32.mrb[0].mxu0
      %v4196 = vadd.f32 0.0, %v4195
      %v4197 = vpop.f32.mrb[0].mxu0
      %4198 = vmatprep.mubr.bf16.mxu0 0
      %4199 = vmatmul.mubr.bf16.gmra.mrb[0].mxu0 %v4099
      %v4200 = vpop.f32.mrb[0].mxu0
      %v4201 = vadd.f32 0.0, %v4200
      %v4202 = vpop.f32.mrb[0].mxu0
      %v4203 = vpop.f32.mrb[0].mxu0
      %v4204 = vadd.f32 0.0, %v4203
      %v4205 = vpop.f32.mrb[0].mxu0
      %4206 = vmatprep.mubr.bf16.mxu0 0
      %4207 = vmatmul.mubr.bf16.gmra.mrb[0].mxu0 %v4102
      %v4208 = vpop.f32.mrb[0].mxu0
      %v4209 = vadd.f32 0.0, %v4208
      %v4210 = vpop.f32.mrb[0].mxu0
      %v4211 = vpop.f32.mrb[0].mxu0
      %v4212 = vadd.f32 0.0, %v4211
      %v4213 = vpop.f32.mrb[0].mxu0
      %4214 = vmatprep.mubr.bf16.mxu0 0
      %4215 = vmatmul.mubr.bf16.gmra.mrb[0].mxu0 %v4105
      %v4216 = vpop.f32.mrb[0].mxu0
      %v4217 = vadd.f32 0.0, %v4216
      %v4218 = vpop.f32.mrb[0].mxu0
      %v4219 = vpop.f32.mrb[0].mxu0
      %v4220 = vadd.f32 0.0, %v4219
      %v4221 = vpop.f32.mrb[0].mxu0
      %4222 = vmatprep.mubr.bf16.mxu0 0
      %4223 = vmatmul.mubr.bf16.gmra.mrb[0].mxu0 %v4108
      %v4224 = vpop.f32.mrb[0].mxu0
      %v4225 = vadd.f32 0.0, %v4224
      %v4226 = vpop.f32.mrb[0].mxu0
      %v4227 = vpop.f32.mrb[0].mxu0
      %v4228 = vadd.f32 0.0, %v4227
      %v4229 = vpop.f32.mrb[0].mxu0
      %4230 = vmatprep.mubr.bf16.mxu0 0
      %4231 = vmatmul.mubr.bf16.gmra.mrb[0].mxu0 %v4111
      %v4232 = vpop.f32.mrb[0].mxu0
      %v4233 = vadd.f32 0.0, %v4232
      %v4234 = vpop.f32.mrb[0].mxu0
      %v4235 = vpop.f32.mrb[0].mxu0
      %v4236 = vadd.f32 0.0, %v4235
      %v4237 = vpop.f32.mrb[0].mxu0
      %4238 = vmatprep.mubr.bf16.mxu0 0
      %4239 = vmatmul.mubr.bf16.gmra.mrb[0].mxu0 %v4114
      %v4240 = vpop.f32.mrb[0].mxu0
      %v4241 = vadd.f32 0.0, %v4240
      %v4242 = vpop.f32.mrb[0].mxu0
      %v4243 = vpop.f32.mrb[0].mxu0
      %v4244 = vadd.f32 0.0, %v4243
      %v4245 = vpop.f32.mrb[0].mxu0
      %4246 = vmatprep.mubr.bf16.mxu0 0
      %4247 = vmatmul.mubr.bf16.gmra.mrb[0].mxu0 %v4117
      %v4248 = vpop.f32.mrb[0].mxu0
      %v4249 = vadd.f32 0.0, %v4248
      %v4250 = vpop.f32.mrb[0].mxu0
      %v4251 = vpop.f32.mrb[0].mxu0
      %v4252 = vadd.f32 0.0, %v4251
      %v4253 = vpop.f32.mrb[0].mxu0
      %4254 = vmatprep.mubr.bf16.mxu0 0
      %4255 = vmatmul.mubr.bf16.gmra.mrb[0].mxu0 %v4120
      %v4256 = vpop.f32.mrb[0].mxu0
      %v4257 = vadd.f32 0.0, %v4256
      %v4258 = vpop.f32.mrb[0].mxu0
      %v4259 = vpop.f32.mrb[0].mxu0
      %v4260 = vadd.f32 0.0, %v4259
      %v4261 = vpop.f32.mrb[0].mxu0
      %4262 = vmatprep.mubr.bf16.mxu0 0
      %4263 = vmatmul.mubr.bf16.gmra.mrb[0].mxu0 %v4123
      %v4264 = vpop.f32.mrb[0].mxu0
      %v4265 = vadd.f32 0.0, %v4264
      %v4266 = vpop.f32.mrb[0].mxu0
      %v4267 = vpop.f32.mrb[0].mxu0
      %v4268 = vadd.f32 0.0, %v4267
      %v4269 = vpop.f32.mrb[0].mxu0
      %4270 = vmatprep.mubr.bf16.mxu0 0
      %4271 = vmatmul.mubr.bf16.gmra.mrb[0].mxu0 %v4126
      %v4272 = vpop.f32.mrb[0].mxu0
      %v4273 = vadd.f32 0.0, %v4272
      %v4274 = vpop.f32.mrb[0].mxu0
      %v4275 = vpop.f32.mrb[0].mxu0
      %v4276 = vadd.f32 0.0, %v4275
      %v4277 = vpop.f32.mrb[0].mxu0
      %4278 = vmatprep.mubr.bf16.mxu0 0
      %4279 = vmatmul.mubr.bf16.gmra.mrb[0].mxu0 %v4129
      %v4280 = vpop.f32.mrb[0].mxu0
      %v4281 = vadd.f32 0.0, %v4280
      %v4282 = vpop.f32.mrb[0].mxu0
      %v4283 = vpop.f32.mrb[0].mxu0
      %v4284 = vadd.f32 0.0, %v4283
      %v4285 = vpop.f32.mrb[0].mxu0
      %4286 = vmatprep.mubr.bf16.mxu0 0
      %4287 = vmatmul.mubr.bf16.gmra.mrb[0].mxu0 %v4132
      %v4288 = vpop.f32.mrb[0].mxu0
      %v4289 = vadd.f32 0.0, %v4288
      %v4290 = vpop.f32.mrb[0].mxu0
      %v4291 = vpop.f32.mrb[0].mxu0
      %v4292 = vadd.f32 0.0, %v4291
      %v4293 = vpop.f32.mrb[0].mxu0
      %4294 = vdwg.mxu0
      %v4295 = vadd.f32 %v4021, %v4169
      %v4296 = vadd.f32 %v4022, %v4172
      %v4297 = vadd.f32 %v4023, %v4177
      %v4298 = vadd.f32 %v4024, %v4180
      %v4299 = vadd.f32 %v4025, %v4185
      %v4300 = vadd.f32 %v4026, %v4188
      %v4301 = vadd.f32 %v4027, %v4193
      %v4302 = vadd.f32 %v4028, %v4196
      %v4303 = vadd.f32 %v4029, %v4201
      %v4304 = vadd.f32 %v4030, %v4204
      %v4305 = vadd.f32 %v4031, %v4209
      %v4306 = vadd.f32 %v4032, %v4212
      %v4307 = vadd.f32 %v4033, %v4217
      %v4308 = vadd.f32 %v4034, %v4220
      %v4309 = vadd.f32 %v4035, %v4225
      %v4310 = vadd.f32 %v4036, %v4228
      %v4311 = vadd.f32 %v4037, %v4233
      %v4312 = vadd.f32 %v4038, %v4236
      %v4313 = vadd.f32 %v4039, %v4241
      %v4314 = vadd.f32 %v4040, %v4244
      %v4315 = vadd.f32 %v4041, %v4249
      %v4316 = vadd.f32 %v4042, %v4252
      %v4317 = vadd.f32 %v4043, %v4257
      %v4318 = vadd.f32 %v4044, %v4260
      %v4319 = vadd.f32 %v4045, %v4265
      %v4320 = vadd.f32 %v4046, %v4268
      %v4321 = vadd.f32 %v4047, %v4273
      %v4322 = vadd.f32 %v4048, %v4276
      %v4323 = vadd.f32 %v4049, %v4281
      %v4324 = vadd.f32 %v4050, %v4284
      %v4325 = vadd.f32 %v4051, %v4289
      %v4326 = vadd.f32 %v4052, %v4292
      %v4327 = vld [vmem:[#allocation2 + $0x18] sm:$0xff]
      %v4328 = vld [vmem:[#allocation2 + $0x20] sm:$0xff]
      %v4329 = vld [vmem:[#allocation2 + $0x28] sm:$0xff]
      %v4330 = vld [vmem:[#allocation2 + $0x30] sm:$0xff]
      %v4331 = vld [vmem:[#allocation2 + $0x38] sm:$0xff]
      %v4332 = vld [vmem:[#allocation2 + $0x40] sm:$0xff]
      %v4333 = vld [vmem:[#allocation2 + $0x48] sm:$0xff]
      %v4334 = vld [vmem:[#allocation2 + $0x50] sm:$0xff]
      %v4335 = vld [vmem:[#allocation2 + $0x58] sm:$0xff]
      %v4336 = vld [vmem:[#allocation2 + $0x60] sm:$0xff]
      %v4337 = vld [vmem:[#allocation2 + $0x68] sm:$0xff]
      %v4338 = vld [vmem:[#allocation2 + $0x70] sm:$0xff]
      %v4339 = vld [vmem:[#allocation2 + $0x78] sm:$0xff]
      %v4340 = vld [vmem:[#allocation2 + $0x80] sm:$0xff]
      %v4341 = vld [vmem:[#allocation2 + $0x88] sm:$0xff]
      %v4342 = vld [vmem:[#allocation2 + $0x90] sm:$0xff]
      %v4343 = vld [vmem:[#allocation2 + $0x98] sm:$0x1]
      %v4344 = vsel %vm2049, %v4327, 0
      %v4345 = vsel %vm2050, %v4328, 0
      %v4346 = vsel %vm2051, %v4329, 0
      %v4347 = vsel %vm2052, %v4330, 0
      %v4348 = vsel %vm2053, %v4331, 0
      %v4349 = vsel %vm2054, %v4332, 0
      %v4350 = vsel %vm2055, %v4333, 0
      %v4351 = vsel %vm2056, %v4334, 0
      %v4352 = vsel %vm2057, %v4335, 0
      %v4353 = vsel %vm2058, %v4336, 0
      %v4354 = vsel %vm2059, %v4337, 0
      %v4355 = vsel %vm2060, %v4338, 0
      %v4356 = vsel %vm2061, %v4339, 0
      %v4357 = vsel %vm2062, %v4340, 0
      %v4358 = vsel %vm2063, %v4341, 0
      %v4359 = vsel %vm2064, %v4342, 0
      %v4360 = vsel %vm2065, %v4343, 0
      %s4361 = scalar_lea.vmem %s1, 256
      %v4362 = vld [vmem:[%s4361] sm:$0xf]
      %v4363 = vld [vmem:[%s4361 + $0x4] sm:$0xf]
      %v4364 = vld [vmem:[%s4361 + $0x8] sm:$0xf]
      %v4365 = vld [vmem:[%s4361 + $0xc] sm:$0xf]
      %v4366 = vld [vmem:[%s4361 + $0x10] sm:$0xf]
      %v4367 = vld [vmem:[%s4361 + $0x14] sm:$0xf]
      %v4368 = vld [vmem:[%s4361 + $0x18] sm:$0xf]
      %v4369 = vld [vmem:[%s4361 + $0x1c] sm:$0xf]
      %v4371 = vshrl.u32 %v4344, 16
      %v4373 = vshll.u32 %v4344, 16
      %v4375 = vrot.slane %v4373, 1
      %v4376 = vor.u32 %v4371, %v4375
      %v4378 = vshll.u32 %v4345, 16
      %v4380 = vrot.slane %v4378, 1
      %v4381 = vsel %vm1015, %v4376, %v4380
      %v4382 = vshrl.u32 %v4345, 16
      %v4384 = vor.u32 %v4382, %v4380
      %v4386 = vshll.u32 %v4346, 16
      %v4388 = vrot.slane %v4386, 1
      %v4389 = vsel %vm1015, %v4384, %v4388
      %v4390 = vshrl.u32 %v4346, 16
      %v4392 = vor.u32 %v4390, %v4388
      %v4394 = vshll.u32 %v4347, 16
      %v4396 = vrot.slane %v4394, 1
      %v4397 = vsel %vm1015, %v4392, %v4396
      %v4398 = vshrl.u32 %v4347, 16
      %v4400 = vor.u32 %v4398, %v4396
      %v4402 = vshll.u32 %v4348, 16
      %v4404 = vrot.slane %v4402, 1
      %v4405 = vsel %vm1015, %v4400, %v4404
      %v4406 = vshrl.u32 %v4348, 16
      %v4408 = vor.u32 %v4406, %v4404
      %v4410 = vshll.u32 %v4349, 16
      %v4412 = vrot.slane %v4410, 1
      %v4413 = vsel %vm1015, %v4408, %v4412
      %v4414 = vshrl.u32 %v4349, 16
      %v4416 = vor.u32 %v4414, %v4412
      %v4418 = vshll.u32 %v4350, 16
      %v4420 = vrot.slane %v4418, 1
      %v4421 = vsel %vm1015, %v4416, %v4420
      %v4422 = vshrl.u32 %v4350, 16
      %v4424 = vor.u32 %v4422, %v4420
      %v4426 = vshll.u32 %v4351, 16
      %v4428 = vrot.slane %v4426, 1
      %v4429 = vsel %vm1015, %v4424, %v4428
      %v4430 = vshrl.u32 %v4351, 16
      %v4432 = vor.u32 %v4430, %v4428
      %v4434 = vshll.u32 %v4352, 16
      %v4436 = vrot.slane %v4434, 1
      %v4437 = vsel %vm1015, %v4432, %v4436
      %v4438 = vshrl.u32 %v4352, 16
      %v4440 = vor.u32 %v4438, %v4436
      %v4442 = vshll.u32 %v4353, 16
      %v4444 = vrot.slane %v4442, 1
      %v4445 = vsel %vm1015, %v4440, %v4444
      %v4446 = vshrl.u32 %v4353, 16
      %v4448 = vor.u32 %v4446, %v4444
      %v4450 = vshll.u32 %v4354, 16
      %v4452 = vrot.slane %v4450, 1
      %v4453 = vsel %vm1015, %v4448, %v4452
      %v4454 = vshrl.u32 %v4354, 16
      %v4456 = vor.u32 %v4454, %v4452
      %v4458 = vshll.u32 %v4355, 16
      %v4460 = vrot.slane %v4458, 1
      %v4461 = vsel %vm1015, %v4456, %v4460
      %v4462 = vshrl.u32 %v4355, 16
      %v4464 = vor.u32 %v4462, %v4460
      %v4466 = vshll.u32 %v4356, 16
      %v4468 = vrot.slane %v4466, 1
      %v4469 = vsel %vm1015, %v4464, %v4468
      %v4470 = vshrl.u32 %v4356, 16
      %v4472 = vor.u32 %v4470, %v4468
      %v4474 = vshll.u32 %v4357, 16
      %v4476 = vrot.slane %v4474, 1
      %v4477 = vsel %vm1015, %v4472, %v4476
      %v4478 = vshrl.u32 %v4357, 16
      %v4480 = vor.u32 %v4478, %v4476
      %v4482 = vshll.u32 %v4358, 16
      %v4484 = vrot.slane %v4482, 1
      %v4485 = vsel %vm1015, %v4480, %v4484
      %v4486 = vshrl.u32 %v4358, 16
      %v4488 = vor.u32 %v4486, %v4484
      %v4490 = vshll.u32 %v4359, 16
      %v4492 = vrot.slane %v4490, 1
      %v4493 = vsel %vm1015, %v4488, %v4492
      %v4494 = vshrl.u32 %v4359, 16
      %v4496 = vor.u32 %v4494, %v4492
      %v4498 = vshll.u32 %v4360, 16
      %v4500 = vrot.slane %v4498, 1
      %v4501 = vsel %vm1015, %v4496, %v4500
      %v4510 = vunpack.c.l.b16 %v4362
      %v4511 = vunpack.c.l.b16 %v4363
      %v4512 = vunpack.c.l.b16 %v4364
      %v4513 = vunpack.c.l.b16 %v4365
      %v4514 = vunpack.c.l.b16 %v4366
      %v4515 = vunpack.c.l.b16 %v4367
      %v4516 = vunpack.c.l.b16 %v4368
      %v4517 = vunpack.c.l.b16 %v4369
      %v4518 = vpack.c.b16 %v4511, %v4510
      %v4519 = vpack.c.b16 %v4513, %v4512
      %v4520 = vpack.c.b16 %v4515, %v4514
      %v4521 = vpack.c.b16 %v4517, %v4516
      %v4527 = vsel %vm336, %v4381, 0
      %v4530 = vsel %vm336, %v4389, 0
      %v4533 = vsel %vm336, %v4397, 0
      %v4536 = vsel %vm336, %v4405, 0
      %v4539 = vsel %vm336, %v4413, 0
      %v4542 = vsel %vm336, %v4421, 0
      %v4545 = vsel %vm336, %v4429, 0
      %v4548 = vsel %vm336, %v4437, 0
      %v4551 = vsel %vm336, %v4445, 0
      %v4554 = vsel %vm336, %v4453, 0
      %v4557 = vsel %vm336, %v4461, 0
      %v4560 = vsel %vm336, %v4469, 0
      %v4563 = vsel %vm336, %v4477, 0
      %v4566 = vsel %vm336, %v4485, 0
      %v4569 = vsel %vm336, %v4493, 0
      %v4572 = vsel %vm336, %v4501, 0
      %4574 = vmatprep.subr.bf16.mxu0 0
      %4575 = vmatpush1.bf16.msra.mxu0 %v4518
      %4576 = vmatprep.subr.bf16.mxu0 0
      %4577 = vmatpush1.bf16.msra.mxu0 %v4519
      %4578 = vmatprep.subr.bf16.mxu0 0
      %4579 = vmatpush1.bf16.msra.mxu0 %v4520
      %4580 = vmatprep.subr.bf16.mxu0 0
      %4581 = vmatpush1.bf16.msra.mxu0 %v4521
      %4582 = vmatprep.subr.bf16.mxu0 0
      %4583 = vmatpush1.bf16.msra.mxu0 0
      %4584 = vmatprep.subr.bf16.mxu0 0
      %4585 = vmatpush1.bf16.msra.mxu0 0
      %4586 = vmatprep.subr.bf16.mxu0 0
      %4587 = vmatpush1.bf16.msra.mxu0 0
      %4588 = vmatprep.subr.bf16.mxu0 0
      %4589 = vmatpush1.bf16.msra.mxu0 0
      %4590 = vmatprep.subr.bf16.mxu0 0
      %4591 = vmatpush1.bf16.msra.mxu0 0
      %4592 = vmatprep.subr.bf16.mxu0 0
      %4593 = vmatpush1.bf16.msra.mxu0 0
      %4594 = vmatprep.subr.bf16.mxu0 0
      %4595 = vmatpush1.bf16.msra.mxu0 0
      %4596 = vmatprep.subr.bf16.mxu0 0
      %4597 = vmatpush1.bf16.msra.mxu0 0
      %4598 = vmatprep.subr.bf16.mxu0 0
      %4599 = vmatpush1.bf16.msra.mxu0 0
      %4600 = vmatprep.subr.bf16.mxu0 0
      %4601 = vmatpush1.bf16.msra.mxu0 0
      %4602 = vmatprep.subr.bf16.mxu0 0
      %4603 = vmatpush1.bf16.msra.mxu0 0
      %4604 = vmatprep.subr.bf16.mxu0 0
      %4605 = vmatpush1.bf16.msra.mxu0 0
      %4606 = vmatprep.mubr.bf16.mxu0 0
      %4607 = vmatmul.mubr.bf16.gmra.mrb[0].mxu0 %v4527
      %v4608 = vpop.f32.mrb[0].mxu0
      %v4609 = vadd.f32 0.0, %v4608
      %v4610 = vpop.f32.mrb[0].mxu0
      %v4611 = vpop.f32.mrb[0].mxu0
      %v4612 = vadd.f32 0.0, %v4611
      %v4613 = vpop.f32.mrb[0].mxu0
      %4614 = vmatprep.mubr.bf16.mxu0 0
      %4615 = vmatmul.mubr.bf16.gmra.mrb[0].mxu0 %v4530
      %v4616 = vpop.f32.mrb[0].mxu0
      %v4617 = vadd.f32 0.0, %v4616
      %v4618 = vpop.f32.mrb[0].mxu0
      %v4619 = vpop.f32.mrb[0].mxu0
      %v4620 = vadd.f32 0.0, %v4619
      %v4621 = vpop.f32.mrb[0].mxu0
      %4622 = vmatprep.mubr.bf16.mxu0 0
      %4623 = vmatmul.mubr.bf16.gmra.mrb[0].mxu0 %v4533
      %v4624 = vpop.f32.mrb[0].mxu0
      %v4625 = vadd.f32 0.0, %v4624
      %v4626 = vpop.f32.mrb[0].mxu0
      %v4627 = vpop.f32.mrb[0].mxu0
      %v4628 = vadd.f32 0.0, %v4627
      %v4629 = vpop.f32.mrb[0].mxu0
      %4630 = vmatprep.mubr.bf16.mxu0 0
      %4631 = vmatmul.mubr.bf16.gmra.mrb[0].mxu0 %v4536
      %v4632 = vpop.f32.mrb[0].mxu0
      %v4633 = vadd.f32 0.0, %v4632
      %v4634 = vpop.f32.mrb[0].mxu0
      %v4635 = vpop.f32.mrb[0].mxu0
      %v4636 = vadd.f32 0.0, %v4635
      %v4637 = vpop.f32.mrb[0].mxu0
      %4638 = vmatprep.mubr.bf16.mxu0 0
      %4639 = vmatmul.mubr.bf16.gmra.mrb[0].mxu0 %v4539
      %v4640 = vpop.f32.mrb[0].mxu0
      %v4641 = vadd.f32 0.0, %v4640
      %v4642 = vpop.f32.mrb[0].mxu0
      %v4643 = vpop.f32.mrb[0].mxu0
      %v4644 = vadd.f32 0.0, %v4643
      %v4645 = vpop.f32.mrb[0].mxu0
      %4646 = vmatprep.mubr.bf16.mxu0 0
      %4647 = vmatmul.mubr.bf16.gmra.mrb[0].mxu0 %v4542
      %v4648 = vpop.f32.mrb[0].mxu0
      %v4649 = vadd.f32 0.0, %v4648
      %v4650 = vpop.f32.mrb[0].mxu0
      %v4651 = vpop.f32.mrb[0].mxu0
      %v4652 = vadd.f32 0.0, %v4651
      %v4653 = vpop.f32.mrb[0].mxu0
      %4654 = vmatprep.mubr.bf16.mxu0 0
      %4655 = vmatmul.mubr.bf16.gmra.mrb[0].mxu0 %v4545
      %v4656 = vpop.f32.mrb[0].mxu0
      %v4657 = vadd.f32 0.0, %v4656
      %v4658 = vpop.f32.mrb[0].mxu0
      %v4659 = vpop.f32.mrb[0].mxu0
      %v4660 = vadd.f32 0.0, %v4659
      %v4661 = vpop.f32.mrb[0].mxu0
      %4662 = vmatprep.mubr.bf16.mxu0 0
      %4663 = vmatmul.mubr.bf16.gmra.mrb[0].mxu0 %v4548
      %v4664 = vpop.f32.mrb[0].mxu0
      %v4665 = vadd.f32 0.0, %v4664
      %v4666 = vpop.f32.mrb[0].mxu0
      %v4667 = vpop.f32.mrb[0].mxu0
      %v4668 = vadd.f32 0.0, %v4667
      %v4669 = vpop.f32.mrb[0].mxu0
      %4670 = vmatprep.mubr.bf16.mxu0 0
      %4671 = vmatmul.mubr.bf16.gmra.mrb[0].mxu0 %v4551
      %v4672 = vpop.f32.mrb[0].mxu0
      %v4673 = vadd.f32 0.0, %v4672
      %v4674 = vpop.f32.mrb[0].mxu0
      %v4675 = vpop.f32.mrb[0].mxu0
      %v4676 = vadd.f32 0.0, %v4675
      %v4677 = vpop.f32.mrb[0].mxu0
      %4678 = vmatprep.mubr.bf16.mxu0 0
      %4679 = vmatmul.mubr.bf16.gmra.mrb[0].mxu0 %v4554
      %v4680 = vpop.f32.mrb[0].mxu0
      %v4681 = vadd.f32 0.0, %v4680
      %v4682 = vpop.f32.mrb[0].mxu0
      %v4683 = vpop.f32.mrb[0].mxu0
      %v4684 = vadd.f32 0.0, %v4683
      %v4685 = vpop.f32.mrb[0].mxu0
      %4686 = vmatprep.mubr.bf16.mxu0 0
      %4687 = vmatmul.mubr.bf16.gmra.mrb[0].mxu0 %v4557
      %v4688 = vpop.f32.mrb[0].mxu0
      %v4689 = vadd.f32 0.0, %v4688
      %v4690 = vpop.f32.mrb[0].mxu0
      %v4691 = vpop.f32.mrb[0].mxu0
      %v4692 = vadd.f32 0.0, %v4691
      %v4693 = vpop.f32.mrb[0].mxu0
      %4694 = vmatprep.mubr.bf16.mxu0 0
      %4695 = vmatmul.mubr.bf16.gmra.mrb[0].mxu0 %v4560
      %v4696 = vpop.f32.mrb[0].mxu0
      %v4697 = vadd.f32 0.0, %v4696
      %v4698 = vpop.f32.mrb[0].mxu0
      %v4699 = vpop.f32.mrb[0].mxu0
      %v4700 = vadd.f32 0.0, %v4699
      %v4701 = vpop.f32.mrb[0].mxu0
      %4702 = vmatprep.mubr.bf16.mxu0 0
      %4703 = vmatmul.mubr.bf16.gmra.mrb[0].mxu0 %v4563
      %v4704 = vpop.f32.mrb[0].mxu0
      %v4705 = vadd.f32 0.0, %v4704
      %v4706 = vpop.f32.mrb[0].mxu0
      %v4707 = vpop.f32.mrb[0].mxu0
      %v4708 = vadd.f32 0.0, %v4707
      %v4709 = vpop.f32.mrb[0].mxu0
      %4710 = vmatprep.mubr.bf16.mxu0 0
      %4711 = vmatmul.mubr.bf16.gmra.mrb[0].mxu0 %v4566
      %v4712 = vpop.f32.mrb[0].mxu0
      %v4713 = vadd.f32 0.0, %v4712
      %v4714 = vpop.f32.mrb[0].mxu0
      %v4715 = vpop.f32.mrb[0].mxu0
      %v4716 = vadd.f32 0.0, %v4715
      %v4717 = vpop.f32.mrb[0].mxu0
      %4718 = vmatprep.mubr.bf16.mxu0 0
      %4719 = vmatmul.mubr.bf16.gmra.mrb[0].mxu0 %v4569
      %v4720 = vpop.f32.mrb[0].mxu0
      %v4721 = vadd.f32 0.0, %v4720
      %v4722 = vpop.f32.mrb[0].mxu0
      %v4723 = vpop.f32.mrb[0].mxu0
      %v4724 = vadd.f32 0.0, %v4723
      %v4725 = vpop.f32.mrb[0].mxu0
      %4726 = vmatprep.mubr.bf16.mxu0 0
      %4727 = vmatmul.mubr.bf16.gmra.mrb[0].mxu0 %v4572
      %v4728 = vpop.f32.mrb[0].mxu0
      %v4729 = vadd.f32 0.0, %v4728
      %v4730 = vpop.f32.mrb[0].mxu0
      %v4731 = vpop.f32.mrb[0].mxu0
      %v4732 = vadd.f32 0.0, %v4731
      %v4733 = vpop.f32.mrb[0].mxu0
      %4734 = vdwg.mxu0
      %v4735 = vadd.f32 %v4295, %v4609
      %v4736 = vadd.f32 %v4296, %v4612
      %v4737 = vadd.f32 %v4297, %v4617
      %v4738 = vadd.f32 %v4298, %v4620
      %v4739 = vadd.f32 %v4299, %v4625
      %v4740 = vadd.f32 %v4300, %v4628
      %v4741 = vadd.f32 %v4301, %v4633
      %v4742 = vadd.f32 %v4302, %v4636
      %v4743 = vadd.f32 %v4303, %v4641
      %v4744 = vadd.f32 %v4304, %v4644
      %v4745 = vadd.f32 %v4305, %v4649
      %v4746 = vadd.f32 %v4306, %v4652
      %v4747 = vadd.f32 %v4307, %v4657
      %v4748 = vadd.f32 %v4308, %v4660
      %v4749 = vadd.f32 %v4309, %v4665
      %v4750 = vadd.f32 %v4310, %v4668
      %v4751 = vadd.f32 %v4311, %v4673
      %v4752 = vadd.f32 %v4312, %v4676
      %v4753 = vadd.f32 %v4313, %v4681
      %v4754 = vadd.f32 %v4314, %v4684
      %v4755 = vadd.f32 %v4315, %v4689
      %v4756 = vadd.f32 %v4316, %v4692
      %v4757 = vadd.f32 %v4317, %v4697
      %v4758 = vadd.f32 %v4318, %v4700
      %v4759 = vadd.f32 %v4319, %v4705
      %v4760 = vadd.f32 %v4320, %v4708
      %v4761 = vadd.f32 %v4321, %v4713
      %v4762 = vadd.f32 %v4322, %v4716
      %v4763 = vadd.f32 %v4323, %v4721
      %v4764 = vadd.f32 %v4324, %v4724
      %v4765 = vadd.f32 %v4325, %v4729
      %v4766 = vadd.f32 %v4326, %v4732
      %v4767 = vld [vmem:[%s2] sm:$0x1]
      %v4769 = vlaneseq
      %v4770 = vshrl.u32 %v4769, 7
      %v4771 = vsub.s32 0, %v4770
      %v4772 = vrot.slane %v4767, %v4771
      %v4774 = vadd.f32 %v4735, %v4772
      %v4775 = vadd.f32 %v4736, %v4772
      %v4776 = vadd.f32 %v4737, %v4772
      %v4777 = vadd.f32 %v4738, %v4772
      %v4778 = vadd.f32 %v4739, %v4772
      %v4779 = vadd.f32 %v4740, %v4772
      %v4780 = vadd.f32 %v4741, %v4772
      %v4781 = vadd.f32 %v4742, %v4772
      %v4782 = vadd.f32 %v4743, %v4772
      %v4783 = vadd.f32 %v4744, %v4772
      %v4784 = vadd.f32 %v4745, %v4772
      %v4785 = vadd.f32 %v4746, %v4772
      %v4786 = vadd.f32 %v4747, %v4772
      %v4787 = vadd.f32 %v4748, %v4772
      %v4788 = vadd.f32 %v4749, %v4772
      %v4789 = vadd.f32 %v4750, %v4772
      %v4790 = vadd.f32 %v4751, %v4772
      %v4791 = vadd.f32 %v4752, %v4772
      %v4792 = vadd.f32 %v4753, %v4772
      %v4793 = vadd.f32 %v4754, %v4772
      %v4794 = vadd.f32 %v4755, %v4772
      %v4795 = vadd.f32 %v4756, %v4772
      %v4796 = vadd.f32 %v4757, %v4772
      %v4797 = vadd.f32 %v4758, %v4772
      %v4798 = vadd.f32 %v4759, %v4772
      %v4799 = vadd.f32 %v4760, %v4772
      %v4800 = vadd.f32 %v4761, %v4772
      %v4801 = vadd.f32 %v4762, %v4772
      %v4802 = vadd.f32 %v4763, %v4772
      %v4803 = vadd.f32 %v4764, %v4772
      %v4804 = vadd.f32 %v4765, %v4772
      %v4805 = vadd.f32 %v4766, %v4772
      %v4806 = vmax.f32 %v4774, 0.0
      %v4807 = vmax.f32 %v4775, 0.0
      %v4808 = vmax.f32 %v4776, 0.0
      %v4809 = vmax.f32 %v4777, 0.0
      %v4810 = vmax.f32 %v4778, 0.0
      %v4811 = vmax.f32 %v4779, 0.0
      %v4812 = vmax.f32 %v4780, 0.0
      %v4813 = vmax.f32 %v4781, 0.0
      %v4814 = vmax.f32 %v4782, 0.0
      %v4815 = vmax.f32 %v4783, 0.0
      %v4816 = vmax.f32 %v4784, 0.0
      %v4817 = vmax.f32 %v4785, 0.0
      %v4818 = vmax.f32 %v4786, 0.0
      %v4819 = vmax.f32 %v4787, 0.0
      %v4820 = vmax.f32 %v4788, 0.0
      %v4821 = vmax.f32 %v4789, 0.0
      %v4822 = vmax.f32 %v4790, 0.0
      %v4823 = vmax.f32 %v4791, 0.0
      %v4824 = vmax.f32 %v4792, 0.0
      %v4825 = vmax.f32 %v4793, 0.0
      %v4826 = vmax.f32 %v4794, 0.0
      %v4827 = vmax.f32 %v4795, 0.0
      %v4828 = vmax.f32 %v4796, 0.0
      %v4829 = vmax.f32 %v4797, 0.0
      %v4830 = vmax.f32 %v4798, 0.0
      %v4831 = vmax.f32 %v4799, 0.0
      %v4832 = vmax.f32 %v4800, 0.0
      %v4833 = vmax.f32 %v4801, 0.0
      %v4834 = vmax.f32 %v4802, 0.0
      %v4835 = vmax.f32 %v4803, 0.0
      %v4836 = vmax.f32 %v4804, 0.0
      %v4837 = vmax.f32 %v4805, 0.0
      %v4838 = vpack.c.bf16 %v4807, %v4806
      %v4839 = vpack.c.bf16 %v4809, %v4808
      %v4840 = vpack.c.bf16 %v4811, %v4810
      %v4841 = vpack.c.bf16 %v4813, %v4812
      %v4842 = vpack.c.bf16 %v4815, %v4814
      %v4843 = vpack.c.bf16 %v4817, %v4816
      %v4844 = vpack.c.bf16 %v4819, %v4818
      %v4845 = vpack.c.bf16 %v4821, %v4820
      %v4846 = vpack.c.bf16 %v4823, %v4822
      %v4847 = vpack.c.bf16 %v4825, %v4824
      %v4848 = vpack.c.bf16 %v4827, %v4826
      %v4849 = vpack.c.bf16 %v4829, %v4828
      %v4850 = vpack.c.bf16 %v4831, %v4830
      %v4851 = vpack.c.bf16 %v4833, %v4832
      %v4852 = vpack.c.bf16 %v4835, %v4834
      %v4853 = vpack.c.bf16 %v4837, %v4836
      %4854 = vst.msk [vmem:[#allocation2 + $0x10] sm:$0xff] %vm336, %v4838
      %4855 = vst.msk [vmem:[#allocation2 + $0x18] sm:$0xff] %vm336, %v4839
      %4856 = vst.msk [vmem:[#allocation2 + $0x20] sm:$0xff] %vm336, %v4840
      %4857 = vst.msk [vmem:[#allocation2 + $0x28] sm:$0xff] %vm336, %v4841
      %4858 = vst.msk [vmem:[#allocation2 + $0x30] sm:$0xff] %vm336, %v4842
      %4859 = vst.msk [vmem:[#allocation2 + $0x38] sm:$0xff] %vm336, %v4843
      %4860 = vst.msk [vmem:[#allocation2 + $0x40] sm:$0xff] %vm336, %v4844
      %4861 = vst.msk [vmem:[#allocation2 + $0x48] sm:$0xff] %vm336, %v4845
      %4862 = vst.msk [vmem:[#allocation2 + $0x50] sm:$0xff] %vm336, %v4846
      %4863 = vst.msk [vmem:[#allocation2 + $0x58] sm:$0xff] %vm336, %v4847
      %4864 = vst.msk [vmem:[#allocation2 + $0x60] sm:$0xff] %vm336, %v4848
      %4865 = vst.msk [vmem:[#allocation2 + $0x68] sm:$0xff] %vm336, %v4849
      %4866 = vst.msk [vmem:[#allocation2 + $0x70] sm:$0xff] %vm336, %v4850
      %4867 = vst.msk [vmem:[#allocation2 + $0x78] sm:$0xff] %vm336, %v4851
      %4868 = vst.msk [vmem:[#allocation2 + $0x80] sm:$0xff] %vm336, %v4852
      %4869 = vst.msk [vmem:[#allocation2 + $0x88] sm:$0xff] %vm336, %v4853
      %v4870 = vld [vmem:[#allocation2] sm:$0x80]
      %v4871 = vld [vmem:[#allocation2 + $0x8] sm:$0xff]
      %v4872 = vld [vmem:[#allocation2 + $0x10] sm:$0xff]
      %v4873 = vld [vmem:[#allocation2 + $0x18] sm:$0xff]
      %v4874 = vld [vmem:[#allocation2 + $0x20] sm:$0xff]
      %v4875 = vld [vmem:[#allocation2 + $0x28] sm:$0xff]
      %v4876 = vld [vmem:[#allocation2 + $0x30] sm:$0xff]
      %v4877 = vld [vmem:[#allocation2 + $0x38] sm:$0xff]
      %v4878 = vld [vmem:[#allocation2 + $0x40] sm:$0xff]
      %v4879 = vld [vmem:[#allocation2 + $0x48] sm:$0xff]
      %v4880 = vld [vmem:[#allocation2 + $0x50] sm:$0xff]
      %v4881 = vld [vmem:[#allocation2 + $0x58] sm:$0xff]
      %v4882 = vld [vmem:[#allocation2 + $0x60] sm:$0xff]
      %v4883 = vld [vmem:[#allocation2 + $0x68] sm:$0xff]
      %v4884 = vld [vmem:[#allocation2 + $0x70] sm:$0xff]
      %v4885 = vld [vmem:[#allocation2 + $0x78] sm:$0xff]
      %v4886 = vld [vmem:[#allocation2 + $0x80] sm:$0xff]
      %v4887 = vsel %vm1143, %v4870, 0
      %v4888 = vsel %vm1144, %v4871, 0
      %v4889 = vsel %vm1145, %v4872, 0
      %v4890 = vsel %vm1146, %v4873, 0
      %v4891 = vsel %vm1147, %v4874, 0
      %v4892 = vsel %vm1148, %v4875, 0
      %v4893 = vsel %vm1149, %v4876, 0
      %v4894 = vsel %vm1150, %v4877, 0
      %v4895 = vsel %vm1151, %v4878, 0
      %v4896 = vsel %vm1152, %v4879, 0
      %v4897 = vsel %vm1153, %v4880, 0
      %v4898 = vsel %vm1154, %v4881, 0
      %v4899 = vsel %vm1155, %v4882, 0
      %v4900 = vsel %vm1156, %v4883, 0
      %v4901 = vsel %vm1157, %v4884, 0
      %v4902 = vsel %vm1158, %v4885, 0
      %v4903 = vsel %vm1159, %v4886, 0
      %v4904 = vld [vmem:[%s3] sm:$0xf]
      %v4905 = vld [vmem:[%s3 + $0x4] sm:$0xf]
      %v4906 = vld [vmem:[%s3 + $0x8] sm:$0xf]
      %v4907 = vld [vmem:[%s3 + $0xc] sm:$0xf]
      %v4908 = vld [vmem:[%s3 + $0x10] sm:$0xf]
      %v4909 = vld [vmem:[%s3 + $0x14] sm:$0xf]
      %v4910 = vld [vmem:[%s3 + $0x18] sm:$0xf]
      %v4911 = vld [vmem:[%s3 + $0x1c] sm:$0xf]
      %s4912 = scalar_lea.vmem %s3, 32
      %v4913 = vld [vmem:[%s4912] sm:$0xf]
      %v4914 = vld [vmem:[%s4912 + $0x4] sm:$0xf]
      %v4915 = vld [vmem:[%s4912 + $0x8] sm:$0xf]
      %v4916 = vld [vmem:[%s4912 + $0xc] sm:$0xf]
      %v4917 = vld [vmem:[%s4912 + $0x10] sm:$0xf]
      %v4918 = vld [vmem:[%s4912 + $0x14] sm:$0xf]
      %v4919 = vld [vmem:[%s4912 + $0x18] sm:$0xf]
      %v4920 = vld [vmem:[%s4912 + $0x1c] sm:$0xf]
      %v4929 = vunpack.c.l.b16 %v4913
      %v4930 = vunpack.c.l.b16 %v4914
      %v4931 = vunpack.c.l.b16 %v4915
      %v4932 = vunpack.c.l.b16 %v4916
      %v4933 = vunpack.c.l.b16 %v4917
      %v4934 = vunpack.c.l.b16 %v4918
      %v4935 = vunpack.c.l.b16 %v4919
      %v4936 = vunpack.c.l.b16 %v4920
      %v4937 = vpack.c.b16 %v4930, %v4929
      %v4938 = vpack.c.b16 %v4932, %v4931
      %v4939 = vpack.c.b16 %v4934, %v4933
      %v4940 = vpack.c.b16 %v4936, %v4935
      %v4946 = vsel %vm336, %v4871, 0
      %v4949 = vsel %vm336, %v4872, 0
      %v4952 = vsel %vm336, %v4873, 0
      %v4955 = vsel %vm336, %v4874, 0
      %v4958 = vsel %vm336, %v4875, 0
      %v4961 = vsel %vm336, %v4876, 0
      %v4964 = vsel %vm336, %v4877, 0
      %v4967 = vsel %vm336, %v4878, 0
      %v4970 = vsel %vm336, %v4879, 0
      %v4973 = vsel %vm336, %v4880, 0
      %v4976 = vsel %vm336, %v4881, 0
      %v4979 = vsel %vm336, %v4882, 0
      %v4982 = vsel %vm336, %v4883, 0
      %v4985 = vsel %vm336, %v4884, 0
      %v4988 = vsel %vm336, %v4885, 0
      %v4991 = vsel %vm336, %v4886, 0
      %4993 = vmatprep.subr.bf16.mxu0 0
      %4994 = vmatpush1.bf16.msra.mxu0 %v4937
      %4995 = vmatprep.subr.bf16.mxu0 0
      %4996 = vmatpush1.bf16.msra.mxu0 %v4938
      %4997 = vmatprep.subr.bf16.mxu0 0
      %4998 = vmatpush1.bf16.msra.mxu0 %v4939
      %4999 = vmatprep.subr.bf16.mxu0 0
      %5000 = vmatpush1.bf16.msra.mxu0 %v4940
      %5001 = vmatprep.subr.bf16.mxu0 0
      %5002 = vmatpush1.bf16.msra.mxu0 0
      %5003 = vmatprep.subr.bf16.mxu0 0
      %5004 = vmatpush1.bf16.msra.mxu0 0
      %5005 = vmatprep.subr.bf16.mxu0 0
      %5006 = vmatpush1.bf16.msra.mxu0 0
      %5007 = vmatprep.subr.bf16.mxu0 0
      %5008 = vmatpush1.bf16.msra.mxu0 0
      %5009 = vmatprep.subr.bf16.mxu0 0
      %5010 = vmatpush1.bf16.msra.mxu0 0
      %5011 = vmatprep.subr.bf16.mxu0 0
      %5012 = vmatpush1.bf16.msra.mxu0 0
      %5013 = vmatprep.subr.bf16.mxu0 0
      %5014 = vmatpush1.bf16.msra.mxu0 0
      %5015 = vmatprep.subr.bf16.mxu0 0
      %5016 = vmatpush1.bf16.msra.mxu0 0
      %5017 = vmatprep.subr.bf16.mxu0 0
      %5018 = vmatpush1.bf16.msra.mxu0 0
      %5019 = vmatprep.subr.bf16.mxu0 0
      %5020 = vmatpush1.bf16.msra.mxu0 0
      %5021 = vmatprep.subr.bf16.mxu0 0
      %5022 = vmatpush1.bf16.msra.mxu0 0
      %5023 = vmatprep.subr.bf16.mxu0 0
      %5024 = vmatpush1.bf16.msra.mxu0 0
      %5025 = vmatprep.mubr.bf16.mxu0 0
      %5026 = vmatmul.mubr.bf16.gmra.mrb[0].mxu0 %v4946
      %v5027 = vpop.f32.mrb[0].mxu0
      %v5028 = vadd.f32 0.0, %v5027
      %v5029 = vpop.f32.mrb[0].mxu0
      %v5030 = vpop.f32.mrb[0].mxu0
      %v5031 = vadd.f32 0.0, %v5030
      %v5032 = vpop.f32.mrb[0].mxu0
      %5033 = vmatprep.mubr.bf16.mxu0 0
      %5034 = vmatmul.mubr.bf16.gmra.mrb[0].mxu0 %v4949
      %v5035 = vpop.f32.mrb[0].mxu0
      %v5036 = vadd.f32 0.0, %v5035
      %v5037 = vpop.f32.mrb[0].mxu0
      %v5038 = vpop.f32.mrb[0].mxu0
      %v5039 = vadd.f32 0.0, %v5038
      %v5040 = vpop.f32.mrb[0].mxu0
      %5041 = vmatprep.mubr.bf16.mxu0 0
      %5042 = vmatmul.mubr.bf16.gmra.mrb[0].mxu0 %v4952
      %v5043 = vpop.f32.mrb[0].mxu0
      %v5044 = vadd.f32 0.0, %v5043
      %v5045 = vpop.f32.mrb[0].mxu0
      %v5046 = vpop.f32.mrb[0].mxu0
      %v5047 = vadd.f32 0.0, %v5046
      %v5048 = vpop.f32.mrb[0].mxu0
      %5049 = vmatprep.mubr.bf16.mxu0 0
      %5050 = vmatmul.mubr.bf16.gmra.mrb[0].mxu0 %v4955
      %v5051 = vpop.f32.mrb[0].mxu0
      %v5052 = vadd.f32 0.0, %v5051
      %v5053 = vpop.f32.mrb[0].mxu0
      %v5054 = vpop.f32.mrb[0].mxu0
      %v5055 = vadd.f32 0.0, %v5054
      %v5056 = vpop.f32.mrb[0].mxu0
      %5057 = vmatprep.mubr.bf16.mxu0 0
      %5058 = vmatmul.mubr.bf16.gmra.mrb[0].mxu0 %v4958
      %v5059 = vpop.f32.mrb[0].mxu0
      %v5060 = vadd.f32 0.0, %v5059
      %v5061 = vpop.f32.mrb[0].mxu0
      %v5062 = vpop.f32.mrb[0].mxu0
      %v5063 = vadd.f32 0.0, %v5062
      %v5064 = vpop.f32.mrb[0].mxu0
      %5065 = vmatprep.mubr.bf16.mxu0 0
      %5066 = vmatmul.mubr.bf16.gmra.mrb[0].mxu0 %v4961
      %v5067 = vpop.f32.mrb[0].mxu0
      %v5068 = vadd.f32 0.0, %v5067
      %v5069 = vpop.f32.mrb[0].mxu0
      %v5070 = vpop.f32.mrb[0].mxu0
      %v5071 = vadd.f32 0.0, %v5070
      %v5072 = vpop.f32.mrb[0].mxu0
      %5073 = vmatprep.mubr.bf16.mxu0 0
      %5074 = vmatmul.mubr.bf16.gmra.mrb[0].mxu0 %v4964
      %v5075 = vpop.f32.mrb[0].mxu0
      %v5076 = vadd.f32 0.0, %v5075
      %v5077 = vpop.f32.mrb[0].mxu0
      %v5078 = vpop.f32.mrb[0].mxu0
      %v5079 = vadd.f32 0.0, %v5078
      %v5080 = vpop.f32.mrb[0].mxu0
      %5081 = vmatprep.mubr.bf16.mxu0 0
      %5082 = vmatmul.mubr.bf16.gmra.mrb[0].mxu0 %v4967
      %v5083 = vpop.f32.mrb[0].mxu0
      %v5084 = vadd.f32 0.0, %v5083
      %v5085 = vpop.f32.mrb[0].mxu0
      %v5086 = vpop.f32.mrb[0].mxu0
      %v5087 = vadd.f32 0.0, %v5086
      %v5088 = vpop.f32.mrb[0].mxu0
      %5089 = vmatprep.mubr.bf16.mxu0 0
      %5090 = vmatmul.mubr.bf16.gmra.mrb[0].mxu0 %v4970
      %v5091 = vpop.f32.mrb[0].mxu0
      %v5092 = vadd.f32 0.0, %v5091
      %v5093 = vpop.f32.mrb[0].mxu0
      %v5094 = vpop.f32.mrb[0].mxu0
      %v5095 = vadd.f32 0.0, %v5094
      %v5096 = vpop.f32.mrb[0].mxu0
      %5097 = vmatprep.mubr.bf16.mxu0 0
      %5098 = vmatmul.mubr.bf16.gmra.mrb[0].mxu0 %v4973
      %v5099 = vpop.f32.mrb[0].mxu0
      %v5100 = vadd.f32 0.0, %v5099
      %v5101 = vpop.f32.mrb[0].mxu0
      %v5102 = vpop.f32.mrb[0].mxu0
      %v5103 = vadd.f32 0.0, %v5102
      %v5104 = vpop.f32.mrb[0].mxu0
      %5105 = vmatprep.mubr.bf16.mxu0 0
      %5106 = vmatmul.mubr.bf16.gmra.mrb[0].mxu0 %v4976
      %v5107 = vpop.f32.mrb[0].mxu0
      %v5108 = vadd.f32 0.0, %v5107
      %v5109 = vpop.f32.mrb[0].mxu0
      %v5110 = vpop.f32.mrb[0].mxu0
      %v5111 = vadd.f32 0.0, %v5110
      %v5112 = vpop.f32.mrb[0].mxu0
      %5113 = vmatprep.mubr.bf16.mxu0 0
      %5114 = vmatmul.mubr.bf16.gmra.mrb[0].mxu0 %v4979
      %v5115 = vpop.f32.mrb[0].mxu0
      %v5116 = vadd.f32 0.0, %v5115
      %v5117 = vpop.f32.mrb[0].mxu0
      %v5118 = vpop.f32.mrb[0].mxu0
      %v5119 = vadd.f32 0.0, %v5118
      %v5120 = vpop.f32.mrb[0].mxu0
      %5121 = vmatprep.mubr.bf16.mxu0 0
      %5122 = vmatmul.mubr.bf16.gmra.mrb[0].mxu0 %v4982
      %v5123 = vpop.f32.mrb[0].mxu0
      %v5124 = vadd.f32 0.0, %v5123
      %v5125 = vpop.f32.mrb[0].mxu0
      %v5126 = vpop.f32.mrb[0].mxu0
      %v5127 = vadd.f32 0.0, %v5126
      %v5128 = vpop.f32.mrb[0].mxu0
      %5129 = vmatprep.mubr.bf16.mxu0 0
      %5130 = vmatmul.mubr.bf16.gmra.mrb[0].mxu0 %v4985
      %v5131 = vpop.f32.mrb[0].mxu0
      %v5132 = vadd.f32 0.0, %v5131
      %v5133 = vpop.f32.mrb[0].mxu0
      %v5134 = vpop.f32.mrb[0].mxu0
      %v5135 = vadd.f32 0.0, %v5134
      %v5136 = vpop.f32.mrb[0].mxu0
      %5137 = vmatprep.mubr.bf16.mxu0 0
      %5138 = vmatmul.mubr.bf16.gmra.mrb[0].mxu0 %v4988
      %v5139 = vpop.f32.mrb[0].mxu0
      %v5140 = vadd.f32 0.0, %v5139
      %v5141 = vpop.f32.mrb[0].mxu0
      %v5142 = vpop.f32.mrb[0].mxu0
      %v5143 = vadd.f32 0.0, %v5142
      %v5144 = vpop.f32.mrb[0].mxu0
      %5145 = vmatprep.mubr.bf16.mxu0 0
      %5146 = vmatmul.mubr.bf16.gmra.mrb[0].mxu0 %v4991
      %v5147 = vpop.f32.mrb[0].mxu0
      %v5148 = vadd.f32 0.0, %v5147
      %v5149 = vpop.f32.mrb[0].mxu0
      %v5150 = vpop.f32.mrb[0].mxu0
      %v5151 = vadd.f32 0.0, %v5150
      %v5152 = vpop.f32.mrb[0].mxu0
      %5153 = vdwg.mxu0
      %v5155 = vshrl.u32 %v4887, 16
      %v5157 = vrot.slane %v5155, 7
      %v5159 = vshrl.u32 %v4888, 16
      %v5161 = vrot.slane %v5159, 7
      %v5162 = vshll.u32 %v4888, 16
      %v5164 = vor.u32 %v5161, %v5162
      %v5165 = vsel %vm1427, %v5157, %v5164
      %v5167 = vshrl.u32 %v4889, 16
      %v5169 = vrot.slane %v5167, 7
      %v5170 = vshll.u32 %v4889, 16
      %v5172 = vor.u32 %v5169, %v5170
      %v5173 = vsel %vm1427, %v5161, %v5172
      %v5175 = vshrl.u32 %v4890, 16
      %v5177 = vrot.slane %v5175, 7
      %v5178 = vshll.u32 %v4890, 16
      %v5180 = vor.u32 %v5177, %v5178
      %v5181 = vsel %vm1427, %v5169, %v5180
      %v5183 = vshrl.u32 %v4891, 16
      %v5185 = vrot.slane %v5183, 7
      %v5186 = vshll.u32 %v4891, 16
      %v5188 = vor.u32 %v5185, %v5186
      %v5189 = vsel %vm1427, %v5177, %v5188
      %v5191 = vshrl.u32 %v4892, 16
      %v5193 = vrot.slane %v5191, 7
      %v5194 = vshll.u32 %v4892, 16
      %v5196 = vor.u32 %v5193, %v5194
      %v5197 = vsel %vm1427, %v5185, %v5196
      %v5199 = vshrl.u32 %v4893, 16
      %v5201 = vrot.slane %v5199, 7
      %v5202 = vshll.u32 %v4893, 16
      %v5204 = vor.u32 %v5201, %v5202
      %v5205 = vsel %vm1427, %v5193, %v5204
      %v5207 = vshrl.u32 %v4894, 16
      %v5209 = vrot.slane %v5207, 7
      %v5210 = vshll.u32 %v4894, 16
      %v5212 = vor.u32 %v5209, %v5210
      %v5213 = vsel %vm1427, %v5201, %v5212
      %v5215 = vshrl.u32 %v4895, 16
      %v5217 = vrot.slane %v5215, 7
      %v5218 = vshll.u32 %v4895, 16
      %v5220 = vor.u32 %v5217, %v5218
      %v5221 = vsel %vm1427, %v5209, %v5220
      %v5223 = vshrl.u32 %v4896, 16
      %v5225 = vrot.slane %v5223, 7
      %v5226 = vshll.u32 %v4896, 16
      %v5228 = vor.u32 %v5225, %v5226
      %v5229 = vsel %vm1427, %v5217, %v5228
      %v5231 = vshrl.u32 %v4897, 16
      %v5233 = vrot.slane %v5231, 7
      %v5234 = vshll.u32 %v4897, 16
      %v5236 = vor.u32 %v5233, %v5234
      %v5237 = vsel %vm1427, %v5225, %v5236
      %v5239 = vshrl.u32 %v4898, 16
      %v5241 = vrot.slane %v5239, 7
      %v5242 = vshll.u32 %v4898, 16
      %v5244 = vor.u32 %v5241, %v5242
      %v5245 = vsel %vm1427, %v5233, %v5244
      %v5247 = vshrl.u32 %v4899, 16
      %v5249 = vrot.slane %v5247, 7
      %v5250 = vshll.u32 %v4899, 16
      %v5252 = vor.u32 %v5249, %v5250
      %v5253 = vsel %vm1427, %v5241, %v5252
      %v5255 = vshrl.u32 %v4900, 16
      %v5257 = vrot.slane %v5255, 7
      %v5258 = vshll.u32 %v4900, 16
      %v5260 = vor.u32 %v5257, %v5258
      %v5261 = vsel %vm1427, %v5249, %v5260
      %v5263 = vshrl.u32 %v4901, 16
      %v5265 = vrot.slane %v5263, 7
      %v5266 = vshll.u32 %v4901, 16
      %v5268 = vor.u32 %v5265, %v5266
      %v5269 = vsel %vm1427, %v5257, %v5268
      %v5271 = vshrl.u32 %v4902, 16
      %v5273 = vrot.slane %v5271, 7
      %v5274 = vshll.u32 %v4902, 16
      %v5276 = vor.u32 %v5273, %v5274
      %v5277 = vsel %vm1427, %v5265, %v5276
      %v5279 = vshrl.u32 %v4903, 16
      %v5281 = vrot.slane %v5279, 7
      %v5282 = vshll.u32 %v4903, 16
      %v5284 = vor.u32 %v5281, %v5282
      %v5285 = vsel %vm1427, %v5273, %v5284
      %v5294 = vunpack.c.l.b16 %v4904
      %v5295 = vunpack.c.l.b16 %v4905
      %v5296 = vunpack.c.l.b16 %v4906
      %v5297 = vunpack.c.l.b16 %v4907
      %v5298 = vunpack.c.l.b16 %v4908
      %v5299 = vunpack.c.l.b16 %v4909
      %v5300 = vunpack.c.l.b16 %v4910
      %v5301 = vunpack.c.l.b16 %v4911
      %v5302 = vpack.c.b16 %v5295, %v5294
      %v5303 = vpack.c.b16 %v5297, %v5296
      %v5304 = vpack.c.b16 %v5299, %v5298
      %v5305 = vpack.c.b16 %v5301, %v5300
      %v5311 = vsel %vm336, %v5165, 0
      %v5314 = vsel %vm336, %v5173, 0
      %v5317 = vsel %vm336, %v5181, 0
      %v5320 = vsel %vm336, %v5189, 0
      %v5323 = vsel %vm336, %v5197, 0
      %v5326 = vsel %vm336, %v5205, 0
      %v5329 = vsel %vm336, %v5213, 0
      %v5332 = vsel %vm336, %v5221, 0
      %v5335 = vsel %vm336, %v5229, 0
      %v5338 = vsel %vm336, %v5237, 0
      %v5341 = vsel %vm336, %v5245, 0
      %v5344 = vsel %vm336, %v5253, 0
      %v5347 = vsel %vm336, %v5261, 0
      %v5350 = vsel %vm336, %v5269, 0
      %v5353 = vsel %vm336, %v5277, 0
      %v5356 = vsel %vm336, %v5285, 0
      %5358 = vmatprep.subr.bf16.mxu0 0
      %5359 = vmatpush1.bf16.msra.mxu0 %v5302
      %5360 = vmatprep.subr.bf16.mxu0 0
      %5361 = vmatpush1.bf16.msra.mxu0 %v5303
      %5362 = vmatprep.subr.bf16.mxu0 0
      %5363 = vmatpush1.bf16.msra.mxu0 %v5304
      %5364 = vmatprep.subr.bf16.mxu0 0
      %5365 = vmatpush1.bf16.msra.mxu0 %v5305
      %5366 = vmatprep.subr.bf16.mxu0 0
      %5367 = vmatpush1.bf16.msra.mxu0 0
      %5368 = vmatprep.subr.bf16.mxu0 0
      %5369 = vmatpush1.bf16.msra.mxu0 0
      %5370 = vmatprep.subr.bf16.mxu0 0
      %5371 = vmatpush1.bf16.msra.mxu0 0
      %5372 = vmatprep.subr.bf16.mxu0 0
      %5373 = vmatpush1.bf16.msra.mxu0 0
      %5374 = vmatprep.subr.bf16.mxu0 0
      %5375 = vmatpush1.bf16.msra.mxu0 0
      %5376 = vmatprep.subr.bf16.mxu0 0
      %5377 = vmatpush1.bf16.msra.mxu0 0
      %5378 = vmatprep.subr.bf16.mxu0 0
      %5379 = vmatpush1.bf16.msra.mxu0 0
      %5380 = vmatprep.subr.bf16.mxu0 0
      %5381 = vmatpush1.bf16.msra.mxu0 0
      %5382 = vmatprep.subr.bf16.mxu0 0
      %5383 = vmatpush1.bf16.msra.mxu0 0
      %5384 = vmatprep.subr.bf16.mxu0 0
      %5385 = vmatpush1.bf16.msra.mxu0 0
      %5386 = vmatprep.subr.bf16.mxu0 0
      %5387 = vmatpush1.bf16.msra.mxu0 0
      %5388 = vmatprep.subr.bf16.mxu0 0
      %5389 = vmatpush1.bf16.msra.mxu0 0
      %5390 = vmatprep.mubr.bf16.mxu0 0
      %5391 = vmatmul.mubr.bf16.gmra.mrb[0].mxu0 %v5311
      %v5392 = vpop.f32.mrb[0].mxu0
      %v5393 = vadd.f32 %v5028, %v5392
      %v5394 = vpop.f32.mrb[0].mxu0
      %v5395 = vpop.f32.mrb[0].mxu0
      %v5396 = vadd.f32 %v5031, %v5395
      %v5397 = vpop.f32.mrb[0].mxu0
      %5398 = vmatprep.mubr.bf16.mxu0 0
      %5399 = vmatmul.mubr.bf16.gmra.mrb[0].mxu0 %v5314
      %v5400 = vpop.f32.mrb[0].mxu0
      %v5401 = vadd.f32 %v5036, %v5400
      %v5402 = vpop.f32.mrb[0].mxu0
      %v5403 = vpop.f32.mrb[0].mxu0
      %v5404 = vadd.f32 %v5039, %v5403
      %v5405 = vpop.f32.mrb[0].mxu0
      %5406 = vmatprep.mubr.bf16.mxu0 0
      %5407 = vmatmul.mubr.bf16.gmra.mrb[0].mxu0 %v5317
      %v5408 = vpop.f32.mrb[0].mxu0
      %v5409 = vadd.f32 %v5044, %v5408
      %v5410 = vpop.f32.mrb[0].mxu0
      %v5411 = vpop.f32.mrb[0].mxu0
      %v5412 = vadd.f32 %v5047, %v5411
      %v5413 = vpop.f32.mrb[0].mxu0
      %5414 = vmatprep.mubr.bf16.mxu0 0
      %5415 = vmatmul.mubr.bf16.gmra.mrb[0].mxu0 %v5320
      %v5416 = vpop.f32.mrb[0].mxu0
      %v5417 = vadd.f32 %v5052, %v5416
      %v5418 = vpop.f32.mrb[0].mxu0
      %v5419 = vpop.f32.mrb[0].mxu0
      %v5420 = vadd.f32 %v5055, %v5419
      %v5421 = vpop.f32.mrb[0].mxu0
      %5422 = vmatprep.mubr.bf16.mxu0 0
      %5423 = vmatmul.mubr.bf16.gmra.mrb[0].mxu0 %v5323
      %v5424 = vpop.f32.mrb[0].mxu0
      %v5425 = vadd.f32 %v5060, %v5424
      %v5426 = vpop.f32.mrb[0].mxu0
      %v5427 = vpop.f32.mrb[0].mxu0
      %v5428 = vadd.f32 %v5063, %v5427
      %v5429 = vpop.f32.mrb[0].mxu0
      %5430 = vmatprep.mubr.bf16.mxu0 0
      %5431 = vmatmul.mubr.bf16.gmra.mrb[0].mxu0 %v5326
      %v5432 = vpop.f32.mrb[0].mxu0
      %v5433 = vadd.f32 %v5068, %v5432
      %v5434 = vpop.f32.mrb[0].mxu0
      %v5435 = vpop.f32.mrb[0].mxu0
      %v5436 = vadd.f32 %v5071, %v5435
      %v5437 = vpop.f32.mrb[0].mxu0
      %5438 = vmatprep.mubr.bf16.mxu0 0
      %5439 = vmatmul.mubr.bf16.gmra.mrb[0].mxu0 %v5329
      %v5440 = vpop.f32.mrb[0].mxu0
      %v5441 = vadd.f32 %v5076, %v5440
      %v5442 = vpop.f32.mrb[0].mxu0
      %v5443 = vpop.f32.mrb[0].mxu0
      %v5444 = vadd.f32 %v5079, %v5443
      %v5445 = vpop.f32.mrb[0].mxu0
      %5446 = vmatprep.mubr.bf16.mxu0 0
      %5447 = vmatmul.mubr.bf16.gmra.mrb[0].mxu0 %v5332
      %v5448 = vpop.f32.mrb[0].mxu0
      %v5449 = vadd.f32 %v5084, %v5448
      %v5450 = vpop.f32.mrb[0].mxu0
      %v5451 = vpop.f32.mrb[0].mxu0
      %v5452 = vadd.f32 %v5087, %v5451
      %v5453 = vpop.f32.mrb[0].mxu0
      %5454 = vmatprep.mubr.bf16.mxu0 0
      %5455 = vmatmul.mubr.bf16.gmra.mrb[0].mxu0 %v5335
      %v5456 = vpop.f32.mrb[0].mxu0
      %v5457 = vadd.f32 %v5092, %v5456
      %v5458 = vpop.f32.mrb[0].mxu0
      %v5459 = vpop.f32.mrb[0].mxu0
      %v5460 = vadd.f32 %v5095, %v5459
      %v5461 = vpop.f32.mrb[0].mxu0
      %5462 = vmatprep.mubr.bf16.mxu0 0
      %5463 = vmatmul.mubr.bf16.gmra.mrb[0].mxu0 %v5338
      %v5464 = vpop.f32.mrb[0].mxu0
      %v5465 = vadd.f32 %v5100, %v5464
      %v5466 = vpop.f32.mrb[0].mxu0
      %v5467 = vpop.f32.mrb[0].mxu0
      %v5468 = vadd.f32 %v5103, %v5467
      %v5469 = vpop.f32.mrb[0].mxu0
      %5470 = vmatprep.mubr.bf16.mxu0 0
      %5471 = vmatmul.mubr.bf16.gmra.mrb[0].mxu0 %v5341
      %v5472 = vpop.f32.mrb[0].mxu0
      %v5473 = vadd.f32 %v5108, %v5472
      %v5474 = vpop.f32.mrb[0].mxu0
      %v5475 = vpop.f32.mrb[0].mxu0
      %v5476 = vadd.f32 %v5111, %v5475
      %v5477 = vpop.f32.mrb[0].mxu0
      %5478 = vmatprep.mubr.bf16.mxu0 0
      %5479 = vmatmul.mubr.bf16.gmra.mrb[0].mxu0 %v5344
      %v5480 = vpop.f32.mrb[0].mxu0
      %v5481 = vadd.f32 %v5116, %v5480
      %v5482 = vpop.f32.mrb[0].mxu0
      %v5483 = vpop.f32.mrb[0].mxu0
      %v5484 = vadd.f32 %v5119, %v5483
      %v5485 = vpop.f32.mrb[0].mxu0
      %5486 = vmatprep.mubr.bf16.mxu0 0
      %5487 = vmatmul.mubr.bf16.gmra.mrb[0].mxu0 %v5347
      %v5488 = vpop.f32.mrb[0].mxu0
      %v5489 = vadd.f32 %v5124, %v5488
      %v5490 = vpop.f32.mrb[0].mxu0
      %v5491 = vpop.f32.mrb[0].mxu0
      %v5492 = vadd.f32 %v5127, %v5491
      %v5493 = vpop.f32.mrb[0].mxu0
      %5494 = vmatprep.mubr.bf16.mxu0 0
      %5495 = vmatmul.mubr.bf16.gmra.mrb[0].mxu0 %v5350
      %v5496 = vpop.f32.mrb[0].mxu0
      %v5497 = vadd.f32 %v5132, %v5496
      %v5498 = vpop.f32.mrb[0].mxu0
      %v5499 = vpop.f32.mrb[0].mxu0
      %v5500 = vadd.f32 %v5135, %v5499
      %v5501 = vpop.f32.mrb[0].mxu0
      %5502 = vmatprep.mubr.bf16.mxu0 0
      %5503 = vmatmul.mubr.bf16.gmra.mrb[0].mxu0 %v5353
      %v5504 = vpop.f32.mrb[0].mxu0
      %v5505 = vadd.f32 %v5140, %v5504
      %v5506 = vpop.f32.mrb[0].mxu0
      %v5507 = vpop.f32.mrb[0].mxu0
      %v5508 = vadd.f32 %v5143, %v5507
      %v5509 = vpop.f32.mrb[0].mxu0
      %5510 = vmatprep.mubr.bf16.mxu0 0
      %5511 = vmatmul.mubr.bf16.gmra.mrb[0].mxu0 %v5356
      %v5512 = vpop.f32.mrb[0].mxu0
      %v5513 = vadd.f32 %v5148, %v5512
      %v5514 = vpop.f32.mrb[0].mxu0
      %v5515 = vpop.f32.mrb[0].mxu0
      %v5516 = vadd.f32 %v5151, %v5515
      %v5517 = vpop.f32.mrb[0].mxu0
      %5518 = vdwg.mxu0
      %v5519 = vld [vmem:[#allocation2 + $0x8] sm:$0xff]
      %v5520 = vld [vmem:[#allocation2 + $0x10] sm:$0xff]
      %v5521 = vld [vmem:[#allocation2 + $0x18] sm:$0xff]
      %v5522 = vld [vmem:[#allocation2 + $0x20] sm:$0xff]
      %v5523 = vld [vmem:[#allocation2 + $0x28] sm:$0xff]
      %v5524 = vld [vmem:[#allocation2 + $0x30] sm:$0xff]
      %v5525 = vld [vmem:[#allocation2 + $0x38] sm:$0xff]
      %v5526 = vld [vmem:[#allocation2 + $0x40] sm:$0xff]
      %v5527 = vld [vmem:[#allocation2 + $0x48] sm:$0xff]
      %v5528 = vld [vmem:[#allocation2 + $0x50] sm:$0xff]
      %v5529 = vld [vmem:[#allocation2 + $0x58] sm:$0xff]
      %v5530 = vld [vmem:[#allocation2 + $0x60] sm:$0xff]
      %v5531 = vld [vmem:[#allocation2 + $0x68] sm:$0xff]
      %v5532 = vld [vmem:[#allocation2 + $0x70] sm:$0xff]
      %v5533 = vld [vmem:[#allocation2 + $0x78] sm:$0xff]
      %v5534 = vld [vmem:[#allocation2 + $0x80] sm:$0xff]
      %v5535 = vld [vmem:[#allocation2 + $0x88] sm:$0x1]
      %v5536 = vsel %vm2049, %v5519, 0
      %v5537 = vsel %vm2050, %v5520, 0
      %v5538 = vsel %vm2051, %v5521, 0
      %v5539 = vsel %vm2052, %v5522, 0
      %v5540 = vsel %vm2053, %v5523, 0
      %v5541 = vsel %vm2054, %v5524, 0
      %v5542 = vsel %vm2055, %v5525, 0
      %v5543 = vsel %vm2056, %v5526, 0
      %v5544 = vsel %vm2057, %v5527, 0
      %v5545 = vsel %vm2058, %v5528, 0
      %v5546 = vsel %vm2059, %v5529, 0
      %v5547 = vsel %vm2060, %v5530, 0
      %v5548 = vsel %vm2061, %v5531, 0
      %v5549 = vsel %vm2062, %v5532, 0
      %v5550 = vsel %vm2063, %v5533, 0
      %v5551 = vsel %vm2064, %v5534, 0
      %v5552 = vsel %vm2065, %v5535, 0
      %s5553 = scalar_lea.vmem %s3, 64
      %v5554 = vld [vmem:[%s5553] sm:$0xf]
      %v5555 = vld [vmem:[%s5553 + $0x4] sm:$0xf]
      %v5556 = vld [vmem:[%s5553 + $0x8] sm:$0xf]
      %v5557 = vld [vmem:[%s5553 + $0xc] sm:$0xf]
      %v5558 = vld [vmem:[%s5553 + $0x10] sm:$0xf]
      %v5559 = vld [vmem:[%s5553 + $0x14] sm:$0xf]
      %v5560 = vld [vmem:[%s5553 + $0x18] sm:$0xf]
      %v5561 = vld [vmem:[%s5553 + $0x1c] sm:$0xf]
      %v5563 = vshrl.u32 %v5536, 16
      %v5565 = vshll.u32 %v5536, 16
      %v5567 = vrot.slane %v5565, 1
      %v5568 = vor.u32 %v5563, %v5567
      %v5570 = vshll.u32 %v5537, 16
      %v5572 = vrot.slane %v5570, 1
      %v5573 = vsel %vm1015, %v5568, %v5572
      %v5574 = vshrl.u32 %v5537, 16
      %v5576 = vor.u32 %v5574, %v5572
      %v5578 = vshll.u32 %v5538, 16
      %v5580 = vrot.slane %v5578, 1
      %v5581 = vsel %vm1015, %v5576, %v5580
      %v5582 = vshrl.u32 %v5538, 16
      %v5584 = vor.u32 %v5582, %v5580
      %v5586 = vshll.u32 %v5539, 16
      %v5588 = vrot.slane %v5586, 1
      %v5589 = vsel %vm1015, %v5584, %v5588
      %v5590 = vshrl.u32 %v5539, 16
      %v5592 = vor.u32 %v5590, %v5588
      %v5594 = vshll.u32 %v5540, 16
      %v5596 = vrot.slane %v5594, 1
      %v5597 = vsel %vm1015, %v5592, %v5596
      %v5598 = vshrl.u32 %v5540, 16
      %v5600 = vor.u32 %v5598, %v5596
      %v5602 = vshll.u32 %v5541, 16
      %v5604 = vrot.slane %v5602, 1
      %v5605 = vsel %vm1015, %v5600, %v5604
      %v5606 = vshrl.u32 %v5541, 16
      %v5608 = vor.u32 %v5606, %v5604
      %v5610 = vshll.u32 %v5542, 16
      %v5612 = vrot.slane %v5610, 1
      %v5613 = vsel %vm1015, %v5608, %v5612
      %v5614 = vshrl.u32 %v5542, 16
      %v5616 = vor.u32 %v5614, %v5612
      %v5618 = vshll.u32 %v5543, 16
      %v5620 = vrot.slane %v5618, 1
      %v5621 = vsel %vm1015, %v5616, %v5620
      %v5622 = vshrl.u32 %v5543, 16
      %v5624 = vor.u32 %v5622, %v5620
      %v5626 = vshll.u32 %v5544, 16
      %v5628 = vrot.slane %v5626, 1
      %v5629 = vsel %vm1015, %v5624, %v5628
      %v5630 = vshrl.u32 %v5544, 16
      %v5632 = vor.u32 %v5630, %v5628
      %v5634 = vshll.u32 %v5545, 16
      %v5636 = vrot.slane %v5634, 1
      %v5637 = vsel %vm1015, %v5632, %v5636
      %v5638 = vshrl.u32 %v5545, 16
      %v5640 = vor.u32 %v5638, %v5636
      %v5642 = vshll.u32 %v5546, 16
      %v5644 = vrot.slane %v5642, 1
      %v5645 = vsel %vm1015, %v5640, %v5644
      %v5646 = vshrl.u32 %v5546, 16
      %v5648 = vor.u32 %v5646, %v5644
      %v5650 = vshll.u32 %v5547, 16
      %v5652 = vrot.slane %v5650, 1
      %v5653 = vsel %vm1015, %v5648, %v5652
      %v5654 = vshrl.u32 %v5547, 16
      %v5656 = vor.u32 %v5654, %v5652
      %v5658 = vshll.u32 %v5548, 16
      %v5660 = vrot.slane %v5658, 1
      %v5661 = vsel %vm1015, %v5656, %v5660
      %v5662 = vshrl.u32 %v5548, 16
      %v5664 = vor.u32 %v5662, %v5660
      %v5666 = vshll.u32 %v5549, 16
      %v5668 = vrot.slane %v5666, 1
      %v5669 = vsel %vm1015, %v5664, %v5668
      %v5670 = vshrl.u32 %v5549, 16
      %v5672 = vor.u32 %v5670, %v5668
      %v5674 = vshll.u32 %v5550, 16
      %v5676 = vrot.slane %v5674, 1
      %v5677 = vsel %vm1015, %v5672, %v5676
      %v5678 = vshrl.u32 %v5550, 16
      %v5680 = vor.u32 %v5678, %v5676
      %v5682 = vshll.u32 %v5551, 16
      %v5684 = vrot.slane %v5682, 1
      %v5685 = vsel %vm1015, %v5680, %v5684
      %v5686 = vshrl.u32 %v5551, 16
      %v5688 = vor.u32 %v5686, %v5684
      %v5690 = vshll.u32 %v5552, 16
      %v5692 = vrot.slane %v5690, 1
      %v5693 = vsel %vm1015, %v5688, %v5692
      %v5702 = vunpack.c.l.b16 %v5554
      %v5703 = vunpack.c.l.b16 %v5555
      %v5704 = vunpack.c.l.b16 %v5556
      %v5705 = vunpack.c.l.b16 %v5557
      %v5706 = vunpack.c.l.b16 %v5558
      %v5707 = vunpack.c.l.b16 %v5559
      %v5708 = vunpack.c.l.b16 %v5560
      %v5709 = vunpack.c.l.b16 %v5561
      %v5710 = vpack.c.b16 %v5703, %v5702
      %v5711 = vpack.c.b16 %v5705, %v5704
      %v5712 = vpack.c.b16 %v5707, %v5706
      %v5713 = vpack.c.b16 %v5709, %v5708
      %v5719 = vsel %vm336, %v5573, 0
      %v5722 = vsel %vm336, %v5581, 0
      %v5725 = vsel %vm336, %v5589, 0
      %v5728 = vsel %vm336, %v5597, 0
      %v5731 = vsel %vm336, %v5605, 0
      %v5734 = vsel %vm336, %v5613, 0
      %v5737 = vsel %vm336, %v5621, 0
      %v5740 = vsel %vm336, %v5629, 0
      %v5743 = vsel %vm336, %v5637, 0
      %v5746 = vsel %vm336, %v5645, 0
      %v5749 = vsel %vm336, %v5653, 0
      %v5752 = vsel %vm336, %v5661, 0
      %v5755 = vsel %vm336, %v5669, 0
      %v5758 = vsel %vm336, %v5677, 0
      %v5761 = vsel %vm336, %v5685, 0
      %v5764 = vsel %vm336, %v5693, 0
      %5766 = vmatprep.subr.bf16.mxu0 0
      %5767 = vmatpush1.bf16.msra.mxu0 %v5710
      %5768 = vmatprep.subr.bf16.mxu0 0
      %5769 = vmatpush1.bf16.msra.mxu0 %v5711
      %5770 = vmatprep.subr.bf16.mxu0 0
      %5771 = vmatpush1.bf16.msra.mxu0 %v5712
      %5772 = vmatprep.subr.bf16.mxu0 0
      %5773 = vmatpush1.bf16.msra.mxu0 %v5713
      %5774 = vmatprep.subr.bf16.mxu0 0
      %5775 = vmatpush1.bf16.msra.mxu0 0
      %5776 = vmatprep.subr.bf16.mxu0 0
      %5777 = vmatpush1.bf16.msra.mxu0 0
      %5778 = vmatprep.subr.bf16.mxu0 0
      %5779 = vmatpush1.bf16.msra.mxu0 0
      %5780 = vmatprep.subr.bf16.mxu0 0
      %5781 = vmatpush1.bf16.msra.mxu0 0
      %5782 = vmatprep.subr.bf16.mxu0 0
      %5783 = vmatpush1.bf16.msra.mxu0 0
      %5784 = vmatprep.subr.bf16.mxu0 0
      %5785 = vmatpush1.bf16.msra.mxu0 0
      %5786 = vmatprep.subr.bf16.mxu0 0
      %5787 = vmatpush1.bf16.msra.mxu0 0
      %5788 = vmatprep.subr.bf16.mxu0 0
      %5789 = vmatpush1.bf16.msra.mxu0 0
      %5790 = vmatprep.subr.bf16.mxu0 0
      %5791 = vmatpush1.bf16.msra.mxu0 0
      %5792 = vmatprep.subr.bf16.mxu0 0
      %5793 = vmatpush1.bf16.msra.mxu0 0
      %5794 = vmatprep.subr.bf16.mxu0 0
      %5795 = vmatpush1.bf16.msra.mxu0 0
      %5796 = vmatprep.subr.bf16.mxu0 0
      %5797 = vmatpush1.bf16.msra.mxu0 0
      %5798 = vmatprep.mubr.bf16.mxu0 0
      %5799 = vmatmul.mubr.bf16.gmra.mrb[0].mxu0 %v5719
      %v5800 = vpop.f32.mrb[0].mxu0
      %v5801 = vadd.f32 0.0, %v5800
      %v5802 = vpop.f32.mrb[0].mxu0
      %v5803 = vpop.f32.mrb[0].mxu0
      %v5804 = vadd.f32 0.0, %v5803
      %v5805 = vpop.f32.mrb[0].mxu0
      %5806 = vmatprep.mubr.bf16.mxu0 0
      %5807 = vmatmul.mubr.bf16.gmra.mrb[0].mxu0 %v5722
      %v5808 = vpop.f32.mrb[0].mxu0
      %v5809 = vadd.f32 0.0, %v5808
      %v5810 = vpop.f32.mrb[0].mxu0
      %v5811 = vpop.f32.mrb[0].mxu0
      %v5812 = vadd.f32 0.0, %v5811
      %v5813 = vpop.f32.mrb[0].mxu0
      %5814 = vmatprep.mubr.bf16.mxu0 0
      %5815 = vmatmul.mubr.bf16.gmra.mrb[0].mxu0 %v5725
      %v5816 = vpop.f32.mrb[0].mxu0
      %v5817 = vadd.f32 0.0, %v5816
      %v5818 = vpop.f32.mrb[0].mxu0
      %v5819 = vpop.f32.mrb[0].mxu0
      %v5820 = vadd.f32 0.0, %v5819
      %v5821 = vpop.f32.mrb[0].mxu0
      %5822 = vmatprep.mubr.bf16.mxu0 0
      %5823 = vmatmul.mubr.bf16.gmra.mrb[0].mxu0 %v5728
      %v5824 = vpop.f32.mrb[0].mxu0
      %v5825 = vadd.f32 0.0, %v5824
      %v5826 = vpop.f32.mrb[0].mxu0
      %v5827 = vpop.f32.mrb[0].mxu0
      %v5828 = vadd.f32 0.0, %v5827
      %v5829 = vpop.f32.mrb[0].mxu0
      %5830 = vmatprep.mubr.bf16.mxu0 0
      %5831 = vmatmul.mubr.bf16.gmra.mrb[0].mxu0 %v5731
      %v5832 = vpop.f32.mrb[0].mxu0
      %v5833 = vadd.f32 0.0, %v5832
      %v5834 = vpop.f32.mrb[0].mxu0
      %v5835 = vpop.f32.mrb[0].mxu0
      %v5836 = vadd.f32 0.0, %v5835
      %v5837 = vpop.f32.mrb[0].mxu0
      %5838 = vmatprep.mubr.bf16.mxu0 0
      %5839 = vmatmul.mubr.bf16.gmra.mrb[0].mxu0 %v5734
      %v5840 = vpop.f32.mrb[0].mxu0
      %v5841 = vadd.f32 0.0, %v5840
      %v5842 = vpop.f32.mrb[0].mxu0
      %v5843 = vpop.f32.mrb[0].mxu0
      %v5844 = vadd.f32 0.0, %v5843
      %v5845 = vpop.f32.mrb[0].mxu0
      %5846 = vmatprep.mubr.bf16.mxu0 0
      %5847 = vmatmul.mubr.bf16.gmra.mrb[0].mxu0 %v5737
      %v5848 = vpop.f32.mrb[0].mxu0
      %v5849 = vadd.f32 0.0, %v5848
      %v5850 = vpop.f32.mrb[0].mxu0
      %v5851 = vpop.f32.mrb[0].mxu0
      %v5852 = vadd.f32 0.0, %v5851
      %v5853 = vpop.f32.mrb[0].mxu0
      %5854 = vmatprep.mubr.bf16.mxu0 0
      %5855 = vmatmul.mubr.bf16.gmra.mrb[0].mxu0 %v5740
      %v5856 = vpop.f32.mrb[0].mxu0
      %v5857 = vadd.f32 0.0, %v5856
      %v5858 = vpop.f32.mrb[0].mxu0
      %v5859 = vpop.f32.mrb[0].mxu0
      %v5860 = vadd.f32 0.0, %v5859
      %v5861 = vpop.f32.mrb[0].mxu0
      %5862 = vmatprep.mubr.bf16.mxu0 0
      %5863 = vmatmul.mubr.bf16.gmra.mrb[0].mxu0 %v5743
      %v5864 = vpop.f32.mrb[0].mxu0
      %v5865 = vadd.f32 0.0, %v5864
      %v5866 = vpop.f32.mrb[0].mxu0
      %v5867 = vpop.f32.mrb[0].mxu0
      %v5868 = vadd.f32 0.0, %v5867
      %v5869 = vpop.f32.mrb[0].mxu0
      %5870 = vmatprep.mubr.bf16.mxu0 0
      %5871 = vmatmul.mubr.bf16.gmra.mrb[0].mxu0 %v5746
      %v5872 = vpop.f32.mrb[0].mxu0
      %v5873 = vadd.f32 0.0, %v5872
      %v5874 = vpop.f32.mrb[0].mxu0
      %v5875 = vpop.f32.mrb[0].mxu0
      %v5876 = vadd.f32 0.0, %v5875
      %v5877 = vpop.f32.mrb[0].mxu0
      %5878 = vmatprep.mubr.bf16.mxu0 0
      %5879 = vmatmul.mubr.bf16.gmra.mrb[0].mxu0 %v5749
      %v5880 = vpop.f32.mrb[0].mxu0
      %v5881 = vadd.f32 0.0, %v5880
      %v5882 = vpop.f32.mrb[0].mxu0
      %v5883 = vpop.f32.mrb[0].mxu0
      %v5884 = vadd.f32 0.0, %v5883
      %v5885 = vpop.f32.mrb[0].mxu0
      %5886 = vmatprep.mubr.bf16.mxu0 0
      %5887 = vmatmul.mubr.bf16.gmra.mrb[0].mxu0 %v5752
      %v5888 = vpop.f32.mrb[0].mxu0
      %v5889 = vadd.f32 0.0, %v5888
      %v5890 = vpop.f32.mrb[0].mxu0
      %v5891 = vpop.f32.mrb[0].mxu0
      %v5892 = vadd.f32 0.0, %v5891
      %v5893 = vpop.f32.mrb[0].mxu0
      %5894 = vmatprep.mubr.bf16.mxu0 0
      %5895 = vmatmul.mubr.bf16.gmra.mrb[0].mxu0 %v5755
      %v5896 = vpop.f32.mrb[0].mxu0
      %v5897 = vadd.f32 0.0, %v5896
      %v5898 = vpop.f32.mrb[0].mxu0
      %v5899 = vpop.f32.mrb[0].mxu0
      %v5900 = vadd.f32 0.0, %v5899
      %v5901 = vpop.f32.mrb[0].mxu0
      %5902 = vmatprep.mubr.bf16.mxu0 0
      %5903 = vmatmul.mubr.bf16.gmra.mrb[0].mxu0 %v5758
      %v5904 = vpop.f32.mrb[0].mxu0
      %v5905 = vadd.f32 0.0, %v5904
      %v5906 = vpop.f32.mrb[0].mxu0
      %v5907 = vpop.f32.mrb[0].mxu0
      %v5908 = vadd.f32 0.0, %v5907
      %v5909 = vpop.f32.mrb[0].mxu0
      %5910 = vmatprep.mubr.bf16.mxu0 0
      %5911 = vmatmul.mubr.bf16.gmra.mrb[0].mxu0 %v5761
      %v5912 = vpop.f32.mrb[0].mxu0
      %v5913 = vadd.f32 0.0, %v5912
      %v5914 = vpop.f32.mrb[0].mxu0
      %v5915 = vpop.f32.mrb[0].mxu0
      %v5916 = vadd.f32 0.0, %v5915
      %v5917 = vpop.f32.mrb[0].mxu0
      %5918 = vmatprep.mubr.bf16.mxu0 0
      %5919 = vmatmul.mubr.bf16.gmra.mrb[0].mxu0 %v5764
      %v5920 = vpop.f32.mrb[0].mxu0
      %v5921 = vadd.f32 0.0, %v5920
      %v5922 = vpop.f32.mrb[0].mxu0
      %v5923 = vpop.f32.mrb[0].mxu0
      %v5924 = vadd.f32 0.0, %v5923
      %v5925 = vpop.f32.mrb[0].mxu0
      %5926 = vdwg.mxu0
      %v5927 = vadd.f32 %v5393, %v5801
      %v5928 = vadd.f32 %v5396, %v5804
      %v5929 = vadd.f32 %v5401, %v5809
      %v5930 = vadd.f32 %v5404, %v5812
      %v5931 = vadd.f32 %v5409, %v5817
      %v5932 = vadd.f32 %v5412, %v5820
      %v5933 = vadd.f32 %v5417, %v5825
      %v5934 = vadd.f32 %v5420, %v5828
      %v5935 = vadd.f32 %v5425, %v5833
      %v5936 = vadd.f32 %v5428, %v5836
      %v5937 = vadd.f32 %v5433, %v5841
      %v5938 = vadd.f32 %v5436, %v5844
      %v5939 = vadd.f32 %v5441, %v5849
      %v5940 = vadd.f32 %v5444, %v5852
      %v5941 = vadd.f32 %v5449, %v5857
      %v5942 = vadd.f32 %v5452, %v5860
      %v5943 = vadd.f32 %v5457, %v5865
      %v5944 = vadd.f32 %v5460, %v5868
      %v5945 = vadd.f32 %v5465, %v5873
      %v5946 = vadd.f32 %v5468, %v5876
      %v5947 = vadd.f32 %v5473, %v5881
      %v5948 = vadd.f32 %v5476, %v5884
      %v5949 = vadd.f32 %v5481, %v5889
      %v5950 = vadd.f32 %v5484, %v5892
      %v5951 = vadd.f32 %v5489, %v5897
      %v5952 = vadd.f32 %v5492, %v5900
      %v5953 = vadd.f32 %v5497, %v5905
      %v5954 = vadd.f32 %v5500, %v5908
      %v5955 = vadd.f32 %v5505, %v5913
      %v5956 = vadd.f32 %v5508, %v5916
      %v5957 = vadd.f32 %v5513, %v5921
      %v5958 = vadd.f32 %v5516, %v5924
      %v5959 = vld [vmem:[#allocation2 + $0x8] sm:$0x80]
      %v5960 = vld [vmem:[#allocation2 + $0x88] sm:$0xff]
      %v5961 = vsel %vm1143, %v5959, 0
      %v5962 = vsel %vm1144, %v5520, 0
      %v5963 = vsel %vm1145, %v5521, 0
      %v5964 = vsel %vm1146, %v5522, 0
      %v5965 = vsel %vm1147, %v5523, 0
      %v5966 = vsel %vm1148, %v5524, 0
      %v5967 = vsel %vm1149, %v5525, 0
      %v5968 = vsel %vm1150, %v5526, 0
      %v5969 = vsel %vm1151, %v5527, 0
      %v5970 = vsel %vm1152, %v5528, 0
      %v5971 = vsel %vm1153, %v5529, 0
      %v5972 = vsel %vm1154, %v5530, 0
      %v5973 = vsel %vm1155, %v5531, 0
      %v5974 = vsel %vm1156, %v5532, 0
      %v5975 = vsel %vm1157, %v5533, 0
      %v5976 = vsel %vm1158, %v5534, 0
      %v5977 = vsel %vm1159, %v5960, 0
      %s5978 = scalar_lea.vmem %s3, 96
      %v5979 = vld [vmem:[%s5978] sm:$0xf]
      %v5980 = vld [vmem:[%s5978 + $0x4] sm:$0xf]
      %v5981 = vld [vmem:[%s5978 + $0x8] sm:$0xf]
      %v5982 = vld [vmem:[%s5978 + $0xc] sm:$0xf]
      %v5983 = vld [vmem:[%s5978 + $0x10] sm:$0xf]
      %v5984 = vld [vmem:[%s5978 + $0x14] sm:$0xf]
      %v5985 = vld [vmem:[%s5978 + $0x18] sm:$0xf]
      %v5986 = vld [vmem:[%s5978 + $0x1c] sm:$0xf]
      %v5988 = vshrl.u32 %v5961, 16
      %v5990 = vrot.slane %v5988, 7
      %v5992 = vshrl.u32 %v5962, 16
      %v5994 = vrot.slane %v5992, 7
      %v5995 = vshll.u32 %v5962, 16
      %v5997 = vor.u32 %v5994, %v5995
      %v5998 = vsel %vm1427, %v5990, %v5997
      %v6000 = vshrl.u32 %v5963, 16
      %v6002 = vrot.slane %v6000, 7
      %v6003 = vshll.u32 %v5963, 16
      %v6005 = vor.u32 %v6002, %v6003
      %v6006 = vsel %vm1427, %v5994, %v6005
      %v6008 = vshrl.u32 %v5964, 16
      %v6010 = vrot.slane %v6008, 7
      %v6011 = vshll.u32 %v5964, 16
      %v6013 = vor.u32 %v6010, %v6011
      %v6014 = vsel %vm1427, %v6002, %v6013
      %v6016 = vshrl.u32 %v5965, 16
      %v6018 = vrot.slane %v6016, 7
      %v6019 = vshll.u32 %v5965, 16
      %v6021 = vor.u32 %v6018, %v6019
      %v6022 = vsel %vm1427, %v6010, %v6021
      %v6024 = vshrl.u32 %v5966, 16
      %v6026 = vrot.slane %v6024, 7
      %v6027 = vshll.u32 %v5966, 16
      %v6029 = vor.u32 %v6026, %v6027
      %v6030 = vsel %vm1427, %v6018, %v6029
      %v6032 = vshrl.u32 %v5967, 16
      %v6034 = vrot.slane %v6032, 7
      %v6035 = vshll.u32 %v5967, 16
      %v6037 = vor.u32 %v6034, %v6035
      %v6038 = vsel %vm1427, %v6026, %v6037
      %v6040 = vshrl.u32 %v5968, 16
      %v6042 = vrot.slane %v6040, 7
      %v6043 = vshll.u32 %v5968, 16
      %v6045 = vor.u32 %v6042, %v6043
      %v6046 = vsel %vm1427, %v6034, %v6045
      %v6048 = vshrl.u32 %v5969, 16
      %v6050 = vrot.slane %v6048, 7
      %v6051 = vshll.u32 %v5969, 16
      %v6053 = vor.u32 %v6050, %v6051
      %v6054 = vsel %vm1427, %v6042, %v6053
      %v6056 = vshrl.u32 %v5970, 16
      %v6058 = vrot.slane %v6056, 7
      %v6059 = vshll.u32 %v5970, 16
      %v6061 = vor.u32 %v6058, %v6059
      %v6062 = vsel %vm1427, %v6050, %v6061
      %v6064 = vshrl.u32 %v5971, 16
      %v6066 = vrot.slane %v6064, 7
      %v6067 = vshll.u32 %v5971, 16
      %v6069 = vor.u32 %v6066, %v6067
      %v6070 = vsel %vm1427, %v6058, %v6069
      %v6072 = vshrl.u32 %v5972, 16
      %v6074 = vrot.slane %v6072, 7
      %v6075 = vshll.u32 %v5972, 16
      %v6077 = vor.u32 %v6074, %v6075
      %v6078 = vsel %vm1427, %v6066, %v6077
      %v6080 = vshrl.u32 %v5973, 16
      %v6082 = vrot.slane %v6080, 7
      %v6083 = vshll.u32 %v5973, 16
      %v6085 = vor.u32 %v6082, %v6083
      %v6086 = vsel %vm1427, %v6074, %v6085
      %v6088 = vshrl.u32 %v5974, 16
      %v6090 = vrot.slane %v6088, 7
      %v6091 = vshll.u32 %v5974, 16
      %v6093 = vor.u32 %v6090, %v6091
      %v6094 = vsel %vm1427, %v6082, %v6093
      %v6096 = vshrl.u32 %v5975, 16
      %v6098 = vrot.slane %v6096, 7
      %v6099 = vshll.u32 %v5975, 16
      %v6101 = vor.u32 %v6098, %v6099
      %v6102 = vsel %vm1427, %v6090, %v6101
      %v6104 = vshrl.u32 %v5976, 16
      %v6106 = vrot.slane %v6104, 7
      %v6107 = vshll.u32 %v5976, 16
      %v6109 = vor.u32 %v6106, %v6107
      %v6110 = vsel %vm1427, %v6098, %v6109
      %v6112 = vshrl.u32 %v5977, 16
      %v6114 = vrot.slane %v6112, 7
      %v6115 = vshll.u32 %v5977, 16
      %v6117 = vor.u32 %v6114, %v6115
      %v6118 = vsel %vm1427, %v6106, %v6117
      %v6127 = vunpack.c.l.b16 %v5979
      %v6128 = vunpack.c.l.b16 %v5980
      %v6129 = vunpack.c.l.b16 %v5981
      %v6130 = vunpack.c.l.b16 %v5982
      %v6131 = vunpack.c.l.b16 %v5983
      %v6132 = vunpack.c.l.b16 %v5984
      %v6133 = vunpack.c.l.b16 %v5985
      %v6134 = vunpack.c.l.b16 %v5986
      %v6135 = vpack.c.b16 %v6128, %v6127
      %v6136 = vpack.c.b16 %v6130, %v6129
      %v6137 = vpack.c.b16 %v6132, %v6131
      %v6138 = vpack.c.b16 %v6134, %v6133
      %v6144 = vsel %vm336, %v5998, 0
      %v6147 = vsel %vm336, %v6006, 0
      %v6150 = vsel %vm336, %v6014, 0
      %v6153 = vsel %vm336, %v6022, 0
      %v6156 = vsel %vm336, %v6030, 0
      %v6159 = vsel %vm336, %v6038, 0
      %v6162 = vsel %vm336, %v6046, 0
      %v6165 = vsel %vm336, %v6054, 0
      %v6168 = vsel %vm336, %v6062, 0
      %v6171 = vsel %vm336, %v6070, 0
      %v6174 = vsel %vm336, %v6078, 0
      %v6177 = vsel %vm336, %v6086, 0
      %v6180 = vsel %vm336, %v6094, 0
      %v6183 = vsel %vm336, %v6102, 0
      %v6186 = vsel %vm336, %v6110, 0
      %v6189 = vsel %vm336, %v6118, 0
      %6191 = vmatprep.subr.bf16.mxu0 0
      %6192 = vmatpush1.bf16.msra.mxu0 %v6135
      %6193 = vmatprep.subr.bf16.mxu0 0
      %6194 = vmatpush1.bf16.msra.mxu0 %v6136
      %6195 = vmatprep.subr.bf16.mxu0 0
      %6196 = vmatpush1.bf16.msra.mxu0 %v6137
      %6197 = vmatprep.subr.bf16.mxu0 0
      %6198 = vmatpush1.bf16.msra.mxu0 %v6138
      %6199 = vmatprep.subr.bf16.mxu0 0
      %6200 = vmatpush1.bf16.msra.mxu0 0
      %6201 = vmatprep.subr.bf16.mxu0 0
      %6202 = vmatpush1.bf16.msra.mxu0 0
      %6203 = vmatprep.subr.bf16.mxu0 0
      %6204 = vmatpush1.bf16.msra.mxu0 0
      %6205 = vmatprep.subr.bf16.mxu0 0
      %6206 = vmatpush1.bf16.msra.mxu0 0
      %6207 = vmatprep.subr.bf16.mxu0 0
      %6208 = vmatpush1.bf16.msra.mxu0 0
      %6209 = vmatprep.subr.bf16.mxu0 0
      %6210 = vmatpush1.bf16.msra.mxu0 0
      %6211 = vmatprep.subr.bf16.mxu0 0
      %6212 = vmatpush1.bf16.msra.mxu0 0
      %6213 = vmatprep.subr.bf16.mxu0 0
      %6214 = vmatpush1.bf16.msra.mxu0 0
      %6215 = vmatprep.subr.bf16.mxu0 0
      %6216 = vmatpush1.bf16.msra.mxu0 0
      %6217 = vmatprep.subr.bf16.mxu0 0
      %6218 = vmatpush1.bf16.msra.mxu0 0
      %6219 = vmatprep.subr.bf16.mxu0 0
      %6220 = vmatpush1.bf16.msra.mxu0 0
      %6221 = vmatprep.subr.bf16.mxu0 0
      %6222 = vmatpush1.bf16.msra.mxu0 0
      %6223 = vmatprep.mubr.bf16.mxu0 0
      %6224 = vmatmul.mubr.bf16.gmra.mrb[0].mxu0 %v6144
      %v6225 = vpop.f32.mrb[0].mxu0
      %v6226 = vadd.f32 0.0, %v6225
      %v6227 = vpop.f32.mrb[0].mxu0
      %v6228 = vpop.f32.mrb[0].mxu0
      %v6229 = vadd.f32 0.0, %v6228
      %v6230 = vpop.f32.mrb[0].mxu0
      %6231 = vmatprep.mubr.bf16.mxu0 0
      %6232 = vmatmul.mubr.bf16.gmra.mrb[0].mxu0 %v6147
      %v6233 = vpop.f32.mrb[0].mxu0
      %v6234 = vadd.f32 0.0, %v6233
      %v6235 = vpop.f32.mrb[0].mxu0
      %v6236 = vpop.f32.mrb[0].mxu0
      %v6237 = vadd.f32 0.0, %v6236
      %v6238 = vpop.f32.mrb[0].mxu0
      %6239 = vmatprep.mubr.bf16.mxu0 0
      %6240 = vmatmul.mubr.bf16.gmra.mrb[0].mxu0 %v6150
      %v6241 = vpop.f32.mrb[0].mxu0
      %v6242 = vadd.f32 0.0, %v6241
      %v6243 = vpop.f32.mrb[0].mxu0
      %v6244 = vpop.f32.mrb[0].mxu0
      %v6245 = vadd.f32 0.0, %v6244
      %v6246 = vpop.f32.mrb[0].mxu0
      %6247 = vmatprep.mubr.bf16.mxu0 0
      %6248 = vmatmul.mubr.bf16.gmra.mrb[0].mxu0 %v6153
      %v6249 = vpop.f32.mrb[0].mxu0
      %v6250 = vadd.f32 0.0, %v6249
      %v6251 = vpop.f32.mrb[0].mxu0
      %v6252 = vpop.f32.mrb[0].mxu0
      %v6253 = vadd.f32 0.0, %v6252
      %v6254 = vpop.f32.mrb[0].mxu0
      %6255 = vmatprep.mubr.bf16.mxu0 0
      %6256 = vmatmul.mubr.bf16.gmra.mrb[0].mxu0 %v6156
      %v6257 = vpop.f32.mrb[0].mxu0
      %v6258 = vadd.f32 0.0, %v6257
      %v6259 = vpop.f32.mrb[0].mxu0
      %v6260 = vpop.f32.mrb[0].mxu0
      %v6261 = vadd.f32 0.0, %v6260
      %v6262 = vpop.f32.mrb[0].mxu0
      %6263 = vmatprep.mubr.bf16.mxu0 0
      %6264 = vmatmul.mubr.bf16.gmra.mrb[0].mxu0 %v6159
      %v6265 = vpop.f32.mrb[0].mxu0
      %v6266 = vadd.f32 0.0, %v6265
      %v6267 = vpop.f32.mrb[0].mxu0
      %v6268 = vpop.f32.mrb[0].mxu0
      %v6269 = vadd.f32 0.0, %v6268
      %v6270 = vpop.f32.mrb[0].mxu0
      %6271 = vmatprep.mubr.bf16.mxu0 0
      %6272 = vmatmul.mubr.bf16.gmra.mrb[0].mxu0 %v6162
      %v6273 = vpop.f32.mrb[0].mxu0
      %v6274 = vadd.f32 0.0, %v6273
      %v6275 = vpop.f32.mrb[0].mxu0
      %v6276 = vpop.f32.mrb[0].mxu0
      %v6277 = vadd.f32 0.0, %v6276
      %v6278 = vpop.f32.mrb[0].mxu0
      %6279 = vmatprep.mubr.bf16.mxu0 0
      %6280 = vmatmul.mubr.bf16.gmra.mrb[0].mxu0 %v6165
      %v6281 = vpop.f32.mrb[0].mxu0
      %v6282 = vadd.f32 0.0, %v6281
      %v6283 = vpop.f32.mrb[0].mxu0
      %v6284 = vpop.f32.mrb[0].mxu0
      %v6285 = vadd.f32 0.0, %v6284
      %v6286 = vpop.f32.mrb[0].mxu0
      %6287 = vmatprep.mubr.bf16.mxu0 0
      %6288 = vmatmul.mubr.bf16.gmra.mrb[0].mxu0 %v6168
      %v6289 = vpop.f32.mrb[0].mxu0
      %v6290 = vadd.f32 0.0, %v6289
      %v6291 = vpop.f32.mrb[0].mxu0
      %v6292 = vpop.f32.mrb[0].mxu0
      %v6293 = vadd.f32 0.0, %v6292
      %v6294 = vpop.f32.mrb[0].mxu0
      %6295 = vmatprep.mubr.bf16.mxu0 0
      %6296 = vmatmul.mubr.bf16.gmra.mrb[0].mxu0 %v6171
      %v6297 = vpop.f32.mrb[0].mxu0
      %v6298 = vadd.f32 0.0, %v6297
      %v6299 = vpop.f32.mrb[0].mxu0
      %v6300 = vpop.f32.mrb[0].mxu0
      %v6301 = vadd.f32 0.0, %v6300
      %v6302 = vpop.f32.mrb[0].mxu0
      %6303 = vmatprep.mubr.bf16.mxu0 0
      %6304 = vmatmul.mubr.bf16.gmra.mrb[0].mxu0 %v6174
      %v6305 = vpop.f32.mrb[0].mxu0
      %v6306 = vadd.f32 0.0, %v6305
      %v6307 = vpop.f32.mrb[0].mxu0
      %v6308 = vpop.f32.mrb[0].mxu0
      %v6309 = vadd.f32 0.0, %v6308
      %v6310 = vpop.f32.mrb[0].mxu0
      %6311 = vmatprep.mubr.bf16.mxu0 0
      %6312 = vmatmul.mubr.bf16.gmra.mrb[0].mxu0 %v6177
      %v6313 = vpop.f32.mrb[0].mxu0
      %v6314 = vadd.f32 0.0, %v6313
      %v6315 = vpop.f32.mrb[0].mxu0
      %v6316 = vpop.f32.mrb[0].mxu0
      %v6317 = vadd.f32 0.0, %v6316
      %v6318 = vpop.f32.mrb[0].mxu0
      %6319 = vmatprep.mubr.bf16.mxu0 0
      %6320 = vmatmul.mubr.bf16.gmra.mrb[0].mxu0 %v6180
      %v6321 = vpop.f32.mrb[0].mxu0
      %v6322 = vadd.f32 0.0, %v6321
      %v6323 = vpop.f32.mrb[0].mxu0
      %v6324 = vpop.f32.mrb[0].mxu0
      %v6325 = vadd.f32 0.0, %v6324
      %v6326 = vpop.f32.mrb[0].mxu0
      %6327 = vmatprep.mubr.bf16.mxu0 0
      %6328 = vmatmul.mubr.bf16.gmra.mrb[0].mxu0 %v6183
      %v6329 = vpop.f32.mrb[0].mxu0
      %v6330 = vadd.f32 0.0, %v6329
      %v6331 = vpop.f32.mrb[0].mxu0
      %v6332 = vpop.f32.mrb[0].mxu0
      %v6333 = vadd.f32 0.0, %v6332
      %v6334 = vpop.f32.mrb[0].mxu0
      %6335 = vmatprep.mubr.bf16.mxu0 0
      %6336 = vmatmul.mubr.bf16.gmra.mrb[0].mxu0 %v6186
      %v6337 = vpop.f32.mrb[0].mxu0
      %v6338 = vadd.f32 0.0, %v6337
      %v6339 = vpop.f32.mrb[0].mxu0
      %v6340 = vpop.f32.mrb[0].mxu0
      %v6341 = vadd.f32 0.0, %v6340
      %v6342 = vpop.f32.mrb[0].mxu0
      %6343 = vmatprep.mubr.bf16.mxu0 0
      %6344 = vmatmul.mubr.bf16.gmra.mrb[0].mxu0 %v6189
      %v6345 = vpop.f32.mrb[0].mxu0
      %v6346 = vadd.f32 0.0, %v6345
      %v6347 = vpop.f32.mrb[0].mxu0
      %v6348 = vpop.f32.mrb[0].mxu0
      %v6349 = vadd.f32 0.0, %v6348
      %v6350 = vpop.f32.mrb[0].mxu0
      %6351 = vdwg.mxu0
      %v6352 = vadd.f32 %v5927, %v6226
      %v6353 = vadd.f32 %v5928, %v6229
      %v6354 = vadd.f32 %v5929, %v6234
      %v6355 = vadd.f32 %v5930, %v6237
      %v6356 = vadd.f32 %v5931, %v6242
      %v6357 = vadd.f32 %v5932, %v6245
      %v6358 = vadd.f32 %v5933, %v6250
      %v6359 = vadd.f32 %v5934, %v6253
      %v6360 = vadd.f32 %v5935, %v6258
      %v6361 = vadd.f32 %v5936, %v6261
      %v6362 = vadd.f32 %v5937, %v6266
      %v6363 = vadd.f32 %v5938, %v6269
      %v6364 = vadd.f32 %v5939, %v6274
      %v6365 = vadd.f32 %v5940, %v6277
      %v6366 = vadd.f32 %v5941, %v6282
      %v6367 = vadd.f32 %v5942, %v6285
      %v6368 = vadd.f32 %v5943, %v6290
      %v6369 = vadd.f32 %v5944, %v6293
      %v6370 = vadd.f32 %v5945, %v6298
      %v6371 = vadd.f32 %v5946, %v6301
      %v6372 = vadd.f32 %v5947, %v6306
      %v6373 = vadd.f32 %v5948, %v6309
      %v6374 = vadd.f32 %v5949, %v6314
      %v6375 = vadd.f32 %v5950, %v6317
      %v6376 = vadd.f32 %v5951, %v6322
      %v6377 = vadd.f32 %v5952, %v6325
      %v6378 = vadd.f32 %v5953, %v6330
      %v6379 = vadd.f32 %v5954, %v6333
      %v6380 = vadd.f32 %v5955, %v6338
      %v6381 = vadd.f32 %v5956, %v6341
      %v6382 = vadd.f32 %v5957, %v6346
      %v6383 = vadd.f32 %v5958, %v6349
      %s6384 = scalar_lea.vmem %s3, 128
      %v6385 = vld [vmem:[%s6384] sm:$0xf]
      %v6386 = vld [vmem:[%s6384 + $0x4] sm:$0xf]
      %v6387 = vld [vmem:[%s6384 + $0x8] sm:$0xf]
      %v6388 = vld [vmem:[%s6384 + $0xc] sm:$0xf]
      %v6389 = vld [vmem:[%s6384 + $0x10] sm:$0xf]
      %v6390 = vld [vmem:[%s6384 + $0x14] sm:$0xf]
      %v6391 = vld [vmem:[%s6384 + $0x18] sm:$0xf]
      %v6392 = vld [vmem:[%s6384 + $0x1c] sm:$0xf]
      %v6401 = vunpack.c.l.b16 %v6385
      %v6402 = vunpack.c.l.b16 %v6386
      %v6403 = vunpack.c.l.b16 %v6387
      %v6404 = vunpack.c.l.b16 %v6388
      %v6405 = vunpack.c.l.b16 %v6389
      %v6406 = vunpack.c.l.b16 %v6390
      %v6407 = vunpack.c.l.b16 %v6391
      %v6408 = vunpack.c.l.b16 %v6392
      %v6409 = vpack.c.b16 %v6402, %v6401
      %v6410 = vpack.c.b16 %v6404, %v6403
      %v6411 = vpack.c.b16 %v6406, %v6405
      %v6412 = vpack.c.b16 %v6408, %v6407
      %v6418 = vsel %vm336, %v5520, 0
      %v6421 = vsel %vm336, %v5521, 0
      %v6424 = vsel %vm336, %v5522, 0
      %v6427 = vsel %vm336, %v5523, 0
      %v6430 = vsel %vm336, %v5524, 0
      %v6433 = vsel %vm336, %v5525, 0
      %v6436 = vsel %vm336, %v5526, 0
      %v6439 = vsel %vm336, %v5527, 0
      %v6442 = vsel %vm336, %v5528, 0
      %v6445 = vsel %vm336, %v5529, 0
      %v6448 = vsel %vm336, %v5530, 0
      %v6451 = vsel %vm336, %v5531, 0
      %v6454 = vsel %vm336, %v5532, 0
      %v6457 = vsel %vm336, %v5533, 0
      %v6460 = vsel %vm336, %v5534, 0
      %v6463 = vsel %vm336, %v5960, 0
      %6465 = vmatprep.subr.bf16.mxu0 0
      %6466 = vmatpush1.bf16.msra.mxu0 %v6409
      %6467 = vmatprep.subr.bf16.mxu0 0
      %6468 = vmatpush1.bf16.msra.mxu0 %v6410
      %6469 = vmatprep.subr.bf16.mxu0 0
      %6470 = vmatpush1.bf16.msra.mxu0 %v6411
      %6471 = vmatprep.subr.bf16.mxu0 0
      %6472 = vmatpush1.bf16.msra.mxu0 %v6412
      %6473 = vmatprep.subr.bf16.mxu0 0
      %6474 = vmatpush1.bf16.msra.mxu0 0
      %6475 = vmatprep.subr.bf16.mxu0 0
      %6476 = vmatpush1.bf16.msra.mxu0 0
      %6477 = vmatprep.subr.bf16.mxu0 0
      %6478 = vmatpush1.bf16.msra.mxu0 0
      %6479 = vmatprep.subr.bf16.mxu0 0
      %6480 = vmatpush1.bf16.msra.mxu0 0
      %6481 = vmatprep.subr.bf16.mxu0 0
      %6482 = vmatpush1.bf16.msra.mxu0 0
      %6483 = vmatprep.subr.bf16.mxu0 0
      %6484 = vmatpush1.bf16.msra.mxu0 0
      %6485 = vmatprep.subr.bf16.mxu0 0
      %6486 = vmatpush1.bf16.msra.mxu0 0
      %6487 = vmatprep.subr.bf16.mxu0 0
      %6488 = vmatpush1.bf16.msra.mxu0 0
      %6489 = vmatprep.subr.bf16.mxu0 0
      %6490 = vmatpush1.bf16.msra.mxu0 0
      %6491 = vmatprep.subr.bf16.mxu0 0
      %6492 = vmatpush1.bf16.msra.mxu0 0
      %6493 = vmatprep.subr.bf16.mxu0 0
      %6494 = vmatpush1.bf16.msra.mxu0 0
      %6495 = vmatprep.subr.bf16.mxu0 0
      %6496 = vmatpush1.bf16.msra.mxu0 0
      %6497 = vmatprep.mubr.bf16.mxu0 0
      %6498 = vmatmul.mubr.bf16.gmra.mrb[0].mxu0 %v6418
      %v6499 = vpop.f32.mrb[0].mxu0
      %v6500 = vadd.f32 0.0, %v6499
      %v6501 = vpop.f32.mrb[0].mxu0
      %v6502 = vpop.f32.mrb[0].mxu0
      %v6503 = vadd.f32 0.0, %v6502
      %v6504 = vpop.f32.mrb[0].mxu0
      %6505 = vmatprep.mubr.bf16.mxu0 0
      %6506 = vmatmul.mubr.bf16.gmra.mrb[0].mxu0 %v6421
      %v6507 = vpop.f32.mrb[0].mxu0
      %v6508 = vadd.f32 0.0, %v6507
      %v6509 = vpop.f32.mrb[0].mxu0
      %v6510 = vpop.f32.mrb[0].mxu0
      %v6511 = vadd.f32 0.0, %v6510
      %v6512 = vpop.f32.mrb[0].mxu0
      %6513 = vmatprep.mubr.bf16.mxu0 0
      %6514 = vmatmul.mubr.bf16.gmra.mrb[0].mxu0 %v6424
      %v6515 = vpop.f32.mrb[0].mxu0
      %v6516 = vadd.f32 0.0, %v6515
      %v6517 = vpop.f32.mrb[0].mxu0
      %v6518 = vpop.f32.mrb[0].mxu0
      %v6519 = vadd.f32 0.0, %v6518
      %v6520 = vpop.f32.mrb[0].mxu0
      %6521 = vmatprep.mubr.bf16.mxu0 0
      %6522 = vmatmul.mubr.bf16.gmra.mrb[0].mxu0 %v6427
      %v6523 = vpop.f32.mrb[0].mxu0
      %v6524 = vadd.f32 0.0, %v6523
      %v6525 = vpop.f32.mrb[0].mxu0
      %v6526 = vpop.f32.mrb[0].mxu0
      %v6527 = vadd.f32 0.0, %v6526
      %v6528 = vpop.f32.mrb[0].mxu0
      %6529 = vmatprep.mubr.bf16.mxu0 0
      %6530 = vmatmul.mubr.bf16.gmra.mrb[0].mxu0 %v6430
      %v6531 = vpop.f32.mrb[0].mxu0
      %v6532 = vadd.f32 0.0, %v6531
      %v6533 = vpop.f32.mrb[0].mxu0
      %v6534 = vpop.f32.mrb[0].mxu0
      %v6535 = vadd.f32 0.0, %v6534
      %v6536 = vpop.f32.mrb[0].mxu0
      %6537 = vmatprep.mubr.bf16.mxu0 0
      %6538 = vmatmul.mubr.bf16.gmra.mrb[0].mxu0 %v6433
      %v6539 = vpop.f32.mrb[0].mxu0
      %v6540 = vadd.f32 0.0, %v6539
      %v6541 = vpop.f32.mrb[0].mxu0
      %v6542 = vpop.f32.mrb[0].mxu0
      %v6543 = vadd.f32 0.0, %v6542
      %v6544 = vpop.f32.mrb[0].mxu0
      %6545 = vmatprep.mubr.bf16.mxu0 0
      %6546 = vmatmul.mubr.bf16.gmra.mrb[0].mxu0 %v6436
      %v6547 = vpop.f32.mrb[0].mxu0
      %v6548 = vadd.f32 0.0, %v6547
      %v6549 = vpop.f32.mrb[0].mxu0
      %v6550 = vpop.f32.mrb[0].mxu0
      %v6551 = vadd.f32 0.0, %v6550
      %v6552 = vpop.f32.mrb[0].mxu0
      %6553 = vmatprep.mubr.bf16.mxu0 0
      %6554 = vmatmul.mubr.bf16.gmra.mrb[0].mxu0 %v6439
      %v6555 = vpop.f32.mrb[0].mxu0
      %v6556 = vadd.f32 0.0, %v6555
      %v6557 = vpop.f32.mrb[0].mxu0
      %v6558 = vpop.f32.mrb[0].mxu0
      %v6559 = vadd.f32 0.0, %v6558
      %v6560 = vpop.f32.mrb[0].mxu0
      %6561 = vmatprep.mubr.bf16.mxu0 0
      %6562 = vmatmul.mubr.bf16.gmra.mrb[0].mxu0 %v6442
      %v6563 = vpop.f32.mrb[0].mxu0
      %v6564 = vadd.f32 0.0, %v6563
      %v6565 = vpop.f32.mrb[0].mxu0
      %v6566 = vpop.f32.mrb[0].mxu0
      %v6567 = vadd.f32 0.0, %v6566
      %v6568 = vpop.f32.mrb[0].mxu0
      %6569 = vmatprep.mubr.bf16.mxu0 0
      %6570 = vmatmul.mubr.bf16.gmra.mrb[0].mxu0 %v6445
      %v6571 = vpop.f32.mrb[0].mxu0
      %v6572 = vadd.f32 0.0, %v6571
      %v6573 = vpop.f32.mrb[0].mxu0
      %v6574 = vpop.f32.mrb[0].mxu0
      %v6575 = vadd.f32 0.0, %v6574
      %v6576 = vpop.f32.mrb[0].mxu0
      %6577 = vmatprep.mubr.bf16.mxu0 0
      %6578 = vmatmul.mubr.bf16.gmra.mrb[0].mxu0 %v6448
      %v6579 = vpop.f32.mrb[0].mxu0
      %v6580 = vadd.f32 0.0, %v6579
      %v6581 = vpop.f32.mrb[0].mxu0
      %v6582 = vpop.f32.mrb[0].mxu0
      %v6583 = vadd.f32 0.0, %v6582
      %v6584 = vpop.f32.mrb[0].mxu0
      %6585 = vmatprep.mubr.bf16.mxu0 0
      %6586 = vmatmul.mubr.bf16.gmra.mrb[0].mxu0 %v6451
      %v6587 = vpop.f32.mrb[0].mxu0
      %v6588 = vadd.f32 0.0, %v6587
      %v6589 = vpop.f32.mrb[0].mxu0
      %v6590 = vpop.f32.mrb[0].mxu0
      %v6591 = vadd.f32 0.0, %v6590
      %v6592 = vpop.f32.mrb[0].mxu0
      %6593 = vmatprep.mubr.bf16.mxu0 0
      %6594 = vmatmul.mubr.bf16.gmra.mrb[0].mxu0 %v6454
      %v6595 = vpop.f32.mrb[0].mxu0
      %v6596 = vadd.f32 0.0, %v6595
      %v6597 = vpop.f32.mrb[0].mxu0
      %v6598 = vpop.f32.mrb[0].mxu0
      %v6599 = vadd.f32 0.0, %v6598
      %v6600 = vpop.f32.mrb[0].mxu0
      %6601 = vmatprep.mubr.bf16.mxu0 0
      %6602 = vmatmul.mubr.bf16.gmra.mrb[0].mxu0 %v6457
      %v6603 = vpop.f32.mrb[0].mxu0
      %v6604 = vadd.f32 0.0, %v6603
      %v6605 = vpop.f32.mrb[0].mxu0
      %v6606 = vpop.f32.mrb[0].mxu0
      %v6607 = vadd.f32 0.0, %v6606
      %v6608 = vpop.f32.mrb[0].mxu0
      %6609 = vmatprep.mubr.bf16.mxu0 0
      %6610 = vmatmul.mubr.bf16.gmra.mrb[0].mxu0 %v6460
      %v6611 = vpop.f32.mrb[0].mxu0
      %v6612 = vadd.f32 0.0, %v6611
      %v6613 = vpop.f32.mrb[0].mxu0
      %v6614 = vpop.f32.mrb[0].mxu0
      %v6615 = vadd.f32 0.0, %v6614
      %v6616 = vpop.f32.mrb[0].mxu0
      %6617 = vmatprep.mubr.bf16.mxu0 0
      %6618 = vmatmul.mubr.bf16.gmra.mrb[0].mxu0 %v6463
      %v6619 = vpop.f32.mrb[0].mxu0
      %v6620 = vadd.f32 0.0, %v6619
      %v6621 = vpop.f32.mrb[0].mxu0
      %v6622 = vpop.f32.mrb[0].mxu0
      %v6623 = vadd.f32 0.0, %v6622
      %v6624 = vpop.f32.mrb[0].mxu0
      %6625 = vdwg.mxu0
      %v6626 = vadd.f32 %v6352, %v6500
      %v6627 = vadd.f32 %v6353, %v6503
      %v6628 = vadd.f32 %v6354, %v6508
      %v6629 = vadd.f32 %v6355, %v6511
      %v6630 = vadd.f32 %v6356, %v6516
      %v6631 = vadd.f32 %v6357, %v6519
      %v6632 = vadd.f32 %v6358, %v6524
      %v6633 = vadd.f32 %v6359, %v6527
      %v6634 = vadd.f32 %v6360, %v6532
      %v6635 = vadd.f32 %v6361, %v6535
      %v6636 = vadd.f32 %v6362, %v6540
      %v6637 = vadd.f32 %v6363, %v6543
      %v6638 = vadd.f32 %v6364, %v6548
      %v6639 = vadd.f32 %v6365, %v6551
      %v6640 = vadd.f32 %v6366, %v6556
      %v6641 = vadd.f32 %v6367, %v6559
      %v6642 = vadd.f32 %v6368, %v6564
      %v6643 = vadd.f32 %v6369, %v6567
      %v6644 = vadd.f32 %v6370, %v6572
      %v6645 = vadd.f32 %v6371, %v6575
      %v6646 = vadd.f32 %v6372, %v6580
      %v6647 = vadd.f32 %v6373, %v6583
      %v6648 = vadd.f32 %v6374, %v6588
      %v6649 = vadd.f32 %v6375, %v6591
      %v6650 = vadd.f32 %v6376, %v6596
      %v6651 = vadd.f32 %v6377, %v6599
      %v6652 = vadd.f32 %v6378, %v6604
      %v6653 = vadd.f32 %v6379, %v6607
      %v6654 = vadd.f32 %v6380, %v6612
      %v6655 = vadd.f32 %v6381, %v6615
      %v6656 = vadd.f32 %v6382, %v6620
      %v6657 = vadd.f32 %v6383, %v6623
      %v6658 = vld [vmem:[#allocation2 + $0x10] sm:$0xff]
      %v6659 = vld [vmem:[#allocation2 + $0x18] sm:$0xff]
      %v6660 = vld [vmem:[#allocation2 + $0x20] sm:$0xff]
      %v6661 = vld [vmem:[#allocation2 + $0x28] sm:$0xff]
      %v6662 = vld [vmem:[#allocation2 + $0x30] sm:$0xff]
      %v6663 = vld [vmem:[#allocation2 + $0x38] sm:$0xff]
      %v6664 = vld [vmem:[#allocation2 + $0x40] sm:$0xff]
      %v6665 = vld [vmem:[#allocation2 + $0x48] sm:$0xff]
      %v6666 = vld [vmem:[#allocation2 + $0x50] sm:$0xff]
      %v6667 = vld [vmem:[#allocation2 + $0x58] sm:$0xff]
      %v6668 = vld [vmem:[#allocation2 + $0x60] sm:$0xff]
      %v6669 = vld [vmem:[#allocation2 + $0x68] sm:$0xff]
      %v6670 = vld [vmem:[#allocation2 + $0x70] sm:$0xff]
      %v6671 = vld [vmem:[#allocation2 + $0x78] sm:$0xff]
      %v6672 = vld [vmem:[#allocation2 + $0x80] sm:$0xff]
      %v6673 = vld [vmem:[#allocation2 + $0x88] sm:$0xff]
      %v6674 = vld [vmem:[#allocation2 + $0x90] sm:$0x1]
      %v6675 = vsel %vm2049, %v6658, 0
      %v6676 = vsel %vm2050, %v6659, 0
      %v6677 = vsel %vm2051, %v6660, 0
      %v6678 = vsel %vm2052, %v6661, 0
      %v6679 = vsel %vm2053, %v6662, 0
      %v6680 = vsel %vm2054, %v6663, 0
      %v6681 = vsel %vm2055, %v6664, 0
      %v6682 = vsel %vm2056, %v6665, 0
      %v6683 = vsel %vm2057, %v6666, 0
      %v6684 = vsel %vm2058, %v6667, 0
      %v6685 = vsel %vm2059, %v6668, 0
      %v6686 = vsel %vm2060, %v6669, 0
      %v6687 = vsel %vm2061, %v6670, 0
      %v6688 = vsel %vm2062, %v6671, 0
      %v6689 = vsel %vm2063, %v6672, 0
      %v6690 = vsel %vm2064, %v6673, 0
      %v6691 = vsel %vm2065, %v6674, 0
      %s6692 = scalar_lea.vmem %s3, 160
      %v6693 = vld [vmem:[%s6692] sm:$0xf]
      %v6694 = vld [vmem:[%s6692 + $0x4] sm:$0xf]
      %v6695 = vld [vmem:[%s6692 + $0x8] sm:$0xf]
      %v6696 = vld [vmem:[%s6692 + $0xc] sm:$0xf]
      %v6697 = vld [vmem:[%s6692 + $0x10] sm:$0xf]
      %v6698 = vld [vmem:[%s6692 + $0x14] sm:$0xf]
      %v6699 = vld [vmem:[%s6692 + $0x18] sm:$0xf]
      %v6700 = vld [vmem:[%s6692 + $0x1c] sm:$0xf]
      %v6702 = vshrl.u32 %v6675, 16
      %v6704 = vshll.u32 %v6675, 16
      %v6706 = vrot.slane %v6704, 1
      %v6707 = vor.u32 %v6702, %v6706
      %v6709 = vshll.u32 %v6676, 16
      %v6711 = vrot.slane %v6709, 1
      %v6712 = vsel %vm1015, %v6707, %v6711
      %v6713 = vshrl.u32 %v6676, 16
      %v6715 = vor.u32 %v6713, %v6711
      %v6717 = vshll.u32 %v6677, 16
      %v6719 = vrot.slane %v6717, 1
      %v6720 = vsel %vm1015, %v6715, %v6719
      %v6721 = vshrl.u32 %v6677, 16
      %v6723 = vor.u32 %v6721, %v6719
      %v6725 = vshll.u32 %v6678, 16
      %v6727 = vrot.slane %v6725, 1
      %v6728 = vsel %vm1015, %v6723, %v6727
      %v6729 = vshrl.u32 %v6678, 16
      %v6731 = vor.u32 %v6729, %v6727
      %v6733 = vshll.u32 %v6679, 16
      %v6735 = vrot.slane %v6733, 1
      %v6736 = vsel %vm1015, %v6731, %v6735
      %v6737 = vshrl.u32 %v6679, 16
      %v6739 = vor.u32 %v6737, %v6735
      %v6741 = vshll.u32 %v6680, 16
      %v6743 = vrot.slane %v6741, 1
      %v6744 = vsel %vm1015, %v6739, %v6743
      %v6745 = vshrl.u32 %v6680, 16
      %v6747 = vor.u32 %v6745, %v6743
      %v6749 = vshll.u32 %v6681, 16
      %v6751 = vrot.slane %v6749, 1
      %v6752 = vsel %vm1015, %v6747, %v6751
      %v6753 = vshrl.u32 %v6681, 16
      %v6755 = vor.u32 %v6753, %v6751
      %v6757 = vshll.u32 %v6682, 16
      %v6759 = vrot.slane %v6757, 1
      %v6760 = vsel %vm1015, %v6755, %v6759
      %v6761 = vshrl.u32 %v6682, 16
      %v6763 = vor.u32 %v6761, %v6759
      %v6765 = vshll.u32 %v6683, 16
      %v6767 = vrot.slane %v6765, 1
      %v6768 = vsel %vm1015, %v6763, %v6767
      %v6769 = vshrl.u32 %v6683, 16
      %v6771 = vor.u32 %v6769, %v6767
      %v6773 = vshll.u32 %v6684, 16
      %v6775 = vrot.slane %v6773, 1
      %v6776 = vsel %vm1015, %v6771, %v6775
      %v6777 = vshrl.u32 %v6684, 16
      %v6779 = vor.u32 %v6777, %v6775
      %v6781 = vshll.u32 %v6685, 16
      %v6783 = vrot.slane %v6781, 1
      %v6784 = vsel %vm1015, %v6779, %v6783
      %v6785 = vshrl.u32 %v6685, 16
      %v6787 = vor.u32 %v6785, %v6783
      %v6789 = vshll.u32 %v6686, 16
      %v6791 = vrot.slane %v6789, 1
      %v6792 = vsel %vm1015, %v6787, %v6791
      %v6793 = vshrl.u32 %v6686, 16
      %v6795 = vor.u32 %v6793, %v6791
      %v6797 = vshll.u32 %v6687, 16
      %v6799 = vrot.slane %v6797, 1
      %v6800 = vsel %vm1015, %v6795, %v6799
      %v6801 = vshrl.u32 %v6687, 16
      %v6803 = vor.u32 %v6801, %v6799
      %v6805 = vshll.u32 %v6688, 16
      %v6807 = vrot.slane %v6805, 1
      %v6808 = vsel %vm1015, %v6803, %v6807
      %v6809 = vshrl.u32 %v6688, 16
      %v6811 = vor.u32 %v6809, %v6807
      %v6813 = vshll.u32 %v6689, 16
      %v6815 = vrot.slane %v6813, 1
      %v6816 = vsel %vm1015, %v6811, %v6815
      %v6817 = vshrl.u32 %v6689, 16
      %v6819 = vor.u32 %v6817, %v6815
      %v6821 = vshll.u32 %v6690, 16
      %v6823 = vrot.slane %v6821, 1
      %v6824 = vsel %vm1015, %v6819, %v6823
      %v6825 = vshrl.u32 %v6690, 16
      %v6827 = vor.u32 %v6825, %v6823
      %v6829 = vshll.u32 %v6691, 16
      %v6831 = vrot.slane %v6829, 1
      %v6832 = vsel %vm1015, %v6827, %v6831
      %v6841 = vunpack.c.l.b16 %v6693
      %v6842 = vunpack.c.l.b16 %v6694
      %v6843 = vunpack.c.l.b16 %v6695
      %v6844 = vunpack.c.l.b16 %v6696
      %v6845 = vunpack.c.l.b16 %v6697
      %v6846 = vunpack.c.l.b16 %v6698
      %v6847 = vunpack.c.l.b16 %v6699
      %v6848 = vunpack.c.l.b16 %v6700
      %v6849 = vpack.c.b16 %v6842, %v6841
      %v6850 = vpack.c.b16 %v6844, %v6843
      %v6851 = vpack.c.b16 %v6846, %v6845
      %v6852 = vpack.c.b16 %v6848, %v6847
      %v6858 = vsel %vm336, %v6712, 0
      %v6861 = vsel %vm336, %v6720, 0
      %v6864 = vsel %vm336, %v6728, 0
      %v6867 = vsel %vm336, %v6736, 0
      %v6870 = vsel %vm336, %v6744, 0
      %v6873 = vsel %vm336, %v6752, 0
      %v6876 = vsel %vm336, %v6760, 0
      %v6879 = vsel %vm336, %v6768, 0
      %v6882 = vsel %vm336, %v6776, 0
      %v6885 = vsel %vm336, %v6784, 0
      %v6888 = vsel %vm336, %v6792, 0
      %v6891 = vsel %vm336, %v6800, 0
      %v6894 = vsel %vm336, %v6808, 0
      %v6897 = vsel %vm336, %v6816, 0
      %v6900 = vsel %vm336, %v6824, 0
      %v6903 = vsel %vm336, %v6832, 0
      %6905 = vmatprep.subr.bf16.mxu0 0
      %6906 = vmatpush1.bf16.msra.mxu0 %v6849
      %6907 = vmatprep.subr.bf16.mxu0 0
      %6908 = vmatpush1.bf16.msra.mxu0 %v6850
      %6909 = vmatprep.subr.bf16.mxu0 0
      %6910 = vmatpush1.bf16.msra.mxu0 %v6851
      %6911 = vmatprep.subr.bf16.mxu0 0
      %6912 = vmatpush1.bf16.msra.mxu0 %v6852
      %6913 = vmatprep.subr.bf16.mxu0 0
      %6914 = vmatpush1.bf16.msra.mxu0 0
      %6915 = vmatprep.subr.bf16.mxu0 0
      %6916 = vmatpush1.bf16.msra.mxu0 0
      %6917 = vmatprep.subr.bf16.mxu0 0
      %6918 = vmatpush1.bf16.msra.mxu0 0
      %6919 = vmatprep.subr.bf16.mxu0 0
      %6920 = vmatpush1.bf16.msra.mxu0 0
      %6921 = vmatprep.subr.bf16.mxu0 0
      %6922 = vmatpush1.bf16.msra.mxu0 0
      %6923 = vmatprep.subr.bf16.mxu0 0
      %6924 = vmatpush1.bf16.msra.mxu0 0
      %6925 = vmatprep.subr.bf16.mxu0 0
      %6926 = vmatpush1.bf16.msra.mxu0 0
      %6927 = vmatprep.subr.bf16.mxu0 0
      %6928 = vmatpush1.bf16.msra.mxu0 0
      %6929 = vmatprep.subr.bf16.mxu0 0
      %6930 = vmatpush1.bf16.msra.mxu0 0
      %6931 = vmatprep.subr.bf16.mxu0 0
      %6932 = vmatpush1.bf16.msra.mxu0 0
      %6933 = vmatprep.subr.bf16.mxu0 0
      %6934 = vmatpush1.bf16.msra.mxu0 0
      %6935 = vmatprep.subr.bf16.mxu0 0
      %6936 = vmatpush1.bf16.msra.mxu0 0
      %6937 = vmatprep.mubr.bf16.mxu0 0
      %6938 = vmatmul.mubr.bf16.gmra.mrb[0].mxu0 %v6858
      %v6939 = vpop.f32.mrb[0].mxu0
      %v6940 = vadd.f32 0.0, %v6939
      %v6941 = vpop.f32.mrb[0].mxu0
      %v6942 = vpop.f32.mrb[0].mxu0
      %v6943 = vadd.f32 0.0, %v6942
      %v6944 = vpop.f32.mrb[0].mxu0
      %6945 = vmatprep.mubr.bf16.mxu0 0
      %6946 = vmatmul.mubr.bf16.gmra.mrb[0].mxu0 %v6861
      %v6947 = vpop.f32.mrb[0].mxu0
      %v6948 = vadd.f32 0.0, %v6947
      %v6949 = vpop.f32.mrb[0].mxu0
      %v6950 = vpop.f32.mrb[0].mxu0
      %v6951 = vadd.f32 0.0, %v6950
      %v6952 = vpop.f32.mrb[0].mxu0
      %6953 = vmatprep.mubr.bf16.mxu0 0
      %6954 = vmatmul.mubr.bf16.gmra.mrb[0].mxu0 %v6864
      %v6955 = vpop.f32.mrb[0].mxu0
      %v6956 = vadd.f32 0.0, %v6955
      %v6957 = vpop.f32.mrb[0].mxu0
      %v6958 = vpop.f32.mrb[0].mxu0
      %v6959 = vadd.f32 0.0, %v6958
      %v6960 = vpop.f32.mrb[0].mxu0
      %6961 = vmatprep.mubr.bf16.mxu0 0
      %6962 = vmatmul.mubr.bf16.gmra.mrb[0].mxu0 %v6867
      %v6963 = vpop.f32.mrb[0].mxu0
      %v6964 = vadd.f32 0.0, %v6963
      %v6965 = vpop.f32.mrb[0].mxu0
      %v6966 = vpop.f32.mrb[0].mxu0
      %v6967 = vadd.f32 0.0, %v6966
      %v6968 = vpop.f32.mrb[0].mxu0
      %6969 = vmatprep.mubr.bf16.mxu0 0
      %6970 = vmatmul.mubr.bf16.gmra.mrb[0].mxu0 %v6870
      %v6971 = vpop.f32.mrb[0].mxu0
      %v6972 = vadd.f32 0.0, %v6971
      %v6973 = vpop.f32.mrb[0].mxu0
      %v6974 = vpop.f32.mrb[0].mxu0
      %v6975 = vadd.f32 0.0, %v6974
      %v6976 = vpop.f32.mrb[0].mxu0
      %6977 = vmatprep.mubr.bf16.mxu0 0
      %6978 = vmatmul.mubr.bf16.gmra.mrb[0].mxu0 %v6873
      %v6979 = vpop.f32.mrb[0].mxu0
      %v6980 = vadd.f32 0.0, %v6979
      %v6981 = vpop.f32.mrb[0].mxu0
      %v6982 = vpop.f32.mrb[0].mxu0
      %v6983 = vadd.f32 0.0, %v6982
      %v6984 = vpop.f32.mrb[0].mxu0
      %6985 = vmatprep.mubr.bf16.mxu0 0
      %6986 = vmatmul.mubr.bf16.gmra.mrb[0].mxu0 %v6876
      %v6987 = vpop.f32.mrb[0].mxu0
      %v6988 = vadd.f32 0.0, %v6987
      %v6989 = vpop.f32.mrb[0].mxu0
      %v6990 = vpop.f32.mrb[0].mxu0
      %v6991 = vadd.f32 0.0, %v6990
      %v6992 = vpop.f32.mrb[0].mxu0
      %6993 = vmatprep.mubr.bf16.mxu0 0
      %6994 = vmatmul.mubr.bf16.gmra.mrb[0].mxu0 %v6879
      %v6995 = vpop.f32.mrb[0].mxu0
      %v6996 = vadd.f32 0.0, %v6995
      %v6997 = vpop.f32.mrb[0].mxu0
      %v6998 = vpop.f32.mrb[0].mxu0
      %v6999 = vadd.f32 0.0, %v6998
      %v7000 = vpop.f32.mrb[0].mxu0
      %7001 = vmatprep.mubr.bf16.mxu0 0
      %7002 = vmatmul.mubr.bf16.gmra.mrb[0].mxu0 %v6882
      %v7003 = vpop.f32.mrb[0].mxu0
      %v7004 = vadd.f32 0.0, %v7003
      %v7005 = vpop.f32.mrb[0].mxu0
      %v7006 = vpop.f32.mrb[0].mxu0
      %v7007 = vadd.f32 0.0, %v7006
      %v7008 = vpop.f32.mrb[0].mxu0
      %7009 = vmatprep.mubr.bf16.mxu0 0
      %7010 = vmatmul.mubr.bf16.gmra.mrb[0].mxu0 %v6885
      %v7011 = vpop.f32.mrb[0].mxu0
      %v7012 = vadd.f32 0.0, %v7011
      %v7013 = vpop.f32.mrb[0].mxu0
      %v7014 = vpop.f32.mrb[0].mxu0
      %v7015 = vadd.f32 0.0, %v7014
      %v7016 = vpop.f32.mrb[0].mxu0
      %7017 = vmatprep.mubr.bf16.mxu0 0
      %7018 = vmatmul.mubr.bf16.gmra.mrb[0].mxu0 %v6888
      %v7019 = vpop.f32.mrb[0].mxu0
      %v7020 = vadd.f32 0.0, %v7019
      %v7021 = vpop.f32.mrb[0].mxu0
      %v7022 = vpop.f32.mrb[0].mxu0
      %v7023 = vadd.f32 0.0, %v7022
      %v7024 = vpop.f32.mrb[0].mxu0
      %7025 = vmatprep.mubr.bf16.mxu0 0
      %7026 = vmatmul.mubr.bf16.gmra.mrb[0].mxu0 %v6891
      %v7027 = vpop.f32.mrb[0].mxu0
      %v7028 = vadd.f32 0.0, %v7027
      %v7029 = vpop.f32.mrb[0].mxu0
      %v7030 = vpop.f32.mrb[0].mxu0
      %v7031 = vadd.f32 0.0, %v7030
      %v7032 = vpop.f32.mrb[0].mxu0
      %7033 = vmatprep.mubr.bf16.mxu0 0
      %7034 = vmatmul.mubr.bf16.gmra.mrb[0].mxu0 %v6894
      %v7035 = vpop.f32.mrb[0].mxu0
      %v7036 = vadd.f32 0.0, %v7035
      %v7037 = vpop.f32.mrb[0].mxu0
      %v7038 = vpop.f32.mrb[0].mxu0
      %v7039 = vadd.f32 0.0, %v7038
      %v7040 = vpop.f32.mrb[0].mxu0
      %7041 = vmatprep.mubr.bf16.mxu0 0
      %7042 = vmatmul.mubr.bf16.gmra.mrb[0].mxu0 %v6897
      %v7043 = vpop.f32.mrb[0].mxu0
      %v7044 = vadd.f32 0.0, %v7043
      %v7045 = vpop.f32.mrb[0].mxu0
      %v7046 = vpop.f32.mrb[0].mxu0
      %v7047 = vadd.f32 0.0, %v7046
      %v7048 = vpop.f32.mrb[0].mxu0
      %7049 = vmatprep.mubr.bf16.mxu0 0
      %7050 = vmatmul.mubr.bf16.gmra.mrb[0].mxu0 %v6900
      %v7051 = vpop.f32.mrb[0].mxu0
      %v7052 = vadd.f32 0.0, %v7051
      %v7053 = vpop.f32.mrb[0].mxu0
      %v7054 = vpop.f32.mrb[0].mxu0
      %v7055 = vadd.f32 0.0, %v7054
      %v7056 = vpop.f32.mrb[0].mxu0
      %7057 = vmatprep.mubr.bf16.mxu0 0
      %7058 = vmatmul.mubr.bf16.gmra.mrb[0].mxu0 %v6903
      %v7059 = vpop.f32.mrb[0].mxu0
      %v7060 = vadd.f32 0.0, %v7059
      %v7061 = vpop.f32.mrb[0].mxu0
      %v7062 = vpop.f32.mrb[0].mxu0
      %v7063 = vadd.f32 0.0, %v7062
      %v7064 = vpop.f32.mrb[0].mxu0
      %7065 = vdwg.mxu0
      %v7066 = vadd.f32 %v6626, %v6940
      %v7067 = vadd.f32 %v6627, %v6943
      %v7068 = vadd.f32 %v6628, %v6948
      %v7069 = vadd.f32 %v6629, %v6951
      %v7070 = vadd.f32 %v6630, %v6956
      %v7071 = vadd.f32 %v6631, %v6959
      %v7072 = vadd.f32 %v6632, %v6964
      %v7073 = vadd.f32 %v6633, %v6967
      %v7074 = vadd.f32 %v6634, %v6972
      %v7075 = vadd.f32 %v6635, %v6975
      %v7076 = vadd.f32 %v6636, %v6980
      %v7077 = vadd.f32 %v6637, %v6983
      %v7078 = vadd.f32 %v6638, %v6988
      %v7079 = vadd.f32 %v6639, %v6991
      %v7080 = vadd.f32 %v6640, %v6996
      %v7081 = vadd.f32 %v6641, %v6999
      %v7082 = vadd.f32 %v6642, %v7004
      %v7083 = vadd.f32 %v6643, %v7007
      %v7084 = vadd.f32 %v6644, %v7012
      %v7085 = vadd.f32 %v6645, %v7015
      %v7086 = vadd.f32 %v6646, %v7020
      %v7087 = vadd.f32 %v6647, %v7023
      %v7088 = vadd.f32 %v6648, %v7028
      %v7089 = vadd.f32 %v6649, %v7031
      %v7090 = vadd.f32 %v6650, %v7036
      %v7091 = vadd.f32 %v6651, %v7039
      %v7092 = vadd.f32 %v6652, %v7044
      %v7093 = vadd.f32 %v6653, %v7047
      %v7094 = vadd.f32 %v6654, %v7052
      %v7095 = vadd.f32 %v6655, %v7055
      %v7096 = vadd.f32 %v6656, %v7060
      %v7097 = vadd.f32 %v6657, %v7063
      %v7098 = vld [vmem:[#allocation2 + $0x10] sm:$0x80]
      %v7099 = vld [vmem:[#allocation2 + $0x90] sm:$0xff]
      %v7100 = vsel %vm1143, %v7098, 0
      %v7101 = vsel %vm1144, %v6659, 0
      %v7102 = vsel %vm1145, %v6660, 0
      %v7103 = vsel %vm1146, %v6661, 0
      %v7104 = vsel %vm1147, %v6662, 0
      %v7105 = vsel %vm1148, %v6663, 0
      %v7106 = vsel %vm1149, %v6664, 0
      %v7107 = vsel %vm1150, %v6665, 0
      %v7108 = vsel %vm1151, %v6666, 0
      %v7109 = vsel %vm1152, %v6667, 0
      %v7110 = vsel %vm1153, %v6668, 0
      %v7111 = vsel %vm1154, %v6669, 0
      %v7112 = vsel %vm1155, %v6670, 0
      %v7113 = vsel %vm1156, %v6671, 0
      %v7114 = vsel %vm1157, %v6672, 0
      %v7115 = vsel %vm1158, %v6673, 0
      %v7116 = vsel %vm1159, %v7099, 0
      %s7117 = scalar_lea.vmem %s3, 192
      %v7118 = vld [vmem:[%s7117] sm:$0xf]
      %v7119 = vld [vmem:[%s7117 + $0x4] sm:$0xf]
      %v7120 = vld [vmem:[%s7117 + $0x8] sm:$0xf]
      %v7121 = vld [vmem:[%s7117 + $0xc] sm:$0xf]
      %v7122 = vld [vmem:[%s7117 + $0x10] sm:$0xf]
      %v7123 = vld [vmem:[%s7117 + $0x14] sm:$0xf]
      %v7124 = vld [vmem:[%s7117 + $0x18] sm:$0xf]
      %v7125 = vld [vmem:[%s7117 + $0x1c] sm:$0xf]
      %v7127 = vshrl.u32 %v7100, 16
      %v7129 = vrot.slane %v7127, 7
      %v7131 = vshrl.u32 %v7101, 16
      %v7133 = vrot.slane %v7131, 7
      %v7134 = vshll.u32 %v7101, 16
      %v7136 = vor.u32 %v7133, %v7134
      %v7137 = vsel %vm1427, %v7129, %v7136
      %v7139 = vshrl.u32 %v7102, 16
      %v7141 = vrot.slane %v7139, 7
      %v7142 = vshll.u32 %v7102, 16
      %v7144 = vor.u32 %v7141, %v7142
      %v7145 = vsel %vm1427, %v7133, %v7144
      %v7147 = vshrl.u32 %v7103, 16
      %v7149 = vrot.slane %v7147, 7
      %v7150 = vshll.u32 %v7103, 16
      %v7152 = vor.u32 %v7149, %v7150
      %v7153 = vsel %vm1427, %v7141, %v7152
      %v7155 = vshrl.u32 %v7104, 16
      %v7157 = vrot.slane %v7155, 7
      %v7158 = vshll.u32 %v7104, 16
      %v7160 = vor.u32 %v7157, %v7158
      %v7161 = vsel %vm1427, %v7149, %v7160
      %v7163 = vshrl.u32 %v7105, 16
      %v7165 = vrot.slane %v7163, 7
      %v7166 = vshll.u32 %v7105, 16
      %v7168 = vor.u32 %v7165, %v7166
      %v7169 = vsel %vm1427, %v7157, %v7168
      %v7171 = vshrl.u32 %v7106, 16
      %v7173 = vrot.slane %v7171, 7
      %v7174 = vshll.u32 %v7106, 16
      %v7176 = vor.u32 %v7173, %v7174
      %v7177 = vsel %vm1427, %v7165, %v7176
      %v7179 = vshrl.u32 %v7107, 16
      %v7181 = vrot.slane %v7179, 7
      %v7182 = vshll.u32 %v7107, 16
      %v7184 = vor.u32 %v7181, %v7182
      %v7185 = vsel %vm1427, %v7173, %v7184
      %v7187 = vshrl.u32 %v7108, 16
      %v7189 = vrot.slane %v7187, 7
      %v7190 = vshll.u32 %v7108, 16
      %v7192 = vor.u32 %v7189, %v7190
      %v7193 = vsel %vm1427, %v7181, %v7192
      %v7195 = vshrl.u32 %v7109, 16
      %v7197 = vrot.slane %v7195, 7
      %v7198 = vshll.u32 %v7109, 16
      %v7200 = vor.u32 %v7197, %v7198
      %v7201 = vsel %vm1427, %v7189, %v7200
      %v7203 = vshrl.u32 %v7110, 16
      %v7205 = vrot.slane %v7203, 7
      %v7206 = vshll.u32 %v7110, 16
      %v7208 = vor.u32 %v7205, %v7206
      %v7209 = vsel %vm1427, %v7197, %v7208
      %v7211 = vshrl.u32 %v7111, 16
      %v7213 = vrot.slane %v7211, 7
      %v7214 = vshll.u32 %v7111, 16
      %v7216 = vor.u32 %v7213, %v7214
      %v7217 = vsel %vm1427, %v7205, %v7216
      %v7219 = vshrl.u32 %v7112, 16
      %v7221 = vrot.slane %v7219, 7
      %v7222 = vshll.u32 %v7112, 16
      %v7224 = vor.u32 %v7221, %v7222
      %v7225 = vsel %vm1427, %v7213, %v7224
      %v7227 = vshrl.u32 %v7113, 16
      %v7229 = vrot.slane %v7227, 7
      %v7230 = vshll.u32 %v7113, 16
      %v7232 = vor.u32 %v7229, %v7230
      %v7233 = vsel %vm1427, %v7221, %v7232
      %v7235 = vshrl.u32 %v7114, 16
      %v7237 = vrot.slane %v7235, 7
      %v7238 = vshll.u32 %v7114, 16
      %v7240 = vor.u32 %v7237, %v7238
      %v7241 = vsel %vm1427, %v7229, %v7240
      %v7243 = vshrl.u32 %v7115, 16
      %v7245 = vrot.slane %v7243, 7
      %v7246 = vshll.u32 %v7115, 16
      %v7248 = vor.u32 %v7245, %v7246
      %v7249 = vsel %vm1427, %v7237, %v7248
      %v7251 = vshrl.u32 %v7116, 16
      %v7253 = vrot.slane %v7251, 7
      %v7254 = vshll.u32 %v7116, 16
      %v7256 = vor.u32 %v7253, %v7254
      %v7257 = vsel %vm1427, %v7245, %v7256
      %v7266 = vunpack.c.l.b16 %v7118
      %v7267 = vunpack.c.l.b16 %v7119
      %v7268 = vunpack.c.l.b16 %v7120
      %v7269 = vunpack.c.l.b16 %v7121
      %v7270 = vunpack.c.l.b16 %v7122
      %v7271 = vunpack.c.l.b16 %v7123
      %v7272 = vunpack.c.l.b16 %v7124
      %v7273 = vunpack.c.l.b16 %v7125
      %v7274 = vpack.c.b16 %v7267, %v7266
      %v7275 = vpack.c.b16 %v7269, %v7268
      %v7276 = vpack.c.b16 %v7271, %v7270
      %v7277 = vpack.c.b16 %v7273, %v7272
      %v7283 = vsel %vm336, %v7137, 0
      %v7286 = vsel %vm336, %v7145, 0
      %v7289 = vsel %vm336, %v7153, 0
      %v7292 = vsel %vm336, %v7161, 0
      %v7295 = vsel %vm336, %v7169, 0
      %v7298 = vsel %vm336, %v7177, 0
      %v7301 = vsel %vm336, %v7185, 0
      %v7304 = vsel %vm336, %v7193, 0
      %v7307 = vsel %vm336, %v7201, 0
      %v7310 = vsel %vm336, %v7209, 0
      %v7313 = vsel %vm336, %v7217, 0
      %v7316 = vsel %vm336, %v7225, 0
      %v7319 = vsel %vm336, %v7233, 0
      %v7322 = vsel %vm336, %v7241, 0
      %v7325 = vsel %vm336, %v7249, 0
      %v7328 = vsel %vm336, %v7257, 0
      %7330 = vmatprep.subr.bf16.mxu0 0
      %7331 = vmatpush1.bf16.msra.mxu0 %v7274
      %7332 = vmatprep.subr.bf16.mxu0 0
      %7333 = vmatpush1.bf16.msra.mxu0 %v7275
      %7334 = vmatprep.subr.bf16.mxu0 0
      %7335 = vmatpush1.bf16.msra.mxu0 %v7276
      %7336 = vmatprep.subr.bf16.mxu0 0
      %7337 = vmatpush1.bf16.msra.mxu0 %v7277
      %7338 = vmatprep.subr.bf16.mxu0 0
      %7339 = vmatpush1.bf16.msra.mxu0 0
      %7340 = vmatprep.subr.bf16.mxu0 0
      %7341 = vmatpush1.bf16.msra.mxu0 0
      %7342 = vmatprep.subr.bf16.mxu0 0
      %7343 = vmatpush1.bf16.msra.mxu0 0
      %7344 = vmatprep.subr.bf16.mxu0 0
      %7345 = vmatpush1.bf16.msra.mxu0 0
      %7346 = vmatprep.subr.bf16.mxu0 0
      %7347 = vmatpush1.bf16.msra.mxu0 0
      %7348 = vmatprep.subr.bf16.mxu0 0
      %7349 = vmatpush1.bf16.msra.mxu0 0
      %7350 = vmatprep.subr.bf16.mxu0 0
      %7351 = vmatpush1.bf16.msra.mxu0 0
      %7352 = vmatprep.subr.bf16.mxu0 0
      %7353 = vmatpush1.bf16.msra.mxu0 0
      %7354 = vmatprep.subr.bf16.mxu0 0
      %7355 = vmatpush1.bf16.msra.mxu0 0
      %7356 = vmatprep.subr.bf16.mxu0 0
      %7357 = vmatpush1.bf16.msra.mxu0 0
      %7358 = vmatprep.subr.bf16.mxu0 0
      %7359 = vmatpush1.bf16.msra.mxu0 0
      %7360 = vmatprep.subr.bf16.mxu0 0
      %7361 = vmatpush1.bf16.msra.mxu0 0
      %7362 = vmatprep.mubr.bf16.mxu0 0
      %7363 = vmatmul.mubr.bf16.gmra.mrb[0].mxu0 %v7283
      %v7364 = vpop.f32.mrb[0].mxu0
      %v7365 = vadd.f32 0.0, %v7364
      %v7366 = vpop.f32.mrb[0].mxu0
      %v7367 = vpop.f32.mrb[0].mxu0
      %v7368 = vadd.f32 0.0, %v7367
      %v7369 = vpop.f32.mrb[0].mxu0
      %7370 = vmatprep.mubr.bf16.mxu0 0
      %7371 = vmatmul.mubr.bf16.gmra.mrb[0].mxu0 %v7286
      %v7372 = vpop.f32.mrb[0].mxu0
      %v7373 = vadd.f32 0.0, %v7372
      %v7374 = vpop.f32.mrb[0].mxu0
      %v7375 = vpop.f32.mrb[0].mxu0
      %v7376 = vadd.f32 0.0, %v7375
      %v7377 = vpop.f32.mrb[0].mxu0
      %7378 = vmatprep.mubr.bf16.mxu0 0
      %7379 = vmatmul.mubr.bf16.gmra.mrb[0].mxu0 %v7289
      %v7380 = vpop.f32.mrb[0].mxu0
      %v7381 = vadd.f32 0.0, %v7380
      %v7382 = vpop.f32.mrb[0].mxu0
      %v7383 = vpop.f32.mrb[0].mxu0
      %v7384 = vadd.f32 0.0, %v7383
      %v7385 = vpop.f32.mrb[0].mxu0
      %7386 = vmatprep.mubr.bf16.mxu0 0
      %7387 = vmatmul.mubr.bf16.gmra.mrb[0].mxu0 %v7292
      %v7388 = vpop.f32.mrb[0].mxu0
      %v7389 = vadd.f32 0.0, %v7388
      %v7390 = vpop.f32.mrb[0].mxu0
      %v7391 = vpop.f32.mrb[0].mxu0
      %v7392 = vadd.f32 0.0, %v7391
      %v7393 = vpop.f32.mrb[0].mxu0
      %7394 = vmatprep.mubr.bf16.mxu0 0
      %7395 = vmatmul.mubr.bf16.gmra.mrb[0].mxu0 %v7295
      %v7396 = vpop.f32.mrb[0].mxu0
      %v7397 = vadd.f32 0.0, %v7396
      %v7398 = vpop.f32.mrb[0].mxu0
      %v7399 = vpop.f32.mrb[0].mxu0
      %v7400 = vadd.f32 0.0, %v7399
      %v7401 = vpop.f32.mrb[0].mxu0
      %7402 = vmatprep.mubr.bf16.mxu0 0
      %7403 = vmatmul.mubr.bf16.gmra.mrb[0].mxu0 %v7298
      %v7404 = vpop.f32.mrb[0].mxu0
      %v7405 = vadd.f32 0.0, %v7404
      %v7406 = vpop.f32.mrb[0].mxu0
      %v7407 = vpop.f32.mrb[0].mxu0
      %v7408 = vadd.f32 0.0, %v7407
      %v7409 = vpop.f32.mrb[0].mxu0
      %7410 = vmatprep.mubr.bf16.mxu0 0
      %7411 = vmatmul.mubr.bf16.gmra.mrb[0].mxu0 %v7301
      %v7412 = vpop.f32.mrb[0].mxu0
      %v7413 = vadd.f32 0.0, %v7412
      %v7414 = vpop.f32.mrb[0].mxu0
      %v7415 = vpop.f32.mrb[0].mxu0
      %v7416 = vadd.f32 0.0, %v7415
      %v7417 = vpop.f32.mrb[0].mxu0
      %7418 = vmatprep.mubr.bf16.mxu0 0
      %7419 = vmatmul.mubr.bf16.gmra.mrb[0].mxu0 %v7304
      %v7420 = vpop.f32.mrb[0].mxu0
      %v7421 = vadd.f32 0.0, %v7420
      %v7422 = vpop.f32.mrb[0].mxu0
      %v7423 = vpop.f32.mrb[0].mxu0
      %v7424 = vadd.f32 0.0, %v7423
      %v7425 = vpop.f32.mrb[0].mxu0
      %7426 = vmatprep.mubr.bf16.mxu0 0
      %7427 = vmatmul.mubr.bf16.gmra.mrb[0].mxu0 %v7307
      %v7428 = vpop.f32.mrb[0].mxu0
      %v7429 = vadd.f32 0.0, %v7428
      %v7430 = vpop.f32.mrb[0].mxu0
      %v7431 = vpop.f32.mrb[0].mxu0
      %v7432 = vadd.f32 0.0, %v7431
      %v7433 = vpop.f32.mrb[0].mxu0
      %7434 = vmatprep.mubr.bf16.mxu0 0
      %7435 = vmatmul.mubr.bf16.gmra.mrb[0].mxu0 %v7310
      %v7436 = vpop.f32.mrb[0].mxu0
      %v7437 = vadd.f32 0.0, %v7436
      %v7438 = vpop.f32.mrb[0].mxu0
      %v7439 = vpop.f32.mrb[0].mxu0
      %v7440 = vadd.f32 0.0, %v7439
      %v7441 = vpop.f32.mrb[0].mxu0
      %7442 = vmatprep.mubr.bf16.mxu0 0
      %7443 = vmatmul.mubr.bf16.gmra.mrb[0].mxu0 %v7313
      %v7444 = vpop.f32.mrb[0].mxu0
      %v7445 = vadd.f32 0.0, %v7444
      %v7446 = vpop.f32.mrb[0].mxu0
      %v7447 = vpop.f32.mrb[0].mxu0
      %v7448 = vadd.f32 0.0, %v7447
      %v7449 = vpop.f32.mrb[0].mxu0
      %7450 = vmatprep.mubr.bf16.mxu0 0
      %7451 = vmatmul.mubr.bf16.gmra.mrb[0].mxu0 %v7316
      %v7452 = vpop.f32.mrb[0].mxu0
      %v7453 = vadd.f32 0.0, %v7452
      %v7454 = vpop.f32.mrb[0].mxu0
      %v7455 = vpop.f32.mrb[0].mxu0
      %v7456 = vadd.f32 0.0, %v7455
      %v7457 = vpop.f32.mrb[0].mxu0
      %7458 = vmatprep.mubr.bf16.mxu0 0
      %7459 = vmatmul.mubr.bf16.gmra.mrb[0].mxu0 %v7319
      %v7460 = vpop.f32.mrb[0].mxu0
      %v7461 = vadd.f32 0.0, %v7460
      %v7462 = vpop.f32.mrb[0].mxu0
      %v7463 = vpop.f32.mrb[0].mxu0
      %v7464 = vadd.f32 0.0, %v7463
      %v7465 = vpop.f32.mrb[0].mxu0
      %7466 = vmatprep.mubr.bf16.mxu0 0
      %7467 = vmatmul.mubr.bf16.gmra.mrb[0].mxu0 %v7322
      %v7468 = vpop.f32.mrb[0].mxu0
      %v7469 = vadd.f32 0.0, %v7468
      %v7470 = vpop.f32.mrb[0].mxu0
      %v7471 = vpop.f32.mrb[0].mxu0
      %v7472 = vadd.f32 0.0, %v7471
      %v7473 = vpop.f32.mrb[0].mxu0
      %7474 = vmatprep.mubr.bf16.mxu0 0
      %7475 = vmatmul.mubr.bf16.gmra.mrb[0].mxu0 %v7325
      %v7476 = vpop.f32.mrb[0].mxu0
      %v7477 = vadd.f32 0.0, %v7476
      %v7478 = vpop.f32.mrb[0].mxu0
      %v7479 = vpop.f32.mrb[0].mxu0
      %v7480 = vadd.f32 0.0, %v7479
      %v7481 = vpop.f32.mrb[0].mxu0
      %7482 = vmatprep.mubr.bf16.mxu0 0
      %7483 = vmatmul.mubr.bf16.gmra.mrb[0].mxu0 %v7328
      %v7484 = vpop.f32.mrb[0].mxu0
      %v7485 = vadd.f32 0.0, %v7484
      %v7486 = vpop.f32.mrb[0].mxu0
      %v7487 = vpop.f32.mrb[0].mxu0
      %v7488 = vadd.f32 0.0, %v7487
      %v7489 = vpop.f32.mrb[0].mxu0
      %7490 = vdwg.mxu0
      %v7491 = vadd.f32 %v7066, %v7365
      %v7492 = vadd.f32 %v7067, %v7368
      %v7493 = vadd.f32 %v7068, %v7373
      %v7494 = vadd.f32 %v7069, %v7376
      %v7495 = vadd.f32 %v7070, %v7381
      %v7496 = vadd.f32 %v7071, %v7384
      %v7497 = vadd.f32 %v7072, %v7389
      %v7498 = vadd.f32 %v7073, %v7392
      %v7499 = vadd.f32 %v7074, %v7397
      %v7500 = vadd.f32 %v7075, %v7400
      %v7501 = vadd.f32 %v7076, %v7405
      %v7502 = vadd.f32 %v7077, %v7408
      %v7503 = vadd.f32 %v7078, %v7413
      %v7504 = vadd.f32 %v7079, %v7416
      %v7505 = vadd.f32 %v7080, %v7421
      %v7506 = vadd.f32 %v7081, %v7424
      %v7507 = vadd.f32 %v7082, %v7429
      %v7508 = vadd.f32 %v7083, %v7432
      %v7509 = vadd.f32 %v7084, %v7437
      %v7510 = vadd.f32 %v7085, %v7440
      %v7511 = vadd.f32 %v7086, %v7445
      %v7512 = vadd.f32 %v7087, %v7448
      %v7513 = vadd.f32 %v7088, %v7453
      %v7514 = vadd.f32 %v7089, %v7456
      %v7515 = vadd.f32 %v7090, %v7461
      %v7516 = vadd.f32 %v7091, %v7464
      %v7517 = vadd.f32 %v7092, %v7469
      %v7518 = vadd.f32 %v7093, %v7472
      %v7519 = vadd.f32 %v7094, %v7477
      %v7520 = vadd.f32 %v7095, %v7480
      %v7521 = vadd.f32 %v7096, %v7485
      %v7522 = vadd.f32 %v7097, %v7488
      %s7523 = scalar_lea.vmem %s3, 224
      %v7524 = vld [vmem:[%s7523] sm:$0xf]
      %v7525 = vld [vmem:[%s7523 + $0x4] sm:$0xf]
      %v7526 = vld [vmem:[%s7523 + $0x8] sm:$0xf]
      %v7527 = vld [vmem:[%s7523 + $0xc] sm:$0xf]
      %v7528 = vld [vmem:[%s7523 + $0x10] sm:$0xf]
      %v7529 = vld [vmem:[%s7523 + $0x14] sm:$0xf]
      %v7530 = vld [vmem:[%s7523 + $0x18] sm:$0xf]
      %v7531 = vld [vmem:[%s7523 + $0x1c] sm:$0xf]
      %v7540 = vunpack.c.l.b16 %v7524
      %v7541 = vunpack.c.l.b16 %v7525
      %v7542 = vunpack.c.l.b16 %v7526
      %v7543 = vunpack.c.l.b16 %v7527
      %v7544 = vunpack.c.l.b16 %v7528
      %v7545 = vunpack.c.l.b16 %v7529
      %v7546 = vunpack.c.l.b16 %v7530
      %v7547 = vunpack.c.l.b16 %v7531
      %v7548 = vpack.c.b16 %v7541, %v7540
      %v7549 = vpack.c.b16 %v7543, %v7542
      %v7550 = vpack.c.b16 %v7545, %v7544
      %v7551 = vpack.c.b16 %v7547, %v7546
      %v7557 = vsel %vm336, %v6659, 0
      %v7560 = vsel %vm336, %v6660, 0
      %v7563 = vsel %vm336, %v6661, 0
      %v7566 = vsel %vm336, %v6662, 0
      %v7569 = vsel %vm336, %v6663, 0
      %v7572 = vsel %vm336, %v6664, 0
      %v7575 = vsel %vm336, %v6665, 0
      %v7578 = vsel %vm336, %v6666, 0
      %v7581 = vsel %vm336, %v6667, 0
      %v7584 = vsel %vm336, %v6668, 0
      %v7587 = vsel %vm336, %v6669, 0
      %v7590 = vsel %vm336, %v6670, 0
      %v7593 = vsel %vm336, %v6671, 0
      %v7596 = vsel %vm336, %v6672, 0
      %v7599 = vsel %vm336, %v6673, 0
      %v7602 = vsel %vm336, %v7099, 0
      %7604 = vmatprep.subr.bf16.mxu0 0
      %7605 = vmatpush1.bf16.msra.mxu0 %v7548
      %7606 = vmatprep.subr.bf16.mxu0 0
      %7607 = vmatpush1.bf16.msra.mxu0 %v7549
      %7608 = vmatprep.subr.bf16.mxu0 0
      %7609 = vmatpush1.bf16.msra.mxu0 %v7550
      %7610 = vmatprep.subr.bf16.mxu0 0
      %7611 = vmatpush1.bf16.msra.mxu0 %v7551
      %7612 = vmatprep.subr.bf16.mxu0 0
      %7613 = vmatpush1.bf16.msra.mxu0 0
      %7614 = vmatprep.subr.bf16.mxu0 0
      %7615 = vmatpush1.bf16.msra.mxu0 0
      %7616 = vmatprep.subr.bf16.mxu0 0
      %7617 = vmatpush1.bf16.msra.mxu0 0
      %7618 = vmatprep.subr.bf16.mxu0 0
      %7619 = vmatpush1.bf16.msra.mxu0 0
      %7620 = vmatprep.subr.bf16.mxu0 0
      %7621 = vmatpush1.bf16.msra.mxu0 0
      %7622 = vmatprep.subr.bf16.mxu0 0
      %7623 = vmatpush1.bf16.msra.mxu0 0
      %7624 = vmatprep.subr.bf16.mxu0 0
      %7625 = vmatpush1.bf16.msra.mxu0 0
      %7626 = vmatprep.subr.bf16.mxu0 0
      %7627 = vmatpush1.bf16.msra.mxu0 0
      %7628 = vmatprep.subr.bf16.mxu0 0
      %7629 = vmatpush1.bf16.msra.mxu0 0
      %7630 = vmatprep.subr.bf16.mxu0 0
      %7631 = vmatpush1.bf16.msra.mxu0 0
      %7632 = vmatprep.subr.bf16.mxu0 0
      %7633 = vmatpush1.bf16.msra.mxu0 0
      %7634 = vmatprep.subr.bf16.mxu0 0
      %7635 = vmatpush1.bf16.msra.mxu0 0
      %7636 = vmatprep.mubr.bf16.mxu0 0
      %7637 = vmatmul.mubr.bf16.gmra.mrb[0].mxu0 %v7557
      %v7638 = vpop.f32.mrb[0].mxu0
      %v7639 = vadd.f32 0.0, %v7638
      %v7640 = vpop.f32.mrb[0].mxu0
      %v7641 = vpop.f32.mrb[0].mxu0
      %v7642 = vadd.f32 0.0, %v7641
      %v7643 = vpop.f32.mrb[0].mxu0
      %7644 = vmatprep.mubr.bf16.mxu0 0
      %7645 = vmatmul.mubr.bf16.gmra.mrb[0].mxu0 %v7560
      %v7646 = vpop.f32.mrb[0].mxu0
      %v7647 = vadd.f32 0.0, %v7646
      %v7648 = vpop.f32.mrb[0].mxu0
      %v7649 = vpop.f32.mrb[0].mxu0
      %v7650 = vadd.f32 0.0, %v7649
      %v7651 = vpop.f32.mrb[0].mxu0
      %7652 = vmatprep.mubr.bf16.mxu0 0
      %7653 = vmatmul.mubr.bf16.gmra.mrb[0].mxu0 %v7563
      %v7654 = vpop.f32.mrb[0].mxu0
      %v7655 = vadd.f32 0.0, %v7654
      %v7656 = vpop.f32.mrb[0].mxu0
      %v7657 = vpop.f32.mrb[0].mxu0
      %v7658 = vadd.f32 0.0, %v7657
      %v7659 = vpop.f32.mrb[0].mxu0
      %7660 = vmatprep.mubr.bf16.mxu0 0
      %7661 = vmatmul.mubr.bf16.gmra.mrb[0].mxu0 %v7566
      %v7662 = vpop.f32.mrb[0].mxu0
      %v7663 = vadd.f32 0.0, %v7662
      %v7664 = vpop.f32.mrb[0].mxu0
      %v7665 = vpop.f32.mrb[0].mxu0
      %v7666 = vadd.f32 0.0, %v7665
      %v7667 = vpop.f32.mrb[0].mxu0
      %7668 = vmatprep.mubr.bf16.mxu0 0
      %7669 = vmatmul.mubr.bf16.gmra.mrb[0].mxu0 %v7569
      %v7670 = vpop.f32.mrb[0].mxu0
      %v7671 = vadd.f32 0.0, %v7670
      %v7672 = vpop.f32.mrb[0].mxu0
      %v7673 = vpop.f32.mrb[0].mxu0
      %v7674 = vadd.f32 0.0, %v7673
      %v7675 = vpop.f32.mrb[0].mxu0
      %7676 = vmatprep.mubr.bf16.mxu0 0
      %7677 = vmatmul.mubr.bf16.gmra.mrb[0].mxu0 %v7572
      %v7678 = vpop.f32.mrb[0].mxu0
      %v7679 = vadd.f32 0.0, %v7678
      %v7680 = vpop.f32.mrb[0].mxu0
      %v7681 = vpop.f32.mrb[0].mxu0
      %v7682 = vadd.f32 0.0, %v7681
      %v7683 = vpop.f32.mrb[0].mxu0
      %7684 = vmatprep.mubr.bf16.mxu0 0
      %7685 = vmatmul.mubr.bf16.gmra.mrb[0].mxu0 %v7575
      %v7686 = vpop.f32.mrb[0].mxu0
      %v7687 = vadd.f32 0.0, %v7686
      %v7688 = vpop.f32.mrb[0].mxu0
      %v7689 = vpop.f32.mrb[0].mxu0
      %v7690 = vadd.f32 0.0, %v7689
      %v7691 = vpop.f32.mrb[0].mxu0
      %7692 = vmatprep.mubr.bf16.mxu0 0
      %7693 = vmatmul.mubr.bf16.gmra.mrb[0].mxu0 %v7578
      %v7694 = vpop.f32.mrb[0].mxu0
      %v7695 = vadd.f32 0.0, %v7694
      %v7696 = vpop.f32.mrb[0].mxu0
      %v7697 = vpop.f32.mrb[0].mxu0
      %v7698 = vadd.f32 0.0, %v7697
      %v7699 = vpop.f32.mrb[0].mxu0
      %7700 = vmatprep.mubr.bf16.mxu0 0
      %7701 = vmatmul.mubr.bf16.gmra.mrb[0].mxu0 %v7581
      %v7702 = vpop.f32.mrb[0].mxu0
      %v7703 = vadd.f32 0.0, %v7702
      %v7704 = vpop.f32.mrb[0].mxu0
      %v7705 = vpop.f32.mrb[0].mxu0
      %v7706 = vadd.f32 0.0, %v7705
      %v7707 = vpop.f32.mrb[0].mxu0
      %7708 = vmatprep.mubr.bf16.mxu0 0
      %7709 = vmatmul.mubr.bf16.gmra.mrb[0].mxu0 %v7584
      %v7710 = vpop.f32.mrb[0].mxu0
      %v7711 = vadd.f32 0.0, %v7710
      %v7712 = vpop.f32.mrb[0].mxu0
      %v7713 = vpop.f32.mrb[0].mxu0
      %v7714 = vadd.f32 0.0, %v7713
      %v7715 = vpop.f32.mrb[0].mxu0
      %7716 = vmatprep.mubr.bf16.mxu0 0
      %7717 = vmatmul.mubr.bf16.gmra.mrb[0].mxu0 %v7587
      %v7718 = vpop.f32.mrb[0].mxu0
      %v7719 = vadd.f32 0.0, %v7718
      %v7720 = vpop.f32.mrb[0].mxu0
      %v7721 = vpop.f32.mrb[0].mxu0
      %v7722 = vadd.f32 0.0, %v7721
      %v7723 = vpop.f32.mrb[0].mxu0
      %7724 = vmatprep.mubr.bf16.mxu0 0
      %7725 = vmatmul.mubr.bf16.gmra.mrb[0].mxu0 %v7590
      %v7726 = vpop.f32.mrb[0].mxu0
      %v7727 = vadd.f32 0.0, %v7726
      %v7728 = vpop.f32.mrb[0].mxu0
      %v7729 = vpop.f32.mrb[0].mxu0
      %v7730 = vadd.f32 0.0, %v7729
      %v7731 = vpop.f32.mrb[0].mxu0
      %7732 = vmatprep.mubr.bf16.mxu0 0
      %7733 = vmatmul.mubr.bf16.gmra.mrb[0].mxu0 %v7593
      %v7734 = vpop.f32.mrb[0].mxu0
      %v7735 = vadd.f32 0.0, %v7734
      %v7736 = vpop.f32.mrb[0].mxu0
      %v7737 = vpop.f32.mrb[0].mxu0
      %v7738 = vadd.f32 0.0, %v7737
      %v7739 = vpop.f32.mrb[0].mxu0
      %7740 = vmatprep.mubr.bf16.mxu0 0
      %7741 = vmatmul.mubr.bf16.gmra.mrb[0].mxu0 %v7596
      %v7742 = vpop.f32.mrb[0].mxu0
      %v7743 = vadd.f32 0.0, %v7742
      %v7744 = vpop.f32.mrb[0].mxu0
      %v7745 = vpop.f32.mrb[0].mxu0
      %v7746 = vadd.f32 0.0, %v7745
      %v7747 = vpop.f32.mrb[0].mxu0
      %7748 = vmatprep.mubr.bf16.mxu0 0
      %7749 = vmatmul.mubr.bf16.gmra.mrb[0].mxu0 %v7599
      %v7750 = vpop.f32.mrb[0].mxu0
      %v7751 = vadd.f32 0.0, %v7750
      %v7752 = vpop.f32.mrb[0].mxu0
      %v7753 = vpop.f32.mrb[0].mxu0
      %v7754 = vadd.f32 0.0, %v7753
      %v7755 = vpop.f32.mrb[0].mxu0
      %7756 = vmatprep.mubr.bf16.mxu0 0
      %7757 = vmatmul.mubr.bf16.gmra.mrb[0].mxu0 %v7602
      %v7758 = vpop.f32.mrb[0].mxu0
      %v7759 = vadd.f32 0.0, %v7758
      %v7760 = vpop.f32.mrb[0].mxu0
      %v7761 = vpop.f32.mrb[0].mxu0
      %v7762 = vadd.f32 0.0, %v7761
      %v7763 = vpop.f32.mrb[0].mxu0
      %7764 = vdwg.mxu0
      %v7765 = vadd.f32 %v7491, %v7639
      %v7766 = vadd.f32 %v7492, %v7642
      %v7767 = vadd.f32 %v7493, %v7647
      %v7768 = vadd.f32 %v7494, %v7650
      %v7769 = vadd.f32 %v7495, %v7655
      %v7770 = vadd.f32 %v7496, %v7658
      %v7771 = vadd.f32 %v7497, %v7663
      %v7772 = vadd.f32 %v7498, %v7666
      %v7773 = vadd.f32 %v7499, %v7671
      %v7774 = vadd.f32 %v7500, %v7674
      %v7775 = vadd.f32 %v7501, %v7679
      %v7776 = vadd.f32 %v7502, %v7682
      %v7777 = vadd.f32 %v7503, %v7687
      %v7778 = vadd.f32 %v7504, %v7690
      %v7779 = vadd.f32 %v7505, %v7695
      %v7780 = vadd.f32 %v7506, %v7698
      %v7781 = vadd.f32 %v7507, %v7703
      %v7782 = vadd.f32 %v7508, %v7706
      %v7783 = vadd.f32 %v7509, %v7711
      %v7784 = vadd.f32 %v7510, %v7714
      %v7785 = vadd.f32 %v7511, %v7719
      %v7786 = vadd.f32 %v7512, %v7722
      %v7787 = vadd.f32 %v7513, %v7727
      %v7788 = vadd.f32 %v7514, %v7730
      %v7789 = vadd.f32 %v7515, %v7735
      %v7790 = vadd.f32 %v7516, %v7738
      %v7791 = vadd.f32 %v7517, %v7743
      %v7792 = vadd.f32 %v7518, %v7746
      %v7793 = vadd.f32 %v7519, %v7751
      %v7794 = vadd.f32 %v7520, %v7754
      %v7795 = vadd.f32 %v7521, %v7759
      %v7796 = vadd.f32 %v7522, %v7762
      %v7797 = vld [vmem:[#allocation2 + $0x18] sm:$0xff]
      %v7798 = vld [vmem:[#allocation2 + $0x20] sm:$0xff]
      %v7799 = vld [vmem:[#allocation2 + $0x28] sm:$0xff]
      %v7800 = vld [vmem:[#allocation2 + $0x30] sm:$0xff]
      %v7801 = vld [vmem:[#allocation2 + $0x38] sm:$0xff]
      %v7802 = vld [vmem:[#allocation2 + $0x40] sm:$0xff]
      %v7803 = vld [vmem:[#allocation2 + $0x48] sm:$0xff]
      %v7804 = vld [vmem:[#allocation2 + $0x50] sm:$0xff]
      %v7805 = vld [vmem:[#allocation2 + $0x58] sm:$0xff]
      %v7806 = vld [vmem:[#allocation2 + $0x60] sm:$0xff]
      %v7807 = vld [vmem:[#allocation2 + $0x68] sm:$0xff]
      %v7808 = vld [vmem:[#allocation2 + $0x70] sm:$0xff]
      %v7809 = vld [vmem:[#allocation2 + $0x78] sm:$0xff]
      %v7810 = vld [vmem:[#allocation2 + $0x80] sm:$0xff]
      %v7811 = vld [vmem:[#allocation2 + $0x88] sm:$0xff]
      %v7812 = vld [vmem:[#allocation2 + $0x90] sm:$0xff]
      %v7813 = vld [vmem:[#allocation2 + $0x98] sm:$0x1]
      %v7814 = vsel %vm2049, %v7797, 0
      %v7815 = vsel %vm2050, %v7798, 0
      %v7816 = vsel %vm2051, %v7799, 0
      %v7817 = vsel %vm2052, %v7800, 0
      %v7818 = vsel %vm2053, %v7801, 0
      %v7819 = vsel %vm2054, %v7802, 0
      %v7820 = vsel %vm2055, %v7803, 0
      %v7821 = vsel %vm2056, %v7804, 0
      %v7822 = vsel %vm2057, %v7805, 0
      %v7823 = vsel %vm2058, %v7806, 0
      %v7824 = vsel %vm2059, %v7807, 0
      %v7825 = vsel %vm2060, %v7808, 0
      %v7826 = vsel %vm2061, %v7809, 0
      %v7827 = vsel %vm2062, %v7810, 0
      %v7828 = vsel %vm2063, %v7811, 0
      %v7829 = vsel %vm2064, %v7812, 0
      %v7830 = vsel %vm2065, %v7813, 0
      %s7831 = scalar_lea.vmem %s3, 256
      %v7832 = vld [vmem:[%s7831] sm:$0xf]
      %v7833 = vld [vmem:[%s7831 + $0x4] sm:$0xf]
      %v7834 = vld [vmem:[%s7831 + $0x8] sm:$0xf]
      %v7835 = vld [vmem:[%s7831 + $0xc] sm:$0xf]
      %v7836 = vld [vmem:[%s7831 + $0x10] sm:$0xf]
      %v7837 = vld [vmem:[%s7831 + $0x14] sm:$0xf]
      %v7838 = vld [vmem:[%s7831 + $0x18] sm:$0xf]
      %v7839 = vld [vmem:[%s7831 + $0x1c] sm:$0xf]
      %v7841 = vshrl.u32 %v7814, 16
      %v7843 = vshll.u32 %v7814, 16
      %v7845 = vrot.slane %v7843, 1
      %v7846 = vor.u32 %v7841, %v7845
      %v7848 = vshll.u32 %v7815, 16
      %v7850 = vrot.slane %v7848, 1
      %v7851 = vsel %vm1015, %v7846, %v7850
      %v7852 = vshrl.u32 %v7815, 16
      %v7854 = vor.u32 %v7852, %v7850
      %v7856 = vshll.u32 %v7816, 16
      %v7858 = vrot.slane %v7856, 1
      %v7859 = vsel %vm1015, %v7854, %v7858
      %v7860 = vshrl.u32 %v7816, 16
      %v7862 = vor.u32 %v7860, %v7858
      %v7864 = vshll.u32 %v7817, 16
      %v7866 = vrot.slane %v7864, 1
      %v7867 = vsel %vm1015, %v7862, %v7866
      %v7868 = vshrl.u32 %v7817, 16
      %v7870 = vor.u32 %v7868, %v7866
      %v7872 = vshll.u32 %v7818, 16
      %v7874 = vrot.slane %v7872, 1
      %v7875 = vsel %vm1015, %v7870, %v7874
      %v7876 = vshrl.u32 %v7818, 16
      %v7878 = vor.u32 %v7876, %v7874
      %v7880 = vshll.u32 %v7819, 16
      %v7882 = vrot.slane %v7880, 1
      %v7883 = vsel %vm1015, %v7878, %v7882
      %v7884 = vshrl.u32 %v7819, 16
      %v7886 = vor.u32 %v7884, %v7882
      %v7888 = vshll.u32 %v7820, 16
      %v7890 = vrot.slane %v7888, 1
      %v7891 = vsel %vm1015, %v7886, %v7890
      %v7892 = vshrl.u32 %v7820, 16
      %v7894 = vor.u32 %v7892, %v7890
      %v7896 = vshll.u32 %v7821, 16
      %v7898 = vrot.slane %v7896, 1
      %v7899 = vsel %vm1015, %v7894, %v7898
      %v7900 = vshrl.u32 %v7821, 16
      %v7902 = vor.u32 %v7900, %v7898
      %v7904 = vshll.u32 %v7822, 16
      %v7906 = vrot.slane %v7904, 1
      %v7907 = vsel %vm1015, %v7902, %v7906
      %v7908 = vshrl.u32 %v7822, 16
      %v7910 = vor.u32 %v7908, %v7906
      %v7912 = vshll.u32 %v7823, 16
      %v7914 = vrot.slane %v7912, 1
      %v7915 = vsel %vm1015, %v7910, %v7914
      %v7916 = vshrl.u32 %v7823, 16
      %v7918 = vor.u32 %v7916, %v7914
      %v7920 = vshll.u32 %v7824, 16
      %v7922 = vrot.slane %v7920, 1
      %v7923 = vsel %vm1015, %v7918, %v7922
      %v7924 = vshrl.u32 %v7824, 16
      %v7926 = vor.u32 %v7924, %v7922
      %v7928 = vshll.u32 %v7825, 16
      %v7930 = vrot.slane %v7928, 1
      %v7931 = vsel %vm1015, %v7926, %v7930
      %v7932 = vshrl.u32 %v7825, 16
      %v7934 = vor.u32 %v7932, %v7930
      %v7936 = vshll.u32 %v7826, 16
      %v7938 = vrot.slane %v7936, 1
      %v7939 = vsel %vm1015, %v7934, %v7938
      %v7940 = vshrl.u32 %v7826, 16
      %v7942 = vor.u32 %v7940, %v7938
      %v7944 = vshll.u32 %v7827, 16
      %v7946 = vrot.slane %v7944, 1
      %v7947 = vsel %vm1015, %v7942, %v7946
      %v7948 = vshrl.u32 %v7827, 16
      %v7950 = vor.u32 %v7948, %v7946
      %v7952 = vshll.u32 %v7828, 16
      %v7954 = vrot.slane %v7952, 1
      %v7955 = vsel %vm1015, %v7950, %v7954
      %v7956 = vshrl.u32 %v7828, 16
      %v7958 = vor.u32 %v7956, %v7954
      %v7960 = vshll.u32 %v7829, 16
      %v7962 = vrot.slane %v7960, 1
      %v7963 = vsel %vm1015, %v7958, %v7962
      %v7964 = vshrl.u32 %v7829, 16
      %v7966 = vor.u32 %v7964, %v7962
      %v7968 = vshll.u32 %v7830, 16
      %v7970 = vrot.slane %v7968, 1
      %v7971 = vsel %vm1015, %v7966, %v7970
      %v7980 = vunpack.c.l.b16 %v7832
      %v7981 = vunpack.c.l.b16 %v7833
      %v7982 = vunpack.c.l.b16 %v7834
      %v7983 = vunpack.c.l.b16 %v7835
      %v7984 = vunpack.c.l.b16 %v7836
      %v7985 = vunpack.c.l.b16 %v7837
      %v7986 = vunpack.c.l.b16 %v7838
      %v7987 = vunpack.c.l.b16 %v7839
      %v7988 = vpack.c.b16 %v7981, %v7980
      %v7989 = vpack.c.b16 %v7983, %v7982
      %v7990 = vpack.c.b16 %v7985, %v7984
      %v7991 = vpack.c.b16 %v7987, %v7986
      %v7997 = vsel %vm336, %v7851, 0
      %v8000 = vsel %vm336, %v7859, 0
      %v8003 = vsel %vm336, %v7867, 0
      %v8006 = vsel %vm336, %v7875, 0
      %v8009 = vsel %vm336, %v7883, 0
      %v8012 = vsel %vm336, %v7891, 0
      %v8015 = vsel %vm336, %v7899, 0
      %v8018 = vsel %vm336, %v7907, 0
      %v8021 = vsel %vm336, %v7915, 0
      %v8024 = vsel %vm336, %v7923, 0
      %v8027 = vsel %vm336, %v7931, 0
      %v8030 = vsel %vm336, %v7939, 0
      %v8033 = vsel %vm336, %v7947, 0
      %v8036 = vsel %vm336, %v7955, 0
      %v8039 = vsel %vm336, %v7963, 0
      %v8042 = vsel %vm336, %v7971, 0
      %8044 = vmatprep.subr.bf16.mxu0 0
      %8045 = vmatpush1.bf16.msra.mxu0 %v7988
      %8046 = vmatprep.subr.bf16.mxu0 0
      %8047 = vmatpush1.bf16.msra.mxu0 %v7989
      %8048 = vmatprep.subr.bf16.mxu0 0
      %8049 = vmatpush1.bf16.msra.mxu0 %v7990
      %8050 = vmatprep.subr.bf16.mxu0 0
      %8051 = vmatpush1.bf16.msra.mxu0 %v7991
      %8052 = vmatprep.subr.bf16.mxu0 0
      %8053 = vmatpush1.bf16.msra.mxu0 0
      %8054 = vmatprep.subr.bf16.mxu0 0
      %8055 = vmatpush1.bf16.msra.mxu0 0
      %8056 = vmatprep.subr.bf16.mxu0 0
      %8057 = vmatpush1.bf16.msra.mxu0 0
      %8058 = vmatprep.subr.bf16.mxu0 0
      %8059 = vmatpush1.bf16.msra.mxu0 0
      %8060 = vmatprep.subr.bf16.mxu0 0
      %8061 = vmatpush1.bf16.msra.mxu0 0
      %8062 = vmatprep.subr.bf16.mxu0 0
      %8063 = vmatpush1.bf16.msra.mxu0 0
      %8064 = vmatprep.subr.bf16.mxu0 0
      %8065 = vmatpush1.bf16.msra.mxu0 0
      %8066 = vmatprep.subr.bf16.mxu0 0
      %8067 = vmatpush1.bf16.msra.mxu0 0
      %8068 = vmatprep.subr.bf16.mxu0 0
      %8069 = vmatpush1.bf16.msra.mxu0 0
      %8070 = vmatprep.subr.bf16.mxu0 0
      %8071 = vmatpush1.bf16.msra.mxu0 0
      %8072 = vmatprep.subr.bf16.mxu0 0
      %8073 = vmatpush1.bf16.msra.mxu0 0
      %8074 = vmatprep.subr.bf16.mxu0 0
      %8075 = vmatpush1.bf16.msra.mxu0 0
      %8076 = vmatprep.mubr.bf16.mxu0 0
      %8077 = vmatmul.mubr.bf16.gmra.mrb[0].mxu0 %v7997
      %v8078 = vpop.f32.mrb[0].mxu0
      %v8079 = vadd.f32 0.0, %v8078
      %v8080 = vpop.f32.mrb[0].mxu0
      %v8081 = vpop.f32.mrb[0].mxu0
      %v8082 = vadd.f32 0.0, %v8081
      %v8083 = vpop.f32.mrb[0].mxu0
      %8084 = vmatprep.mubr.bf16.mxu0 0
      %8085 = vmatmul.mubr.bf16.gmra.mrb[0].mxu0 %v8000
      %v8086 = vpop.f32.mrb[0].mxu0
      %v8087 = vadd.f32 0.0, %v8086
      %v8088 = vpop.f32.mrb[0].mxu0
      %v8089 = vpop.f32.mrb[0].mxu0
      %v8090 = vadd.f32 0.0, %v8089
      %v8091 = vpop.f32.mrb[0].mxu0
      %8092 = vmatprep.mubr.bf16.mxu0 0
      %8093 = vmatmul.mubr.bf16.gmra.mrb[0].mxu0 %v8003
      %v8094 = vpop.f32.mrb[0].mxu0
      %v8095 = vadd.f32 0.0, %v8094
      %v8096 = vpop.f32.mrb[0].mxu0
      %v8097 = vpop.f32.mrb[0].mxu0
      %v8098 = vadd.f32 0.0, %v8097
      %v8099 = vpop.f32.mrb[0].mxu0
      %8100 = vmatprep.mubr.bf16.mxu0 0
      %8101 = vmatmul.mubr.bf16.gmra.mrb[0].mxu0 %v8006
      %v8102 = vpop.f32.mrb[0].mxu0
      %v8103 = vadd.f32 0.0, %v8102
      %v8104 = vpop.f32.mrb[0].mxu0
      %v8105 = vpop.f32.mrb[0].mxu0
      %v8106 = vadd.f32 0.0, %v8105
      %v8107 = vpop.f32.mrb[0].mxu0
      %8108 = vmatprep.mubr.bf16.mxu0 0
      %8109 = vmatmul.mubr.bf16.gmra.mrb[0].mxu0 %v8009
      %v8110 = vpop.f32.mrb[0].mxu0
      %v8111 = vadd.f32 0.0, %v8110
      %v8112 = vpop.f32.mrb[0].mxu0
      %v8113 = vpop.f32.mrb[0].mxu0
      %v8114 = vadd.f32 0.0, %v8113
      %v8115 = vpop.f32.mrb[0].mxu0
      %8116 = vmatprep.mubr.bf16.mxu0 0
      %8117 = vmatmul.mubr.bf16.gmra.mrb[0].mxu0 %v8012
      %v8118 = vpop.f32.mrb[0].mxu0
      %v8119 = vadd.f32 0.0, %v8118
      %v8120 = vpop.f32.mrb[0].mxu0
      %v8121 = vpop.f32.mrb[0].mxu0
      %v8122 = vadd.f32 0.0, %v8121
      %v8123 = vpop.f32.mrb[0].mxu0
      %8124 = vmatprep.mubr.bf16.mxu0 0
      %8125 = vmatmul.mubr.bf16.gmra.mrb[0].mxu0 %v8015
      %v8126 = vpop.f32.mrb[0].mxu0
      %v8127 = vadd.f32 0.0, %v8126
      %v8128 = vpop.f32.mrb[0].mxu0
      %v8129 = vpop.f32.mrb[0].mxu0
      %v8130 = vadd.f32 0.0, %v8129
      %v8131 = vpop.f32.mrb[0].mxu0
      %8132 = vmatprep.mubr.bf16.mxu0 0
      %8133 = vmatmul.mubr.bf16.gmra.mrb[0].mxu0 %v8018
      %v8134 = vpop.f32.mrb[0].mxu0
      %v8135 = vadd.f32 0.0, %v8134
      %v8136 = vpop.f32.mrb[0].mxu0
      %v8137 = vpop.f32.mrb[0].mxu0
      %v8138 = vadd.f32 0.0, %v8137
      %v8139 = vpop.f32.mrb[0].mxu0
      %8140 = vmatprep.mubr.bf16.mxu0 0
      %8141 = vmatmul.mubr.bf16.gmra.mrb[0].mxu0 %v8021
      %v8142 = vpop.f32.mrb[0].mxu0
      %v8143 = vadd.f32 0.0, %v8142
      %v8144 = vpop.f32.mrb[0].mxu0
      %v8145 = vpop.f32.mrb[0].mxu0
      %v8146 = vadd.f32 0.0, %v8145
      %v8147 = vpop.f32.mrb[0].mxu0
      %8148 = vmatprep.mubr.bf16.mxu0 0
      %8149 = vmatmul.mubr.bf16.gmra.mrb[0].mxu0 %v8024
      %v8150 = vpop.f32.mrb[0].mxu0
      %v8151 = vadd.f32 0.0, %v8150
      %v8152 = vpop.f32.mrb[0].mxu0
      %v8153 = vpop.f32.mrb[0].mxu0
      %v8154 = vadd.f32 0.0, %v8153
      %v8155 = vpop.f32.mrb[0].mxu0
      %8156 = vmatprep.mubr.bf16.mxu0 0
      %8157 = vmatmul.mubr.bf16.gmra.mrb[0].mxu0 %v8027
      %v8158 = vpop.f32.mrb[0].mxu0
      %v8159 = vadd.f32 0.0, %v8158
      %v8160 = vpop.f32.mrb[0].mxu0
      %v8161 = vpop.f32.mrb[0].mxu0
      %v8162 = vadd.f32 0.0, %v8161
      %v8163 = vpop.f32.mrb[0].mxu0
      %8164 = vmatprep.mubr.bf16.mxu0 0
      %8165 = vmatmul.mubr.bf16.gmra.mrb[0].mxu0 %v8030
      %v8166 = vpop.f32.mrb[0].mxu0
      %v8167 = vadd.f32 0.0, %v8166
      %v8168 = vpop.f32.mrb[0].mxu0
      %v8169 = vpop.f32.mrb[0].mxu0
      %v8170 = vadd.f32 0.0, %v8169
      %v8171 = vpop.f32.mrb[0].mxu0
      %8172 = vmatprep.mubr.bf16.mxu0 0
      %8173 = vmatmul.mubr.bf16.gmra.mrb[0].mxu0 %v8033
      %v8174 = vpop.f32.mrb[0].mxu0
      %v8175 = vadd.f32 0.0, %v8174
      %v8176 = vpop.f32.mrb[0].mxu0
      %v8177 = vpop.f32.mrb[0].mxu0
      %v8178 = vadd.f32 0.0, %v8177
      %v8179 = vpop.f32.mrb[0].mxu0
      %8180 = vmatprep.mubr.bf16.mxu0 0
      %8181 = vmatmul.mubr.bf16.gmra.mrb[0].mxu0 %v8036
      %v8182 = vpop.f32.mrb[0].mxu0
      %v8183 = vadd.f32 0.0, %v8182
      %v8184 = vpop.f32.mrb[0].mxu0
      %v8185 = vpop.f32.mrb[0].mxu0
      %v8186 = vadd.f32 0.0, %v8185
      %v8187 = vpop.f32.mrb[0].mxu0
      %8188 = vmatprep.mubr.bf16.mxu0 0
      %8189 = vmatmul.mubr.bf16.gmra.mrb[0].mxu0 %v8039
      %v8190 = vpop.f32.mrb[0].mxu0
      %v8191 = vadd.f32 0.0, %v8190
      %v8192 = vpop.f32.mrb[0].mxu0
      %v8193 = vpop.f32.mrb[0].mxu0
      %v8194 = vadd.f32 0.0, %v8193
      %v8195 = vpop.f32.mrb[0].mxu0
      %8196 = vmatprep.mubr.bf16.mxu0 0
      %8197 = vmatmul.mubr.bf16.gmra.mrb[0].mxu0 %v8042
      %v8198 = vpop.f32.mrb[0].mxu0
      %v8199 = vadd.f32 0.0, %v8198
      %v8200 = vpop.f32.mrb[0].mxu0
      %v8201 = vpop.f32.mrb[0].mxu0
      %v8202 = vadd.f32 0.0, %v8201
      %v8203 = vpop.f32.mrb[0].mxu0
      %8204 = vdwg.mxu0
      %v8205 = vadd.f32 %v7765, %v8079
      %v8206 = vadd.f32 %v7766, %v8082
      %v8207 = vadd.f32 %v7767, %v8087
      %v8208 = vadd.f32 %v7768, %v8090
      %v8209 = vadd.f32 %v7769, %v8095
      %v8210 = vadd.f32 %v7770, %v8098
      %v8211 = vadd.f32 %v7771, %v8103
      %v8212 = vadd.f32 %v7772, %v8106
      %v8213 = vadd.f32 %v7773, %v8111
      %v8214 = vadd.f32 %v7774, %v8114
      %v8215 = vadd.f32 %v7775, %v8119
      %v8216 = vadd.f32 %v7776, %v8122
      %v8217 = vadd.f32 %v7777, %v8127
      %v8218 = vadd.f32 %v7778, %v8130
      %v8219 = vadd.f32 %v7779, %v8135
      %v8220 = vadd.f32 %v7780, %v8138
      %v8221 = vadd.f32 %v7781, %v8143
      %v8222 = vadd.f32 %v7782, %v8146
      %v8223 = vadd.f32 %v7783, %v8151
      %v8224 = vadd.f32 %v7784, %v8154
      %v8225 = vadd.f32 %v7785, %v8159
      %v8226 = vadd.f32 %v7786, %v8162
      %v8227 = vadd.f32 %v7787, %v8167
      %v8228 = vadd.f32 %v7788, %v8170
      %v8229 = vadd.f32 %v7789, %v8175
      %v8230 = vadd.f32 %v7790, %v8178
      %v8231 = vadd.f32 %v7791, %v8183
      %v8232 = vadd.f32 %v7792, %v8186
      %v8233 = vadd.f32 %v7793, %v8191
      %v8234 = vadd.f32 %v7794, %v8194
      %v8235 = vadd.f32 %v7795, %v8199
      %v8236 = vadd.f32 %v7796, %v8202
      %v8237 = vld [vmem:[%s4] sm:$0x1]
      %v8239 = vlaneseq
      %v8240 = vshrl.u32 %v8239, 7
      %v8241 = vsub.s32 0, %v8240
      %v8242 = vrot.slane %v8237, %v8241
      %v8244 = vadd.f32 %v8205, %v8242
      %v8245 = vadd.f32 %v8206, %v8242
      %v8246 = vadd.f32 %v8207, %v8242
      %v8247 = vadd.f32 %v8208, %v8242
      %v8248 = vadd.f32 %v8209, %v8242
      %v8249 = vadd.f32 %v8210, %v8242
      %v8250 = vadd.f32 %v8211, %v8242
      %v8251 = vadd.f32 %v8212, %v8242
      %v8252 = vadd.f32 %v8213, %v8242
      %v8253 = vadd.f32 %v8214, %v8242
      %v8254 = vadd.f32 %v8215, %v8242
      %v8255 = vadd.f32 %v8216, %v8242
      %v8256 = vadd.f32 %v8217, %v8242
      %v8257 = vadd.f32 %v8218, %v8242
      %v8258 = vadd.f32 %v8219, %v8242
      %v8259 = vadd.f32 %v8220, %v8242
      %v8260 = vadd.f32 %v8221, %v8242
      %v8261 = vadd.f32 %v8222, %v8242
      %v8262 = vadd.f32 %v8223, %v8242
      %v8263 = vadd.f32 %v8224, %v8242
      %v8264 = vadd.f32 %v8225, %v8242
      %v8265 = vadd.f32 %v8226, %v8242
      %v8266 = vadd.f32 %v8227, %v8242
      %v8267 = vadd.f32 %v8228, %v8242
      %v8268 = vadd.f32 %v8229, %v8242
      %v8269 = vadd.f32 %v8230, %v8242
      %v8270 = vadd.f32 %v8231, %v8242
      %v8271 = vadd.f32 %v8232, %v8242
      %v8272 = vadd.f32 %v8233, %v8242
      %v8273 = vadd.f32 %v8234, %v8242
      %v8274 = vadd.f32 %v8235, %v8242
      %v8275 = vadd.f32 %v8236, %v8242
      %v8276 = vsel %vm336, %v8244, 0.0
      %v8277 = vsel %vm336, %v8245, 0.0
      %v8278 = vadd.f32 %v8276, %v8277
      %v8279 = vsel %vm336, %v8246, 0.0
      %v8280 = vadd.f32 %v8278, %v8279
      %v8281 = vsel %vm336, %v8247, 0.0
      %v8282 = vadd.f32 %v8280, %v8281
      %v8283 = vsel %vm336, %v8248, 0.0
      %v8284 = vadd.f32 %v8282, %v8283
      %v8285 = vsel %vm336, %v8249, 0.0
      %v8286 = vadd.f32 %v8284, %v8285
      %v8287 = vsel %vm336, %v8250, 0.0
      %v8288 = vadd.f32 %v8286, %v8287
      %v8289 = vsel %vm336, %v8251, 0.0
      %v8290 = vadd.f32 %v8288, %v8289
      %v8291 = vsel %vm336, %v8252, 0.0
      %v8292 = vadd.f32 %v8290, %v8291
      %v8293 = vsel %vm336, %v8253, 0.0
      %v8294 = vadd.f32 %v8292, %v8293
      %v8295 = vsel %vm336, %v8254, 0.0
      %v8296 = vadd.f32 %v8294, %v8295
      %v8297 = vsel %vm336, %v8255, 0.0
      %v8298 = vadd.f32 %v8296, %v8297
      %v8299 = vsel %vm336, %v8256, 0.0
      %v8300 = vadd.f32 %v8298, %v8299
      %v8301 = vsel %vm336, %v8257, 0.0
      %v8302 = vadd.f32 %v8300, %v8301
      %v8303 = vsel %vm336, %v8258, 0.0
      %v8304 = vadd.f32 %v8302, %v8303
      %v8305 = vsel %vm336, %v8259, 0.0
      %v8306 = vadd.f32 %v8304, %v8305
      %v8307 = vsel %vm336, %v8260, 0.0
      %v8308 = vadd.f32 %v8306, %v8307
      %v8309 = vsel %vm336, %v8261, 0.0
      %v8310 = vadd.f32 %v8308, %v8309
      %v8311 = vsel %vm336, %v8262, 0.0
      %v8312 = vadd.f32 %v8310, %v8311
      %v8313 = vsel %vm336, %v8263, 0.0
      %v8314 = vadd.f32 %v8312, %v8313
      %v8315 = vsel %vm336, %v8264, 0.0
      %v8316 = vadd.f32 %v8314, %v8315
      %v8317 = vsel %vm336, %v8265, 0.0
      %v8318 = vadd.f32 %v8316, %v8317
      %v8319 = vsel %vm336, %v8266, 0.0
      %v8320 = vadd.f32 %v8318, %v8319
      %v8321 = vsel %vm336, %v8267, 0.0
      %v8322 = vadd.f32 %v8320, %v8321
      %v8323 = vsel %vm336, %v8268, 0.0
      %v8324 = vadd.f32 %v8322, %v8323
      %v8325 = vsel %vm336, %v8269, 0.0
      %v8326 = vadd.f32 %v8324, %v8325
      %v8327 = vsel %vm336, %v8270, 0.0
      %v8328 = vadd.f32 %v8326, %v8327
      %v8329 = vsel %vm336, %v8271, 0.0
      %v8330 = vadd.f32 %v8328, %v8329
      %v8331 = vsel %vm336, %v8272, 0.0
      %v8332 = vadd.f32 %v8330, %v8331
      %v8333 = vsel %vm336, %v8273, 0.0
      %v8334 = vadd.f32 %v8332, %v8333
      %v8335 = vsel %vm336, %v8274, 0.0
      %v8336 = vadd.f32 %v8334, %v8335
      %v8337 = vsel %vm336, %v8275, 0.0
      %v8338 = vadd.f32 %v8336, %v8337
      %v8339 = vrot.slane %v8338, 4
      %v8340 = vadd.f32 %v8338, %v8339
      %v8341 = vrot.slane %v8340, 2
      %v8342 = vadd.f32 %v8340, %v8341
      %v8343 = vrot.slane %v8342, 1
      %v8344 = vadd.f32 %v8342, %v8343
      %v8345 = vrcp.pop 256.0
      %v8346 = vmul.f32 %v8344, %v8345
      %v8347 = vld [vmem:[%s5] sm:$0xff]
      %v8348 = vld [vmem:[%s5 + $0x8] sm:$0xff]
      %v8349 = vld [vmem:[%s5 + $0x10] sm:$0xff]
      %v8350 = vld [vmem:[%s5 + $0x18] sm:$0xff]
      %v8351 = vld [vmem:[%s5 + $0x20] sm:$0xff]
      %v8352 = vld [vmem:[%s5 + $0x28] sm:$0xff]
      %v8353 = vld [vmem:[%s5 + $0x30] sm:$0xff]
      %v8354 = vld [vmem:[%s5 + $0x38] sm:$0xff]
      %v8355 = vld [vmem:[%s6] sm:$0x1]
      %v8357 = vsel %vm336, %v8346, 0
      %8359 = vmatprep.subr.mxu0 0.0
      %8360 = vmatpush1.msra.mxu0 %v8347
      %8361 = vmatprep.subr.mxu0 0.0
      %8362 = vmatpush1.msra.mxu0 %v8348
      %8363 = vmatprep.subr.mxu0 0.0
      %8364 = vmatpush1.msra.mxu0 %v8349
      %8365 = vmatprep.subr.mxu0 0.0
      %8366 = vmatpush1.msra.mxu0 %v8350
      %8367 = vmatprep.subr.mxu0 0.0
      %8368 = vmatpush1.msra.mxu0 %v8351
      %8369 = vmatprep.subr.mxu0 0.0
      %8370 = vmatpush1.msra.mxu0 %v8352
      %8371 = vmatprep.subr.mxu0 0.0
      %8372 = vmatpush1.msra.mxu0 %v8353
      %8373 = vmatprep.subr.mxu0 0.0
      %8374 = vmatpush1.msra.mxu0 %v8354
      %8375 = vmatprep.subr.mxu0 0.0
      %8376 = vmatpush1.msra.mxu0 0.0
      %8377 = vmatprep.subr.mxu0 0.0
      %8378 = vmatpush1.msra.mxu0 0.0
      %8379 = vmatprep.subr.mxu0 0.0
      %8380 = vmatpush1.msra.mxu0 0.0
      %8381 = vmatprep.subr.mxu0 0.0
      %8382 = vmatpush1.msra.mxu0 0.0
      %8383 = vmatprep.subr.mxu0 0.0
      %8384 = vmatpush1.msra.mxu0 0.0
      %8385 = vmatprep.subr.mxu0 0.0
      %8386 = vmatpush1.msra.mxu0 0.0
      %8387 = vmatprep.subr.mxu0 0.0
      %8388 = vmatpush1.msra.mxu0 0.0
      %8389 = vmatprep.subr.mxu0 0.0
      %8390 = vmatpush1.msra.mxu0 0.0
      %8391 = vmatprep.subr.mxu0 0.0
      %8392 = vmatpush1.msra.mxu0 0.0
      %8393 = vmatprep.subr.mxu0 0.0
      %8394 = vmatpush1.msra.mxu0 0.0
      %8395 = vmatprep.subr.mxu0 0.0
      %8396 = vmatpush1.msra.mxu0 0.0
      %8397 = vmatprep.subr.mxu0 0.0
      %8398 = vmatpush1.msra.mxu0 0.0
      %8399 = vmatprep.subr.mxu0 0.0
      %8400 = vmatpush1.msra.mxu0 0.0
      %8401 = vmatprep.subr.mxu0 0.0
      %8402 = vmatpush1.msra.mxu0 0.0
      %8403 = vmatprep.subr.mxu0 0.0
      %8404 = vmatpush1.msra.mxu0 0.0
      %8405 = vmatprep.subr.mxu0 0.0
      %8406 = vmatpush1.msra.mxu0 0.0
      %8407 = vmatprep.subr.mxu0 0.0
      %8408 = vmatpush1.msra.mxu0 0.0
      %8409 = vmatprep.subr.mxu0 0.0
      %8410 = vmatpush1.msra.mxu0 0.0
      %8411 = vmatprep.subr.mxu0 0.0
      %8412 = vmatpush1.msra.mxu0 0.0
      %8413 = vmatprep.subr.mxu0 0.0
      %8414 = vmatpush1.msra.mxu0 0.0
      %8415 = vmatprep.subr.mxu0 0.0
      %8416 = vmatpush1.msra.mxu0 0.0
      %8417 = vmatprep.subr.mxu0 0.0
      %8418 = vmatpush1.msra.mxu0 0.0
      %8419 = vmatprep.subr.mxu0 0.0
      %8420 = vmatpush1.msra.mxu0 0.0
      %8421 = vmatprep.subr.mxu0 0.0
      %8422 = vmatpush1.msra.mxu0 0.0
      %8423 = vmatprep.mubr.f32.mxu0 0.0
      %8424 = vmatmul.mubr.f32.gmra.mrb[0].mxu0 %v8357
      %v8425 = vpop.f32.mrb[0].mxu0
      %v8426 = vadd.f32 %v8355, %v8425
      %v8427 = vpop.f32.mrb[0].mxu0
      %8428 = vdwg.mxu0
      %v8429 = vmax.f32 %v8426, 0.0
      %v8430 = vld [vmem:[%s7] sm:$0xf]
      %v8431 = vld [vmem:[%s8] sm:$0x1]
      %vm8432 = vcmask 31744
      %v8434 = vsel %vm8432, %v8429, 0
      %vm8436 = vcmask 1043456
      %v8438 = vsel %vm8436, %v8430, 0
      %8440 = vmatprep.subr.mxu0 0.0
      %8441 = vmatpush1.msra.mxu0 %v8438
      %8442 = vmatprep.subr.mxu0 0.0
      %8443 = vmatpush1.msra.mxu0 0.0
      %8444 = vmatprep.subr.mxu0 0.0
      %8445 = vmatpush1.msra.mxu0 0.0
      %8446 = vmatprep.subr.mxu0 0.0
      %8447 = vmatpush1.msra.mxu0 0.0
      %8448 = vmatprep.subr.mxu0 0.0
      %8449 = vmatpush1.msra.mxu0 0.0
      %8450 = vmatprep.subr.mxu0 0.0
      %8451 = vmatpush1.msra.mxu0 0.0
      %8452 = vmatprep.subr.mxu0 0.0
      %8453 = vmatpush1.msra.mxu0 0.0
      %8454 = vmatprep.subr.mxu0 0.0
      %8455 = vmatpush1.msra.mxu0 0.0
      %8456 = vmatprep.subr.mxu0 0.0
      %8457 = vmatpush1.msra.mxu0 0.0
      %8458 = vmatprep.subr.mxu0 0.0
      %8459 = vmatpush1.msra.mxu0 0.0
      %8460 = vmatprep.subr.mxu0 0.0
      %8461 = vmatpush1.msra.mxu0 0.0
      %8462 = vmatprep.subr.mxu0 0.0
      %8463 = vmatpush1.msra.mxu0 0.0
      %8464 = vmatprep.subr.mxu0 0.0
      %8465 = vmatpush1.msra.mxu0 0.0
      %8466 = vmatprep.subr.mxu0 0.0
      %8467 = vmatpush1.msra.mxu0 0.0
      %8468 = vmatprep.subr.mxu0 0.0
      %8469 = vmatpush1.msra.mxu0 0.0
      %8470 = vmatprep.subr.mxu0 0.0
      %8471 = vmatpush1.msra.mxu0 0.0
      %8472 = vmatprep.subr.mxu0 0.0
      %8473 = vmatpush1.msra.mxu0 0.0
      %8474 = vmatprep.subr.mxu0 0.0
      %8475 = vmatpush1.msra.mxu0 0.0
      %8476 = vmatprep.subr.mxu0 0.0
      %8477 = vmatpush1.msra.mxu0 0.0
      %8478 = vmatprep.subr.mxu0 0.0
      %8479 = vmatpush1.msra.mxu0 0.0
      %8480 = vmatprep.subr.mxu0 0.0
      %8481 = vmatpush1.msra.mxu0 0.0
      %8482 = vmatprep.subr.mxu0 0.0
      %8483 = vmatpush1.msra.mxu0 0.0
      %8484 = vmatprep.subr.mxu0 0.0
      %8485 = vmatpush1.msra.mxu0 0.0
      %8486 = vmatprep.subr.mxu0 0.0
      %8487 = vmatpush1.msra.mxu0 0.0
      %8488 = vmatprep.subr.mxu0 0.0
      %8489 = vmatpush1.msra.mxu0 0.0
      %8490 = vmatprep.subr.mxu0 0.0
      %8491 = vmatpush1.msra.mxu0 0.0
      %8492 = vmatprep.subr.mxu0 0.0
      %8493 = vmatpush1.msra.mxu0 0.0
      %8494 = vmatprep.subr.mxu0 0.0
      %8495 = vmatpush1.msra.mxu0 0.0
      %8496 = vmatprep.subr.mxu0 0.0
      %8497 = vmatpush1.msra.mxu0 0.0
      %8498 = vmatprep.subr.mxu0 0.0
      %8499 = vmatpush1.msra.mxu0 0.0
      %8500 = vmatprep.subr.mxu0 0.0
      %8501 = vmatpush1.msra.mxu0 0.0
      %8502 = vmatprep.subr.mxu0 0.0
      %8503 = vmatpush1.msra.mxu0 0.0
      %8504 = vmatprep.mubr.f32.mxu0 0.0
      %8505 = vmatmul.mubr.f32.gmra.mrb[0].mxu0 %v8434
      %v8506 = vpop.f32.mrb[0].mxu0
      %v8507 = vadd.f32 %v8431, %v8506
      %v8508 = vpop.f32.mrb[0].mxu0
      %8509 = vdwg.mxu0
      %v8510 = vxor.u32 %v8507, 2147483648
      %v8511 = vmul.f32 %v8510, 1.442695
      %v8512 = vpow.pop %v8511
      %v8513 = vadd.f32 %v8512, 1.0
      %v8514 = vrcp.pop %v8513
      %v8515 = vmul.f32 1.0, %v8514
      %v8516 = vlaneseq
      %v8517 = vshrl.u32 %v8516, 7
      %v8518 = vsub.s32 0, %v8517
      %v8519 = vrot.slane %v8515, %v8518
      %v8520 = vmul.f32 %v8244, %v8519
      %v8521 = vmul.f32 %v8245, %v8519
      %v8522 = vmul.f32 %v8246, %v8519
      %v8523 = vmul.f32 %v8247, %v8519
      %v8524 = vmul.f32 %v8248, %v8519
      %v8525 = vmul.f32 %v8249, %v8519
      %v8526 = vmul.f32 %v8250, %v8519
      %v8527 = vmul.f32 %v8251, %v8519
      %v8528 = vmul.f32 %v8252, %v8519
      %v8529 = vmul.f32 %v8253, %v8519
      %v8530 = vmul.f32 %v8254, %v8519
      %v8531 = vmul.f32 %v8255, %v8519
      %v8532 = vmul.f32 %v8256, %v8519
      %v8533 = vmul.f32 %v8257, %v8519
      %v8534 = vmul.f32 %v8258, %v8519
      %v8535 = vmul.f32 %v8259, %v8519
      %v8536 = vmul.f32 %v8260, %v8519
      %v8537 = vmul.f32 %v8261, %v8519
      %v8538 = vmul.f32 %v8262, %v8519
      %v8539 = vmul.f32 %v8263, %v8519
      %v8540 = vmul.f32 %v8264, %v8519
      %v8541 = vmul.f32 %v8265, %v8519
      %v8542 = vmul.f32 %v8266, %v8519
      %v8543 = vmul.f32 %v8267, %v8519
      %v8544 = vmul.f32 %v8268, %v8519
      %v8545 = vmul.f32 %v8269, %v8519
      %v8546 = vmul.f32 %v8270, %v8519
      %v8547 = vmul.f32 %v8271, %v8519
      %v8548 = vmul.f32 %v8272, %v8519
      %v8549 = vmul.f32 %v8273, %v8519
      %v8550 = vmul.f32 %v8274, %v8519
      %v8551 = vmul.f32 %v8275, %v8519
      %v8552 = vadd.f32 %v822, %v8520
      %v8553 = vadd.f32 %v823, %v8521
      %v8554 = vadd.f32 %v824, %v8522
      %v8555 = vadd.f32 %v825, %v8523
      %v8556 = vadd.f32 %v826, %v8524
      %v8557 = vadd.f32 %v827, %v8525
      %v8558 = vadd.f32 %v828, %v8526
      %v8559 = vadd.f32 %v829, %v8527
      %v8560 = vadd.f32 %v830, %v8528
      %v8561 = vadd.f32 %v831, %v8529
      %v8562 = vadd.f32 %v832, %v8530
      %v8563 = vadd.f32 %v833, %v8531
      %v8564 = vadd.f32 %v834, %v8532
      %v8565 = vadd.f32 %v835, %v8533
      %v8566 = vadd.f32 %v836, %v8534
      %v8567 = vadd.f32 %v837, %v8535
      %v8568 = vadd.f32 %v838, %v8536
      %v8569 = vadd.f32 %v839, %v8537
      %v8570 = vadd.f32 %v840, %v8538
      %v8571 = vadd.f32 %v841, %v8539
      %v8572 = vadd.f32 %v842, %v8540
      %v8573 = vadd.f32 %v843, %v8541
      %v8574 = vadd.f32 %v844, %v8542
      %v8575 = vadd.f32 %v845, %v8543
      %v8576 = vadd.f32 %v846, %v8544
      %v8577 = vadd.f32 %v847, %v8545
      %v8578 = vadd.f32 %v848, %v8546
      %v8579 = vadd.f32 %v849, %v8547
      %v8580 = vadd.f32 %v850, %v8548
      %v8581 = vadd.f32 %v851, %v8549
      %v8582 = vadd.f32 %v852, %v8550
      %v8583 = vadd.f32 %v853, %v8551
      %8584 = vst.msk [vmem:[%s332] sm:$0xff] %vm336, %v8552
      %8585 = vst.msk [vmem:[%s332 + $0x8] sm:$0xff] %vm336, %v8553
      %8586 = vst.msk [vmem:[%s332 + $0x10] sm:$0xff] %vm336, %v8554
      %8587 = vst.msk [vmem:[%s332 + $0x18] sm:$0xff] %vm336, %v8555
      %8588 = vst.msk [vmem:[%s332 + $0x20] sm:$0xff] %vm336, %v8556
      %8589 = vst.msk [vmem:[%s332 + $0x28] sm:$0xff] %vm336, %v8557
      %8590 = vst.msk [vmem:[%s332 + $0x30] sm:$0xff] %vm336, %v8558
      %8591 = vst.msk [vmem:[%s332 + $0x38] sm:$0xff] %vm336, %v8559
      %8592 = vst.msk [vmem:[%s332 + $0x40] sm:$0xff] %vm336, %v8560
      %8593 = vst.msk [vmem:[%s332 + $0x48] sm:$0xff] %vm336, %v8561
      %8594 = vst.msk [vmem:[%s332 + $0x50] sm:$0xff] %vm336, %v8562
      %8595 = vst.msk [vmem:[%s332 + $0x58] sm:$0xff] %vm336, %v8563
      %8596 = vst.msk [vmem:[%s332 + $0x60] sm:$0xff] %vm336, %v8564
      %8597 = vst.msk [vmem:[%s332 + $0x68] sm:$0xff] %vm336, %v8565
      %8598 = vst.msk [vmem:[%s332 + $0x70] sm:$0xff] %vm336, %v8566
      %8599 = vst.msk [vmem:[%s332 + $0x78] sm:$0xff] %vm336, %v8567
      %8600 = vst.msk [vmem:[%s332 + $0x80] sm:$0xff] %vm336, %v8568
      %8601 = vst.msk [vmem:[%s332 + $0x88] sm:$0xff] %vm336, %v8569
      %8602 = vst.msk [vmem:[%s332 + $0x90] sm:$0xff] %vm336, %v8570
      %8603 = vst.msk [vmem:[%s332 + $0x98] sm:$0xff] %vm336, %v8571
      %8604 = vst.msk [vmem:[%s332 + $0xa0] sm:$0xff] %vm336, %v8572
      %8605 = vst.msk [vmem:[%s332 + $0xa8] sm:$0xff] %vm336, %v8573
      %8606 = vst.msk [vmem:[%s332 + $0xb0] sm:$0xff] %vm336, %v8574
      %8607 = vst.msk [vmem:[%s332 + $0xb8] sm:$0xff] %vm336, %v8575
      %8608 = vst.msk [vmem:[%s332 + $0xc0] sm:$0xff] %vm336, %v8576
      %8609 = vst.msk [vmem:[%s332 + $0xc8] sm:$0xff] %vm336, %v8577
      %8610 = vst.msk [vmem:[%s332 + $0xd0] sm:$0xff] %vm336, %v8578
      %8611 = vst.msk [vmem:[%s332 + $0xd8] sm:$0xff] %vm336, %v8579
      %8612 = vst.msk [vmem:[%s332 + $0xe0] sm:$0xff] %vm336, %v8580
      %8613 = vst.msk [vmem:[%s332 + $0xe8] sm:$0xff] %vm336, %v8581
      %8614 = vst.msk [vmem:[%s332 + $0xf0] sm:$0xff] %vm336, %v8582
      %8615 = vst.msk [vmem:[%s332 + $0xf8] sm:$0xff] %vm336, %v8583
      %p8616 = scmp.lt.s32.totalorder %s20, 1
      %s8617 = scalar_select %p8616, %s20, 1
      %s8618 = smul.addr %s8617, 32
      %s8619 = smul.addr %s8618, 8
      %s8620 = scalar_lea.vmem %s9, %s8619
      // Predicated region
      $region57: #{tpu_custom_call.1} parent=55 // pred_check
        %p8621 = pneg %p232
      $region58: #{tpu_custom_call.1} parent=55 // pred_check_branch
        %8623 = sbr.rel (%p8621) target = $region60
      $region59: #{tpu_custom_call.1} parent=55 // pred_region
        _
      $region60: #{tpu_custom_call.1} parent=55 // pred_fallthru
        _
    $region56: #{tpu_custom_call.1} parent=5 // pred_fallthru
      _
    %p8624 = scmp.le.s32.totalorder 2, %s15
    // Predicated region
    $region61: #{tpu_custom_call.1} parent=5 // pred_check
      %p8625 = pneg %p8624
    $region62: #{tpu_custom_call.1} parent=5 // pred_check_branch
      %8627 = sbr.rel (%p8625) target = $region64
    $region63: #{tpu_custom_call.1} parent=5 // pred_region
      %s8628 = ssub.s32 %s15, 2
      // Predicated region
      $region65: #{tpu_custom_call.1} parent=63 // pred_check
        %p8629 = pneg %p238
      $region66: #{tpu_custom_call.1} parent=63 // pred_check_branch
        %8631 = sbr.rel (%p8629) target = $region68
      $region67: #{tpu_custom_call.1} parent=63 // pred_region
        %p8632 = scmp.lt.s32.totalorder %s21, 1
        %s8633 = scalar_select %p8632, %s21, 1
        %s8634 = smul.addr %s8633, 32
        %s8635 = smul.addr %s8634, 8
        %s8636 = scalar_lea.vmem %s9, %s8635
      $region68: #{tpu_custom_call.1} parent=63 // pred_fallthru
        _
    $region64: #{tpu_custom_call.1} parent=5 // pred_fallthru
      _
  $region6: #{tpu_custom_call.1} parent=0 // loop_footer
    %s19 = sadd.s32 1, %s15
  $region7: #{tpu_custom_call.1} parent=0 // loop_footer_branch
    %14 = sbr.rel target = $region3
  $region8: #{tpu_custom_call.1} parent=0 // loop_exit
    _

</llo_original>
